<compile_context>
chip_gen: v7x
topology: tpu7x:2x2x1
jax: 0.10.0
libtpu: 0.0.40
codegen_flags: <defaults>
</compile_context>

<pallas_src>
import jax
import jax.numpy as jnp
from jax.experimental import pallas as pl
from jax.experimental.pallas import tpu as pltpu

HIDDEN = 256
LANE = 128
SUBLANE_BF16 = 16
DEFAULT_TK = 3584          # K tile: multiple of 128; 2 steps for K_pad = 7168
VMEM_LIMIT = 32 << 20      # safe on v5e/v6e (128 MiB phys) and v7x (64 MiB)


def _round_up(x, m):
    return (x + m - 1) // m * m


# --------------------------------------------------------------------------
# Kernels
# --------------------------------------------------------------------------
def _frogger_fused_kernel(x_ref, w1_ref, b1_ref, w2_ref, b2_ref, w3_ref,
                          b3_ref, out_ref, h1_acc):
    """Single-core path.  Grid axis 0 tiles the K = n_obs reduction of layer 1.

    Each step: (B, tk) @ (tk, 256) accumulated into an f32 VMEM scratch.
    Last step: bias + ReLU, then layers 2 and 3 and the lane-dense output
    store.
    """
    k = pl.program_id(0)

    @pl.when(k == 0)
    def _():
        h1_acc[...] = jnp.zeros_like(h1_acc)

    # bf16 x bf16 -> f32 accumulate on the MXU.
    h1_acc[...] += jnp.dot(x_ref[...], w1_ref[...],
                           preferred_element_type=jnp.float32)

    @pl.when(k == pl.num_programs(0) - 1)
    def _():
        h1 = jnp.maximum(h1_acc[...] + b1_ref[...], 0.0)
        h2 = jnp.dot(h1.astype(jnp.bfloat16), w2_ref[...],
                     preferred_element_type=jnp.float32)
        h2 = jnp.maximum(h2 + b2_ref[...], 0.0)
        y = jnp.dot(h2.astype(jnp.bfloat16), w3_ref[...],
                    preferred_element_type=jnp.float32)
        out_ref[...] = (y + b3_ref[...]).astype(out_ref.dtype)


def _frogger_layer1_partial_kernel(x_ref, w1_ref, part_ref, h1_acc):
    """Dual-core path, stage 1: each value of the leading ("parallel") grid
    axis owns half of the K reduction and produces its own partial h1."""
    k = pl.program_id(1)

    @pl.when(k == 0)
    def _():
        h1_acc[...] = jnp.zeros_like(h1_acc)

    h1_acc[...] += jnp.dot(x_ref[...], w1_ref[...],
                           preferred_element_type=jnp.float32)

    @pl.when(k == pl.num_programs(1) - 1)
    def _():
        part_ref[0] = h1_acc[...]


def _frogger_epilogue_kernel(part_ref, b1_ref, w2_ref, b2_ref, w3_ref, b3_ref,
                             out_ref):
    """Dual-core path, stage 2: combine the two K-partials, bias+ReLU, then
    layers 2 and 3 (tiny, fully VMEM resident)."""
    h1 = jnp.maximum(part_ref[0] + part_ref[1] + b1_ref[...], 0.0)
    h2 = jnp.dot(h1.astype(jnp.bfloat16), w2_ref[...],
                 preferred_element_type=jnp.float32)
    h2 = jnp.maximum(h2 + b2_ref[...], 0.0)
    y = jnp.dot(h2.astype(jnp.bfloat16), w3_ref[...],
                preferred_element_type=jnp.float32)
    out_ref[...] = (y + b3_ref[...]).astype(out_ref.dtype)


# --------------------------------------------------------------------------
# Wrapper
# --------------------------------------------------------------------------
def frogger_net(x, params, *, tk=DEFAULT_TK, split_k_across_cores=False):
    """FroggerNet forward.

    x:      (B_pad, K_pad) bfloat16 -- padded/cast ONCE by the observation
            producer via prepare_observations(); no per-call padding here.
    params: output of init_params() -- padded bf16 (in, out) weights and f32
            (1, out) biases.
    Returns (B_pad, N_pad) float32; slice [:batch, :n_actions] at the caller.

    split_k_across_cores=True targets v7x (2 TensorCores per chip): the
    dominant x+W1 stream is split across cores via a leading "parallel" grid
    axis; keep it False on single-core chips (v5e/v6e).
    """
    w1, b1, w2, b2, w3, b3 = (params["w1"], params["b1"], params["w2"],
                              params["b2"], params["w3"], params["b3"])
    B_pad, K_pad = x.shape
    N_pad = w3.shape[1]
    assert x.dtype == jnp.bfloat16, "prepare_observations() must be applied"
    assert w1.shape == (K_pad, HIDDEN), (w1.shape, x.shape)
    assert B_pad % 8 == 0 and K_pad % LANE == 0 and N_pad % LANE == 0
    assert K_pad % tk == 0, "tk must divide the padded feature dim"
    num_k = K_pad // tk

    compiler_params_seq = pltpu.CompilerParams(
        dimension_semantics=("arbitrary",),        # K is a reduction axis
        vmem_limit_bytes=VMEM_LIMIT)

    if not split_k_across_cores:
        return pl.pallas_call(
            _frogger_fused_kernel,
            out_shape=jax.ShapeDtypeStruct((B_pad, N_pad), jnp.float32),
            grid_spec=pltpu.PrefetchScalarGridSpec(
                num_scalar_prefetch=0,
                grid=(num_k,),
                in_specs=[
                    pl.BlockSpec((B_pad, tk), lambda k: (0, k)),       # x
                    pl.BlockSpec((tk, HIDDEN), lambda k: (k, 0)),      # W1
                    pl.BlockSpec((1, HIDDEN), lambda k: (0, 0)),       # b1
                    pl.BlockSpec((HIDDEN, HIDDEN), lambda k: (0, 0)),  # W2
                    pl.BlockSpec((1, HIDDEN), lambda k: (0, 0)),       # b2
                    pl.BlockSpec((HIDDEN, N_pad), lambda k: (0, 0)),   # W3
                    pl.BlockSpec((1, N_pad), lambda k: (0, 0)),        # b3
                ],
                out_specs=pl.BlockSpec((B_pad, N_pad), lambda k: (0, 0)),
                scratch_shapes=[pltpu.VMEM((B_pad, HIDDEN), jnp.float32)],
            ),
            compiler_params=compiler_params_seq,
        )(x, w1, b1, w2, b2, w3, b3)

    # ---- v7x dual-core path: split the K stream, NOT the batch (splitting
    # batch would duplicate the dominant W1 stream on both cores). ----
    assert num_k % 2 == 0, "need an even number of K chunks to split by core"
    nkh = num_k // 2

    partials = pl.pallas_call(
        _frogger_layer1_partial_kernel,
        out_shape=jax.ShapeDtypeStruct((2, B_pad, HIDDEN), jnp.float32),
        grid_spec=pltpu.PrefetchScalarGridSpec(
            num_scalar_prefetch=0,
            grid=(2, nkh),
            in_specs=[
                pl.BlockSpec((B_pad, tk), lambda c, k: (0, c * nkh + k)),
                pl.BlockSpec((tk, HIDDEN), lambda c, k: (c * nkh + k, 0)),
            ],
            out_specs=pl.BlockSpec((1, B_pad, HIDDEN), lambda c, k: (c, 0, 0)),
            scratch_shapes=[pltpu.VMEM((B_pad, HIDDEN), jnp.float32)],
        ),
        compiler_params=pltpu.CompilerParams(
            # core split is "parallel"; the K reduction axis stays "arbitrary"
            dimension_semantics=("parallel", "arbitrary"),
            vmem_limit_bytes=VMEM_LIMIT),
    )(x, w1)

    return pl.pallas_call(
        _frogger_epilogue_kernel,
        out_shape=jax.ShapeDtypeStruct((B_pad, N_pad), jnp.float32),
        compiler_params=pltpu.CompilerParams(vmem_limit_bytes=VMEM_LIMIT),
    )(partials, b1, w2, b2, w3, b3)


# --------------------------------------------------------------------------
# One-time data preparation (NOT per forward call)
# --------------------------------------------------------------------------
def prepare_observations(x, k_pad):
    """Pad features to k_pad, batch to a multiple of 16 (bf16 sublanes) and
    cast to bf16.  Do this once where observations are produced / stored
    (e.g. the replay buffer), not per forward call: the forward kernel is
    HBM-bound, and an extra per-call pad+cast pass roughly doubles its
    traffic."""
    B, K = x.shape
    b_pad = _round_up(max(B, 8), SUBLANE_BF16)
    out = jnp.zeros((b_pad, k_pad), jnp.bfloat16)
    return out.at[:B, :K].set(x.astype(jnp.bfloat16))


def init_params(key, n_observations, n_actions, *, tk=DEFAULT_TK):
    """Mirrors PyTorch nn.Linear default init (uniform +-1/sqrt(fan_in)).

    Weights are stored pre-transposed as (in, out), pre-padded and pre-cast to
    bf16 ONCE here (the padded arrays are the canonical params), so the
    forward wrapper does zero per-call padding/casting work.  Biases stay f32.
    Zero rows/cols contribute exactly 0 to the matmuls.
    """
    def linear(key, fan_in, fan_out):
        kw, kb = jax.random.split(key)
        bound = 1.0 / (fan_in ** 0.5)
        w = jax.random.uniform(kw, (fan_in, fan_out), jnp.float32,
                               minval=-bound, maxval=bound)
        b = jax.random.uniform(kb, (1, fan_out), jnp.float32,
                               minval=-bound, maxval=bound)
        return w, b

    k1, k2, k3 = jax.random.split(key, 3)
    w1, b1 = linear(k1, n_observations, HIDDEN)
    w2, b2 = linear(k2, HIDDEN, HIDDEN)
    w3, b3 = linear(k3, HIDDEN, n_actions)

    k_pad = _round_up(n_observations, tk)
    n_pad = _round_up(n_actions, LANE)

    w1p = jnp.zeros((k_pad, HIDDEN), jnp.bfloat16).at[:n_observations, :].set(
        w1.astype(jnp.bfloat16))
    w3p = jnp.zeros((HIDDEN, n_pad), jnp.bfloat16).at[:, :n_actions].set(
        w3.astype(jnp.bfloat16))
    b3p = jnp.zeros((1, n_pad), jnp.float32).at[:, :n_actions].set(b3)

    return {"w1": w1p, "b1": b1,
            "w2": w2.astype(jnp.bfloat16), "b2": b2,
            "w3": w3p, "b3": b3p}


# --------------------------------------------------------------------------
# Demo / correctness check
# --------------------------------------------------------------------------
if __name__ == "__main__":
    key = jax.random.PRNGKey(0)
    kx, kp = jax.random.split(key)

    # Shapes implied by the module: flattened 84x84 observation = 7056
    # features, small discrete action space.  batch=256 = two fused DQN
    # minibatches (weight traffic is batch independent; M=256 fills the
    # 256-wide MXU on v6e/v7x).
    batch = 256
    n_observations = 7056
    n_actions = 5

    params = init_params(kp, n_observations, n_actions)
    k_pad = params["w1"].shape[0]

    x = jax.random.uniform(kx, (batch, n_observations), jnp.float32)
    # Producer-side, once-per-observation-batch prep (not per forward call).
    xb = jax.block_until_ready(prepare_observations(x, k_pad))

    # Default (single TensorCore) path.
    out = jax.block_until_ready(frogger_net(xb, params))[:batch, :n_actions]
    # v7x path: K reduction split across the two TensorCores.
    out2 = jax.block_until_ready(
        frogger_net(xb, params, split_k_across_cores=True))[:batch, :n_actions]

    # Pure-JAX reference using the same bf16 weights / f32 accumulation.
    h = jnp.maximum(
        jnp.dot(xb[:batch], params["w1"], preferred_element_type=jnp.float32)
        + params["b1"], 0.0)
    h = jnp.maximum(
        jnp.dot(h.astype(jnp.bfloat16), params["w2"],
                preferred_element_type=jnp.float32) + params["b2"], 0.0)
    ref = (jnp.dot(h.astype(jnp.bfloat16), params["w3"],
                   preferred_element_type=jnp.float32)
           + params["b3"])[:, :n_actions]

    assert out.shape == (batch, n_actions)
    assert out2.shape == (batch, n_actions)
    assert jnp.allclose(out, ref, atol=1e-2, rtol=1e-2), \
        float(jnp.max(jnp.abs(out - ref)))
    assert jnp.allclose(out2, ref, atol=1e-2, rtol=1e-2), \
        float(jnp.max(jnp.abs(out2 - ref)))

    print("KERNEL_OK")
</pallas_src>

<mosaic_0001>
module attributes {stable_mosaic.version = 11 : i64} {
  func.func @_frogger_fused_kernel(%arg0: i32, %arg1: memref<256x3584xbf16, #tpu.memory_space<vmem>>, %arg2: memref<3584x256xbf16, #tpu.memory_space<vmem>>, %arg3: memref<1x256xf32, #tpu.memory_space<vmem>>, %arg4: memref<256x256xbf16, #tpu.memory_space<vmem>>, %arg5: memref<1x256xf32, #tpu.memory_space<vmem>>, %arg6: memref<256x128xbf16, #tpu.memory_space<vmem>>, %arg7: memref<1x128xf32, #tpu.memory_space<vmem>>, %arg8: memref<256x128xf32, #tpu.memory_space<vmem>>, %arg9: memref<256x256xf32, #tpu.memory_space<vmem>>) attributes {dimension_semantics = [#tpu.dimension_semantics<arbitrary>], iteration_bounds = array<i64: 2>, scalar_prefetch = 0 : i64, scratch_operands = 1 : i64, tpu.core_type = #tpu.core_type<tc>, window_params = [{transform_indices = @transform_0, window_bounds = array<i64: 256, 3584>}, {transform_indices = @transform_1, window_bounds = array<i64: 3584, 256>}, {pipeline_mode = #tpu.pipeline_mode<synchronous>, transform_indices = @transform_2, window_bounds = array<i64: 1, 256>}, {pipeline_mode = #tpu.pipeline_mode<synchronous>, transform_indices = @transform_3, window_bounds = array<i64: 256, 256>}, {pipeline_mode = #tpu.pipeline_mode<synchronous>, transform_indices = @transform_4, window_bounds = array<i64: 1, 256>}, {pipeline_mode = #tpu.pipeline_mode<synchronous>, transform_indices = @transform_5, window_bounds = array<i64: 256, 128>}, {pipeline_mode = #tpu.pipeline_mode<synchronous>, transform_indices = @transform_6, window_bounds = array<i64: 1, 128>}, {pipeline_mode = #tpu.pipeline_mode<synchronous>, transform_indices = @transform_7, window_bounds = array<i64: 256, 128>}]} {
    %c0_i32 = arith.constant 0 : i32
    %0 = arith.cmpi eq, %arg0, %c0_i32 : i32
    %1 = arith.extui %0 : i1 to i32
    %c0_i32_0 = arith.constant 0 : i32
    %2 = arith.cmpi ne, %1, %c0_i32_0 : i32
    scf.if %2 {
      %cst_9 = arith.constant 0.000000e+00 : f32
      %12 = vector.broadcast %cst_9 : f32 to vector<256x256xf32>
      %c0_10 = arith.constant 0 : index
      %c0_11 = arith.constant 0 : index
      %13 = vector.load %arg9[%c0_10, %c0_11] : memref<256x256xf32, #tpu.memory_space<vmem>>, vector<256x256xf32>
      tpu.vector_store %arg9[%c0_10, %c0_11], %12 {strides = array<i32>} : memref<256x256xf32, #tpu.memory_space<vmem>>, vector<256x256xf32>,
    } else {
    }
    %c0 = arith.constant 0 : index
    %c0_1 = arith.constant 0 : index
    %3 = vector.load %arg9[%c0, %c0_1] : memref<256x256xf32, #tpu.memory_space<vmem>>, vector<256x256xf32>
    %c0_2 = arith.constant 0 : index
    %c0_3 = arith.constant 0 : index
    %4 = vector.load %arg1[%c0_2, %c0_3] : memref<256x3584xbf16, #tpu.memory_space<vmem>>, vector<256x3584xbf16>
    %c0_4 = arith.constant 0 : index
    %c0_5 = arith.constant 0 : index
    %5 = vector.load %arg2[%c0_4, %c0_5] : memref<3584x256xbf16, #tpu.memory_space<vmem>>, vector<3584x256xbf16>
    %cst = arith.constant dense<0.000000e+00> : vector<256x256xf32>
    %6 = tpu.matmul %4, %5, %cst {dimension_numbers = #tpu.dot_dimension_numbers<[1], [0], [0], [1], [0, 0, 1, 1], [], []>} : vector<256x3584xbf16>, vector<3584x256xbf16>, vector<256x256xf32> -> vector<256x256xf32>
    %7 = arith.addf %3, %6 : vector<256x256xf32>
    %c0_6 = arith.constant 0 : index
    %c0_7 = arith.constant 0 : index
    %8 = vector.load %arg9[%c0_6, %c0_7] : memref<256x256xf32, #tpu.memory_space<vmem>>, vector<256x256xf32>
    tpu.vector_store %arg9[%c0_6, %c0_7], %7 {strides = array<i32>} : memref<256x256xf32, #tpu.memory_space<vmem>>, vector<256x256xf32>,
    %c1_i32 = arith.constant 1 : i32
    %9 = arith.cmpi eq, %arg0, %c1_i32 : i32
    %10 = arith.extui %9 : i1 to i32
    %c0_i32_8 = arith.constant 0 : i32
    %11 = arith.cmpi ne, %10, %c0_i32_8 : i32
    scf.if %11 {
      %c0_9 = arith.constant 0 : index
      %c0_10 = arith.constant 0 : index
      %12 = vector.load %arg9[%c0_9, %c0_10] : memref<256x256xf32, #tpu.memory_space<vmem>>, vector<256x256xf32>
      %c0_11 = arith.constant 0 : index
      %c0_12 = arith.constant 0 : index
      %13 = vector.load %arg3[%c0_11, %c0_12] : memref<1x256xf32, #tpu.memory_space<vmem>>, vector<1x256xf32>
      %14 = vector.broadcast %13 : vector<1x256xf32> to vector<256x256xf32>
      %15 = arith.addf %12, %14 : vector<256x256xf32>
      %cst_13 = arith.constant 0.000000e+00 : f32
      %16 = vector.broadcast %cst_13 : f32 to vector<256x256xf32>
      %17 = arith.maximumf %15, %16 : vector<256x256xf32>
      %18 = arith.truncf %17 : vector<256x256xf32> to vector<256x256xbf16>
      %c0_14 = arith.constant 0 : index
      %c0_15 = arith.constant 0 : index
      %19 = vector.load %arg4[%c0_14, %c0_15] : memref<256x256xbf16, #tpu.memory_space<vmem>>, vector<256x256xbf16>
      %cst_16 = arith.constant dense<0.000000e+00> : vector<256x256xf32>
      %20 = tpu.matmul %18, %19, %cst_16 {dimension_numbers = #tpu.dot_dimension_numbers<[1], [0], [0], [1], [0, 0, 1, 1], [], []>} : vector<256x256xbf16>, vector<256x256xbf16>, vector<256x256xf32> -> vector<256x256xf32>
      %c0_17 = arith.constant 0 : index
      %c0_18 = arith.constant 0 : index
      %21 = vector.load %arg5[%c0_17, %c0_18] : memref<1x256xf32, #tpu.memory_space<vmem>>, vector<1x256xf32>
      %22 = vector.broadcast %21 : vector<1x256xf32> to vector<256x256xf32>
      %23 = arith.addf %20, %22 : vector<256x256xf32>
      %cst_19 = arith.constant 0.000000e+00 : f32
      %24 = vector.broadcast %cst_19 : f32 to vector<256x256xf32>
      %25 = arith.maximumf %23, %24 : vector<256x256xf32>
      %26 = arith.truncf %25 : vector<256x256xf32> to vector<256x256xbf16>
      %c0_20 = arith.constant 0 : index
      %c0_21 = arith.constant 0 : index
      %27 = vector.load %arg6[%c0_20, %c0_21] : memref<256x128xbf16, #tpu.memory_space<vmem>>, vector<256x128xbf16>
      %cst_22 = arith.constant dense<0.000000e+00> : vector<256x128xf32>
      %28 = tpu.matmul %26, %27, %cst_22 {dimension_numbers = #tpu.dot_dimension_numbers<[1], [0], [0], [1], [0, 0, 1, 1], [], []>} : vector<256x256xbf16>, vector<256x128xbf16>, vector<256x128xf32> -> vector<256x128xf32>
      %c0_23 = arith.constant 0 : index
      %c0_24 = arith.constant 0 : index
      %29 = vector.load %arg7[%c0_23, %c0_24] : memref<1x128xf32, #tpu.memory_space<vmem>>, vector<1x128xf32>
      %30 = vector.broadcast %29 : vector<1x128xf32> to vector<256x128xf32>
      %31 = arith.addf %28, %30 : vector<256x128xf32>
      %c0_25 = arith.constant 0 : index
      %c0_26 = arith.constant 0 : index
      %32 = vector.load %arg8[%c0_25, %c0_26] : memref<256x128xf32, #tpu.memory_space<vmem>>, vector<256x128xf32>
      tpu.vector_store %arg8[%c0_25, %c0_26], %31 {strides = array<i32>} : memref<256x128xf32, #tpu.memory_space<vmem>>, vector<256x128xf32>,
    } else {
    }
    return
  }
  func.func @transform_0(%arg0: i32) -> (i32, i32) {
    %c0_i32 = arith.constant 0 : i32
    %c0_i32_0 = arith.constant 0 : i32
    return %c0_i32, %arg0 : i32, i32
  }
  func.func @transform_1(%arg0: i32) -> (i32, i32) {
    %c0_i32 = arith.constant 0 : i32
    %c0_i32_0 = arith.constant 0 : i32
    return %arg0, %c0_i32 : i32, i32
  }
  func.func @transform_2(%arg0: i32) -> (i32, i32) {
    %c0_i32 = arith.constant 0 : i32
    %c0_i32_0 = arith.constant 0 : i32
    %c0_i32_1 = arith.constant 0 : i32
    return %c0_i32, %c0_i32_0 : i32, i32
  }
  func.func @transform_3(%arg0: i32) -> (i32, i32) {
    %c0_i32 = arith.constant 0 : i32
    %c0_i32_0 = arith.constant 0 : i32
    %c0_i32_1 = arith.constant 0 : i32
    return %c0_i32, %c0_i32_0 : i32, i32
  }
  func.func @transform_4(%arg0: i32) -> (i32, i32) {
    %c0_i32 = arith.constant 0 : i32
    %c0_i32_0 = arith.constant 0 : i32
    %c0_i32_1 = arith.constant 0 : i32
    return %c0_i32, %c0_i32_0 : i32, i32
  }
  func.func @transform_5(%arg0: i32) -> (i32, i32) {
    %c0_i32 = arith.constant 0 : i32
    %c0_i32_0 = arith.constant 0 : i32
    %c0_i32_1 = arith.constant 0 : i32
    return %c0_i32, %c0_i32_0 : i32, i32
  }
  func.func @transform_6(%arg0: i32) -> (i32, i32) {
    %c0_i32 = arith.constant 0 : i32
    %c0_i32_0 = arith.constant 0 : i32
    %c0_i32_1 = arith.constant 0 : i32
    return %c0_i32, %c0_i32_0 : i32, i32
  }
  func.func @transform_7(%arg0: i32) -> (i32, i32) {
    %c0_i32 = arith.constant 0 : i32
    %c0_i32_0 = arith.constant 0 : i32
    %c0_i32_1 = arith.constant 0 : i32
    return %c0_i32, %c0_i32_0 : i32, i32
  }
}

</mosaic_0001>

<llo_original>
// kernel: tpu_custom_call.1
$region0: #{tpu_custom_call.1}
  #allocation0 [shape = 'u32[]', space=smem, size = 0x4, offset = 0x4, fixed_abs, tag = 'smem constant byte address 0x4 - core index']
  #allocation1 [shape = 'u32[144,128]{1,0:T(1,128)}', space=vmem, size = 0x12000, scoped, tag = 'internal scratch']
  #allocation2 [shape = 'f32[256,256]{1,0:T(8,128)}', space=vmem, size = 0x40000, scoped, tag = 'scratch operand']
  %s0 = inlined_call_operand.hbm [shape: bf16[256,7168], index: 0, kind: input, shape index: {}]
  %s1 = inlined_call_operand.hbm [shape: bf16[7168,256], index: 1, kind: input, shape index: {}]
  %s2 = inlined_call_operand.hbm [shape: f32[1,256], index: 2, kind: input, shape index: {}]
  %s3 = inlined_call_operand.hbm [shape: bf16[256,256], index: 3, kind: input, shape index: {}]
  %s4 = inlined_call_operand.hbm [shape: f32[1,256], index: 4, kind: input, shape index: {}]
  %s5 = inlined_call_operand.hbm [shape: bf16[256,128], index: 5, kind: input, shape index: {}]
  %s6 = inlined_call_operand.hbm [shape: f32[1,128], index: 6, kind: input, shape index: {}]
  %s7 = inlined_call_operand.hbm [shape: f32[256,128], index: 7, kind: output, shape index: {}]
  %s8 = sld [smem:[#allocation0]]
  $region97: #{tpu_custom_call.1} parent=0
    _
  %s10 = ssub.s32 1, %s8
  %s11 = scalar_select 0, %s10, %s8
  $region1: #{tpu_custom_call.1} parent=0
    #allocation3 [shape = 'u8[3670016]{0}', space=vmem, size = 0x380000, scoped, tag = 'input window, operand 0']
    #allocation4 [shape = 's32[2]{0}', space=sflag, size = 0x8, scoped, tag = 'scoped memory for tpu_custom_call.1']
    #allocation5 [shape = 's32[2]{0}', space=sflag, size = 0x8, scoped, tag = 'scoped memory for tpu_custom_call.1']
    #allocation6 [shape = 'u8[3670016]{0}', space=vmem, size = 0x380000, scoped, tag = 'input window, operand 1']
    #allocation7 [shape = 's32[2]{0}', space=sflag, size = 0x8, scoped, tag = 'scoped memory for tpu_custom_call.1']
    #allocation8 [shape = 'u8[1024]{0}', space=vmem, size = 0x400, scoped, tag = 'input window, operand 2, single buffered']
    #allocation9 [shape = 'u8[131072]{0}', space=vmem, size = 0x20000, scoped, tag = 'input window, operand 3, single buffered']
    #allocation10 [shape = 's32[1]{0}', space=sflag, size = 0x4, scoped, tag = 'scoped memory for tpu_custom_call.1']
    #allocation11 [shape = 'u8[1024]{0}', space=vmem, size = 0x400, scoped, tag = 'input window, operand 4, single buffered']
    #allocation12 [shape = 'u8[65536]{0}', space=vmem, size = 0x10000, scoped, tag = 'input window, operand 5, single buffered']
    #allocation13 [shape = 's32[1]{0}', space=sflag, size = 0x4, scoped, tag = 'scoped memory for tpu_custom_call.1']
    #allocation14 [shape = 'u8[512]{0}', space=vmem, size = 0x400, scoped, tag = 'input window, operand 6, single buffered']
    #allocation15 [shape = 'u8[131072]{0}', space=vmem, size = 0x20000, scoped, tag = 'output window, operand 0, single buffered']
    %12 = vsyncpa [#allocation4], 0
    %s13 = scalar_lea.sflag [#allocation4], 1
    %14 = vsyncpa %s13, 0
    %15 = vsyncpa [#allocation7], 0
    %s16 = scalar_lea.sflag [#allocation7], 1
    %17 = vsyncpa %s16, 0
    %18 = vsyncpa [#allocation10], 0
    %19 = vsyncpa [#allocation13], 0
    %20 = vsyncpa [#allocation5], 0
    loop: start=0, step=1, limit=4
    $region2: #{tpu_custom_call.1} parent=1 // loop_pre_header
      _
    $region3: #{tpu_custom_call.1} parent=1 // loop_header
      %s22 = sphi 0, %s26
      %p23 = scmp.ge.s32.totalorder %s22, 4
      %s32 = sphi 0, %s34
      %s35 = sphi 0, %s32
      %s36 = sphi 0, %s35
      %s52 = sphi 0, %s36
      %s58 = sphi 0, %s60
      %s61 = sphi 0, %s58
      %s62 = sphi 0, %s61
      %s78 = sphi 0, %s62
      %s82 = sphi 0, %s82
      %s84 = sphi 0, %s82
      %s85 = sphi 0, %s84
      %s99 = sphi 0, %s85
      %s103 = sphi 0, %s103
      %s105 = sphi 0, %s103
      %s106 = sphi 0, %s105
      %s120 = sphi 0, %s106
      %s124 = sphi 0, %s124
      %s126 = sphi 0, %s124
      %s127 = sphi 0, %s126
      %s141 = sphi 0, %s127
      %s145 = sphi 0, %s145
      %s147 = sphi 0, %s145
      %s148 = sphi 0, %s147
      %s162 = sphi 0, %s148
      %s166 = sphi 0, %s166
      %s168 = sphi 0, %s166
      %s169 = sphi 0, %s168
      %s183 = sphi 0, %s169
      %s187 = sphi 0, %s187
      %s189 = sphi 0, %s187
      %s190 = sphi 0, %s189
      %s204 = sphi 0, %s190
    $region4: #{tpu_custom_call.1} parent=1 // loop_header_branch
      %25 = sbr.rel (%p23) target = $region8
    $region5: #{tpu_custom_call.1} parent=1 // loop_body
      %s27 = ssub.s32 %s22, 1
      %s28 = ssub.s32 %s22, 2
      %s29 = sadd.s32 %s22, 1
      %s30 = ssub.s32 %s22, %s29
      %p31 = scmp.eq.s32.totalorder %s30, 0
      %s33 = sadd.s32 %s32, 1
      %s34 = scalar_select %p31, %s32, %s33
      %p37 = pneg %p31
      %p38 = scmp.eq.s32.totalorder %s22, 1
      %p39 = por %p37, %p38
      %p40 = scmp.ne.s32.totalorder %s32, %s35
      %p41 = scmp.eq.s32.totalorder %s22, 0
      %p42 = por %p40, %p41
      %p43 = scmp.ne.s32.totalorder %s32, %s35
      %p44 = scmp.eq.s32.totalorder %s27, 1
      %p45 = por %p43, %p44
      %p46 = scmp.ne.s32.totalorder %s35, %s36
      %p47 = scmp.eq.s32.totalorder %s27, 0
      %p48 = por %p46, %p47
      %p49 = scmp.ne.s32.totalorder %s35, %s36
      %p50 = scmp.eq.s32.totalorder %s28, 1
      %p51 = por %p49, %p50
      %p53 = scmp.ne.s32.totalorder %s36, %s52
      %p54 = scmp.eq.s32.totalorder %s28, 0
      %p55 = por %p53, %p54
      %s56 = ssub.s32 %s22, %s29
      %p57 = scmp.eq.s32.totalorder %s56, 0
      %s59 = sadd.s32 %s58, 1
      %s60 = scalar_select %p57, %s58, %s59
      %p63 = pneg %p57
      %p64 = scmp.eq.s32.totalorder %s22, 1
      %p65 = por %p63, %p64
      %p66 = scmp.ne.s32.totalorder %s58, %s61
      %p67 = scmp.eq.s32.totalorder %s22, 0
      %p68 = por %p66, %p67
      %p69 = scmp.ne.s32.totalorder %s58, %s61
      %p70 = scmp.eq.s32.totalorder %s27, 1
      %p71 = por %p69, %p70
      %p72 = scmp.ne.s32.totalorder %s61, %s62
      %p73 = scmp.eq.s32.totalorder %s27, 0
      %p74 = por %p72, %p73
      %p75 = scmp.ne.s32.totalorder %s61, %s62
      %p76 = scmp.eq.s32.totalorder %s28, 1
      %p77 = por %p75, %p76
      %p79 = scmp.ne.s32.totalorder %s62, %s78
      %p80 = scmp.eq.s32.totalorder %s28, 0
      %p81 = por %p79, %p80
      %s83 = sadd.s32 %s82, 1
      %p86 = scmp.eq.s32.totalorder %s22, 1
      %p87 = scmp.ne.s32.totalorder %s82, %s84
      %p88 = scmp.eq.s32.totalorder %s22, 0
      %p89 = por %p87, %p88
      %p90 = scmp.ne.s32.totalorder %s82, %s84
      %p91 = scmp.eq.s32.totalorder %s27, 1
      %p92 = por %p90, %p91
      %p93 = scmp.ne.s32.totalorder %s84, %s85
      %p94 = scmp.eq.s32.totalorder %s27, 0
      %p95 = por %p93, %p94
      %p96 = scmp.ne.s32.totalorder %s84, %s85
      %p97 = scmp.eq.s32.totalorder %s28, 1
      %p98 = por %p96, %p97
      %p100 = scmp.ne.s32.totalorder %s85, %s99
      %p101 = scmp.eq.s32.totalorder %s28, 0
      %p102 = por %p100, %p101
      %s104 = sadd.s32 %s103, 1
      %p107 = scmp.eq.s32.totalorder %s22, 1
      %p108 = scmp.ne.s32.totalorder %s103, %s105
      %p109 = scmp.eq.s32.totalorder %s22, 0
      %p110 = por %p108, %p109
      %p111 = scmp.ne.s32.totalorder %s103, %s105
      %p112 = scmp.eq.s32.totalorder %s27, 1
      %p113 = por %p111, %p112
      %p114 = scmp.ne.s32.totalorder %s105, %s106
      %p115 = scmp.eq.s32.totalorder %s27, 0
      %p116 = por %p114, %p115
      %p117 = scmp.ne.s32.totalorder %s105, %s106
      %p118 = scmp.eq.s32.totalorder %s28, 1
      %p119 = por %p117, %p118
      %p121 = scmp.ne.s32.totalorder %s106, %s120
      %p122 = scmp.eq.s32.totalorder %s28, 0
      %p123 = por %p121, %p122
      %s125 = sadd.s32 %s124, 1
      %p128 = scmp.eq.s32.totalorder %s22, 1
      %p129 = scmp.ne.s32.totalorder %s124, %s126
      %p130 = scmp.eq.s32.totalorder %s22, 0
      %p131 = por %p129, %p130
      %p132 = scmp.ne.s32.totalorder %s124, %s126
      %p133 = scmp.eq.s32.totalorder %s27, 1
      %p134 = por %p132, %p133
      %p135 = scmp.ne.s32.totalorder %s126, %s127
      %p136 = scmp.eq.s32.totalorder %s27, 0
      %p137 = por %p135, %p136
      %p138 = scmp.ne.s32.totalorder %s126, %s127
      %p139 = scmp.eq.s32.totalorder %s28, 1
      %p140 = por %p138, %p139
      %p142 = scmp.ne.s32.totalorder %s127, %s141
      %p143 = scmp.eq.s32.totalorder %s28, 0
      %p144 = por %p142, %p143
      %s146 = sadd.s32 %s145, 1
      %p149 = scmp.eq.s32.totalorder %s22, 1
      %p150 = scmp.ne.s32.totalorder %s145, %s147
      %p151 = scmp.eq.s32.totalorder %s22, 0
      %p152 = por %p150, %p151
      %p153 = scmp.ne.s32.totalorder %s145, %s147
      %p154 = scmp.eq.s32.totalorder %s27, 1
      %p155 = por %p153, %p154
      %p156 = scmp.ne.s32.totalorder %s147, %s148
      %p157 = scmp.eq.s32.totalorder %s27, 0
      %p158 = por %p156, %p157
      %p159 = scmp.ne.s32.totalorder %s147, %s148
      %p160 = scmp.eq.s32.totalorder %s28, 1
      %p161 = por %p159, %p160
      %p163 = scmp.ne.s32.totalorder %s148, %s162
      %p164 = scmp.eq.s32.totalorder %s28, 0
      %p165 = por %p163, %p164
      %s167 = sadd.s32 %s166, 1
      %p170 = scmp.eq.s32.totalorder %s22, 1
      %p171 = scmp.ne.s32.totalorder %s166, %s168
      %p172 = scmp.eq.s32.totalorder %s22, 0
      %p173 = por %p171, %p172
      %p174 = scmp.ne.s32.totalorder %s166, %s168
      %p175 = scmp.eq.s32.totalorder %s27, 1
      %p176 = por %p174, %p175
      %p177 = scmp.ne.s32.totalorder %s168, %s169
      %p178 = scmp.eq.s32.totalorder %s27, 0
      %p179 = por %p177, %p178
      %p180 = scmp.ne.s32.totalorder %s168, %s169
      %p181 = scmp.eq.s32.totalorder %s28, 1
      %p182 = por %p180, %p181
      %p184 = scmp.ne.s32.totalorder %s169, %s183
      %p185 = scmp.eq.s32.totalorder %s28, 0
      %p186 = por %p184, %p185
      %s188 = sadd.s32 %s187, 1
      %p191 = scmp.eq.s32.totalorder %s22, 1
      %p192 = scmp.ne.s32.totalorder %s187, %s189
      %p193 = scmp.eq.s32.totalorder %s22, 0
      %p194 = por %p192, %p193
      %p195 = scmp.ne.s32.totalorder %s187, %s189
      %p196 = scmp.eq.s32.totalorder %s27, 1
      %p197 = por %p195, %p196
      %p198 = scmp.ne.s32.totalorder %s189, %s190
      %p199 = scmp.eq.s32.totalorder %s27, 0
      %p200 = por %p198, %p199
      %p201 = scmp.ne.s32.totalorder %s189, %s190
      %p202 = scmp.eq.s32.totalorder %s28, 1
      %p203 = por %p201, %p202
      %p205 = scmp.ne.s32.totalorder %s190, %s204
      %p206 = scmp.eq.s32.totalorder %s28, 0
      %p207 = por %p205, %p206
      %p208 = scmp.le.s32.totalorder 1, %s22
      %p209 = scmp.lt.s32.totalorder %s22, 3
      %p210 = pnand %p208, %p209
      %p211 = pneg %p210
      // Predicated region
      $region9: #{tpu_custom_call.1} parent=5 // pred_check
        _
      $region10: #{tpu_custom_call.1} parent=5 // pred_check_branch
        %213 = sbr.rel (%p210) target = $region12
      $region11: #{tpu_custom_call.1} parent=5 // pred_region
        %s214 = ssub.s32 %s22, 1
        // Predicated region
        $region13: #{tpu_custom_call.1} parent=11 // pred_check
          %p215 = pneg %p95
        $region14: #{tpu_custom_call.1} parent=11 // pred_check_branch
          %217 = sbr.rel (%p215) target = $region16
        $region15: #{tpu_custom_call.1} parent=11 // pred_region
          %s219 = ssub.s32 32, 32
          %220 = vsyncadd [#allocation7], %s219
          %s222 = sshll.u32 [#allocation8], 4
          %s223 = int_to_ptr.vmem [resolvable:$true] %s222
          %225 = dma.hbm_to_vmem [thread:$0]  %s2, 32, %s223, [#allocation7]
        $region16: #{tpu_custom_call.1} parent=11 // pred_fallthru
          _
        // Predicated region
        $region17: #{tpu_custom_call.1} parent=11 // pred_check
          %p226 = pneg %p116
        $region18: #{tpu_custom_call.1} parent=11 // pred_check_branch
          %228 = sbr.rel (%p226) target = $region20
        $region19: #{tpu_custom_call.1} parent=11 // pred_region
          %s230 = ssub.s32 4096, 4096
          %231 = vsyncadd [#allocation10], %s230
          %s232 = sshll.u32 [#allocation9], 4
          %s233 = int_to_ptr.vmem [resolvable:$true] %s232
          %238 = dma.hbm_to_vmem [thread:$0]  %s3, 4096, %s233, [#allocation10], 128, 128, 8
        $region20: #{tpu_custom_call.1} parent=11 // pred_fallthru
          _
        // Predicated region
        $region21: #{tpu_custom_call.1} parent=11 // pred_check
          %p239 = pneg %p137
        $region22: #{tpu_custom_call.1} parent=11 // pred_check_branch
          %241 = sbr.rel (%p239) target = $region24
        $region23: #{tpu_custom_call.1} parent=11 // pred_region
          %s243 = ssub.s32 32, 32
          %244 = vsyncadd [#allocation10], %s243
          %s246 = sshll.u32 [#allocation11], 4
          %s247 = int_to_ptr.vmem [resolvable:$true] %s246
          %249 = dma.hbm_to_vmem [thread:$0]  %s4, 32, %s247, [#allocation10]
        $region24: #{tpu_custom_call.1} parent=11 // pred_fallthru
          _
        // Predicated region
        $region25: #{tpu_custom_call.1} parent=11 // pred_check
          %p250 = pneg %p158
        $region26: #{tpu_custom_call.1} parent=11 // pred_check_branch
          %252 = sbr.rel (%p250) target = $region28
        $region27: #{tpu_custom_call.1} parent=11 // pred_region
          %s254 = ssub.s32 2048, 2048
          %255 = vsyncadd [#allocation13], %s254
          %s256 = sshll.u32 [#allocation12], 4
          %s257 = int_to_ptr.vmem [resolvable:$true] %s256
          %262 = dma.hbm_to_vmem [thread:$0]  %s5, 2048, %s257, [#allocation13], 64, 64, 4
        $region28: #{tpu_custom_call.1} parent=11 // pred_fallthru
          _
        // Predicated region
        $region29: #{tpu_custom_call.1} parent=11 // pred_check
          %p263 = pneg %p179
        $region30: #{tpu_custom_call.1} parent=11 // pred_check_branch
          %265 = sbr.rel (%p263) target = $region32
        $region31: #{tpu_custom_call.1} parent=11 // pred_region
          %s267 = ssub.s32 16, 16
          %268 = vsyncadd [#allocation13], %s267
          %s270 = sshll.u32 [#allocation14], 4
          %s271 = int_to_ptr.vmem [resolvable:$true] %s270
          %273 = dma.hbm_to_vmem [thread:$0]  %s6, 16, %s271, [#allocation13]
        $region32: #{tpu_custom_call.1} parent=11 // pred_fallthru
          _
      $region12: #{tpu_custom_call.1} parent=5 // pred_fallthru
        _
      %p274 = scmp.lt.s32.totalorder %s22, 2
      // Predicated region
      $region33: #{tpu_custom_call.1} parent=5 // pred_check
        %p275 = pneg %p274
      $region34: #{tpu_custom_call.1} parent=5 // pred_check_branch
        %277 = sbr.rel (%p275) target = $region36
      $region35: #{tpu_custom_call.1} parent=5 // pred_region
        // Predicated region
        $region37: #{tpu_custom_call.1} parent=35 // pred_check
          %p278 = pneg %p42
        $region38: #{tpu_custom_call.1} parent=35 // pred_check_branch
          %280 = sbr.rel (%p278) target = $region40
        $region39: #{tpu_custom_call.1} parent=35 // pred_region
          %s281 = sand.u32 %s32, 1
          %s282 = scalar_lea.sflag [#allocation4], %s281
          %s283 = sand.u32 %s32, 1
          %s284 = smul.addr %s283, 3584
          %s285 = scalar_lea.vmem [#allocation3], %s284
          %s286 = smul.u32 28, %s22
          %s288 = ssub.s32 57344, 57344
          %289 = vsyncadd %s282, %s288
          %s290 = smul.addr %s286, 64
          %s291 = scalar_lea.hbm %s0, %s290
          %s292 = sshll.u32 %s285, 4
          %s293 = int_to_ptr.vmem [resolvable:$true] %s292
          %298 = dma.hbm_to_vmem [thread:$0]  %s291, 57344, %s293, %s282, 3584, 1792, 112
        $region40: #{tpu_custom_call.1} parent=35 // pred_fallthru
          _
        // Predicated region
        $region41: #{tpu_custom_call.1} parent=35 // pred_check
          %p299 = pneg %p68
        $region42: #{tpu_custom_call.1} parent=35 // pred_check_branch
          %301 = sbr.rel (%p299) target = $region44
        $region43: #{tpu_custom_call.1} parent=35 // pred_region
          %s302 = sand.u32 %s22, 1
          %s303 = scalar_lea.sflag [#allocation7], %s302
          %s304 = sand.u32 %s58, 1
          %s305 = smul.addr %s304, 3584
          %s306 = scalar_lea.vmem [#allocation6], %s305
          %s307 = smul.u32 448, %s22
          %s309 = ssub.s32 57344, 57344
          %310 = vsyncadd %s303, %s309
          %s311 = smul.addr %s307, 2
          %s312 = smul.addr %s311, 64
          %s313 = scalar_lea.hbm %s1, %s312
          %s314 = sshll.u32 %s306, 4
          %s315 = int_to_ptr.vmem [resolvable:$true] %s314
          %320 = dma.hbm_to_vmem [thread:$0]  %s313, 57344, %s315, %s303, 128, 128, 8
        $region44: #{tpu_custom_call.1} parent=35 // pred_fallthru
          _
      $region36: #{tpu_custom_call.1} parent=5 // pred_fallthru
        _
      %p321 = scmp.le.s32.totalorder 1, %s22
      %p322 = scmp.lt.s32.totalorder %s22, 3
      %p323 = pnand %p321, %p322
      %p324 = pneg %p323
      // Predicated region
      $region45: #{tpu_custom_call.1} parent=5 // pred_check
        _
      $region46: #{tpu_custom_call.1} parent=5 // pred_check_branch
        %326 = sbr.rel (%p323) target = $region48
      $region47: #{tpu_custom_call.1} parent=5 // pred_region
        %s327 = ssub.s32 %s22, 1
        %s328 = sand.u32 %s35, 1
        %s329 = scalar_lea.sflag [#allocation4], %s328
        %s330 = sand.u32 %s35, 1
        %s331 = smul.addr %s330, 3584
        %s332 = scalar_lea.vmem [#allocation3], %s331
        // Predicated region
        $region49: #{tpu_custom_call.1} parent=47 // pred_check
          %p333 = pneg %p48
        $region50: #{tpu_custom_call.1} parent=47 // pred_check_branch
          %335 = sbr.rel (%p333) target = $region52
        $region51: #{tpu_custom_call.1} parent=47 // pred_region
          %336 = dma.done %s329, 57344
        $region52: #{tpu_custom_call.1} parent=47 // pred_fallthru
          _
        %s337 = sand.u32 %s27, 1
        %s338 = scalar_lea.sflag [#allocation7], %s337
        %s339 = sand.u32 %s61, 1
        %s340 = smul.addr %s339, 3584
        %s341 = scalar_lea.vmem [#allocation6], %s340
        // Predicated region
        $region53: #{tpu_custom_call.1} parent=47 // pred_check
          %p342 = pneg %p74
        $region54: #{tpu_custom_call.1} parent=47 // pred_check_branch
          %344 = sbr.rel (%p342) target = $region56
        $region55: #{tpu_custom_call.1} parent=47 // pred_region
          %345 = dma.done %s338, 57344
        $region56: #{tpu_custom_call.1} parent=47 // pred_fallthru
          _
        // Predicated region
        $region57: #{tpu_custom_call.1} parent=47 // pred_check
          %p346 = pneg %p95
        $region58: #{tpu_custom_call.1} parent=47 // pred_check_branch
          %348 = sbr.rel (%p346) target = $region60
        $region59: #{tpu_custom_call.1} parent=47 // pred_region
          %349 = dma.done [#allocation7], 32
        $region60: #{tpu_custom_call.1} parent=47 // pred_fallthru
          _
        // Predicated region
        $region61: #{tpu_custom_call.1} parent=47 // pred_check
          %p350 = pneg %p116
        $region62: #{tpu_custom_call.1} parent=47 // pred_check_branch
          %352 = sbr.rel (%p350) target = $region64
        $region63: #{tpu_custom_call.1} parent=47 // pred_region
          %353 = dma.done [#allocation10], 4096
        $region64: #{tpu_custom_call.1} parent=47 // pred_fallthru
          _
        // Predicated region
        $region65: #{tpu_custom_call.1} parent=47 // pred_check
          %p354 = pneg %p137
        $region66: #{tpu_custom_call.1} parent=47 // pred_check_branch
          %356 = sbr.rel (%p354) target = $region68
        $region67: #{tpu_custom_call.1} parent=47 // pred_region
          %357 = dma.done [#allocation10], 32
        $region68: #{tpu_custom_call.1} parent=47 // pred_fallthru
          _
        // Predicated region
        $region69: #{tpu_custom_call.1} parent=47 // pred_check
          %p358 = pneg %p158
        $region70: #{tpu_custom_call.1} parent=47 // pred_check_branch
          %360 = sbr.rel (%p358) target = $region72
        $region71: #{tpu_custom_call.1} parent=47 // pred_region
          %361 = dma.done [#allocation13], 2048
        $region72: #{tpu_custom_call.1} parent=47 // pred_fallthru
          _
        // Predicated region
        $region73: #{tpu_custom_call.1} parent=47 // pred_check
          %p362 = pneg %p179
        $region74: #{tpu_custom_call.1} parent=47 // pred_check_branch
          %364 = sbr.rel (%p362) target = $region76
        $region75: #{tpu_custom_call.1} parent=47 // pred_region
          %365 = dma.done [#allocation13], 16
        $region76: #{tpu_custom_call.1} parent=47 // pred_fallthru
          _
        %s366 = sand.u32 %s35, 1
        %s367 = scalar_lea.sflag [#allocation4], %s366
        %s368 = sand.u32 %s35, 1
        %s369 = smul.addr %s368, 3584
        %s370 = scalar_lea.vmem [#allocation3], %s369
        %p371 = pneg %p48
        %p372 = pneg %p45
        %s373 = sand.u32 %s27, 1
        %s374 = scalar_lea.sflag [#allocation7], %s373
        %s375 = sand.u32 %s61, 1
        %s376 = smul.addr %s375, 3584
        %s377 = scalar_lea.vmem [#allocation6], %s376
        %p378 = pneg %p74
        %p379 = pneg %p71
        %p380 = pneg %p95
        %p381 = pneg %p92
        %p382 = pneg %p116
        %p383 = pneg %p113
        %p384 = pneg %p137
        %p385 = pneg %p134
        %p386 = pneg %p158
        %p387 = pneg %p155
        %p388 = pneg %p179
        %p389 = pneg %p176
        %p390 = pneg %p200
        %p391 = pneg %p197
        %s392 = smul.u32 28, %s27
        %s393 = smul.u32 448, %s27
        %p395 = scmp.eq.s32.totalorder %s27, 0
        // Predicated region
        $region77: #{tpu_custom_call.1} parent=47 // pred_check
          %p396 = pneg %p395
        $region78: #{tpu_custom_call.1} parent=47 // pred_check_branch
          %398 = sbr.rel (%p396) target = $region80
        $region79: #{tpu_custom_call.1} parent=47 // pred_region
          %399 = vst [vmem:[#allocation2] sm:$0xff] 0.0
          %400 = vst [vmem:[#allocation2 + $0x8] sm:$0xff] 0.0
          %401 = vst [vmem:[#allocation2 + $0x10] sm:$0xff] 0.0
          %402 = vst [vmem:[#allocation2 + $0x18] sm:$0xff] 0.0
          %403 = vst [vmem:[#allocation2 + $0x20] sm:$0xff] 0.0
          %404 = vst [vmem:[#allocation2 + $0x28] sm:$0xff] 0.0
          %405 = vst [vmem:[#allocation2 + $0x30] sm:$0xff] 0.0
          %406 = vst [vmem:[#allocation2 + $0x38] sm:$0xff] 0.0
          %407 = vst [vmem:[#allocation2 + $0x40] sm:$0xff] 0.0
          %408 = vst [vmem:[#allocation2 + $0x48] sm:$0xff] 0.0
          %409 = vst [vmem:[#allocation2 + $0x50] sm:$0xff] 0.0
          %410 = vst [vmem:[#allocation2 + $0x58] sm:$0xff] 0.0
          %411 = vst [vmem:[#allocation2 + $0x60] sm:$0xff] 0.0
          %412 = vst [vmem:[#allocation2 + $0x68] sm:$0xff] 0.0
          %413 = vst [vmem:[#allocation2 + $0x70] sm:$0xff] 0.0
          %414 = vst [vmem:[#allocation2 + $0x78] sm:$0xff] 0.0
          %415 = vst [vmem:[#allocation2 + $0x80] sm:$0xff] 0.0
          %416 = vst [vmem:[#allocation2 + $0x88] sm:$0xff] 0.0
          %417 = vst [vmem:[#allocation2 + $0x90] sm:$0xff] 0.0
          %418 = vst [vmem:[#allocation2 + $0x98] sm:$0xff] 0.0
          %419 = vst [vmem:[#allocation2 + $0xa0] sm:$0xff] 0.0
          %420 = vst [vmem:[#allocation2 + $0xa8] sm:$0xff] 0.0
          %421 = vst [vmem:[#allocation2 + $0xb0] sm:$0xff] 0.0
          %422 = vst [vmem:[#allocation2 + $0xb8] sm:$0xff] 0.0
          %423 = vst [vmem:[#allocation2 + $0xc0] sm:$0xff] 0.0
          %424 = vst [vmem:[#allocation2 + $0xc8] sm:$0xff] 0.0
          %425 = vst [vmem:[#allocation2 + $0xd0] sm:$0xff] 0.0
          %426 = vst [vmem:[#allocation2 + $0xd8] sm:$0xff] 0.0
          %427 = vst [vmem:[#allocation2 + $0xe0] sm:$0xff] 0.0
          %428 = vst [vmem:[#allocation2 + $0xe8] sm:$0xff] 0.0
          %429 = vst [vmem:[#allocation2 + $0xf0] sm:$0xff] 0.0
          %430 = vst [vmem:[#allocation2 + $0xf8] sm:$0xff] 0.0
          %431 = vst [vmem:[#allocation2 + $0x100] sm:$0xff] 0.0
          %432 = vst [vmem:[#allocation2 + $0x108] sm:$0xff] 0.0
          %433 = vst [vmem:[#allocation2 + $0x110] sm:$0xff] 0.0
          %434 = vst [vmem:[#allocation2 + $0x118] sm:$0xff] 0.0
          %435 = vst [vmem:[#allocation2 + $0x120] sm:$0xff] 0.0
          %436 = vst [vmem:[#allocation2 + $0x128] sm:$0xff] 0.0
          %437 = vst [vmem:[#allocation2 + $0x130] sm:$0xff] 0.0
          %438 = vst [vmem:[#allocation2 + $0x138] sm:$0xff] 0.0
          %439 = vst [vmem:[#allocation2 + $0x140] sm:$0xff] 0.0
          %440 = vst [vmem:[#allocation2 + $0x148] sm:$0xff] 0.0
          %441 = vst [vmem:[#allocation2 + $0x150] sm:$0xff] 0.0
          %442 = vst [vmem:[#allocation2 + $0x158] sm:$0xff] 0.0
          %443 = vst [vmem:[#allocation2 + $0x160] sm:$0xff] 0.0
          %444 = vst [vmem:[#allocation2 + $0x168] sm:$0xff] 0.0
          %445 = vst [vmem:[#allocation2 + $0x170] sm:$0xff] 0.0
          %446 = vst [vmem:[#allocation2 + $0x178] sm:$0xff] 0.0
          %447 = vst [vmem:[#allocation2 + $0x180] sm:$0xff] 0.0
          %448 = vst [vmem:[#allocation2 + $0x188] sm:$0xff] 0.0
          %449 = vst [vmem:[#allocation2 + $0x190] sm:$0xff] 0.0
          %450 = vst [vmem:[#allocation2 + $0x198] sm:$0xff] 0.0
          %451 = vst [vmem:[#allocation2 + $0x1a0] sm:$0xff] 0.0
          %452 = vst [vmem:[#allocation2 + $0x1a8] sm:$0xff] 0.0
          %453 = vst [vmem:[#allocation2 + $0x1b0] sm:$0xff] 0.0
          %454 = vst [vmem:[#allocation2 + $0x1b8] sm:$0xff] 0.0
          %455 = vst [vmem:[#allocation2 + $0x1c0] sm:$0xff] 0.0
          %456 = vst [vmem:[#allocation2 + $0x1c8] sm:$0xff] 0.0
          %457 = vst [vmem:[#allocation2 + $0x1d0] sm:$0xff] 0.0
          %458 = vst [vmem:[#allocation2 + $0x1d8] sm:$0xff] 0.0
          %459 = vst [vmem:[#allocation2 + $0x1e0] sm:$0xff] 0.0
          %460 = vst [vmem:[#allocation2 + $0x1e8] sm:$0xff] 0.0
          %461 = vst [vmem:[#allocation2 + $0x1f0] sm:$0xff] 0.0
          %462 = vst [vmem:[#allocation2 + $0x1f8] sm:$0xff] 0.0
        $region80: #{tpu_custom_call.1} parent=47 // pred_fallthru
          _
        %v463 = vld [vmem:[#allocation2] sm:$0xff]
        %v464 = vld [vmem:[#allocation2 + $0x8] sm:$0xff]
        %v465 = vld [vmem:[#allocation2 + $0x10] sm:$0xff]
        %v466 = vld [vmem:[#allocation2 + $0x18] sm:$0xff]
        %v467 = vld [vmem:[#allocation2 + $0x20] sm:$0xff]
        %v468 = vld [vmem:[#allocation2 + $0x28] sm:$0xff]
        %v469 = vld [vmem:[#allocation2 + $0x30] sm:$0xff]
        %v470 = vld [vmem:[#allocation2 + $0x38] sm:$0xff]
        %v471 = vld [vmem:[#allocation2 + $0x40] sm:$0xff]
        %v472 = vld [vmem:[#allocation2 + $0x48] sm:$0xff]
        %v473 = vld [vmem:[#allocation2 + $0x50] sm:$0xff]
        %v474 = vld [vmem:[#allocation2 + $0x58] sm:$0xff]
        %v475 = vld [vmem:[#allocation2 + $0x60] sm:$0xff]
        %v476 = vld [vmem:[#allocation2 + $0x68] sm:$0xff]
        %v477 = vld [vmem:[#allocation2 + $0x70] sm:$0xff]
        %v478 = vld [vmem:[#allocation2 + $0x78] sm:$0xff]
        %v479 = vld [vmem:[#allocation2 + $0x80] sm:$0xff]
        %v480 = vld [vmem:[#allocation2 + $0x88] sm:$0xff]
        %v481 = vld [vmem:[#allocation2 + $0x90] sm:$0xff]
        %v482 = vld [vmem:[#allocation2 + $0x98] sm:$0xff]
        %v483 = vld [vmem:[#allocation2 + $0xa0] sm:$0xff]
        %v484 = vld [vmem:[#allocation2 + $0xa8] sm:$0xff]
        %v485 = vld [vmem:[#allocation2 + $0xb0] sm:$0xff]
        %v486 = vld [vmem:[#allocation2 + $0xb8] sm:$0xff]
        %v487 = vld [vmem:[#allocation2 + $0xc0] sm:$0xff]
        %v488 = vld [vmem:[#allocation2 + $0xc8] sm:$0xff]
        %v489 = vld [vmem:[#allocation2 + $0xd0] sm:$0xff]
        %v490 = vld [vmem:[#allocation2 + $0xd8] sm:$0xff]
        %v491 = vld [vmem:[#allocation2 + $0xe0] sm:$0xff]
        %v492 = vld [vmem:[#allocation2 + $0xe8] sm:$0xff]
        %v493 = vld [vmem:[#allocation2 + $0xf0] sm:$0xff]
        %v494 = vld [vmem:[#allocation2 + $0xf8] sm:$0xff]
        %v495 = vld [vmem:[#allocation2 + $0x100] sm:$0xff]
        %v496 = vld [vmem:[#allocation2 + $0x108] sm:$0xff]
        %v497 = vld [vmem:[#allocation2 + $0x110] sm:$0xff]
        %v498 = vld [vmem:[#allocation2 + $0x118] sm:$0xff]
        %v499 = vld [vmem:[#allocation2 + $0x120] sm:$0xff]
        %v500 = vld [vmem:[#allocation2 + $0x128] sm:$0xff]
        %v501 = vld [vmem:[#allocation2 + $0x130] sm:$0xff]
        %v502 = vld [vmem:[#allocation2 + $0x138] sm:$0xff]
        %v503 = vld [vmem:[#allocation2 + $0x140] sm:$0xff]
        %v504 = vld [vmem:[#allocation2 + $0x148] sm:$0xff]
        %v505 = vld [vmem:[#allocation2 + $0x150] sm:$0xff]
        %v506 = vld [vmem:[#allocation2 + $0x158] sm:$0xff]
        %v507 = vld [vmem:[#allocation2 + $0x160] sm:$0xff]
        %v508 = vld [vmem:[#allocation2 + $0x168] sm:$0xff]
        %v509 = vld [vmem:[#allocation2 + $0x170] sm:$0xff]
        %v510 = vld [vmem:[#allocation2 + $0x178] sm:$0xff]
        %v511 = vld [vmem:[#allocation2 + $0x180] sm:$0xff]
        %v512 = vld [vmem:[#allocation2 + $0x188] sm:$0xff]
        %v513 = vld [vmem:[#allocation2 + $0x190] sm:$0xff]
        %v514 = vld [vmem:[#allocation2 + $0x198] sm:$0xff]
        %v515 = vld [vmem:[#allocation2 + $0x1a0] sm:$0xff]
        %v516 = vld [vmem:[#allocation2 + $0x1a8] sm:$0xff]
        %v517 = vld [vmem:[#allocation2 + $0x1b0] sm:$0xff]
        %v518 = vld [vmem:[#allocation2 + $0x1b8] sm:$0xff]
        %v519 = vld [vmem:[#allocation2 + $0x1c0] sm:$0xff]
        %v520 = vld [vmem:[#allocation2 + $0x1c8] sm:$0xff]
        %v521 = vld [vmem:[#allocation2 + $0x1d0] sm:$0xff]
        %v522 = vld [vmem:[#allocation2 + $0x1d8] sm:$0xff]
        %v523 = vld [vmem:[#allocation2 + $0x1e0] sm:$0xff]
        %v524 = vld [vmem:[#allocation2 + $0x1e8] sm:$0xff]
        %v525 = vld [vmem:[#allocation2 + $0x1f0] sm:$0xff]
        %v526 = vld [vmem:[#allocation2 + $0x1f8] sm:$0xff]
        %v527 = vld [vmem:[%s332] sm:$0xff]
        %v528 = vld [vmem:[%s332 + $0x8] sm:$0xff]
        %v529 = vld [vmem:[%s332 + $0x10] sm:$0xff]
        %v530 = vld [vmem:[%s332 + $0x18] sm:$0xff]
        %v531 = vld [vmem:[%s332 + $0x20] sm:$0xff]
        %v532 = vld [vmem:[%s332 + $0x28] sm:$0xff]
        %v533 = vld [vmem:[%s332 + $0x30] sm:$0xff]
        %v534 = vld [vmem:[%s332 + $0x38] sm:$0xff]
        %v535 = vld [vmem:[%s332 + $0x40] sm:$0xff]
        %v536 = vld [vmem:[%s332 + $0x48] sm:$0xff]
        %v537 = vld [vmem:[%s332 + $0x50] sm:$0xff]
        %v538 = vld [vmem:[%s332 + $0x58] sm:$0xff]
        %v539 = vld [vmem:[%s332 + $0x60] sm:$0xff]
        %v540 = vld [vmem:[%s332 + $0x68] sm:$0xff]
        %v541 = vld [vmem:[%s332 + $0x70] sm:$0xff]
        %v542 = vld [vmem:[%s332 + $0x78] sm:$0xff]
        %v543 = vld [vmem:[%s332 + $0x80] sm:$0xff]
        %v544 = vld [vmem:[%s332 + $0x88] sm:$0xff]
        %v545 = vld [vmem:[%s332 + $0x90] sm:$0xff]
        %v546 = vld [vmem:[%s332 + $0x98] sm:$0xff]
        %v547 = vld [vmem:[%s332 + $0xa0] sm:$0xff]
        %v548 = vld [vmem:[%s332 + $0xa8] sm:$0xff]
        %v549 = vld [vmem:[%s332 + $0xb0] sm:$0xff]
        %v550 = vld [vmem:[%s332 + $0xb8] sm:$0xff]
        %v551 = vld [vmem:[%s332 + $0xc0] sm:$0xff]
        %v552 = vld [vmem:[%s332 + $0xc8] sm:$0xff]
        %v553 = vld [vmem:[%s332 + $0xd0] sm:$0xff]
        %v554 = vld [vmem:[%s332 + $0xd8] sm:$0xff]
        %v555 = vld [vmem:[%s332 + $0xe0] sm:$0xff]
        %v556 = vld [vmem:[%s332 + $0xe8] sm:$0xff]
        %v557 = vld [vmem:[%s332 + $0xf0] sm:$0xff]
        %v558 = vld [vmem:[%s332 + $0xf8] sm:$0xff]
        %v559 = vld [vmem:[%s332 + $0x100] sm:$0xff]
        %v560 = vld [vmem:[%s332 + $0x108] sm:$0xff]
        %v561 = vld [vmem:[%s332 + $0x110] sm:$0xff]
        %v562 = vld [vmem:[%s332 + $0x118] sm:$0xff]
        %v563 = vld [vmem:[%s332 + $0x120] sm:$0xff]
        %v564 = vld [vmem:[%s332 + $0x128] sm:$0xff]
        %v565 = vld [vmem:[%s332 + $0x130] sm:$0xff]
        %v566 = vld [vmem:[%s332 + $0x138] sm:$0xff]
        %v567 = vld [vmem:[%s332 + $0x140] sm:$0xff]
        %v568 = vld [vmem:[%s332 + $0x148] sm:$0xff]
        %v569 = vld [vmem:[%s332 + $0x150] sm:$0xff]
        %v570 = vld [vmem:[%s332 + $0x158] sm:$0xff]
        %v571 = vld [vmem:[%s332 + $0x160] sm:$0xff]
        %v572 = vld [vmem:[%s332 + $0x168] sm:$0xff]
        %v573 = vld [vmem:[%s332 + $0x170] sm:$0xff]
        %v574 = vld [vmem:[%s332 + $0x178] sm:$0xff]
        %v575 = vld [vmem:[%s332 + $0x180] sm:$0xff]
        %v576 = vld [vmem:[%s332 + $0x188] sm:$0xff]
        %v577 = vld [vmem:[%s332 + $0x190] sm:$0xff]
        %v578 = vld [vmem:[%s332 + $0x198] sm:$0xff]
        %v579 = vld [vmem:[%s332 + $0x1a0] sm:$0xff]
        %v580 = vld [vmem:[%s332 + $0x1a8] sm:$0xff]
        %v581 = vld [vmem:[%s332 + $0x1b0] sm:$0xff]
        %v582 = vld [vmem:[%s332 + $0x1b8] sm:$0xff]
        %v583 = vld [vmem:[%s332 + $0x1c0] sm:$0xff]
        %v584 = vld [vmem:[%s332 + $0x1c8] sm:$0xff]
        %v585 = vld [vmem:[%s332 + $0x1d0] sm:$0xff]
        %v586 = vld [vmem:[%s332 + $0x1d8] sm:$0xff]
        %v587 = vld [vmem:[%s332 + $0x1e0] sm:$0xff]
        %v588 = vld [vmem:[%s332 + $0x1e8] sm:$0xff]
        %v589 = vld [vmem:[%s332 + $0x1f0] sm:$0xff]
        %v590 = vld [vmem:[%s332 + $0x1f8] sm:$0xff]
        %v591 = vld [vmem:[%s332 + $0x200] sm:$0xff]
        %v592 = vld [vmem:[%s332 + $0x208] sm:$0xff]
        %v593 = vld [vmem:[%s332 + $0x210] sm:$0xff]
        %v594 = vld [vmem:[%s332 + $0x218] sm:$0xff]
        %v595 = vld [vmem:[%s332 + $0x220] sm:$0xff]
        %v596 = vld [vmem:[%s332 + $0x228] sm:$0xff]
        %v597 = vld [vmem:[%s332 + $0x230] sm:$0xff]
        %v598 = vld [vmem:[%s332 + $0x238] sm:$0xff]
        %v599 = vld [vmem:[%s332 + $0x240] sm:$0xff]
        %v600 = vld [vmem:[%s332 + $0x248] sm:$0xff]
        %v601 = vld [vmem:[%s332 + $0x250] sm:$0xff]
        %v602 = vld [vmem:[%s332 + $0x258] sm:$0xff]
        %v603 = vld [vmem:[%s332 + $0x260] sm:$0xff]
        %v604 = vld [vmem:[%s332 + $0x268] sm:$0xff]
        %v605 = vld [vmem:[%s332 + $0x270] sm:$0xff]
        %v606 = vld [vmem:[%s332 + $0x278] sm:$0xff]
        %v607 = vld [vmem:[%s332 + $0x280] sm:$0xff]
        %v608 = vld [vmem:[%s332 + $0x288] sm:$0xff]
        %v609 = vld [vmem:[%s332 + $0x290] sm:$0xff]
        %v610 = vld [vmem:[%s332 + $0x298] sm:$0xff]
        %v611 = vld [vmem:[%s332 + $0x2a0] sm:$0xff]
        %v612 = vld [vmem:[%s332 + $0x2a8] sm:$0xff]
        %v613 = vld [vmem:[%s332 + $0x2b0] sm:$0xff]
        %v614 = vld [vmem:[%s332 + $0x2b8] sm:$0xff]
        %v615 = vld [vmem:[%s332 + $0x2c0] sm:$0xff]
        %v616 = vld [vmem:[%s332 + $0x2c8] sm:$0xff]
        %v617 = vld [vmem:[%s332 + $0x2d0] sm:$0xff]
        %v618 = vld [vmem:[%s332 + $0x2d8] sm:$0xff]
        %v619 = vld [vmem:[%s332 + $0x2e0] sm:$0xff]
        %v620 = vld [vmem:[%s332 + $0x2e8] sm:$0xff]
        %v621 = vld [vmem:[%s332 + $0x2f0] sm:$0xff]
        %v622 = vld [vmem:[%s332 + $0x2f8] sm:$0xff]
        %v623 = vld [vmem:[%s332 + $0x300] sm:$0xff]
        %v624 = vld [vmem:[%s332 + $0x308] sm:$0xff]
        %v625 = vld [vmem:[%s332 + $0x310] sm:$0xff]
        %v626 = vld [vmem:[%s332 + $0x318] sm:$0xff]
        %v627 = vld [vmem:[%s332 + $0x320] sm:$0xff]
        %v628 = vld [vmem:[%s332 + $0x328] sm:$0xff]
        %v629 = vld [vmem:[%s332 + $0x330] sm:$0xff]
        %v630 = vld [vmem:[%s332 + $0x338] sm:$0xff]
        %v631 = vld [vmem:[%s332 + $0x340] sm:$0xff]
        %v632 = vld [vmem:[%s332 + $0x348] sm:$0xff]
        %v633 = vld [vmem:[%s332 + $0x350] sm:$0xff]
        %v634 = vld [vmem:[%s332 + $0x358] sm:$0xff]
        %v635 = vld [vmem:[%s332 + $0x360] sm:$0xff]
        %v636 = vld [vmem:[%s332 + $0x368] sm:$0xff]
        %v637 = vld [vmem:[%s332 + $0x370] sm:$0xff]
        %v638 = vld [vmem:[%s332 + $0x378] sm:$0xff]
        %v639 = vld [vmem:[%s332 + $0x380] sm:$0xff]
        %v640 = vld [vmem:[%s332 + $0x388] sm:$0xff]
        %v641 = vld [vmem:[%s332 + $0x390] sm:$0xff]
        %v642 = vld [vmem:[%s332 + $0x398] sm:$0xff]
        %v643 = vld [vmem:[%s332 + $0x3a0] sm:$0xff]
        %v644 = vld [vmem:[%s332 + $0x3a8] sm:$0xff]
        %v645 = vld [vmem:[%s332 + $0x3b0] sm:$0xff]
        %v646 = vld [vmem:[%s332 + $0x3b8] sm:$0xff]
        %v647 = vld [vmem:[%s332 + $0x3c0] sm:$0xff]
        %v648 = vld [vmem:[%s332 + $0x3c8] sm:$0xff]
        %v649 = vld [vmem:[%s332 + $0x3d0] sm:$0xff]
        %v650 = vld [vmem:[%s332 + $0x3d8] sm:$0xff]
        %v651 = vld [vmem:[%s332 + $0x3e0] sm:$0xff]
        %v652 = vld [vmem:[%s332 + $0x3e8] sm:$0xff]
        %v653 = vld [vmem:[%s332 + $0x3f0] sm:$0xff]
        %v654 = vld [vmem:[%s332 + $0x3f8] sm:$0xff]
        %v655 = vld [vmem:[%s332 + $0x400] sm:$0xff]
        %v656 = vld [vmem:[%s332 + $0x408] sm:$0xff]
        %v657 = vld [vmem:[%s332 + $0x410] sm:$0xff]
        %v658 = vld [vmem:[%s332 + $0x418] sm:$0xff]
        %v659 = vld [vmem:[%s332 + $0x420] sm:$0xff]
        %v660 = vld [vmem:[%s332 + $0x428] sm:$0xff]
        %v661 = vld [vmem:[%s332 + $0x430] sm:$0xff]
        %v662 = vld [vmem:[%s332 + $0x438] sm:$0xff]
        %v663 = vld [vmem:[%s332 + $0x440] sm:$0xff]
        %v664 = vld [vmem:[%s332 + $0x448] sm:$0xff]
        %v665 = vld [vmem:[%s332 + $0x450] sm:$0xff]
        %v666 = vld [vmem:[%s332 + $0x458] sm:$0xff]
        %v667 = vld [vmem:[%s332 + $0x460] sm:$0xff]
        %v668 = vld [vmem:[%s332 + $0x468] sm:$0xff]
        %v669 = vld [vmem:[%s332 + $0x470] sm:$0xff]
        %v670 = vld [vmem:[%s332 + $0x478] sm:$0xff]
        %v671 = vld [vmem:[%s332 + $0x480] sm:$0xff]
        %v672 = vld [vmem:[%s332 + $0x488] sm:$0xff]
        %v673 = vld [vmem:[%s332 + $0x490] sm:$0xff]
        %v674 = vld [vmem:[%s332 + $0x498] sm:$0xff]
        %v675 = vld [vmem:[%s332 + $0x4a0] sm:$0xff]
        %v676 = vld [vmem:[%s332 + $0x4a8] sm:$0xff]
        %v677 = vld [vmem:[%s332 + $0x4b0] sm:$0xff]
        %v678 = vld [vmem:[%s332 + $0x4b8] sm:$0xff]
        %v679 = vld [vmem:[%s332 + $0x4c0] sm:$0xff]
        %v680 = vld [vmem:[%s332 + $0x4c8] sm:$0xff]
        %v681 = vld [vmem:[%s332 + $0x4d0] sm:$0xff]
        %v682 = vld [vmem:[%s332 + $0x4d8] sm:$0xff]
        %v683 = vld [vmem:[%s332 + $0x4e0] sm:$0xff]
        %v684 = vld [vmem:[%s332 + $0x4e8] sm:$0xff]
        %v685 = vld [vmem:[%s332 + $0x4f0] sm:$0xff]
        %v686 = vld [vmem:[%s332 + $0x4f8] sm:$0xff]
        %v687 = vld [vmem:[%s332 + $0x500] sm:$0xff]
        %v688 = vld [vmem:[%s332 + $0x508] sm:$0xff]
        %v689 = vld [vmem:[%s332 + $0x510] sm:$0xff]
        %v690 = vld [vmem:[%s332 + $0x518] sm:$0xff]
        %v691 = vld [vmem:[%s332 + $0x520] sm:$0xff]
        %v692 = vld [vmem:[%s332 + $0x528] sm:$0xff]
        %v693 = vld [vmem:[%s332 + $0x530] sm:$0xff]
        %v694 = vld [vmem:[%s332 + $0x538] sm:$0xff]
        %v695 = vld [vmem:[%s332 + $0x540] sm:$0xff]
        %v696 = vld [vmem:[%s332 + $0x548] sm:$0xff]
        %v697 = vld [vmem:[%s332 + $0x550] sm:$0xff]
        %v698 = vld [vmem:[%s332 + $0x558] sm:$0xff]
        %v699 = vld [vmem:[%s332 + $0x560] sm:$0xff]
        %v700 = vld [vmem:[%s332 + $0x568] sm:$0xff]
        %v701 = vld [vmem:[%s332 + $0x570] sm:$0xff]
        %v702 = vld [vmem:[%s332 + $0x578] sm:$0xff]
        %v703 = vld [vmem:[%s332 + $0x580] sm:$0xff]
        %v704 = vld [vmem:[%s332 + $0x588] sm:$0xff]
        %v705 = vld [vmem:[%s332 + $0x590] sm:$0xff]
        %v706 = vld [vmem:[%s332 + $0x598] sm:$0xff]
        %v707 = vld [vmem:[%s332 + $0x5a0] sm:$0xff]
        %v708 = vld [vmem:[%s332 + $0x5a8] sm:$0xff]
        %v709 = vld [vmem:[%s332 + $0x5b0] sm:$0xff]
        %v710 = vld [vmem:[%s332 + $0x5b8] sm:$0xff]
        %v711 = vld [vmem:[%s332 + $0x5c0] sm:$0xff]
        %v712 = vld [vmem:[%s332 + $0x5c8] sm:$0xff]
        %v713 = vld [vmem:[%s332 + $0x5d0] sm:$0xff]
        %v714 = vld [vmem:[%s332 + $0x5d8] sm:$0xff]
        %v715 = vld [vmem:[%s332 + $0x5e0] sm:$0xff]
        %v716 = vld [vmem:[%s332 + $0x5e8] sm:$0xff]
        %v717 = vld [vmem:[%s332 + $0x5f0] sm:$0xff]
        %v718 = vld [vmem:[%s332 + $0x5f8] sm:$0xff]
        %v719 = vld [vmem:[%s332 + $0x600] sm:$0xff]
        %v720 = vld [vmem:[%s332 + $0x608] sm:$0xff]
        %v721 = vld [vmem:[%s332 + $0x610] sm:$0xff]
        %v722 = vld [vmem:[%s332 + $0x618] sm:$0xff]
        %v723 = vld [vmem:[%s332 + $0x620] sm:$0xff]
        %v724 = vld [vmem:[%s332 + $0x628] sm:$0xff]
        %v725 = vld [vmem:[%s332 + $0x630] sm:$0xff]
        %v726 = vld [vmem:[%s332 + $0x638] sm:$0xff]
        %v727 = vld [vmem:[%s332 + $0x640] sm:$0xff]
        %v728 = vld [vmem:[%s332 + $0x648] sm:$0xff]
        %v729 = vld [vmem:[%s332 + $0x650] sm:$0xff]
        %v730 = vld [vmem:[%s332 + $0x658] sm:$0xff]
        %v731 = vld [vmem:[%s332 + $0x660] sm:$0xff]
        %v732 = vld [vmem:[%s332 + $0x668] sm:$0xff]
        %v733 = vld [vmem:[%s332 + $0x670] sm:$0xff]
        %v734 = vld [vmem:[%s332 + $0x678] sm:$0xff]
        %v735 = vld [vmem:[%s332 + $0x680] sm:$0xff]
        %v736 = vld [vmem:[%s332 + $0x688] sm:$0xff]
        %v737 = vld [vmem:[%s332 + $0x690] sm:$0xff]
        %v738 = vld [vmem:[%s332 + $0x698] sm:$0xff]
        %v739 = vld [vmem:[%s332 + $0x6a0] sm:$0xff]
        %v740 = vld [vmem:[%s332 + $0x6a8] sm:$0xff]
        %v741 = vld [vmem:[%s332 + $0x6b0] sm:$0xff]
        %v742 = vld [vmem:[%s332 + $0x6b8] sm:$0xff]
        %v743 = vld [vmem:[%s332 + $0x6c0] sm:$0xff]
        %v744 = vld [vmem:[%s332 + $0x6c8] sm:$0xff]
        %v745 = vld [vmem:[%s332 + $0x6d0] sm:$0xff]
        %v746 = vld [vmem:[%s332 + $0x6d8] sm:$0xff]
        %v747 = vld [vmem:[%s332 + $0x6e0] sm:$0xff]
        %v748 = vld [vmem:[%s332 + $0x6e8] sm:$0xff]
        %v749 = vld [vmem:[%s332 + $0x6f0] sm:$0xff]
        %v750 = vld [vmem:[%s332 + $0x6f8] sm:$0xff]
        %v751 = vld [vmem:[%s332 + $0x700] sm:$0xff]
        %v752 = vld [vmem:[%s332 + $0x708] sm:$0xff]
        %v753 = vld [vmem:[%s332 + $0x710] sm:$0xff]
        %v754 = vld [vmem:[%s332 + $0x718] sm:$0xff]
        %v755 = vld [vmem:[%s332 + $0x720] sm:$0xff]
        %v756 = vld [vmem:[%s332 + $0x728] sm:$0xff]
        %v757 = vld [vmem:[%s332 + $0x730] sm:$0xff]
        %v758 = vld [vmem:[%s332 + $0x738] sm:$0xff]
        %v759 = vld [vmem:[%s332 + $0x740] sm:$0xff]
        %v760 = vld [vmem:[%s332 + $0x748] sm:$0xff]
        %v761 = vld [vmem:[%s332 + $0x750] sm:$0xff]
        %v762 = vld [vmem:[%s332 + $0x758] sm:$0xff]
        %v763 = vld [vmem:[%s332 + $0x760] sm:$0xff]
        %v764 = vld [vmem:[%s332 + $0x768] sm:$0xff]
        %v765 = vld [vmem:[%s332 + $0x770] sm:$0xff]
        %v766 = vld [vmem:[%s332 + $0x778] sm:$0xff]
        %v767 = vld [vmem:[%s332 + $0x780] sm:$0xff]
        %v768 = vld [vmem:[%s332 + $0x788] sm:$0xff]
        %v769 = vld [vmem:[%s332 + $0x790] sm:$0xff]
        %v770 = vld [vmem:[%s332 + $0x798] sm:$0xff]
        %v771 = vld [vmem:[%s332 + $0x7a0] sm:$0xff]
        %v772 = vld [vmem:[%s332 + $0x7a8] sm:$0xff]
        %v773 = vld [vmem:[%s332 + $0x7b0] sm:$0xff]
        %v774 = vld [vmem:[%s332 + $0x7b8] sm:$0xff]
        %v775 = vld [vmem:[%s332 + $0x7c0] sm:$0xff]
        %v776 = vld [vmem:[%s332 + $0x7c8] sm:$0xff]
        %v777 = vld [vmem:[%s332 + $0x7d0] sm:$0xff]
        %v778 = vld [vmem:[%s332 + $0x7d8] sm:$0xff]
        %v779 = vld [vmem:[%s332 + $0x7e0] sm:$0xff]
        %v780 = vld [vmem:[%s332 + $0x7e8] sm:$0xff]
        %v781 = vld [vmem:[%s332 + $0x7f0] sm:$0xff]
        %v782 = vld [vmem:[%s332 + $0x7f8] sm:$0xff]
        %v783 = vld [vmem:[%s332 + $0x800] sm:$0xff]
        %v784 = vld [vmem:[%s332 + $0x808] sm:$0xff]
        %v785 = vld [vmem:[%s332 + $0x810] sm:$0xff]
        %v786 = vld [vmem:[%s332 + $0x818] sm:$0xff]
        %v787 = vld [vmem:[%s332 + $0x820] sm:$0xff]
        %v788 = vld [vmem:[%s332 + $0x828] sm:$0xff]
        %v789 = vld [vmem:[%s332 + $0x830] sm:$0xff]
        %v790 = vld [vmem:[%s332 + $0x838] sm:$0xff]
        %v791 = vld [vmem:[%s332 + $0x840] sm:$0xff]
        %v792 = vld [vmem:[%s332 + $0x848] sm:$0xff]
        %v793 = vld [vmem:[%s332 + $0x850] sm:$0xff]
        %v794 = vld [vmem:[%s332 + $0x858] sm:$0xff]
        %v795 = vld [vmem:[%s332 + $0x860] sm:$0xff]
        %v796 = vld [vmem:[%s332 + $0x868] sm:$0xff]
        %v797 = vld [vmem:[%s332 + $0x870] sm:$0xff]
        %v798 = vld [vmem:[%s332 + $0x878] sm:$0xff]
        %v799 = vld [vmem:[%s332 + $0x880] sm:$0xff]
        %v800 = vld [vmem:[%s332 + $0x888] sm:$0xff]
        %v801 = vld [vmem:[%s332 + $0x890] sm:$0xff]
        %v802 = vld [vmem:[%s332 + $0x898] sm:$0xff]
        %v803 = vld [vmem:[%s332 + $0x8a0] sm:$0xff]
        %v804 = vld [vmem:[%s332 + $0x8a8] sm:$0xff]
        %v805 = vld [vmem:[%s332 + $0x8b0] sm:$0xff]
        %v806 = vld [vmem:[%s332 + $0x8b8] sm:$0xff]
        %v807 = vld [vmem:[%s332 + $0x8c0] sm:$0xff]
        %v808 = vld [vmem:[%s332 + $0x8c8] sm:$0xff]
        %v809 = vld [vmem:[%s332 + $0x8d0] sm:$0xff]
        %v810 = vld [vmem:[%s332 + $0x8d8] sm:$0xff]
        %v811 = vld [vmem:[%s332 + $0x8e0] sm:$0xff]
        %v812 = vld [vmem:[%s332 + $0x8e8] sm:$0xff]
        %v813 = vld [vmem:[%s332 + $0x8f0] sm:$0xff]
        %v814 = vld [vmem:[%s332 + $0x8f8] sm:$0xff]
        %v815 = vld [vmem:[%s332 + $0x900] sm:$0xff]
        %v816 = vld [vmem:[%s332 + $0x908] sm:$0xff]
        %v817 = vld [vmem:[%s332 + $0x910] sm:$0xff]
        %v818 = vld [vmem:[%s332 + $0x918] sm:$0xff]
        %v819 = vld [vmem:[%s332 + $0x920] sm:$0xff]
        %v820 = vld [vmem:[%s332 + $0x928] sm:$0xff]
        %v821 = vld [vmem:[%s332 + $0x930] sm:$0xff]
        %v822 = vld [vmem:[%s332 + $0x938] sm:$0xff]
        %v823 = vld [vmem:[%s332 + $0x940] sm:$0xff]
        %v824 = vld [vmem:[%s332 + $0x948] sm:$0xff]
        %v825 = vld [vmem:[%s332 + $0x950] sm:$0xff]
        %v826 = vld [vmem:[%s332 + $0x958] sm:$0xff]
        %v827 = vld [vmem:[%s332 + $0x960] sm:$0xff]
        %v828 = vld [vmem:[%s332 + $0x968] sm:$0xff]
        %v829 = vld [vmem:[%s332 + $0x970] sm:$0xff]
        %v830 = vld [vmem:[%s332 + $0x978] sm:$0xff]
        %v831 = vld [vmem:[%s332 + $0x980] sm:$0xff]
        %v832 = vld [vmem:[%s332 + $0x988] sm:$0xff]
        %v833 = vld [vmem:[%s332 + $0x990] sm:$0xff]
        %v834 = vld [vmem:[%s332 + $0x998] sm:$0xff]
        %v835 = vld [vmem:[%s332 + $0x9a0] sm:$0xff]
        %v836 = vld [vmem:[%s332 + $0x9a8] sm:$0xff]
        %v837 = vld [vmem:[%s332 + $0x9b0] sm:$0xff]
        %v838 = vld [vmem:[%s332 + $0x9b8] sm:$0xff]
        %v839 = vld [vmem:[%s332 + $0x9c0] sm:$0xff]
        %v840 = vld [vmem:[%s332 + $0x9c8] sm:$0xff]
        %v841 = vld [vmem:[%s332 + $0x9d0] sm:$0xff]
        %v842 = vld [vmem:[%s332 + $0x9d8] sm:$0xff]
        %v843 = vld [vmem:[%s332 + $0x9e0] sm:$0xff]
        %v844 = vld [vmem:[%s332 + $0x9e8] sm:$0xff]
        %v845 = vld [vmem:[%s332 + $0x9f0] sm:$0xff]
        %v846 = vld [vmem:[%s332 + $0x9f8] sm:$0xff]
        %v847 = vld [vmem:[%s332 + $0xa00] sm:$0xff]
        %v848 = vld [vmem:[%s332 + $0xa08] sm:$0xff]
        %v849 = vld [vmem:[%s332 + $0xa10] sm:$0xff]
        %v850 = vld [vmem:[%s332 + $0xa18] sm:$0xff]
        %v851 = vld [vmem:[%s332 + $0xa20] sm:$0xff]
        %v852 = vld [vmem:[%s332 + $0xa28] sm:$0xff]
        %v853 = vld [vmem:[%s332 + $0xa30] sm:$0xff]
        %v854 = vld [vmem:[%s332 + $0xa38] sm:$0xff]
        %v855 = vld [vmem:[%s332 + $0xa40] sm:$0xff]
        %v856 = vld [vmem:[%s332 + $0xa48] sm:$0xff]
        %v857 = vld [vmem:[%s332 + $0xa50] sm:$0xff]
        %v858 = vld [vmem:[%s332 + $0xa58] sm:$0xff]
        %v859 = vld [vmem:[%s332 + $0xa60] sm:$0xff]
        %v860 = vld [vmem:[%s332 + $0xa68] sm:$0xff]
        %v861 = vld [vmem:[%s332 + $0xa70] sm:$0xff]
        %v862 = vld [vmem:[%s332 + $0xa78] sm:$0xff]
        %v863 = vld [vmem:[%s332 + $0xa80] sm:$0xff]
        %v864 = vld [vmem:[%s332 + $0xa88] sm:$0xff]
        %v865 = vld [vmem:[%s332 + $0xa90] sm:$0xff]
        %v866 = vld [vmem:[%s332 + $0xa98] sm:$0xff]
        %v867 = vld [vmem:[%s332 + $0xaa0] sm:$0xff]
        %v868 = vld [vmem:[%s332 + $0xaa8] sm:$0xff]
        %v869 = vld [vmem:[%s332 + $0xab0] sm:$0xff]
        %v870 = vld [vmem:[%s332 + $0xab8] sm:$0xff]
        %v871 = vld [vmem:[%s332 + $0xac0] sm:$0xff]
        %v872 = vld [vmem:[%s332 + $0xac8] sm:$0xff]
        %v873 = vld [vmem:[%s332 + $0xad0] sm:$0xff]
        %v874 = vld [vmem:[%s332 + $0xad8] sm:$0xff]
        %v875 = vld [vmem:[%s332 + $0xae0] sm:$0xff]
        %v876 = vld [vmem:[%s332 + $0xae8] sm:$0xff]
        %v877 = vld [vmem:[%s332 + $0xaf0] sm:$0xff]
        %v878 = vld [vmem:[%s332 + $0xaf8] sm:$0xff]
        %v879 = vld [vmem:[%s332 + $0xb00] sm:$0xff]
        %v880 = vld [vmem:[%s332 + $0xb08] sm:$0xff]
        %v881 = vld [vmem:[%s332 + $0xb10] sm:$0xff]
        %v882 = vld [vmem:[%s332 + $0xb18] sm:$0xff]
        %v883 = vld [vmem:[%s332 + $0xb20] sm:$0xff]
        %v884 = vld [vmem:[%s332 + $0xb28] sm:$0xff]
        %v885 = vld [vmem:[%s332 + $0xb30] sm:$0xff]
        %v886 = vld [vmem:[%s332 + $0xb38] sm:$0xff]
        %v887 = vld [vmem:[%s332 + $0xb40] sm:$0xff]
        %v888 = vld [vmem:[%s332 + $0xb48] sm:$0xff]
        %v889 = vld [vmem:[%s332 + $0xb50] sm:$0xff]
        %v890 = vld [vmem:[%s332 + $0xb58] sm:$0xff]
        %v891 = vld [vmem:[%s332 + $0xb60] sm:$0xff]
        %v892 = vld [vmem:[%s332 + $0xb68] sm:$0xff]
        %v893 = vld [vmem:[%s332 + $0xb70] sm:$0xff]
        %v894 = vld [vmem:[%s332 + $0xb78] sm:$0xff]
        %v895 = vld [vmem:[%s332 + $0xb80] sm:$0xff]
        %v896 = vld [vmem:[%s332 + $0xb88] sm:$0xff]
        %v897 = vld [vmem:[%s332 + $0xb90] sm:$0xff]
        %v898 = vld [vmem:[%s332 + $0xb98] sm:$0xff]
        %v899 = vld [vmem:[%s332 + $0xba0] sm:$0xff]
        %v900 = vld [vmem:[%s332 + $0xba8] sm:$0xff]
        %v901 = vld [vmem:[%s332 + $0xbb0] sm:$0xff]
        %v902 = vld [vmem:[%s332 + $0xbb8] sm:$0xff]
        %v903 = vld [vmem:[%s332 + $0xbc0] sm:$0xff]
        %v904 = vld [vmem:[%s332 + $0xbc8] sm:$0xff]
        %v905 = vld [vmem:[%s332 + $0xbd0] sm:$0xff]
        %v906 = vld [vmem:[%s332 + $0xbd8] sm:$0xff]
        %v907 = vld [vmem:[%s332 + $0xbe0] sm:$0xff]
        %v908 = vld [vmem:[%s332 + $0xbe8] sm:$0xff]
        %v909 = vld [vmem:[%s332 + $0xbf0] sm:$0xff]
        %v910 = vld [vmem:[%s332 + $0xbf8] sm:$0xff]
        %v911 = vld [vmem:[%s332 + $0xc00] sm:$0xff]
        %v912 = vld [vmem:[%s332 + $0xc08] sm:$0xff]
        %v913 = vld [vmem:[%s332 + $0xc10] sm:$0xff]
        %v914 = vld [vmem:[%s332 + $0xc18] sm:$0xff]
        %v915 = vld [vmem:[%s332 + $0xc20] sm:$0xff]
        %v916 = vld [vmem:[%s332 + $0xc28] sm:$0xff]
        %v917 = vld [vmem:[%s332 + $0xc30] sm:$0xff]
        %v918 = vld [vmem:[%s332 + $0xc38] sm:$0xff]
        %v919 = vld [vmem:[%s332 + $0xc40] sm:$0xff]
        %v920 = vld [vmem:[%s332 + $0xc48] sm:$0xff]
        %v921 = vld [vmem:[%s332 + $0xc50] sm:$0xff]
        %v922 = vld [vmem:[%s332 + $0xc58] sm:$0xff]
        %v923 = vld [vmem:[%s332 + $0xc60] sm:$0xff]
        %v924 = vld [vmem:[%s332 + $0xc68] sm:$0xff]
        %v925 = vld [vmem:[%s332 + $0xc70] sm:$0xff]
        %v926 = vld [vmem:[%s332 + $0xc78] sm:$0xff]
        %v927 = vld [vmem:[%s332 + $0xc80] sm:$0xff]
        %v928 = vld [vmem:[%s332 + $0xc88] sm:$0xff]
        %v929 = vld [vmem:[%s332 + $0xc90] sm:$0xff]
        %v930 = vld [vmem:[%s332 + $0xc98] sm:$0xff]
        %v931 = vld [vmem:[%s332 + $0xca0] sm:$0xff]
        %v932 = vld [vmem:[%s332 + $0xca8] sm:$0xff]
        %v933 = vld [vmem:[%s332 + $0xcb0] sm:$0xff]
        %v934 = vld [vmem:[%s332 + $0xcb8] sm:$0xff]
        %v935 = vld [vmem:[%s332 + $0xcc0] sm:$0xff]
        %v936 = vld [vmem:[%s332 + $0xcc8] sm:$0xff]
        %v937 = vld [vmem:[%s332 + $0xcd0] sm:$0xff]
        %v938 = vld [vmem:[%s332 + $0xcd8] sm:$0xff]
        %v939 = vld [vmem:[%s332 + $0xce0] sm:$0xff]
        %v940 = vld [vmem:[%s332 + $0xce8] sm:$0xff]
        %v941 = vld [vmem:[%s332 + $0xcf0] sm:$0xff]
        %v942 = vld [vmem:[%s332 + $0xcf8] sm:$0xff]
        %v943 = vld [vmem:[%s332 + $0xd00] sm:$0xff]
        %v944 = vld [vmem:[%s332 + $0xd08] sm:$0xff]
        %v945 = vld [vmem:[%s332 + $0xd10] sm:$0xff]
        %v946 = vld [vmem:[%s332 + $0xd18] sm:$0xff]
        %v947 = vld [vmem:[%s332 + $0xd20] sm:$0xff]
        %v948 = vld [vmem:[%s332 + $0xd28] sm:$0xff]
        %v949 = vld [vmem:[%s332 + $0xd30] sm:$0xff]
        %v950 = vld [vmem:[%s332 + $0xd38] sm:$0xff]
        %v951 = vld [vmem:[%s332 + $0xd40] sm:$0xff]
        %v952 = vld [vmem:[%s332 + $0xd48] sm:$0xff]
        %v953 = vld [vmem:[%s332 + $0xd50] sm:$0xff]
        %v954 = vld [vmem:[%s332 + $0xd58] sm:$0xff]
        %v955 = vld [vmem:[%s332 + $0xd60] sm:$0xff]
        %v956 = vld [vmem:[%s332 + $0xd68] sm:$0xff]
        %v957 = vld [vmem:[%s332 + $0xd70] sm:$0xff]
        %v958 = vld [vmem:[%s332 + $0xd78] sm:$0xff]
        %v959 = vld [vmem:[%s332 + $0xd80] sm:$0xff]
        %v960 = vld [vmem:[%s332 + $0xd88] sm:$0xff]
        %v961 = vld [vmem:[%s332 + $0xd90] sm:$0xff]
        %v962 = vld [vmem:[%s332 + $0xd98] sm:$0xff]
        %v963 = vld [vmem:[%s332 + $0xda0] sm:$0xff]
        %v964 = vld [vmem:[%s332 + $0xda8] sm:$0xff]
        %v965 = vld [vmem:[%s332 + $0xdb0] sm:$0xff]
        %v966 = vld [vmem:[%s332 + $0xdb8] sm:$0xff]
        %v967 = vld [vmem:[%s332 + $0xdc0] sm:$0xff]
        %v968 = vld [vmem:[%s332 + $0xdc8] sm:$0xff]
        %v969 = vld [vmem:[%s332 + $0xdd0] sm:$0xff]
        %v970 = vld [vmem:[%s332 + $0xdd8] sm:$0xff]
        %v971 = vld [vmem:[%s332 + $0xde0] sm:$0xff]
        %v972 = vld [vmem:[%s332 + $0xde8] sm:$0xff]
        %v973 = vld [vmem:[%s332 + $0xdf0] sm:$0xff]
        %v974 = vld [vmem:[%s332 + $0xdf8] sm:$0xff]
        %v975 = vld [vmem:[%s341] sm:$0xff]
        %v976 = vld [vmem:[%s341 + $0x8] sm:$0xff]
        %v977 = vld [vmem:[%s341 + $0x10] sm:$0xff]
        %v978 = vld [vmem:[%s341 + $0x18] sm:$0xff]
        %v979 = vld [vmem:[%s341 + $0x20] sm:$0xff]
        %v980 = vld [vmem:[%s341 + $0x28] sm:$0xff]
        %v981 = vld [vmem:[%s341 + $0x30] sm:$0xff]
        %v982 = vld [vmem:[%s341 + $0x38] sm:$0xff]
        %v983 = vld [vmem:[%s341 + $0x40] sm:$0xff]
        %v984 = vld [vmem:[%s341 + $0x48] sm:$0xff]
        %v985 = vld [vmem:[%s341 + $0x50] sm:$0xff]
        %v986 = vld [vmem:[%s341 + $0x58] sm:$0xff]
        %v987 = vld [vmem:[%s341 + $0x60] sm:$0xff]
        %v988 = vld [vmem:[%s341 + $0x68] sm:$0xff]
        %v989 = vld [vmem:[%s341 + $0x70] sm:$0xff]
        %v990 = vld [vmem:[%s341 + $0x78] sm:$0xff]
        %v991 = vld [vmem:[%s341 + $0x80] sm:$0xff]
        %v992 = vld [vmem:[%s341 + $0x88] sm:$0xff]
        %v993 = vld [vmem:[%s341 + $0x90] sm:$0xff]
        %v994 = vld [vmem:[%s341 + $0x98] sm:$0xff]
        %v995 = vld [vmem:[%s341 + $0xa0] sm:$0xff]
        %v996 = vld [vmem:[%s341 + $0xa8] sm:$0xff]
        %v997 = vld [vmem:[%s341 + $0xb0] sm:$0xff]
        %v998 = vld [vmem:[%s341 + $0xb8] sm:$0xff]
        %v999 = vld [vmem:[%s341 + $0xc0] sm:$0xff]
        %v1000 = vld [vmem:[%s341 + $0xc8] sm:$0xff]
        %v1001 = vld [vmem:[%s341 + $0xd0] sm:$0xff]
        %v1002 = vld [vmem:[%s341 + $0xd8] sm:$0xff]
        %v1003 = vld [vmem:[%s341 + $0xe0] sm:$0xff]
        %v1004 = vld [vmem:[%s341 + $0xe8] sm:$0xff]
        %v1005 = vld [vmem:[%s341 + $0xf0] sm:$0xff]
        %v1006 = vld [vmem:[%s341 + $0xf8] sm:$0xff]
        %v1007 = vld [vmem:[%s341 + $0x100] sm:$0xff]
        %v1008 = vld [vmem:[%s341 + $0x108] sm:$0xff]
        %v1009 = vld [vmem:[%s341 + $0x110] sm:$0xff]
        %v1010 = vld [vmem:[%s341 + $0x118] sm:$0xff]
        %v1011 = vld [vmem:[%s341 + $0x120] sm:$0xff]
        %v1012 = vld [vmem:[%s341 + $0x128] sm:$0xff]
        %v1013 = vld [vmem:[%s341 + $0x130] sm:$0xff]
        %v1014 = vld [vmem:[%s341 + $0x138] sm:$0xff]
        %v1015 = vld [vmem:[%s341 + $0x140] sm:$0xff]
        %v1016 = vld [vmem:[%s341 + $0x148] sm:$0xff]
        %v1017 = vld [vmem:[%s341 + $0x150] sm:$0xff]
        %v1018 = vld [vmem:[%s341 + $0x158] sm:$0xff]
        %v1019 = vld [vmem:[%s341 + $0x160] sm:$0xff]
        %v1020 = vld [vmem:[%s341 + $0x168] sm:$0xff]
        %v1021 = vld [vmem:[%s341 + $0x170] sm:$0xff]
        %v1022 = vld [vmem:[%s341 + $0x178] sm:$0xff]
        %v1023 = vld [vmem:[%s341 + $0x180] sm:$0xff]
        %v1024 = vld [vmem:[%s341 + $0x188] sm:$0xff]
        %v1025 = vld [vmem:[%s341 + $0x190] sm:$0xff]
        %v1026 = vld [vmem:[%s341 + $0x198] sm:$0xff]
        %v1027 = vld [vmem:[%s341 + $0x1a0] sm:$0xff]
        %v1028 = vld [vmem:[%s341 + $0x1a8] sm:$0xff]
        %v1029 = vld [vmem:[%s341 + $0x1b0] sm:$0xff]
        %v1030 = vld [vmem:[%s341 + $0x1b8] sm:$0xff]
        %v1031 = vld [vmem:[%s341 + $0x1c0] sm:$0xff]
        %v1032 = vld [vmem:[%s341 + $0x1c8] sm:$0xff]
        %v1033 = vld [vmem:[%s341 + $0x1d0] sm:$0xff]
        %v1034 = vld [vmem:[%s341 + $0x1d8] sm:$0xff]
        %v1035 = vld [vmem:[%s341 + $0x1e0] sm:$0xff]
        %v1036 = vld [vmem:[%s341 + $0x1e8] sm:$0xff]
        %v1037 = vld [vmem:[%s341 + $0x1f0] sm:$0xff]
        %v1038 = vld [vmem:[%s341 + $0x1f8] sm:$0xff]
        %v1039 = vld [vmem:[%s341 + $0x200] sm:$0xff]
        %v1040 = vld [vmem:[%s341 + $0x208] sm:$0xff]
        %v1041 = vld [vmem:[%s341 + $0x210] sm:$0xff]
        %v1042 = vld [vmem:[%s341 + $0x218] sm:$0xff]
        %v1043 = vld [vmem:[%s341 + $0x220] sm:$0xff]
        %v1044 = vld [vmem:[%s341 + $0x228] sm:$0xff]
        %v1045 = vld [vmem:[%s341 + $0x230] sm:$0xff]
        %v1046 = vld [vmem:[%s341 + $0x238] sm:$0xff]
        %v1047 = vld [vmem:[%s341 + $0x240] sm:$0xff]
        %v1048 = vld [vmem:[%s341 + $0x248] sm:$0xff]
        %v1049 = vld [vmem:[%s341 + $0x250] sm:$0xff]
        %v1050 = vld [vmem:[%s341 + $0x258] sm:$0xff]
        %v1051 = vld [vmem:[%s341 + $0x260] sm:$0xff]
        %v1052 = vld [vmem:[%s341 + $0x268] sm:$0xff]
        %v1053 = vld [vmem:[%s341 + $0x270] sm:$0xff]
        %v1054 = vld [vmem:[%s341 + $0x278] sm:$0xff]
        %v1055 = vld [vmem:[%s341 + $0x280] sm:$0xff]
        %v1056 = vld [vmem:[%s341 + $0x288] sm:$0xff]
        %v1057 = vld [vmem:[%s341 + $0x290] sm:$0xff]
        %v1058 = vld [vmem:[%s341 + $0x298] sm:$0xff]
        %v1059 = vld [vmem:[%s341 + $0x2a0] sm:$0xff]
        %v1060 = vld [vmem:[%s341 + $0x2a8] sm:$0xff]
        %v1061 = vld [vmem:[%s341 + $0x2b0] sm:$0xff]
        %v1062 = vld [vmem:[%s341 + $0x2b8] sm:$0xff]
        %v1063 = vld [vmem:[%s341 + $0x2c0] sm:$0xff]
        %v1064 = vld [vmem:[%s341 + $0x2c8] sm:$0xff]
        %v1065 = vld [vmem:[%s341 + $0x2d0] sm:$0xff]
        %v1066 = vld [vmem:[%s341 + $0x2d8] sm:$0xff]
        %v1067 = vld [vmem:[%s341 + $0x2e0] sm:$0xff]
        %v1068 = vld [vmem:[%s341 + $0x2e8] sm:$0xff]
        %v1069 = vld [vmem:[%s341 + $0x2f0] sm:$0xff]
        %v1070 = vld [vmem:[%s341 + $0x2f8] sm:$0xff]
        %v1071 = vld [vmem:[%s341 + $0x300] sm:$0xff]
        %v1072 = vld [vmem:[%s341 + $0x308] sm:$0xff]
        %v1073 = vld [vmem:[%s341 + $0x310] sm:$0xff]
        %v1074 = vld [vmem:[%s341 + $0x318] sm:$0xff]
        %v1075 = vld [vmem:[%s341 + $0x320] sm:$0xff]
        %v1076 = vld [vmem:[%s341 + $0x328] sm:$0xff]
        %v1077 = vld [vmem:[%s341 + $0x330] sm:$0xff]
        %v1078 = vld [vmem:[%s341 + $0x338] sm:$0xff]
        %v1079 = vld [vmem:[%s341 + $0x340] sm:$0xff]
        %v1080 = vld [vmem:[%s341 + $0x348] sm:$0xff]
        %v1081 = vld [vmem:[%s341 + $0x350] sm:$0xff]
        %v1082 = vld [vmem:[%s341 + $0x358] sm:$0xff]
        %v1083 = vld [vmem:[%s341 + $0x360] sm:$0xff]
        %v1084 = vld [vmem:[%s341 + $0x368] sm:$0xff]
        %v1085 = vld [vmem:[%s341 + $0x370] sm:$0xff]
        %v1086 = vld [vmem:[%s341 + $0x378] sm:$0xff]
        %v1087 = vld [vmem:[%s341 + $0x380] sm:$0xff]
        %v1088 = vld [vmem:[%s341 + $0x388] sm:$0xff]
        %v1089 = vld [vmem:[%s341 + $0x390] sm:$0xff]
        %v1090 = vld [vmem:[%s341 + $0x398] sm:$0xff]
        %v1091 = vld [vmem:[%s341 + $0x3a0] sm:$0xff]
        %v1092 = vld [vmem:[%s341 + $0x3a8] sm:$0xff]
        %v1093 = vld [vmem:[%s341 + $0x3b0] sm:$0xff]
        %v1094 = vld [vmem:[%s341 + $0x3b8] sm:$0xff]
        %v1095 = vld [vmem:[%s341 + $0x3c0] sm:$0xff]
        %v1096 = vld [vmem:[%s341 + $0x3c8] sm:$0xff]
        %v1097 = vld [vmem:[%s341 + $0x3d0] sm:$0xff]
        %v1098 = vld [vmem:[%s341 + $0x3d8] sm:$0xff]
        %v1099 = vld [vmem:[%s341 + $0x3e0] sm:$0xff]
        %v1100 = vld [vmem:[%s341 + $0x3e8] sm:$0xff]
        %v1101 = vld [vmem:[%s341 + $0x3f0] sm:$0xff]
        %v1102 = vld [vmem:[%s341 + $0x3f8] sm:$0xff]
        %v1103 = vld [vmem:[%s341 + $0x400] sm:$0xff]
        %v1104 = vld [vmem:[%s341 + $0x408] sm:$0xff]
        %v1105 = vld [vmem:[%s341 + $0x410] sm:$0xff]
        %v1106 = vld [vmem:[%s341 + $0x418] sm:$0xff]
        %v1107 = vld [vmem:[%s341 + $0x420] sm:$0xff]
        %v1108 = vld [vmem:[%s341 + $0x428] sm:$0xff]
        %v1109 = vld [vmem:[%s341 + $0x430] sm:$0xff]
        %v1110 = vld [vmem:[%s341 + $0x438] sm:$0xff]
        %v1111 = vld [vmem:[%s341 + $0x440] sm:$0xff]
        %v1112 = vld [vmem:[%s341 + $0x448] sm:$0xff]
        %v1113 = vld [vmem:[%s341 + $0x450] sm:$0xff]
        %v1114 = vld [vmem:[%s341 + $0x458] sm:$0xff]
        %v1115 = vld [vmem:[%s341 + $0x460] sm:$0xff]
        %v1116 = vld [vmem:[%s341 + $0x468] sm:$0xff]
        %v1117 = vld [vmem:[%s341 + $0x470] sm:$0xff]
        %v1118 = vld [vmem:[%s341 + $0x478] sm:$0xff]
        %v1119 = vld [vmem:[%s341 + $0x480] sm:$0xff]
        %v1120 = vld [vmem:[%s341 + $0x488] sm:$0xff]
        %v1121 = vld [vmem:[%s341 + $0x490] sm:$0xff]
        %v1122 = vld [vmem:[%s341 + $0x498] sm:$0xff]
        %v1123 = vld [vmem:[%s341 + $0x4a0] sm:$0xff]
        %v1124 = vld [vmem:[%s341 + $0x4a8] sm:$0xff]
        %v1125 = vld [vmem:[%s341 + $0x4b0] sm:$0xff]
        %v1126 = vld [vmem:[%s341 + $0x4b8] sm:$0xff]
        %v1127 = vld [vmem:[%s341 + $0x4c0] sm:$0xff]
        %v1128 = vld [vmem:[%s341 + $0x4c8] sm:$0xff]
        %v1129 = vld [vmem:[%s341 + $0x4d0] sm:$0xff]
        %v1130 = vld [vmem:[%s341 + $0x4d8] sm:$0xff]
        %v1131 = vld [vmem:[%s341 + $0x4e0] sm:$0xff]
        %v1132 = vld [vmem:[%s341 + $0x4e8] sm:$0xff]
        %v1133 = vld [vmem:[%s341 + $0x4f0] sm:$0xff]
        %v1134 = vld [vmem:[%s341 + $0x4f8] sm:$0xff]
        %v1135 = vld [vmem:[%s341 + $0x500] sm:$0xff]
        %v1136 = vld [vmem:[%s341 + $0x508] sm:$0xff]
        %v1137 = vld [vmem:[%s341 + $0x510] sm:$0xff]
        %v1138 = vld [vmem:[%s341 + $0x518] sm:$0xff]
        %v1139 = vld [vmem:[%s341 + $0x520] sm:$0xff]
        %v1140 = vld [vmem:[%s341 + $0x528] sm:$0xff]
        %v1141 = vld [vmem:[%s341 + $0x530] sm:$0xff]
        %v1142 = vld [vmem:[%s341 + $0x538] sm:$0xff]
        %v1143 = vld [vmem:[%s341 + $0x540] sm:$0xff]
        %v1144 = vld [vmem:[%s341 + $0x548] sm:$0xff]
        %v1145 = vld [vmem:[%s341 + $0x550] sm:$0xff]
        %v1146 = vld [vmem:[%s341 + $0x558] sm:$0xff]
        %v1147 = vld [vmem:[%s341 + $0x560] sm:$0xff]
        %v1148 = vld [vmem:[%s341 + $0x568] sm:$0xff]
        %v1149 = vld [vmem:[%s341 + $0x570] sm:$0xff]
        %v1150 = vld [vmem:[%s341 + $0x578] sm:$0xff]
        %v1151 = vld [vmem:[%s341 + $0x580] sm:$0xff]
        %v1152 = vld [vmem:[%s341 + $0x588] sm:$0xff]
        %v1153 = vld [vmem:[%s341 + $0x590] sm:$0xff]
        %v1154 = vld [vmem:[%s341 + $0x598] sm:$0xff]
        %v1155 = vld [vmem:[%s341 + $0x5a0] sm:$0xff]
        %v1156 = vld [vmem:[%s341 + $0x5a8] sm:$0xff]
        %v1157 = vld [vmem:[%s341 + $0x5b0] sm:$0xff]
        %v1158 = vld [vmem:[%s341 + $0x5b8] sm:$0xff]
        %v1159 = vld [vmem:[%s341 + $0x5c0] sm:$0xff]
        %v1160 = vld [vmem:[%s341 + $0x5c8] sm:$0xff]
        %v1161 = vld [vmem:[%s341 + $0x5d0] sm:$0xff]
        %v1162 = vld [vmem:[%s341 + $0x5d8] sm:$0xff]
        %v1163 = vld [vmem:[%s341 + $0x5e0] sm:$0xff]
        %v1164 = vld [vmem:[%s341 + $0x5e8] sm:$0xff]
        %v1165 = vld [vmem:[%s341 + $0x5f0] sm:$0xff]
        %v1166 = vld [vmem:[%s341 + $0x5f8] sm:$0xff]
        %v1167 = vld [vmem:[%s341 + $0x600] sm:$0xff]
        %v1168 = vld [vmem:[%s341 + $0x608] sm:$0xff]
        %v1169 = vld [vmem:[%s341 + $0x610] sm:$0xff]
        %v1170 = vld [vmem:[%s341 + $0x618] sm:$0xff]
        %v1171 = vld [vmem:[%s341 + $0x620] sm:$0xff]
        %v1172 = vld [vmem:[%s341 + $0x628] sm:$0xff]
        %v1173 = vld [vmem:[%s341 + $0x630] sm:$0xff]
        %v1174 = vld [vmem:[%s341 + $0x638] sm:$0xff]
        %v1175 = vld [vmem:[%s341 + $0x640] sm:$0xff]
        %v1176 = vld [vmem:[%s341 + $0x648] sm:$0xff]
        %v1177 = vld [vmem:[%s341 + $0x650] sm:$0xff]
        %v1178 = vld [vmem:[%s341 + $0x658] sm:$0xff]
        %v1179 = vld [vmem:[%s341 + $0x660] sm:$0xff]
        %v1180 = vld [vmem:[%s341 + $0x668] sm:$0xff]
        %v1181 = vld [vmem:[%s341 + $0x670] sm:$0xff]
        %v1182 = vld [vmem:[%s341 + $0x678] sm:$0xff]
        %v1183 = vld [vmem:[%s341 + $0x680] sm:$0xff]
        %v1184 = vld [vmem:[%s341 + $0x688] sm:$0xff]
        %v1185 = vld [vmem:[%s341 + $0x690] sm:$0xff]
        %v1186 = vld [vmem:[%s341 + $0x698] sm:$0xff]
        %v1187 = vld [vmem:[%s341 + $0x6a0] sm:$0xff]
        %v1188 = vld [vmem:[%s341 + $0x6a8] sm:$0xff]
        %v1189 = vld [vmem:[%s341 + $0x6b0] sm:$0xff]
        %v1190 = vld [vmem:[%s341 + $0x6b8] sm:$0xff]
        %v1191 = vld [vmem:[%s341 + $0x6c0] sm:$0xff]
        %v1192 = vld [vmem:[%s341 + $0x6c8] sm:$0xff]
        %v1193 = vld [vmem:[%s341 + $0x6d0] sm:$0xff]
        %v1194 = vld [vmem:[%s341 + $0x6d8] sm:$0xff]
        %v1195 = vld [vmem:[%s341 + $0x6e0] sm:$0xff]
        %v1196 = vld [vmem:[%s341 + $0x6e8] sm:$0xff]
        %v1197 = vld [vmem:[%s341 + $0x6f0] sm:$0xff]
        %v1198 = vld [vmem:[%s341 + $0x6f8] sm:$0xff]
        %v1199 = vld [vmem:[%s341 + $0x700] sm:$0xff]
        %v1200 = vld [vmem:[%s341 + $0x708] sm:$0xff]
        %v1201 = vld [vmem:[%s341 + $0x710] sm:$0xff]
        %v1202 = vld [vmem:[%s341 + $0x718] sm:$0xff]
        %v1203 = vld [vmem:[%s341 + $0x720] sm:$0xff]
        %v1204 = vld [vmem:[%s341 + $0x728] sm:$0xff]
        %v1205 = vld [vmem:[%s341 + $0x730] sm:$0xff]
        %v1206 = vld [vmem:[%s341 + $0x738] sm:$0xff]
        %v1207 = vld [vmem:[%s341 + $0x740] sm:$0xff]
        %v1208 = vld [vmem:[%s341 + $0x748] sm:$0xff]
        %v1209 = vld [vmem:[%s341 + $0x750] sm:$0xff]
        %v1210 = vld [vmem:[%s341 + $0x758] sm:$0xff]
        %v1211 = vld [vmem:[%s341 + $0x760] sm:$0xff]
        %v1212 = vld [vmem:[%s341 + $0x768] sm:$0xff]
        %v1213 = vld [vmem:[%s341 + $0x770] sm:$0xff]
        %v1214 = vld [vmem:[%s341 + $0x778] sm:$0xff]
        %v1215 = vld [vmem:[%s341 + $0x780] sm:$0xff]
        %v1216 = vld [vmem:[%s341 + $0x788] sm:$0xff]
        %v1217 = vld [vmem:[%s341 + $0x790] sm:$0xff]
        %v1218 = vld [vmem:[%s341 + $0x798] sm:$0xff]
        %v1219 = vld [vmem:[%s341 + $0x7a0] sm:$0xff]
        %v1220 = vld [vmem:[%s341 + $0x7a8] sm:$0xff]
        %v1221 = vld [vmem:[%s341 + $0x7b0] sm:$0xff]
        %v1222 = vld [vmem:[%s341 + $0x7b8] sm:$0xff]
        %v1223 = vld [vmem:[%s341 + $0x7c0] sm:$0xff]
        %v1224 = vld [vmem:[%s341 + $0x7c8] sm:$0xff]
        %v1225 = vld [vmem:[%s341 + $0x7d0] sm:$0xff]
        %v1226 = vld [vmem:[%s341 + $0x7d8] sm:$0xff]
        %v1227 = vld [vmem:[%s341 + $0x7e0] sm:$0xff]
        %v1228 = vld [vmem:[%s341 + $0x7e8] sm:$0xff]
        %v1229 = vld [vmem:[%s341 + $0x7f0] sm:$0xff]
        %v1230 = vld [vmem:[%s341 + $0x7f8] sm:$0xff]
        %v1231 = vld [vmem:[%s341 + $0x800] sm:$0xff]
        %v1232 = vld [vmem:[%s341 + $0x808] sm:$0xff]
        %v1233 = vld [vmem:[%s341 + $0x810] sm:$0xff]
        %v1234 = vld [vmem:[%s341 + $0x818] sm:$0xff]
        %v1235 = vld [vmem:[%s341 + $0x820] sm:$0xff]
        %v1236 = vld [vmem:[%s341 + $0x828] sm:$0xff]
        %v1237 = vld [vmem:[%s341 + $0x830] sm:$0xff]
        %v1238 = vld [vmem:[%s341 + $0x838] sm:$0xff]
        %v1239 = vld [vmem:[%s341 + $0x840] sm:$0xff]
        %v1240 = vld [vmem:[%s341 + $0x848] sm:$0xff]
        %v1241 = vld [vmem:[%s341 + $0x850] sm:$0xff]
        %v1242 = vld [vmem:[%s341 + $0x858] sm:$0xff]
        %v1243 = vld [vmem:[%s341 + $0x860] sm:$0xff]
        %v1244 = vld [vmem:[%s341 + $0x868] sm:$0xff]
        %v1245 = vld [vmem:[%s341 + $0x870] sm:$0xff]
        %v1246 = vld [vmem:[%s341 + $0x878] sm:$0xff]
        %v1247 = vld [vmem:[%s341 + $0x880] sm:$0xff]
        %v1248 = vld [vmem:[%s341 + $0x888] sm:$0xff]
        %v1249 = vld [vmem:[%s341 + $0x890] sm:$0xff]
        %v1250 = vld [vmem:[%s341 + $0x898] sm:$0xff]
        %v1251 = vld [vmem:[%s341 + $0x8a0] sm:$0xff]
        %v1252 = vld [vmem:[%s341 + $0x8a8] sm:$0xff]
        %v1253 = vld [vmem:[%s341 + $0x8b0] sm:$0xff]
        %v1254 = vld [vmem:[%s341 + $0x8b8] sm:$0xff]
        %v1255 = vld [vmem:[%s341 + $0x8c0] sm:$0xff]
        %v1256 = vld [vmem:[%s341 + $0x8c8] sm:$0xff]
        %v1257 = vld [vmem:[%s341 + $0x8d0] sm:$0xff]
        %v1258 = vld [vmem:[%s341 + $0x8d8] sm:$0xff]
        %v1259 = vld [vmem:[%s341 + $0x8e0] sm:$0xff]
        %v1260 = vld [vmem:[%s341 + $0x8e8] sm:$0xff]
        %v1261 = vld [vmem:[%s341 + $0x8f0] sm:$0xff]
        %v1262 = vld [vmem:[%s341 + $0x8f8] sm:$0xff]
        %v1263 = vld [vmem:[%s341 + $0x900] sm:$0xff]
        %v1264 = vld [vmem:[%s341 + $0x908] sm:$0xff]
        %v1265 = vld [vmem:[%s341 + $0x910] sm:$0xff]
        %v1266 = vld [vmem:[%s341 + $0x918] sm:$0xff]
        %v1267 = vld [vmem:[%s341 + $0x920] sm:$0xff]
        %v1268 = vld [vmem:[%s341 + $0x928] sm:$0xff]
        %v1269 = vld [vmem:[%s341 + $0x930] sm:$0xff]
        %v1270 = vld [vmem:[%s341 + $0x938] sm:$0xff]
        %v1271 = vld [vmem:[%s341 + $0x940] sm:$0xff]
        %v1272 = vld [vmem:[%s341 + $0x948] sm:$0xff]
        %v1273 = vld [vmem:[%s341 + $0x950] sm:$0xff]
        %v1274 = vld [vmem:[%s341 + $0x958] sm:$0xff]
        %v1275 = vld [vmem:[%s341 + $0x960] sm:$0xff]
        %v1276 = vld [vmem:[%s341 + $0x968] sm:$0xff]
        %v1277 = vld [vmem:[%s341 + $0x970] sm:$0xff]
        %v1278 = vld [vmem:[%s341 + $0x978] sm:$0xff]
        %v1279 = vld [vmem:[%s341 + $0x980] sm:$0xff]
        %v1280 = vld [vmem:[%s341 + $0x988] sm:$0xff]
        %v1281 = vld [vmem:[%s341 + $0x990] sm:$0xff]
        %v1282 = vld [vmem:[%s341 + $0x998] sm:$0xff]
        %v1283 = vld [vmem:[%s341 + $0x9a0] sm:$0xff]
        %v1284 = vld [vmem:[%s341 + $0x9a8] sm:$0xff]
        %v1285 = vld [vmem:[%s341 + $0x9b0] sm:$0xff]
        %v1286 = vld [vmem:[%s341 + $0x9b8] sm:$0xff]
        %v1287 = vld [vmem:[%s341 + $0x9c0] sm:$0xff]
        %v1288 = vld [vmem:[%s341 + $0x9c8] sm:$0xff]
        %v1289 = vld [vmem:[%s341 + $0x9d0] sm:$0xff]
        %v1290 = vld [vmem:[%s341 + $0x9d8] sm:$0xff]
        %v1291 = vld [vmem:[%s341 + $0x9e0] sm:$0xff]
        %v1292 = vld [vmem:[%s341 + $0x9e8] sm:$0xff]
        %v1293 = vld [vmem:[%s341 + $0x9f0] sm:$0xff]
        %v1294 = vld [vmem:[%s341 + $0x9f8] sm:$0xff]
        %v1295 = vld [vmem:[%s341 + $0xa00] sm:$0xff]
        %v1296 = vld [vmem:[%s341 + $0xa08] sm:$0xff]
        %v1297 = vld [vmem:[%s341 + $0xa10] sm:$0xff]
        %v1298 = vld [vmem:[%s341 + $0xa18] sm:$0xff]
        %v1299 = vld [vmem:[%s341 + $0xa20] sm:$0xff]
        %v1300 = vld [vmem:[%s341 + $0xa28] sm:$0xff]
        %v1301 = vld [vmem:[%s341 + $0xa30] sm:$0xff]
        %v1302 = vld [vmem:[%s341 + $0xa38] sm:$0xff]
        %v1303 = vld [vmem:[%s341 + $0xa40] sm:$0xff]
        %v1304 = vld [vmem:[%s341 + $0xa48] sm:$0xff]
        %v1305 = vld [vmem:[%s341 + $0xa50] sm:$0xff]
        %v1306 = vld [vmem:[%s341 + $0xa58] sm:$0xff]
        %v1307 = vld [vmem:[%s341 + $0xa60] sm:$0xff]
        %v1308 = vld [vmem:[%s341 + $0xa68] sm:$0xff]
        %v1309 = vld [vmem:[%s341 + $0xa70] sm:$0xff]
        %v1310 = vld [vmem:[%s341 + $0xa78] sm:$0xff]
        %v1311 = vld [vmem:[%s341 + $0xa80] sm:$0xff]
        %v1312 = vld [vmem:[%s341 + $0xa88] sm:$0xff]
        %v1313 = vld [vmem:[%s341 + $0xa90] sm:$0xff]
        %v1314 = vld [vmem:[%s341 + $0xa98] sm:$0xff]
        %v1315 = vld [vmem:[%s341 + $0xaa0] sm:$0xff]
        %v1316 = vld [vmem:[%s341 + $0xaa8] sm:$0xff]
        %v1317 = vld [vmem:[%s341 + $0xab0] sm:$0xff]
        %v1318 = vld [vmem:[%s341 + $0xab8] sm:$0xff]
        %v1319 = vld [vmem:[%s341 + $0xac0] sm:$0xff]
        %v1320 = vld [vmem:[%s341 + $0xac8] sm:$0xff]
        %v1321 = vld [vmem:[%s341 + $0xad0] sm:$0xff]
        %v1322 = vld [vmem:[%s341 + $0xad8] sm:$0xff]
        %v1323 = vld [vmem:[%s341 + $0xae0] sm:$0xff]
        %v1324 = vld [vmem:[%s341 + $0xae8] sm:$0xff]
        %v1325 = vld [vmem:[%s341 + $0xaf0] sm:$0xff]
        %v1326 = vld [vmem:[%s341 + $0xaf8] sm:$0xff]
        %v1327 = vld [vmem:[%s341 + $0xb00] sm:$0xff]
        %v1328 = vld [vmem:[%s341 + $0xb08] sm:$0xff]
        %v1329 = vld [vmem:[%s341 + $0xb10] sm:$0xff]
        %v1330 = vld [vmem:[%s341 + $0xb18] sm:$0xff]
        %v1331 = vld [vmem:[%s341 + $0xb20] sm:$0xff]
        %v1332 = vld [vmem:[%s341 + $0xb28] sm:$0xff]
        %v1333 = vld [vmem:[%s341 + $0xb30] sm:$0xff]
        %v1334 = vld [vmem:[%s341 + $0xb38] sm:$0xff]
        %v1335 = vld [vmem:[%s341 + $0xb40] sm:$0xff]
        %v1336 = vld [vmem:[%s341 + $0xb48] sm:$0xff]
        %v1337 = vld [vmem:[%s341 + $0xb50] sm:$0xff]
        %v1338 = vld [vmem:[%s341 + $0xb58] sm:$0xff]
        %v1339 = vld [vmem:[%s341 + $0xb60] sm:$0xff]
        %v1340 = vld [vmem:[%s341 + $0xb68] sm:$0xff]
        %v1341 = vld [vmem:[%s341 + $0xb70] sm:$0xff]
        %v1342 = vld [vmem:[%s341 + $0xb78] sm:$0xff]
        %v1343 = vld [vmem:[%s341 + $0xb80] sm:$0xff]
        %v1344 = vld [vmem:[%s341 + $0xb88] sm:$0xff]
        %v1345 = vld [vmem:[%s341 + $0xb90] sm:$0xff]
        %v1346 = vld [vmem:[%s341 + $0xb98] sm:$0xff]
        %v1347 = vld [vmem:[%s341 + $0xba0] sm:$0xff]
        %v1348 = vld [vmem:[%s341 + $0xba8] sm:$0xff]
        %v1349 = vld [vmem:[%s341 + $0xbb0] sm:$0xff]
        %v1350 = vld [vmem:[%s341 + $0xbb8] sm:$0xff]
        %v1351 = vld [vmem:[%s341 + $0xbc0] sm:$0xff]
        %v1352 = vld [vmem:[%s341 + $0xbc8] sm:$0xff]
        %v1353 = vld [vmem:[%s341 + $0xbd0] sm:$0xff]
        %v1354 = vld [vmem:[%s341 + $0xbd8] sm:$0xff]
        %v1355 = vld [vmem:[%s341 + $0xbe0] sm:$0xff]
        %v1356 = vld [vmem:[%s341 + $0xbe8] sm:$0xff]
        %v1357 = vld [vmem:[%s341 + $0xbf0] sm:$0xff]
        %v1358 = vld [vmem:[%s341 + $0xbf8] sm:$0xff]
        %v1359 = vld [vmem:[%s341 + $0xc00] sm:$0xff]
        %v1360 = vld [vmem:[%s341 + $0xc08] sm:$0xff]
        %v1361 = vld [vmem:[%s341 + $0xc10] sm:$0xff]
        %v1362 = vld [vmem:[%s341 + $0xc18] sm:$0xff]
        %v1363 = vld [vmem:[%s341 + $0xc20] sm:$0xff]
        %v1364 = vld [vmem:[%s341 + $0xc28] sm:$0xff]
        %v1365 = vld [vmem:[%s341 + $0xc30] sm:$0xff]
        %v1366 = vld [vmem:[%s341 + $0xc38] sm:$0xff]
        %v1367 = vld [vmem:[%s341 + $0xc40] sm:$0xff]
        %v1368 = vld [vmem:[%s341 + $0xc48] sm:$0xff]
        %v1369 = vld [vmem:[%s341 + $0xc50] sm:$0xff]
        %v1370 = vld [vmem:[%s341 + $0xc58] sm:$0xff]
        %v1371 = vld [vmem:[%s341 + $0xc60] sm:$0xff]
        %v1372 = vld [vmem:[%s341 + $0xc68] sm:$0xff]
        %v1373 = vld [vmem:[%s341 + $0xc70] sm:$0xff]
        %v1374 = vld [vmem:[%s341 + $0xc78] sm:$0xff]
        %v1375 = vld [vmem:[%s341 + $0xc80] sm:$0xff]
        %v1376 = vld [vmem:[%s341 + $0xc88] sm:$0xff]
        %v1377 = vld [vmem:[%s341 + $0xc90] sm:$0xff]
        %v1378 = vld [vmem:[%s341 + $0xc98] sm:$0xff]
        %v1379 = vld [vmem:[%s341 + $0xca0] sm:$0xff]
        %v1380 = vld [vmem:[%s341 + $0xca8] sm:$0xff]
        %v1381 = vld [vmem:[%s341 + $0xcb0] sm:$0xff]
        %v1382 = vld [vmem:[%s341 + $0xcb8] sm:$0xff]
        %v1383 = vld [vmem:[%s341 + $0xcc0] sm:$0xff]
        %v1384 = vld [vmem:[%s341 + $0xcc8] sm:$0xff]
        %v1385 = vld [vmem:[%s341 + $0xcd0] sm:$0xff]
        %v1386 = vld [vmem:[%s341 + $0xcd8] sm:$0xff]
        %v1387 = vld [vmem:[%s341 + $0xce0] sm:$0xff]
        %v1388 = vld [vmem:[%s341 + $0xce8] sm:$0xff]
        %v1389 = vld [vmem:[%s341 + $0xcf0] sm:$0xff]
        %v1390 = vld [vmem:[%s341 + $0xcf8] sm:$0xff]
        %v1391 = vld [vmem:[%s341 + $0xd00] sm:$0xff]
        %v1392 = vld [vmem:[%s341 + $0xd08] sm:$0xff]
        %v1393 = vld [vmem:[%s341 + $0xd10] sm:$0xff]
        %v1394 = vld [vmem:[%s341 + $0xd18] sm:$0xff]
        %v1395 = vld [vmem:[%s341 + $0xd20] sm:$0xff]
        %v1396 = vld [vmem:[%s341 + $0xd28] sm:$0xff]
        %v1397 = vld [vmem:[%s341 + $0xd30] sm:$0xff]
        %v1398 = vld [vmem:[%s341 + $0xd38] sm:$0xff]
        %v1399 = vld [vmem:[%s341 + $0xd40] sm:$0xff]
        %v1400 = vld [vmem:[%s341 + $0xd48] sm:$0xff]
        %v1401 = vld [vmem:[%s341 + $0xd50] sm:$0xff]
        %v1402 = vld [vmem:[%s341 + $0xd58] sm:$0xff]
        %v1403 = vld [vmem:[%s341 + $0xd60] sm:$0xff]
        %v1404 = vld [vmem:[%s341 + $0xd68] sm:$0xff]
        %v1405 = vld [vmem:[%s341 + $0xd70] sm:$0xff]
        %v1406 = vld [vmem:[%s341 + $0xd78] sm:$0xff]
        %v1407 = vld [vmem:[%s341 + $0xd80] sm:$0xff]
        %v1408 = vld [vmem:[%s341 + $0xd88] sm:$0xff]
        %v1409 = vld [vmem:[%s341 + $0xd90] sm:$0xff]
        %v1410 = vld [vmem:[%s341 + $0xd98] sm:$0xff]
        %v1411 = vld [vmem:[%s341 + $0xda0] sm:$0xff]
        %v1412 = vld [vmem:[%s341 + $0xda8] sm:$0xff]
        %v1413 = vld [vmem:[%s341 + $0xdb0] sm:$0xff]
        %v1414 = vld [vmem:[%s341 + $0xdb8] sm:$0xff]
        %v1415 = vld [vmem:[%s341 + $0xdc0] sm:$0xff]
        %v1416 = vld [vmem:[%s341 + $0xdc8] sm:$0xff]
        %v1417 = vld [vmem:[%s341 + $0xdd0] sm:$0xff]
        %v1418 = vld [vmem:[%s341 + $0xdd8] sm:$0xff]
        %v1419 = vld [vmem:[%s341 + $0xde0] sm:$0xff]
        %v1420 = vld [vmem:[%s341 + $0xde8] sm:$0xff]
        %v1421 = vld [vmem:[%s341 + $0xdf0] sm:$0xff]
        %v1422 = vld [vmem:[%s341 + $0xdf8] sm:$0xff]
        %v1871 = vunpack.c.l.b16 %v527
        %v1872 = vunpack.c.h.b16 %v527
        %v1873 = vunpack.c.l.b16 %v528
        %v1874 = vunpack.c.h.b16 %v528
        %v1875 = vunpack.c.l.b16 %v529
        %v1876 = vunpack.c.h.b16 %v529
        %v1877 = vunpack.c.l.b16 %v530
        %v1878 = vunpack.c.h.b16 %v530
        %v1879 = vunpack.c.l.b16 %v531
        %v1880 = vunpack.c.h.b16 %v531
        %v1881 = vunpack.c.l.b16 %v532
        %v1882 = vunpack.c.h.b16 %v532
        %v1883 = vunpack.c.l.b16 %v533
        %v1884 = vunpack.c.h.b16 %v533
        %v1885 = vunpack.c.l.b16 %v534
        %v1886 = vunpack.c.h.b16 %v534
        %v1887 = vunpack.c.l.b16 %v535
        %v1888 = vunpack.c.h.b16 %v535
        %v1889 = vunpack.c.l.b16 %v536
        %v1890 = vunpack.c.h.b16 %v536
        %v1891 = vunpack.c.l.b16 %v537
        %v1892 = vunpack.c.h.b16 %v537
        %v1893 = vunpack.c.l.b16 %v538
        %v1894 = vunpack.c.h.b16 %v538
        %v1895 = vunpack.c.l.b16 %v539
        %v1896 = vunpack.c.h.b16 %v539
        %v1897 = vunpack.c.l.b16 %v540
        %v1898 = vunpack.c.h.b16 %v540
        %v1899 = vunpack.c.l.b16 %v541
        %v1900 = vunpack.c.h.b16 %v541
        %v1901 = vunpack.c.l.b16 %v542
        %v1902 = vunpack.c.h.b16 %v542
        %v1903 = vunpack.c.l.b16 %v543
        %v1904 = vunpack.c.h.b16 %v543
        %v1905 = vunpack.c.l.b16 %v544
        %v1906 = vunpack.c.h.b16 %v544
        %v1907 = vunpack.c.l.b16 %v545
        %v1908 = vunpack.c.h.b16 %v545
        %v1909 = vunpack.c.l.b16 %v546
        %v1910 = vunpack.c.h.b16 %v546
        %v1911 = vunpack.c.l.b16 %v547
        %v1912 = vunpack.c.h.b16 %v547
        %v1913 = vunpack.c.l.b16 %v548
        %v1914 = vunpack.c.h.b16 %v548
        %v1915 = vunpack.c.l.b16 %v549
        %v1916 = vunpack.c.h.b16 %v549
        %v1917 = vunpack.c.l.b16 %v550
        %v1918 = vunpack.c.h.b16 %v550
        %v1919 = vunpack.c.l.b16 %v551
        %v1920 = vunpack.c.h.b16 %v551
        %v1921 = vunpack.c.l.b16 %v552
        %v1922 = vunpack.c.h.b16 %v552
        %v1923 = vunpack.c.l.b16 %v553
        %v1924 = vunpack.c.h.b16 %v553
        %v1925 = vunpack.c.l.b16 %v554
        %v1926 = vunpack.c.h.b16 %v554
        %v1927 = vunpack.c.l.b16 %v555
        %v1928 = vunpack.c.h.b16 %v555
        %v1929 = vunpack.c.l.b16 %v556
        %v1930 = vunpack.c.h.b16 %v556
        %v1931 = vunpack.c.l.b16 %v557
        %v1932 = vunpack.c.h.b16 %v557
        %v1933 = vunpack.c.l.b16 %v558
        %v1934 = vunpack.c.h.b16 %v558
        %v1935 = vunpack.c.l.b16 %v559
        %v1936 = vunpack.c.h.b16 %v559
        %v1937 = vunpack.c.l.b16 %v560
        %v1938 = vunpack.c.h.b16 %v560
        %v1939 = vunpack.c.l.b16 %v561
        %v1940 = vunpack.c.h.b16 %v561
        %v1941 = vunpack.c.l.b16 %v562
        %v1942 = vunpack.c.h.b16 %v562
        %v1943 = vunpack.c.l.b16 %v563
        %v1944 = vunpack.c.h.b16 %v563
        %v1945 = vunpack.c.l.b16 %v564
        %v1946 = vunpack.c.h.b16 %v564
        %v1947 = vunpack.c.l.b16 %v565
        %v1948 = vunpack.c.h.b16 %v565
        %v1949 = vunpack.c.l.b16 %v566
        %v1950 = vunpack.c.h.b16 %v566
        %v1951 = vunpack.c.l.b16 %v567
        %v1952 = vunpack.c.h.b16 %v567
        %v1953 = vunpack.c.l.b16 %v568
        %v1954 = vunpack.c.h.b16 %v568
        %v1955 = vunpack.c.l.b16 %v569
        %v1956 = vunpack.c.h.b16 %v569
        %v1957 = vunpack.c.l.b16 %v570
        %v1958 = vunpack.c.h.b16 %v570
        %v1959 = vunpack.c.l.b16 %v571
        %v1960 = vunpack.c.h.b16 %v571
        %v1961 = vunpack.c.l.b16 %v572
        %v1962 = vunpack.c.h.b16 %v572
        %v1963 = vunpack.c.l.b16 %v573
        %v1964 = vunpack.c.h.b16 %v573
        %v1965 = vunpack.c.l.b16 %v574
        %v1966 = vunpack.c.h.b16 %v574
        %v1967 = vunpack.c.l.b16 %v575
        %v1968 = vunpack.c.h.b16 %v575
        %v1969 = vunpack.c.l.b16 %v576
        %v1970 = vunpack.c.h.b16 %v576
        %v1971 = vunpack.c.l.b16 %v577
        %v1972 = vunpack.c.h.b16 %v577
        %v1973 = vunpack.c.l.b16 %v578
        %v1974 = vunpack.c.h.b16 %v578
        %v1975 = vunpack.c.l.b16 %v579
        %v1976 = vunpack.c.h.b16 %v579
        %v1977 = vunpack.c.l.b16 %v580
        %v1978 = vunpack.c.h.b16 %v580
        %v1979 = vunpack.c.l.b16 %v581
        %v1980 = vunpack.c.h.b16 %v581
        %v1981 = vunpack.c.l.b16 %v582
        %v1982 = vunpack.c.h.b16 %v582
        %v1983 = vunpack.c.l.b16 %v583
        %v1984 = vunpack.c.h.b16 %v583
        %v1985 = vunpack.c.l.b16 %v584
        %v1986 = vunpack.c.h.b16 %v584
        %v1987 = vunpack.c.l.b16 %v585
        %v1988 = vunpack.c.h.b16 %v585
        %v1989 = vunpack.c.l.b16 %v586
        %v1990 = vunpack.c.h.b16 %v586
        %v1991 = vunpack.c.l.b16 %v587
        %v1992 = vunpack.c.h.b16 %v587
        %v1993 = vunpack.c.l.b16 %v588
        %v1994 = vunpack.c.h.b16 %v588
        %v1995 = vunpack.c.l.b16 %v589
        %v1996 = vunpack.c.h.b16 %v589
        %v1997 = vunpack.c.l.b16 %v590
        %v1998 = vunpack.c.h.b16 %v590
        %v1999 = vunpack.c.l.b16 %v591
        %v2000 = vunpack.c.h.b16 %v591
        %v2001 = vunpack.c.l.b16 %v592
        %v2002 = vunpack.c.h.b16 %v592
        %v2003 = vunpack.c.l.b16 %v593
        %v2004 = vunpack.c.h.b16 %v593
        %v2005 = vunpack.c.l.b16 %v594
        %v2006 = vunpack.c.h.b16 %v594
        %v2007 = vunpack.c.l.b16 %v595
        %v2008 = vunpack.c.h.b16 %v595
        %v2009 = vunpack.c.l.b16 %v596
        %v2010 = vunpack.c.h.b16 %v596
        %v2011 = vunpack.c.l.b16 %v597
        %v2012 = vunpack.c.h.b16 %v597
        %v2013 = vunpack.c.l.b16 %v598
        %v2014 = vunpack.c.h.b16 %v598
        %v2015 = vunpack.c.l.b16 %v599
        %v2016 = vunpack.c.h.b16 %v599
        %v2017 = vunpack.c.l.b16 %v600
        %v2018 = vunpack.c.h.b16 %v600
        %v2019 = vunpack.c.l.b16 %v601
        %v2020 = vunpack.c.h.b16 %v601
        %v2021 = vunpack.c.l.b16 %v602
        %v2022 = vunpack.c.h.b16 %v602
        %v2023 = vunpack.c.l.b16 %v603
        %v2024 = vunpack.c.h.b16 %v603
        %v2025 = vunpack.c.l.b16 %v604
        %v2026 = vunpack.c.h.b16 %v604
        %v2027 = vunpack.c.l.b16 %v605
        %v2028 = vunpack.c.h.b16 %v605
        %v2029 = vunpack.c.l.b16 %v606
        %v2030 = vunpack.c.h.b16 %v606
        %v2031 = vunpack.c.l.b16 %v607
        %v2032 = vunpack.c.h.b16 %v607
        %v2033 = vunpack.c.l.b16 %v608
        %v2034 = vunpack.c.h.b16 %v608
        %v2035 = vunpack.c.l.b16 %v609
        %v2036 = vunpack.c.h.b16 %v609
        %v2037 = vunpack.c.l.b16 %v610
        %v2038 = vunpack.c.h.b16 %v610
        %v2039 = vunpack.c.l.b16 %v611
        %v2040 = vunpack.c.h.b16 %v611
        %v2041 = vunpack.c.l.b16 %v612
        %v2042 = vunpack.c.h.b16 %v612
        %v2043 = vunpack.c.l.b16 %v613
        %v2044 = vunpack.c.h.b16 %v613
        %v2045 = vunpack.c.l.b16 %v614
        %v2046 = vunpack.c.h.b16 %v614
        %v2047 = vunpack.c.l.b16 %v615
        %v2048 = vunpack.c.h.b16 %v615
        %v2049 = vunpack.c.l.b16 %v616
        %v2050 = vunpack.c.h.b16 %v616
        %v2051 = vunpack.c.l.b16 %v617
        %v2052 = vunpack.c.h.b16 %v617
        %v2053 = vunpack.c.l.b16 %v618
        %v2054 = vunpack.c.h.b16 %v618
        %v2055 = vunpack.c.l.b16 %v619
        %v2056 = vunpack.c.h.b16 %v619
        %v2057 = vunpack.c.l.b16 %v620
        %v2058 = vunpack.c.h.b16 %v620
        %v2059 = vunpack.c.l.b16 %v621
        %v2060 = vunpack.c.h.b16 %v621
        %v2061 = vunpack.c.l.b16 %v622
        %v2062 = vunpack.c.h.b16 %v622
        %v2063 = vunpack.c.l.b16 %v623
        %v2064 = vunpack.c.h.b16 %v623
        %v2065 = vunpack.c.l.b16 %v624
        %v2066 = vunpack.c.h.b16 %v624
        %v2067 = vunpack.c.l.b16 %v625
        %v2068 = vunpack.c.h.b16 %v625
        %v2069 = vunpack.c.l.b16 %v626
        %v2070 = vunpack.c.h.b16 %v626
        %v2071 = vunpack.c.l.b16 %v627
        %v2072 = vunpack.c.h.b16 %v627
        %v2073 = vunpack.c.l.b16 %v628
        %v2074 = vunpack.c.h.b16 %v628
        %v2075 = vunpack.c.l.b16 %v629
        %v2076 = vunpack.c.h.b16 %v629
        %v2077 = vunpack.c.l.b16 %v630
        %v2078 = vunpack.c.h.b16 %v630
        %v2079 = vunpack.c.l.b16 %v631
        %v2080 = vunpack.c.h.b16 %v631
        %v2081 = vunpack.c.l.b16 %v632
        %v2082 = vunpack.c.h.b16 %v632
        %v2083 = vunpack.c.l.b16 %v633
        %v2084 = vunpack.c.h.b16 %v633
        %v2085 = vunpack.c.l.b16 %v634
        %v2086 = vunpack.c.h.b16 %v634
        %v2087 = vunpack.c.l.b16 %v635
        %v2088 = vunpack.c.h.b16 %v635
        %v2089 = vunpack.c.l.b16 %v636
        %v2090 = vunpack.c.h.b16 %v636
        %v2091 = vunpack.c.l.b16 %v637
        %v2092 = vunpack.c.h.b16 %v637
        %v2093 = vunpack.c.l.b16 %v638
        %v2094 = vunpack.c.h.b16 %v638
        %v2095 = vunpack.c.l.b16 %v639
        %v2096 = vunpack.c.h.b16 %v639
        %v2097 = vunpack.c.l.b16 %v640
        %v2098 = vunpack.c.h.b16 %v640
        %v2099 = vunpack.c.l.b16 %v641
        %v2100 = vunpack.c.h.b16 %v641
        %v2101 = vunpack.c.l.b16 %v642
        %v2102 = vunpack.c.h.b16 %v642
        %v2103 = vunpack.c.l.b16 %v643
        %v2104 = vunpack.c.h.b16 %v643
        %v2105 = vunpack.c.l.b16 %v644
        %v2106 = vunpack.c.h.b16 %v644
        %v2107 = vunpack.c.l.b16 %v645
        %v2108 = vunpack.c.h.b16 %v645
        %v2109 = vunpack.c.l.b16 %v646
        %v2110 = vunpack.c.h.b16 %v646
        %v2111 = vunpack.c.l.b16 %v647
        %v2112 = vunpack.c.h.b16 %v647
        %v2113 = vunpack.c.l.b16 %v648
        %v2114 = vunpack.c.h.b16 %v648
        %v2115 = vunpack.c.l.b16 %v649
        %v2116 = vunpack.c.h.b16 %v649
        %v2117 = vunpack.c.l.b16 %v650
        %v2118 = vunpack.c.h.b16 %v650
        %v2119 = vunpack.c.l.b16 %v651
        %v2120 = vunpack.c.h.b16 %v651
        %v2121 = vunpack.c.l.b16 %v652
        %v2122 = vunpack.c.h.b16 %v652
        %v2123 = vunpack.c.l.b16 %v653
        %v2124 = vunpack.c.h.b16 %v653
        %v2125 = vunpack.c.l.b16 %v654
        %v2126 = vunpack.c.h.b16 %v654
        %v2127 = vunpack.c.l.b16 %v655
        %v2128 = vunpack.c.h.b16 %v655
        %v2129 = vunpack.c.l.b16 %v656
        %v2130 = vunpack.c.h.b16 %v656
        %v2131 = vunpack.c.l.b16 %v657
        %v2132 = vunpack.c.h.b16 %v657
        %v2133 = vunpack.c.l.b16 %v658
        %v2134 = vunpack.c.h.b16 %v658
        %v2135 = vunpack.c.l.b16 %v659
        %v2136 = vunpack.c.h.b16 %v659
        %v2137 = vunpack.c.l.b16 %v660
        %v2138 = vunpack.c.h.b16 %v660
        %v2139 = vunpack.c.l.b16 %v661
        %v2140 = vunpack.c.h.b16 %v661
        %v2141 = vunpack.c.l.b16 %v662
        %v2142 = vunpack.c.h.b16 %v662
        %v2143 = vunpack.c.l.b16 %v663
        %v2144 = vunpack.c.h.b16 %v663
        %v2145 = vunpack.c.l.b16 %v664
        %v2146 = vunpack.c.h.b16 %v664
        %v2147 = vunpack.c.l.b16 %v665
        %v2148 = vunpack.c.h.b16 %v665
        %v2149 = vunpack.c.l.b16 %v666
        %v2150 = vunpack.c.h.b16 %v666
        %v2151 = vunpack.c.l.b16 %v667
        %v2152 = vunpack.c.h.b16 %v667
        %v2153 = vunpack.c.l.b16 %v668
        %v2154 = vunpack.c.h.b16 %v668
        %v2155 = vunpack.c.l.b16 %v669
        %v2156 = vunpack.c.h.b16 %v669
        %v2157 = vunpack.c.l.b16 %v670
        %v2158 = vunpack.c.h.b16 %v670
        %v2159 = vunpack.c.l.b16 %v671
        %v2160 = vunpack.c.h.b16 %v671
        %v2161 = vunpack.c.l.b16 %v672
        %v2162 = vunpack.c.h.b16 %v672
        %v2163 = vunpack.c.l.b16 %v673
        %v2164 = vunpack.c.h.b16 %v673
        %v2165 = vunpack.c.l.b16 %v674
        %v2166 = vunpack.c.h.b16 %v674
        %v2167 = vunpack.c.l.b16 %v675
        %v2168 = vunpack.c.h.b16 %v675
        %v2169 = vunpack.c.l.b16 %v676
        %v2170 = vunpack.c.h.b16 %v676
        %v2171 = vunpack.c.l.b16 %v677
        %v2172 = vunpack.c.h.b16 %v677
        %v2173 = vunpack.c.l.b16 %v678
        %v2174 = vunpack.c.h.b16 %v678
        %v2175 = vunpack.c.l.b16 %v679
        %v2176 = vunpack.c.h.b16 %v679
        %v2177 = vunpack.c.l.b16 %v680
        %v2178 = vunpack.c.h.b16 %v680
        %v2179 = vunpack.c.l.b16 %v681
        %v2180 = vunpack.c.h.b16 %v681
        %v2181 = vunpack.c.l.b16 %v682
        %v2182 = vunpack.c.h.b16 %v682
        %v2183 = vunpack.c.l.b16 %v683
        %v2184 = vunpack.c.h.b16 %v683
        %v2185 = vunpack.c.l.b16 %v684
        %v2186 = vunpack.c.h.b16 %v684
        %v2187 = vunpack.c.l.b16 %v685
        %v2188 = vunpack.c.h.b16 %v685
        %v2189 = vunpack.c.l.b16 %v686
        %v2190 = vunpack.c.h.b16 %v686
        %v2191 = vunpack.c.l.b16 %v687
        %v2192 = vunpack.c.h.b16 %v687
        %v2193 = vunpack.c.l.b16 %v688
        %v2194 = vunpack.c.h.b16 %v688
        %v2195 = vunpack.c.l.b16 %v689
        %v2196 = vunpack.c.h.b16 %v689
        %v2197 = vunpack.c.l.b16 %v690
        %v2198 = vunpack.c.h.b16 %v690
        %v2199 = vunpack.c.l.b16 %v691
        %v2200 = vunpack.c.h.b16 %v691
        %v2201 = vunpack.c.l.b16 %v692
        %v2202 = vunpack.c.h.b16 %v692
        %v2203 = vunpack.c.l.b16 %v693
        %v2204 = vunpack.c.h.b16 %v693
        %v2205 = vunpack.c.l.b16 %v694
        %v2206 = vunpack.c.h.b16 %v694
        %v2207 = vunpack.c.l.b16 %v695
        %v2208 = vunpack.c.h.b16 %v695
        %v2209 = vunpack.c.l.b16 %v696
        %v2210 = vunpack.c.h.b16 %v696
        %v2211 = vunpack.c.l.b16 %v697
        %v2212 = vunpack.c.h.b16 %v697
        %v2213 = vunpack.c.l.b16 %v698
        %v2214 = vunpack.c.h.b16 %v698
        %v2215 = vunpack.c.l.b16 %v699
        %v2216 = vunpack.c.h.b16 %v699
        %v2217 = vunpack.c.l.b16 %v700
        %v2218 = vunpack.c.h.b16 %v700
        %v2219 = vunpack.c.l.b16 %v701
        %v2220 = vunpack.c.h.b16 %v701
        %v2221 = vunpack.c.l.b16 %v702
        %v2222 = vunpack.c.h.b16 %v702
        %v2223 = vunpack.c.l.b16 %v703
        %v2224 = vunpack.c.h.b16 %v703
        %v2225 = vunpack.c.l.b16 %v704
        %v2226 = vunpack.c.h.b16 %v704
        %v2227 = vunpack.c.l.b16 %v705
        %v2228 = vunpack.c.h.b16 %v705
        %v2229 = vunpack.c.l.b16 %v706
        %v2230 = vunpack.c.h.b16 %v706
        %v2231 = vunpack.c.l.b16 %v707
        %v2232 = vunpack.c.h.b16 %v707
        %v2233 = vunpack.c.l.b16 %v708
        %v2234 = vunpack.c.h.b16 %v708
        %v2235 = vunpack.c.l.b16 %v709
        %v2236 = vunpack.c.h.b16 %v709
        %v2237 = vunpack.c.l.b16 %v710
        %v2238 = vunpack.c.h.b16 %v710
        %v2239 = vunpack.c.l.b16 %v711
        %v2240 = vunpack.c.h.b16 %v711
        %v2241 = vunpack.c.l.b16 %v712
        %v2242 = vunpack.c.h.b16 %v712
        %v2243 = vunpack.c.l.b16 %v713
        %v2244 = vunpack.c.h.b16 %v713
        %v2245 = vunpack.c.l.b16 %v714
        %v2246 = vunpack.c.h.b16 %v714
        %v2247 = vunpack.c.l.b16 %v715
        %v2248 = vunpack.c.h.b16 %v715
        %v2249 = vunpack.c.l.b16 %v716
        %v2250 = vunpack.c.h.b16 %v716
        %v2251 = vunpack.c.l.b16 %v717
        %v2252 = vunpack.c.h.b16 %v717
        %v2253 = vunpack.c.l.b16 %v718
        %v2254 = vunpack.c.h.b16 %v718
        %v2255 = vunpack.c.l.b16 %v719
        %v2256 = vunpack.c.h.b16 %v719
        %v2257 = vunpack.c.l.b16 %v720
        %v2258 = vunpack.c.h.b16 %v720
        %v2259 = vunpack.c.l.b16 %v721
        %v2260 = vunpack.c.h.b16 %v721
        %v2261 = vunpack.c.l.b16 %v722
        %v2262 = vunpack.c.h.b16 %v722
        %v2263 = vunpack.c.l.b16 %v723
        %v2264 = vunpack.c.h.b16 %v723
        %v2265 = vunpack.c.l.b16 %v724
        %v2266 = vunpack.c.h.b16 %v724
        %v2267 = vunpack.c.l.b16 %v725
        %v2268 = vunpack.c.h.b16 %v725
        %v2269 = vunpack.c.l.b16 %v726
        %v2270 = vunpack.c.h.b16 %v726
        %v2271 = vunpack.c.l.b16 %v727
        %v2272 = vunpack.c.h.b16 %v727
        %v2273 = vunpack.c.l.b16 %v728
        %v2274 = vunpack.c.h.b16 %v728
        %v2275 = vunpack.c.l.b16 %v729
        %v2276 = vunpack.c.h.b16 %v729
        %v2277 = vunpack.c.l.b16 %v730
        %v2278 = vunpack.c.h.b16 %v730
        %v2279 = vunpack.c.l.b16 %v731
        %v2280 = vunpack.c.h.b16 %v731
        %v2281 = vunpack.c.l.b16 %v732
        %v2282 = vunpack.c.h.b16 %v732
        %v2283 = vunpack.c.l.b16 %v733
        %v2284 = vunpack.c.h.b16 %v733
        %v2285 = vunpack.c.l.b16 %v734
        %v2286 = vunpack.c.h.b16 %v734
        %v2287 = vunpack.c.l.b16 %v735
        %v2288 = vunpack.c.h.b16 %v735
        %v2289 = vunpack.c.l.b16 %v736
        %v2290 = vunpack.c.h.b16 %v736
        %v2291 = vunpack.c.l.b16 %v737
        %v2292 = vunpack.c.h.b16 %v737
        %v2293 = vunpack.c.l.b16 %v738
        %v2294 = vunpack.c.h.b16 %v738
        %v2295 = vunpack.c.l.b16 %v739
        %v2296 = vunpack.c.h.b16 %v739
        %v2297 = vunpack.c.l.b16 %v740
        %v2298 = vunpack.c.h.b16 %v740
        %v2299 = vunpack.c.l.b16 %v741
        %v2300 = vunpack.c.h.b16 %v741
        %v2301 = vunpack.c.l.b16 %v742
        %v2302 = vunpack.c.h.b16 %v742
        %v2303 = vunpack.c.l.b16 %v743
        %v2304 = vunpack.c.h.b16 %v743
        %v2305 = vunpack.c.l.b16 %v744
        %v2306 = vunpack.c.h.b16 %v744
        %v2307 = vunpack.c.l.b16 %v745
        %v2308 = vunpack.c.h.b16 %v745
        %v2309 = vunpack.c.l.b16 %v746
        %v2310 = vunpack.c.h.b16 %v746
        %v2311 = vunpack.c.l.b16 %v747
        %v2312 = vunpack.c.h.b16 %v747
        %v2313 = vunpack.c.l.b16 %v748
        %v2314 = vunpack.c.h.b16 %v748
        %v2315 = vunpack.c.l.b16 %v749
        %v2316 = vunpack.c.h.b16 %v749
        %v2317 = vunpack.c.l.b16 %v750
        %v2318 = vunpack.c.h.b16 %v750
        %v2319 = vunpack.c.l.b16 %v751
        %v2320 = vunpack.c.h.b16 %v751
        %v2321 = vunpack.c.l.b16 %v752
        %v2322 = vunpack.c.h.b16 %v752
        %v2323 = vunpack.c.l.b16 %v753
        %v2324 = vunpack.c.h.b16 %v753
        %v2325 = vunpack.c.l.b16 %v754
        %v2326 = vunpack.c.h.b16 %v754
        %v2327 = vunpack.c.l.b16 %v755
        %v2328 = vunpack.c.h.b16 %v755
        %v2329 = vunpack.c.l.b16 %v756
        %v2330 = vunpack.c.h.b16 %v756
        %v2331 = vunpack.c.l.b16 %v757
        %v2332 = vunpack.c.h.b16 %v757
        %v2333 = vunpack.c.l.b16 %v758
        %v2334 = vunpack.c.h.b16 %v758
        %v2335 = vunpack.c.l.b16 %v759
        %v2336 = vunpack.c.h.b16 %v759
        %v2337 = vunpack.c.l.b16 %v760
        %v2338 = vunpack.c.h.b16 %v760
        %v2339 = vunpack.c.l.b16 %v761
        %v2340 = vunpack.c.h.b16 %v761
        %v2341 = vunpack.c.l.b16 %v762
        %v2342 = vunpack.c.h.b16 %v762
        %v2343 = vunpack.c.l.b16 %v763
        %v2344 = vunpack.c.h.b16 %v763
        %v2345 = vunpack.c.l.b16 %v764
        %v2346 = vunpack.c.h.b16 %v764
        %v2347 = vunpack.c.l.b16 %v765
        %v2348 = vunpack.c.h.b16 %v765
        %v2349 = vunpack.c.l.b16 %v766
        %v2350 = vunpack.c.h.b16 %v766
        %v2351 = vunpack.c.l.b16 %v767
        %v2352 = vunpack.c.h.b16 %v767
        %v2353 = vunpack.c.l.b16 %v768
        %v2354 = vunpack.c.h.b16 %v768
        %v2355 = vunpack.c.l.b16 %v769
        %v2356 = vunpack.c.h.b16 %v769
        %v2357 = vunpack.c.l.b16 %v770
        %v2358 = vunpack.c.h.b16 %v770
        %v2359 = vunpack.c.l.b16 %v771
        %v2360 = vunpack.c.h.b16 %v771
        %v2361 = vunpack.c.l.b16 %v772
        %v2362 = vunpack.c.h.b16 %v772
        %v2363 = vunpack.c.l.b16 %v773
        %v2364 = vunpack.c.h.b16 %v773
        %v2365 = vunpack.c.l.b16 %v774
        %v2366 = vunpack.c.h.b16 %v774
        %v2367 = vunpack.c.l.b16 %v775
        %v2368 = vunpack.c.h.b16 %v775
        %v2369 = vunpack.c.l.b16 %v776
        %v2370 = vunpack.c.h.b16 %v776
        %v2371 = vunpack.c.l.b16 %v777
        %v2372 = vunpack.c.h.b16 %v777
        %v2373 = vunpack.c.l.b16 %v778
        %v2374 = vunpack.c.h.b16 %v778
        %v2375 = vunpack.c.l.b16 %v779
        %v2376 = vunpack.c.h.b16 %v779
        %v2377 = vunpack.c.l.b16 %v780
        %v2378 = vunpack.c.h.b16 %v780
        %v2379 = vunpack.c.l.b16 %v781
        %v2380 = vunpack.c.h.b16 %v781
        %v2381 = vunpack.c.l.b16 %v782
        %v2382 = vunpack.c.h.b16 %v782
        %v2383 = vunpack.c.l.b16 %v783
        %v2384 = vunpack.c.h.b16 %v783
        %v2385 = vunpack.c.l.b16 %v784
        %v2386 = vunpack.c.h.b16 %v784
        %v2387 = vunpack.c.l.b16 %v785
        %v2388 = vunpack.c.h.b16 %v785
        %v2389 = vunpack.c.l.b16 %v786
        %v2390 = vunpack.c.h.b16 %v786
        %v2391 = vunpack.c.l.b16 %v787
        %v2392 = vunpack.c.h.b16 %v787
        %v2393 = vunpack.c.l.b16 %v788
        %v2394 = vunpack.c.h.b16 %v788
        %v2395 = vunpack.c.l.b16 %v789
        %v2396 = vunpack.c.h.b16 %v789
        %v2397 = vunpack.c.l.b16 %v790
        %v2398 = vunpack.c.h.b16 %v790
        %v2399 = vunpack.c.l.b16 %v791
        %v2400 = vunpack.c.h.b16 %v791
        %v2401 = vunpack.c.l.b16 %v792
        %v2402 = vunpack.c.h.b16 %v792
        %v2403 = vunpack.c.l.b16 %v793
        %v2404 = vunpack.c.h.b16 %v793
        %v2405 = vunpack.c.l.b16 %v794
        %v2406 = vunpack.c.h.b16 %v794
        %v2407 = vunpack.c.l.b16 %v795
        %v2408 = vunpack.c.h.b16 %v795
        %v2409 = vunpack.c.l.b16 %v796
        %v2410 = vunpack.c.h.b16 %v796
        %v2411 = vunpack.c.l.b16 %v797
        %v2412 = vunpack.c.h.b16 %v797
        %v2413 = vunpack.c.l.b16 %v798
        %v2414 = vunpack.c.h.b16 %v798
        %v2415 = vunpack.c.l.b16 %v799
        %v2416 = vunpack.c.h.b16 %v799
        %v2417 = vunpack.c.l.b16 %v800
        %v2418 = vunpack.c.h.b16 %v800
        %v2419 = vunpack.c.l.b16 %v801
        %v2420 = vunpack.c.h.b16 %v801
        %v2421 = vunpack.c.l.b16 %v802
        %v2422 = vunpack.c.h.b16 %v802
        %v2423 = vunpack.c.l.b16 %v803
        %v2424 = vunpack.c.h.b16 %v803
        %v2425 = vunpack.c.l.b16 %v804
        %v2426 = vunpack.c.h.b16 %v804
        %v2427 = vunpack.c.l.b16 %v805
        %v2428 = vunpack.c.h.b16 %v805
        %v2429 = vunpack.c.l.b16 %v806
        %v2430 = vunpack.c.h.b16 %v806
        %v2431 = vunpack.c.l.b16 %v807
        %v2432 = vunpack.c.h.b16 %v807
        %v2433 = vunpack.c.l.b16 %v808
        %v2434 = vunpack.c.h.b16 %v808
        %v2435 = vunpack.c.l.b16 %v809
        %v2436 = vunpack.c.h.b16 %v809
        %v2437 = vunpack.c.l.b16 %v810
        %v2438 = vunpack.c.h.b16 %v810
        %v2439 = vunpack.c.l.b16 %v811
        %v2440 = vunpack.c.h.b16 %v811
        %v2441 = vunpack.c.l.b16 %v812
        %v2442 = vunpack.c.h.b16 %v812
        %v2443 = vunpack.c.l.b16 %v813
        %v2444 = vunpack.c.h.b16 %v813
        %v2445 = vunpack.c.l.b16 %v814
        %v2446 = vunpack.c.h.b16 %v814
        %v2447 = vunpack.c.l.b16 %v815
        %v2448 = vunpack.c.h.b16 %v815
        %v2449 = vunpack.c.l.b16 %v816
        %v2450 = vunpack.c.h.b16 %v816
        %v2451 = vunpack.c.l.b16 %v817
        %v2452 = vunpack.c.h.b16 %v817
        %v2453 = vunpack.c.l.b16 %v818
        %v2454 = vunpack.c.h.b16 %v818
        %v2455 = vunpack.c.l.b16 %v819
        %v2456 = vunpack.c.h.b16 %v819
        %v2457 = vunpack.c.l.b16 %v820
        %v2458 = vunpack.c.h.b16 %v820
        %v2459 = vunpack.c.l.b16 %v821
        %v2460 = vunpack.c.h.b16 %v821
        %v2461 = vunpack.c.l.b16 %v822
        %v2462 = vunpack.c.h.b16 %v822
        %v2463 = vunpack.c.l.b16 %v823
        %v2464 = vunpack.c.h.b16 %v823
        %v2465 = vunpack.c.l.b16 %v824
        %v2466 = vunpack.c.h.b16 %v824
        %v2467 = vunpack.c.l.b16 %v825
        %v2468 = vunpack.c.h.b16 %v825
        %v2469 = vunpack.c.l.b16 %v826
        %v2470 = vunpack.c.h.b16 %v826
        %v2471 = vunpack.c.l.b16 %v827
        %v2472 = vunpack.c.h.b16 %v827
        %v2473 = vunpack.c.l.b16 %v828
        %v2474 = vunpack.c.h.b16 %v828
        %v2475 = vunpack.c.l.b16 %v829
        %v2476 = vunpack.c.h.b16 %v829
        %v2477 = vunpack.c.l.b16 %v830
        %v2478 = vunpack.c.h.b16 %v830
        %v2479 = vunpack.c.l.b16 %v831
        %v2480 = vunpack.c.h.b16 %v831
        %v2481 = vunpack.c.l.b16 %v832
        %v2482 = vunpack.c.h.b16 %v832
        %v2483 = vunpack.c.l.b16 %v833
        %v2484 = vunpack.c.h.b16 %v833
        %v2485 = vunpack.c.l.b16 %v834
        %v2486 = vunpack.c.h.b16 %v834
        %v2487 = vunpack.c.l.b16 %v835
        %v2488 = vunpack.c.h.b16 %v835
        %v2489 = vunpack.c.l.b16 %v836
        %v2490 = vunpack.c.h.b16 %v836
        %v2491 = vunpack.c.l.b16 %v837
        %v2492 = vunpack.c.h.b16 %v837
        %v2493 = vunpack.c.l.b16 %v838
        %v2494 = vunpack.c.h.b16 %v838
        %v2495 = vunpack.c.l.b16 %v839
        %v2496 = vunpack.c.h.b16 %v839
        %v2497 = vunpack.c.l.b16 %v840
        %v2498 = vunpack.c.h.b16 %v840
        %v2499 = vunpack.c.l.b16 %v841
        %v2500 = vunpack.c.h.b16 %v841
        %v2501 = vunpack.c.l.b16 %v842
        %v2502 = vunpack.c.h.b16 %v842
        %v2503 = vunpack.c.l.b16 %v843
        %v2504 = vunpack.c.h.b16 %v843
        %v2505 = vunpack.c.l.b16 %v844
        %v2506 = vunpack.c.h.b16 %v844
        %v2507 = vunpack.c.l.b16 %v845
        %v2508 = vunpack.c.h.b16 %v845
        %v2509 = vunpack.c.l.b16 %v846
        %v2510 = vunpack.c.h.b16 %v846
        %v2511 = vunpack.c.l.b16 %v847
        %v2512 = vunpack.c.h.b16 %v847
        %v2513 = vunpack.c.l.b16 %v848
        %v2514 = vunpack.c.h.b16 %v848
        %v2515 = vunpack.c.l.b16 %v849
        %v2516 = vunpack.c.h.b16 %v849
        %v2517 = vunpack.c.l.b16 %v850
        %v2518 = vunpack.c.h.b16 %v850
        %v2519 = vunpack.c.l.b16 %v851
        %v2520 = vunpack.c.h.b16 %v851
        %v2521 = vunpack.c.l.b16 %v852
        %v2522 = vunpack.c.h.b16 %v852
        %v2523 = vunpack.c.l.b16 %v853
        %v2524 = vunpack.c.h.b16 %v853
        %v2525 = vunpack.c.l.b16 %v854
        %v2526 = vunpack.c.h.b16 %v854
        %v2527 = vunpack.c.l.b16 %v855
        %v2528 = vunpack.c.h.b16 %v855
        %v2529 = vunpack.c.l.b16 %v856
        %v2530 = vunpack.c.h.b16 %v856
        %v2531 = vunpack.c.l.b16 %v857
        %v2532 = vunpack.c.h.b16 %v857
        %v2533 = vunpack.c.l.b16 %v858
        %v2534 = vunpack.c.h.b16 %v858
        %v2535 = vunpack.c.l.b16 %v859
        %v2536 = vunpack.c.h.b16 %v859
        %v2537 = vunpack.c.l.b16 %v860
        %v2538 = vunpack.c.h.b16 %v860
        %v2539 = vunpack.c.l.b16 %v861
        %v2540 = vunpack.c.h.b16 %v861
        %v2541 = vunpack.c.l.b16 %v862
        %v2542 = vunpack.c.h.b16 %v862
        %v2543 = vunpack.c.l.b16 %v863
        %v2544 = vunpack.c.h.b16 %v863
        %v2545 = vunpack.c.l.b16 %v864
        %v2546 = vunpack.c.h.b16 %v864
        %v2547 = vunpack.c.l.b16 %v865
        %v2548 = vunpack.c.h.b16 %v865
        %v2549 = vunpack.c.l.b16 %v866
        %v2550 = vunpack.c.h.b16 %v866
        %v2551 = vunpack.c.l.b16 %v867
        %v2552 = vunpack.c.h.b16 %v867
        %v2553 = vunpack.c.l.b16 %v868
        %v2554 = vunpack.c.h.b16 %v868
        %v2555 = vunpack.c.l.b16 %v869
        %v2556 = vunpack.c.h.b16 %v869
        %v2557 = vunpack.c.l.b16 %v870
        %v2558 = vunpack.c.h.b16 %v870
        %v2559 = vunpack.c.l.b16 %v871
        %v2560 = vunpack.c.h.b16 %v871
        %v2561 = vunpack.c.l.b16 %v872
        %v2562 = vunpack.c.h.b16 %v872
        %v2563 = vunpack.c.l.b16 %v873
        %v2564 = vunpack.c.h.b16 %v873
        %v2565 = vunpack.c.l.b16 %v874
        %v2566 = vunpack.c.h.b16 %v874
        %v2567 = vunpack.c.l.b16 %v875
        %v2568 = vunpack.c.h.b16 %v875
        %v2569 = vunpack.c.l.b16 %v876
        %v2570 = vunpack.c.h.b16 %v876
        %v2571 = vunpack.c.l.b16 %v877
        %v2572 = vunpack.c.h.b16 %v877
        %v2573 = vunpack.c.l.b16 %v878
        %v2574 = vunpack.c.h.b16 %v878
        %v2575 = vunpack.c.l.b16 %v879
        %v2576 = vunpack.c.h.b16 %v879
        %v2577 = vunpack.c.l.b16 %v880
        %v2578 = vunpack.c.h.b16 %v880
        %v2579 = vunpack.c.l.b16 %v881
        %v2580 = vunpack.c.h.b16 %v881
        %v2581 = vunpack.c.l.b16 %v882
        %v2582 = vunpack.c.h.b16 %v882
        %v2583 = vunpack.c.l.b16 %v883
        %v2584 = vunpack.c.h.b16 %v883
        %v2585 = vunpack.c.l.b16 %v884
        %v2586 = vunpack.c.h.b16 %v884
        %v2587 = vunpack.c.l.b16 %v885
        %v2588 = vunpack.c.h.b16 %v885
        %v2589 = vunpack.c.l.b16 %v886
        %v2590 = vunpack.c.h.b16 %v886
        %v2591 = vunpack.c.l.b16 %v887
        %v2592 = vunpack.c.h.b16 %v887
        %v2593 = vunpack.c.l.b16 %v888
        %v2594 = vunpack.c.h.b16 %v888
        %v2595 = vunpack.c.l.b16 %v889
        %v2596 = vunpack.c.h.b16 %v889
        %v2597 = vunpack.c.l.b16 %v890
        %v2598 = vunpack.c.h.b16 %v890
        %v2599 = vunpack.c.l.b16 %v891
        %v2600 = vunpack.c.h.b16 %v891
        %v2601 = vunpack.c.l.b16 %v892
        %v2602 = vunpack.c.h.b16 %v892
        %v2603 = vunpack.c.l.b16 %v893
        %v2604 = vunpack.c.h.b16 %v893
        %v2605 = vunpack.c.l.b16 %v894
        %v2606 = vunpack.c.h.b16 %v894
        %v2607 = vunpack.c.l.b16 %v895
        %v2608 = vunpack.c.h.b16 %v895
        %v2609 = vunpack.c.l.b16 %v896
        %v2610 = vunpack.c.h.b16 %v896
        %v2611 = vunpack.c.l.b16 %v897
        %v2612 = vunpack.c.h.b16 %v897
        %v2613 = vunpack.c.l.b16 %v898
        %v2614 = vunpack.c.h.b16 %v898
        %v2615 = vunpack.c.l.b16 %v899
        %v2616 = vunpack.c.h.b16 %v899
        %v2617 = vunpack.c.l.b16 %v900
        %v2618 = vunpack.c.h.b16 %v900
        %v2619 = vunpack.c.l.b16 %v901
        %v2620 = vunpack.c.h.b16 %v901
        %v2621 = vunpack.c.l.b16 %v902
        %v2622 = vunpack.c.h.b16 %v902
        %v2623 = vunpack.c.l.b16 %v903
        %v2624 = vunpack.c.h.b16 %v903
        %v2625 = vunpack.c.l.b16 %v904
        %v2626 = vunpack.c.h.b16 %v904
        %v2627 = vunpack.c.l.b16 %v905
        %v2628 = vunpack.c.h.b16 %v905
        %v2629 = vunpack.c.l.b16 %v906
        %v2630 = vunpack.c.h.b16 %v906
        %v2631 = vunpack.c.l.b16 %v907
        %v2632 = vunpack.c.h.b16 %v907
        %v2633 = vunpack.c.l.b16 %v908
        %v2634 = vunpack.c.h.b16 %v908
        %v2635 = vunpack.c.l.b16 %v909
        %v2636 = vunpack.c.h.b16 %v909
        %v2637 = vunpack.c.l.b16 %v910
        %v2638 = vunpack.c.h.b16 %v910
        %v2639 = vunpack.c.l.b16 %v911
        %v2640 = vunpack.c.h.b16 %v911
        %v2641 = vunpack.c.l.b16 %v912
        %v2642 = vunpack.c.h.b16 %v912
        %v2643 = vunpack.c.l.b16 %v913
        %v2644 = vunpack.c.h.b16 %v913
        %v2645 = vunpack.c.l.b16 %v914
        %v2646 = vunpack.c.h.b16 %v914
        %v2647 = vunpack.c.l.b16 %v915
        %v2648 = vunpack.c.h.b16 %v915
        %v2649 = vunpack.c.l.b16 %v916
        %v2650 = vunpack.c.h.b16 %v916
        %v2651 = vunpack.c.l.b16 %v917
        %v2652 = vunpack.c.h.b16 %v917
        %v2653 = vunpack.c.l.b16 %v918
        %v2654 = vunpack.c.h.b16 %v918
        %v2655 = vunpack.c.l.b16 %v919
        %v2656 = vunpack.c.h.b16 %v919
        %v2657 = vunpack.c.l.b16 %v920
        %v2658 = vunpack.c.h.b16 %v920
        %v2659 = vunpack.c.l.b16 %v921
        %v2660 = vunpack.c.h.b16 %v921
        %v2661 = vunpack.c.l.b16 %v922
        %v2662 = vunpack.c.h.b16 %v922
        %v2663 = vunpack.c.l.b16 %v923
        %v2664 = vunpack.c.h.b16 %v923
        %v2665 = vunpack.c.l.b16 %v924
        %v2666 = vunpack.c.h.b16 %v924
        %v2667 = vunpack.c.l.b16 %v925
        %v2668 = vunpack.c.h.b16 %v925
        %v2669 = vunpack.c.l.b16 %v926
        %v2670 = vunpack.c.h.b16 %v926
        %v2671 = vunpack.c.l.b16 %v927
        %v2672 = vunpack.c.h.b16 %v927
        %v2673 = vunpack.c.l.b16 %v928
        %v2674 = vunpack.c.h.b16 %v928
        %v2675 = vunpack.c.l.b16 %v929
        %v2676 = vunpack.c.h.b16 %v929
        %v2677 = vunpack.c.l.b16 %v930
        %v2678 = vunpack.c.h.b16 %v930
        %v2679 = vunpack.c.l.b16 %v931
        %v2680 = vunpack.c.h.b16 %v931
        %v2681 = vunpack.c.l.b16 %v932
        %v2682 = vunpack.c.h.b16 %v932
        %v2683 = vunpack.c.l.b16 %v933
        %v2684 = vunpack.c.h.b16 %v933
        %v2685 = vunpack.c.l.b16 %v934
        %v2686 = vunpack.c.h.b16 %v934
        %v2687 = vunpack.c.l.b16 %v935
        %v2688 = vunpack.c.h.b16 %v935
        %v2689 = vunpack.c.l.b16 %v936
        %v2690 = vunpack.c.h.b16 %v936
        %v2691 = vunpack.c.l.b16 %v937
        %v2692 = vunpack.c.h.b16 %v937
        %v2693 = vunpack.c.l.b16 %v938
        %v2694 = vunpack.c.h.b16 %v938
        %v2695 = vunpack.c.l.b16 %v939
        %v2696 = vunpack.c.h.b16 %v939
        %v2697 = vunpack.c.l.b16 %v940
        %v2698 = vunpack.c.h.b16 %v940
        %v2699 = vunpack.c.l.b16 %v941
        %v2700 = vunpack.c.h.b16 %v941
        %v2701 = vunpack.c.l.b16 %v942
        %v2702 = vunpack.c.h.b16 %v942
        %v2703 = vunpack.c.l.b16 %v943
        %v2704 = vunpack.c.h.b16 %v943
        %v2705 = vunpack.c.l.b16 %v944
        %v2706 = vunpack.c.h.b16 %v944
        %v2707 = vunpack.c.l.b16 %v945
        %v2708 = vunpack.c.h.b16 %v945
        %v2709 = vunpack.c.l.b16 %v946
        %v2710 = vunpack.c.h.b16 %v946
        %v2711 = vunpack.c.l.b16 %v947
        %v2712 = vunpack.c.h.b16 %v947
        %v2713 = vunpack.c.l.b16 %v948
        %v2714 = vunpack.c.h.b16 %v948
        %v2715 = vunpack.c.l.b16 %v949
        %v2716 = vunpack.c.h.b16 %v949
        %v2717 = vunpack.c.l.b16 %v950
        %v2718 = vunpack.c.h.b16 %v950
        %v2719 = vunpack.c.l.b16 %v951
        %v2720 = vunpack.c.h.b16 %v951
        %v2721 = vunpack.c.l.b16 %v952
        %v2722 = vunpack.c.h.b16 %v952
        %v2723 = vunpack.c.l.b16 %v953
        %v2724 = vunpack.c.h.b16 %v953
        %v2725 = vunpack.c.l.b16 %v954
        %v2726 = vunpack.c.h.b16 %v954
        %v2727 = vunpack.c.l.b16 %v955
        %v2728 = vunpack.c.h.b16 %v955
        %v2729 = vunpack.c.l.b16 %v956
        %v2730 = vunpack.c.h.b16 %v956
        %v2731 = vunpack.c.l.b16 %v957
        %v2732 = vunpack.c.h.b16 %v957
        %v2733 = vunpack.c.l.b16 %v958
        %v2734 = vunpack.c.h.b16 %v958
        %v2735 = vunpack.c.l.b16 %v959
        %v2736 = vunpack.c.h.b16 %v959
        %v2737 = vunpack.c.l.b16 %v960
        %v2738 = vunpack.c.h.b16 %v960
        %v2739 = vunpack.c.l.b16 %v961
        %v2740 = vunpack.c.h.b16 %v961
        %v2741 = vunpack.c.l.b16 %v962
        %v2742 = vunpack.c.h.b16 %v962
        %v2743 = vunpack.c.l.b16 %v963
        %v2744 = vunpack.c.h.b16 %v963
        %v2745 = vunpack.c.l.b16 %v964
        %v2746 = vunpack.c.h.b16 %v964
        %v2747 = vunpack.c.l.b16 %v965
        %v2748 = vunpack.c.h.b16 %v965
        %v2749 = vunpack.c.l.b16 %v966
        %v2750 = vunpack.c.h.b16 %v966
        %v2751 = vunpack.c.l.b16 %v967
        %v2752 = vunpack.c.h.b16 %v967
        %v2753 = vunpack.c.l.b16 %v968
        %v2754 = vunpack.c.h.b16 %v968
        %v2755 = vunpack.c.l.b16 %v969
        %v2756 = vunpack.c.h.b16 %v969
        %v2757 = vunpack.c.l.b16 %v970
        %v2758 = vunpack.c.h.b16 %v970
        %v2759 = vunpack.c.l.b16 %v971
        %v2760 = vunpack.c.h.b16 %v971
        %v2761 = vunpack.c.l.b16 %v972
        %v2762 = vunpack.c.h.b16 %v972
        %v2763 = vunpack.c.l.b16 %v973
        %v2764 = vunpack.c.h.b16 %v973
        %v2765 = vunpack.c.l.b16 %v974
        %v2766 = vunpack.c.h.b16 %v974
        %v2767 = vpack.c.b16 %v1899, %v1871
        %v2768 = vpack.c.b16 %v1900, %v1872
        %v2769 = vpack.c.b16 %v1901, %v1873
        %v2770 = vpack.c.b16 %v1902, %v1874
        %v2771 = vpack.c.b16 %v1903, %v1875
        %v2772 = vpack.c.b16 %v1904, %v1876
        %v2773 = vpack.c.b16 %v1905, %v1877
        %v2774 = vpack.c.b16 %v1906, %v1878
        %v2775 = vpack.c.b16 %v1907, %v1879
        %v2776 = vpack.c.b16 %v1908, %v1880
        %v2777 = vpack.c.b16 %v1909, %v1881
        %v2778 = vpack.c.b16 %v1910, %v1882
        %v2779 = vpack.c.b16 %v1911, %v1883
        %v2780 = vpack.c.b16 %v1912, %v1884
        %v2781 = vpack.c.b16 %v1913, %v1885
        %v2782 = vpack.c.b16 %v1914, %v1886
        %v2783 = vpack.c.b16 %v1915, %v1887
        %v2784 = vpack.c.b16 %v1916, %v1888
        %v2785 = vpack.c.b16 %v1917, %v1889
        %v2786 = vpack.c.b16 %v1918, %v1890
        %v2787 = vpack.c.b16 %v1919, %v1891
        %v2788 = vpack.c.b16 %v1920, %v1892
        %v2789 = vpack.c.b16 %v1921, %v1893
        %v2790 = vpack.c.b16 %v1922, %v1894
        %v2791 = vpack.c.b16 %v1923, %v1895
        %v2792 = vpack.c.b16 %v1924, %v1896
        %v2793 = vpack.c.b16 %v1925, %v1897
        %v2794 = vpack.c.b16 %v1926, %v1898
        %v2795 = vpack.c.b16 %v1955, %v1927
        %v2796 = vpack.c.b16 %v1956, %v1928
        %v2797 = vpack.c.b16 %v1957, %v1929
        %v2798 = vpack.c.b16 %v1958, %v1930
        %v2799 = vpack.c.b16 %v1959, %v1931
        %v2800 = vpack.c.b16 %v1960, %v1932
        %v2801 = vpack.c.b16 %v1961, %v1933
        %v2802 = vpack.c.b16 %v1962, %v1934
        %v2803 = vpack.c.b16 %v1963, %v1935
        %v2804 = vpack.c.b16 %v1964, %v1936
        %v2805 = vpack.c.b16 %v1965, %v1937
        %v2806 = vpack.c.b16 %v1966, %v1938
        %v2807 = vpack.c.b16 %v1967, %v1939
        %v2808 = vpack.c.b16 %v1968, %v1940
        %v2809 = vpack.c.b16 %v1969, %v1941
        %v2810 = vpack.c.b16 %v1970, %v1942
        %v2811 = vpack.c.b16 %v1971, %v1943
        %v2812 = vpack.c.b16 %v1972, %v1944
        %v2813 = vpack.c.b16 %v1973, %v1945
        %v2814 = vpack.c.b16 %v1974, %v1946
        %v2815 = vpack.c.b16 %v1975, %v1947
        %v2816 = vpack.c.b16 %v1976, %v1948
        %v2817 = vpack.c.b16 %v1977, %v1949
        %v2818 = vpack.c.b16 %v1978, %v1950
        %v2819 = vpack.c.b16 %v1979, %v1951
        %v2820 = vpack.c.b16 %v1980, %v1952
        %v2821 = vpack.c.b16 %v1981, %v1953
        %v2822 = vpack.c.b16 %v1982, %v1954
        %v2823 = vpack.c.b16 %v2011, %v1983
        %v2824 = vpack.c.b16 %v2012, %v1984
        %v2825 = vpack.c.b16 %v2013, %v1985
        %v2826 = vpack.c.b16 %v2014, %v1986
        %v2827 = vpack.c.b16 %v2015, %v1987
        %v2828 = vpack.c.b16 %v2016, %v1988
        %v2829 = vpack.c.b16 %v2017, %v1989
        %v2830 = vpack.c.b16 %v2018, %v1990
        %v2831 = vpack.c.b16 %v2019, %v1991
        %v2832 = vpack.c.b16 %v2020, %v1992
        %v2833 = vpack.c.b16 %v2021, %v1993
        %v2834 = vpack.c.b16 %v2022, %v1994
        %v2835 = vpack.c.b16 %v2023, %v1995
        %v2836 = vpack.c.b16 %v2024, %v1996
        %v2837 = vpack.c.b16 %v2025, %v1997
        %v2838 = vpack.c.b16 %v2026, %v1998
        %v2839 = vpack.c.b16 %v2027, %v1999
        %v2840 = vpack.c.b16 %v2028, %v2000
        %v2841 = vpack.c.b16 %v2029, %v2001
        %v2842 = vpack.c.b16 %v2030, %v2002
        %v2843 = vpack.c.b16 %v2031, %v2003
        %v2844 = vpack.c.b16 %v2032, %v2004
        %v2845 = vpack.c.b16 %v2033, %v2005
        %v2846 = vpack.c.b16 %v2034, %v2006
        %v2847 = vpack.c.b16 %v2035, %v2007
        %v2848 = vpack.c.b16 %v2036, %v2008
        %v2849 = vpack.c.b16 %v2037, %v2009
        %v2850 = vpack.c.b16 %v2038, %v2010
        %v2851 = vpack.c.b16 %v2067, %v2039
        %v2852 = vpack.c.b16 %v2068, %v2040
        %v2853 = vpack.c.b16 %v2069, %v2041
        %v2854 = vpack.c.b16 %v2070, %v2042
        %v2855 = vpack.c.b16 %v2071, %v2043
        %v2856 = vpack.c.b16 %v2072, %v2044
        %v2857 = vpack.c.b16 %v2073, %v2045
        %v2858 = vpack.c.b16 %v2074, %v2046
        %v2859 = vpack.c.b16 %v2075, %v2047
        %v2860 = vpack.c.b16 %v2076, %v2048
        %v2861 = vpack.c.b16 %v2077, %v2049
        %v2862 = vpack.c.b16 %v2078, %v2050
        %v2863 = vpack.c.b16 %v2079, %v2051
        %v2864 = vpack.c.b16 %v2080, %v2052
        %v2865 = vpack.c.b16 %v2081, %v2053
        %v2866 = vpack.c.b16 %v2082, %v2054
        %v2867 = vpack.c.b16 %v2083, %v2055
        %v2868 = vpack.c.b16 %v2084, %v2056
        %v2869 = vpack.c.b16 %v2085, %v2057
        %v2870 = vpack.c.b16 %v2086, %v2058
        %v2871 = vpack.c.b16 %v2087, %v2059
        %v2872 = vpack.c.b16 %v2088, %v2060
        %v2873 = vpack.c.b16 %v2089, %v2061
        %v2874 = vpack.c.b16 %v2090, %v2062
        %v2875 = vpack.c.b16 %v2091, %v2063
        %v2876 = vpack.c.b16 %v2092, %v2064
        %v2877 = vpack.c.b16 %v2093, %v2065
        %v2878 = vpack.c.b16 %v2094, %v2066
        %v2879 = vpack.c.b16 %v2123, %v2095
        %v2880 = vpack.c.b16 %v2124, %v2096
        %v2881 = vpack.c.b16 %v2125, %v2097
        %v2882 = vpack.c.b16 %v2126, %v2098
        %v2883 = vpack.c.b16 %v2127, %v2099
        %v2884 = vpack.c.b16 %v2128, %v2100
        %v2885 = vpack.c.b16 %v2129, %v2101
        %v2886 = vpack.c.b16 %v2130, %v2102
        %v2887 = vpack.c.b16 %v2131, %v2103
        %v2888 = vpack.c.b16 %v2132, %v2104
        %v2889 = vpack.c.b16 %v2133, %v2105
        %v2890 = vpack.c.b16 %v2134, %v2106
        %v2891 = vpack.c.b16 %v2135, %v2107
        %v2892 = vpack.c.b16 %v2136, %v2108
        %v2893 = vpack.c.b16 %v2137, %v2109
        %v2894 = vpack.c.b16 %v2138, %v2110
        %v2895 = vpack.c.b16 %v2139, %v2111
        %v2896 = vpack.c.b16 %v2140, %v2112
        %v2897 = vpack.c.b16 %v2141, %v2113
        %v2898 = vpack.c.b16 %v2142, %v2114
        %v2899 = vpack.c.b16 %v2143, %v2115
        %v2900 = vpack.c.b16 %v2144, %v2116
        %v2901 = vpack.c.b16 %v2145, %v2117
        %v2902 = vpack.c.b16 %v2146, %v2118
        %v2903 = vpack.c.b16 %v2147, %v2119
        %v2904 = vpack.c.b16 %v2148, %v2120
        %v2905 = vpack.c.b16 %v2149, %v2121
        %v2906 = vpack.c.b16 %v2150, %v2122
        %v2907 = vpack.c.b16 %v2179, %v2151
        %v2908 = vpack.c.b16 %v2180, %v2152
        %v2909 = vpack.c.b16 %v2181, %v2153
        %v2910 = vpack.c.b16 %v2182, %v2154
        %v2911 = vpack.c.b16 %v2183, %v2155
        %v2912 = vpack.c.b16 %v2184, %v2156
        %v2913 = vpack.c.b16 %v2185, %v2157
        %v2914 = vpack.c.b16 %v2186, %v2158
        %v2915 = vpack.c.b16 %v2187, %v2159
        %v2916 = vpack.c.b16 %v2188, %v2160
        %v2917 = vpack.c.b16 %v2189, %v2161
        %v2918 = vpack.c.b16 %v2190, %v2162
        %v2919 = vpack.c.b16 %v2191, %v2163
        %v2920 = vpack.c.b16 %v2192, %v2164
        %v2921 = vpack.c.b16 %v2193, %v2165
        %v2922 = vpack.c.b16 %v2194, %v2166
        %v2923 = vpack.c.b16 %v2195, %v2167
        %v2924 = vpack.c.b16 %v2196, %v2168
        %v2925 = vpack.c.b16 %v2197, %v2169
        %v2926 = vpack.c.b16 %v2198, %v2170
        %v2927 = vpack.c.b16 %v2199, %v2171
        %v2928 = vpack.c.b16 %v2200, %v2172
        %v2929 = vpack.c.b16 %v2201, %v2173
        %v2930 = vpack.c.b16 %v2202, %v2174
        %v2931 = vpack.c.b16 %v2203, %v2175
        %v2932 = vpack.c.b16 %v2204, %v2176
        %v2933 = vpack.c.b16 %v2205, %v2177
        %v2934 = vpack.c.b16 %v2206, %v2178
        %v2935 = vpack.c.b16 %v2235, %v2207
        %v2936 = vpack.c.b16 %v2236, %v2208
        %v2937 = vpack.c.b16 %v2237, %v2209
        %v2938 = vpack.c.b16 %v2238, %v2210
        %v2939 = vpack.c.b16 %v2239, %v2211
        %v2940 = vpack.c.b16 %v2240, %v2212
        %v2941 = vpack.c.b16 %v2241, %v2213
        %v2942 = vpack.c.b16 %v2242, %v2214
        %v2943 = vpack.c.b16 %v2243, %v2215
        %v2944 = vpack.c.b16 %v2244, %v2216
        %v2945 = vpack.c.b16 %v2245, %v2217
        %v2946 = vpack.c.b16 %v2246, %v2218
        %v2947 = vpack.c.b16 %v2247, %v2219
        %v2948 = vpack.c.b16 %v2248, %v2220
        %v2949 = vpack.c.b16 %v2249, %v2221
        %v2950 = vpack.c.b16 %v2250, %v2222
        %v2951 = vpack.c.b16 %v2251, %v2223
        %v2952 = vpack.c.b16 %v2252, %v2224
        %v2953 = vpack.c.b16 %v2253, %v2225
        %v2954 = vpack.c.b16 %v2254, %v2226
        %v2955 = vpack.c.b16 %v2255, %v2227
        %v2956 = vpack.c.b16 %v2256, %v2228
        %v2957 = vpack.c.b16 %v2257, %v2229
        %v2958 = vpack.c.b16 %v2258, %v2230
        %v2959 = vpack.c.b16 %v2259, %v2231
        %v2960 = vpack.c.b16 %v2260, %v2232
        %v2961 = vpack.c.b16 %v2261, %v2233
        %v2962 = vpack.c.b16 %v2262, %v2234
        %v2963 = vpack.c.b16 %v2291, %v2263
        %v2964 = vpack.c.b16 %v2292, %v2264
        %v2965 = vpack.c.b16 %v2293, %v2265
        %v2966 = vpack.c.b16 %v2294, %v2266
        %v2967 = vpack.c.b16 %v2295, %v2267
        %v2968 = vpack.c.b16 %v2296, %v2268
        %v2969 = vpack.c.b16 %v2297, %v2269
        %v2970 = vpack.c.b16 %v2298, %v2270
        %v2971 = vpack.c.b16 %v2299, %v2271
        %v2972 = vpack.c.b16 %v2300, %v2272
        %v2973 = vpack.c.b16 %v2301, %v2273
        %v2974 = vpack.c.b16 %v2302, %v2274
        %v2975 = vpack.c.b16 %v2303, %v2275
        %v2976 = vpack.c.b16 %v2304, %v2276
        %v2977 = vpack.c.b16 %v2305, %v2277
        %v2978 = vpack.c.b16 %v2306, %v2278
        %v2979 = vpack.c.b16 %v2307, %v2279
        %v2980 = vpack.c.b16 %v2308, %v2280
        %v2981 = vpack.c.b16 %v2309, %v2281
        %v2982 = vpack.c.b16 %v2310, %v2282
        %v2983 = vpack.c.b16 %v2311, %v2283
        %v2984 = vpack.c.b16 %v2312, %v2284
        %v2985 = vpack.c.b16 %v2313, %v2285
        %v2986 = vpack.c.b16 %v2314, %v2286
        %v2987 = vpack.c.b16 %v2315, %v2287
        %v2988 = vpack.c.b16 %v2316, %v2288
        %v2989 = vpack.c.b16 %v2317, %v2289
        %v2990 = vpack.c.b16 %v2318, %v2290
        %v2991 = vpack.c.b16 %v2347, %v2319
        %v2992 = vpack.c.b16 %v2348, %v2320
        %v2993 = vpack.c.b16 %v2349, %v2321
        %v2994 = vpack.c.b16 %v2350, %v2322
        %v2995 = vpack.c.b16 %v2351, %v2323
        %v2996 = vpack.c.b16 %v2352, %v2324
        %v2997 = vpack.c.b16 %v2353, %v2325
        %v2998 = vpack.c.b16 %v2354, %v2326
        %v2999 = vpack.c.b16 %v2355, %v2327
        %v3000 = vpack.c.b16 %v2356, %v2328
        %v3001 = vpack.c.b16 %v2357, %v2329
        %v3002 = vpack.c.b16 %v2358, %v2330
        %v3003 = vpack.c.b16 %v2359, %v2331
        %v3004 = vpack.c.b16 %v2360, %v2332
        %v3005 = vpack.c.b16 %v2361, %v2333
        %v3006 = vpack.c.b16 %v2362, %v2334
        %v3007 = vpack.c.b16 %v2363, %v2335
        %v3008 = vpack.c.b16 %v2364, %v2336
        %v3009 = vpack.c.b16 %v2365, %v2337
        %v3010 = vpack.c.b16 %v2366, %v2338
        %v3011 = vpack.c.b16 %v2367, %v2339
        %v3012 = vpack.c.b16 %v2368, %v2340
        %v3013 = vpack.c.b16 %v2369, %v2341
        %v3014 = vpack.c.b16 %v2370, %v2342
        %v3015 = vpack.c.b16 %v2371, %v2343
        %v3016 = vpack.c.b16 %v2372, %v2344
        %v3017 = vpack.c.b16 %v2373, %v2345
        %v3018 = vpack.c.b16 %v2374, %v2346
        %v3019 = vpack.c.b16 %v2403, %v2375
        %v3020 = vpack.c.b16 %v2404, %v2376
        %v3021 = vpack.c.b16 %v2405, %v2377
        %v3022 = vpack.c.b16 %v2406, %v2378
        %v3023 = vpack.c.b16 %v2407, %v2379
        %v3024 = vpack.c.b16 %v2408, %v2380
        %v3025 = vpack.c.b16 %v2409, %v2381
        %v3026 = vpack.c.b16 %v2410, %v2382
        %v3027 = vpack.c.b16 %v2411, %v2383
        %v3028 = vpack.c.b16 %v2412, %v2384
        %v3029 = vpack.c.b16 %v2413, %v2385
        %v3030 = vpack.c.b16 %v2414, %v2386
        %v3031 = vpack.c.b16 %v2415, %v2387
        %v3032 = vpack.c.b16 %v2416, %v2388
        %v3033 = vpack.c.b16 %v2417, %v2389
        %v3034 = vpack.c.b16 %v2418, %v2390
        %v3035 = vpack.c.b16 %v2419, %v2391
        %v3036 = vpack.c.b16 %v2420, %v2392
        %v3037 = vpack.c.b16 %v2421, %v2393
        %v3038 = vpack.c.b16 %v2422, %v2394
        %v3039 = vpack.c.b16 %v2423, %v2395
        %v3040 = vpack.c.b16 %v2424, %v2396
        %v3041 = vpack.c.b16 %v2425, %v2397
        %v3042 = vpack.c.b16 %v2426, %v2398
        %v3043 = vpack.c.b16 %v2427, %v2399
        %v3044 = vpack.c.b16 %v2428, %v2400
        %v3045 = vpack.c.b16 %v2429, %v2401
        %v3046 = vpack.c.b16 %v2430, %v2402
        %v3047 = vpack.c.b16 %v2459, %v2431
        %v3048 = vpack.c.b16 %v2460, %v2432
        %v3049 = vpack.c.b16 %v2461, %v2433
        %v3050 = vpack.c.b16 %v2462, %v2434
        %v3051 = vpack.c.b16 %v2463, %v2435
        %v3052 = vpack.c.b16 %v2464, %v2436
        %v3053 = vpack.c.b16 %v2465, %v2437
        %v3054 = vpack.c.b16 %v2466, %v2438
        %v3055 = vpack.c.b16 %v2467, %v2439
        %v3056 = vpack.c.b16 %v2468, %v2440
        %v3057 = vpack.c.b16 %v2469, %v2441
        %v3058 = vpack.c.b16 %v2470, %v2442
        %v3059 = vpack.c.b16 %v2471, %v2443
        %v3060 = vpack.c.b16 %v2472, %v2444
        %v3061 = vpack.c.b16 %v2473, %v2445
        %v3062 = vpack.c.b16 %v2474, %v2446
        %v3063 = vpack.c.b16 %v2475, %v2447
        %v3064 = vpack.c.b16 %v2476, %v2448
        %v3065 = vpack.c.b16 %v2477, %v2449
        %v3066 = vpack.c.b16 %v2478, %v2450
        %v3067 = vpack.c.b16 %v2479, %v2451
        %v3068 = vpack.c.b16 %v2480, %v2452
        %v3069 = vpack.c.b16 %v2481, %v2453
        %v3070 = vpack.c.b16 %v2482, %v2454
        %v3071 = vpack.c.b16 %v2483, %v2455
        %v3072 = vpack.c.b16 %v2484, %v2456
        %v3073 = vpack.c.b16 %v2485, %v2457
        %v3074 = vpack.c.b16 %v2486, %v2458
        %v3075 = vpack.c.b16 %v2515, %v2487
        %v3076 = vpack.c.b16 %v2516, %v2488
        %v3077 = vpack.c.b16 %v2517, %v2489
        %v3078 = vpack.c.b16 %v2518, %v2490
        %v3079 = vpack.c.b16 %v2519, %v2491
        %v3080 = vpack.c.b16 %v2520, %v2492
        %v3081 = vpack.c.b16 %v2521, %v2493
        %v3082 = vpack.c.b16 %v2522, %v2494
        %v3083 = vpack.c.b16 %v2523, %v2495
        %v3084 = vpack.c.b16 %v2524, %v2496
        %v3085 = vpack.c.b16 %v2525, %v2497
        %v3086 = vpack.c.b16 %v2526, %v2498
        %v3087 = vpack.c.b16 %v2527, %v2499
        %v3088 = vpack.c.b16 %v2528, %v2500
        %v3089 = vpack.c.b16 %v2529, %v2501
        %v3090 = vpack.c.b16 %v2530, %v2502
        %v3091 = vpack.c.b16 %v2531, %v2503
        %v3092 = vpack.c.b16 %v2532, %v2504
        %v3093 = vpack.c.b16 %v2533, %v2505
        %v3094 = vpack.c.b16 %v2534, %v2506
        %v3095 = vpack.c.b16 %v2535, %v2507
        %v3096 = vpack.c.b16 %v2536, %v2508
        %v3097 = vpack.c.b16 %v2537, %v2509
        %v3098 = vpack.c.b16 %v2538, %v2510
        %v3099 = vpack.c.b16 %v2539, %v2511
        %v3100 = vpack.c.b16 %v2540, %v2512
        %v3101 = vpack.c.b16 %v2541, %v2513
        %v3102 = vpack.c.b16 %v2542, %v2514
        %v3103 = vpack.c.b16 %v2571, %v2543
        %v3104 = vpack.c.b16 %v2572, %v2544
        %v3105 = vpack.c.b16 %v2573, %v2545
        %v3106 = vpack.c.b16 %v2574, %v2546
        %v3107 = vpack.c.b16 %v2575, %v2547
        %v3108 = vpack.c.b16 %v2576, %v2548
        %v3109 = vpack.c.b16 %v2577, %v2549
        %v3110 = vpack.c.b16 %v2578, %v2550
        %v3111 = vpack.c.b16 %v2579, %v2551
        %v3112 = vpack.c.b16 %v2580, %v2552
        %v3113 = vpack.c.b16 %v2581, %v2553
        %v3114 = vpack.c.b16 %v2582, %v2554
        %v3115 = vpack.c.b16 %v2583, %v2555
        %v3116 = vpack.c.b16 %v2584, %v2556
        %v3117 = vpack.c.b16 %v2585, %v2557
        %v3118 = vpack.c.b16 %v2586, %v2558
        %v3119 = vpack.c.b16 %v2587, %v2559
        %v3120 = vpack.c.b16 %v2588, %v2560
        %v3121 = vpack.c.b16 %v2589, %v2561
        %v3122 = vpack.c.b16 %v2590, %v2562
        %v3123 = vpack.c.b16 %v2591, %v2563
        %v3124 = vpack.c.b16 %v2592, %v2564
        %v3125 = vpack.c.b16 %v2593, %v2565
        %v3126 = vpack.c.b16 %v2594, %v2566
        %v3127 = vpack.c.b16 %v2595, %v2567
        %v3128 = vpack.c.b16 %v2596, %v2568
        %v3129 = vpack.c.b16 %v2597, %v2569
        %v3130 = vpack.c.b16 %v2598, %v2570
        %v3131 = vpack.c.b16 %v2627, %v2599
        %v3132 = vpack.c.b16 %v2628, %v2600
        %v3133 = vpack.c.b16 %v2629, %v2601
        %v3134 = vpack.c.b16 %v2630, %v2602
        %v3135 = vpack.c.b16 %v2631, %v2603
        %v3136 = vpack.c.b16 %v2632, %v2604
        %v3137 = vpack.c.b16 %v2633, %v2605
        %v3138 = vpack.c.b16 %v2634, %v2606
        %v3139 = vpack.c.b16 %v2635, %v2607
        %v3140 = vpack.c.b16 %v2636, %v2608
        %v3141 = vpack.c.b16 %v2637, %v2609
        %v3142 = vpack.c.b16 %v2638, %v2610
        %v3143 = vpack.c.b16 %v2639, %v2611
        %v3144 = vpack.c.b16 %v2640, %v2612
        %v3145 = vpack.c.b16 %v2641, %v2613
        %v3146 = vpack.c.b16 %v2642, %v2614
        %v3147 = vpack.c.b16 %v2643, %v2615
        %v3148 = vpack.c.b16 %v2644, %v2616
        %v3149 = vpack.c.b16 %v2645, %v2617
        %v3150 = vpack.c.b16 %v2646, %v2618
        %v3151 = vpack.c.b16 %v2647, %v2619
        %v3152 = vpack.c.b16 %v2648, %v2620
        %v3153 = vpack.c.b16 %v2649, %v2621
        %v3154 = vpack.c.b16 %v2650, %v2622
        %v3155 = vpack.c.b16 %v2651, %v2623
        %v3156 = vpack.c.b16 %v2652, %v2624
        %v3157 = vpack.c.b16 %v2653, %v2625
        %v3158 = vpack.c.b16 %v2654, %v2626
        %v3159 = vpack.c.b16 %v2683, %v2655
        %v3160 = vpack.c.b16 %v2684, %v2656
        %v3161 = vpack.c.b16 %v2685, %v2657
        %v3162 = vpack.c.b16 %v2686, %v2658
        %v3163 = vpack.c.b16 %v2687, %v2659
        %v3164 = vpack.c.b16 %v2688, %v2660
        %v3165 = vpack.c.b16 %v2689, %v2661
        %v3166 = vpack.c.b16 %v2690, %v2662
        %v3167 = vpack.c.b16 %v2691, %v2663
        %v3168 = vpack.c.b16 %v2692, %v2664
        %v3169 = vpack.c.b16 %v2693, %v2665
        %v3170 = vpack.c.b16 %v2694, %v2666
        %v3171 = vpack.c.b16 %v2695, %v2667
        %v3172 = vpack.c.b16 %v2696, %v2668
        %v3173 = vpack.c.b16 %v2697, %v2669
        %v3174 = vpack.c.b16 %v2698, %v2670
        %v3175 = vpack.c.b16 %v2699, %v2671
        %v3176 = vpack.c.b16 %v2700, %v2672
        %v3177 = vpack.c.b16 %v2701, %v2673
        %v3178 = vpack.c.b16 %v2702, %v2674
        %v3179 = vpack.c.b16 %v2703, %v2675
        %v3180 = vpack.c.b16 %v2704, %v2676
        %v3181 = vpack.c.b16 %v2705, %v2677
        %v3182 = vpack.c.b16 %v2706, %v2678
        %v3183 = vpack.c.b16 %v2707, %v2679
        %v3184 = vpack.c.b16 %v2708, %v2680
        %v3185 = vpack.c.b16 %v2709, %v2681
        %v3186 = vpack.c.b16 %v2710, %v2682
        %v3187 = vpack.c.b16 %v2739, %v2711
        %v3188 = vpack.c.b16 %v2740, %v2712
        %v3189 = vpack.c.b16 %v2741, %v2713
        %v3190 = vpack.c.b16 %v2742, %v2714
        %v3191 = vpack.c.b16 %v2743, %v2715
        %v3192 = vpack.c.b16 %v2744, %v2716
        %v3193 = vpack.c.b16 %v2745, %v2717
        %v3194 = vpack.c.b16 %v2746, %v2718
        %v3195 = vpack.c.b16 %v2747, %v2719
        %v3196 = vpack.c.b16 %v2748, %v2720
        %v3197 = vpack.c.b16 %v2749, %v2721
        %v3198 = vpack.c.b16 %v2750, %v2722
        %v3199 = vpack.c.b16 %v2751, %v2723
        %v3200 = vpack.c.b16 %v2752, %v2724
        %v3201 = vpack.c.b16 %v2753, %v2725
        %v3202 = vpack.c.b16 %v2754, %v2726
        %v3203 = vpack.c.b16 %v2755, %v2727
        %v3204 = vpack.c.b16 %v2756, %v2728
        %v3205 = vpack.c.b16 %v2757, %v2729
        %v3206 = vpack.c.b16 %v2758, %v2730
        %v3207 = vpack.c.b16 %v2759, %v2731
        %v3208 = vpack.c.b16 %v2760, %v2732
        %v3209 = vpack.c.b16 %v2761, %v2733
        %v3210 = vpack.c.b16 %v2762, %v2734
        %v3211 = vpack.c.b16 %v2763, %v2735
        %v3212 = vpack.c.b16 %v2764, %v2736
        %v3213 = vpack.c.b16 %v2765, %v2737
        %v3214 = vpack.c.b16 %v2766, %v2738
        %v4111 = vunpack.c.l.b16 %v975
        %v4112 = vunpack.c.h.b16 %v975
        %v4113 = vunpack.c.l.b16 %v976
        %v4114 = vunpack.c.h.b16 %v976
        %v4115 = vunpack.c.l.b16 %v977
        %v4116 = vunpack.c.h.b16 %v977
        %v4117 = vunpack.c.l.b16 %v978
        %v4118 = vunpack.c.h.b16 %v978
        %v4119 = vunpack.c.l.b16 %v979
        %v4120 = vunpack.c.h.b16 %v979
        %v4121 = vunpack.c.l.b16 %v980
        %v4122 = vunpack.c.h.b16 %v980
        %v4123 = vunpack.c.l.b16 %v981
        %v4124 = vunpack.c.h.b16 %v981
        %v4125 = vunpack.c.l.b16 %v982
        %v4126 = vunpack.c.h.b16 %v982
        %v4127 = vunpack.c.l.b16 %v983
        %v4128 = vunpack.c.h.b16 %v983
        %v4129 = vunpack.c.l.b16 %v984
        %v4130 = vunpack.c.h.b16 %v984
        %v4131 = vunpack.c.l.b16 %v985
        %v4132 = vunpack.c.h.b16 %v985
        %v4133 = vunpack.c.l.b16 %v986
        %v4134 = vunpack.c.h.b16 %v986
        %v4135 = vunpack.c.l.b16 %v987
        %v4136 = vunpack.c.h.b16 %v987
        %v4137 = vunpack.c.l.b16 %v988
        %v4138 = vunpack.c.h.b16 %v988
        %v4139 = vunpack.c.l.b16 %v989
        %v4140 = vunpack.c.h.b16 %v989
        %v4141 = vunpack.c.l.b16 %v990
        %v4142 = vunpack.c.h.b16 %v990
        %v4143 = vunpack.c.l.b16 %v991
        %v4144 = vunpack.c.h.b16 %v991
        %v4145 = vunpack.c.l.b16 %v992
        %v4146 = vunpack.c.h.b16 %v992
        %v4147 = vunpack.c.l.b16 %v993
        %v4148 = vunpack.c.h.b16 %v993
        %v4149 = vunpack.c.l.b16 %v994
        %v4150 = vunpack.c.h.b16 %v994
        %v4151 = vunpack.c.l.b16 %v995
        %v4152 = vunpack.c.h.b16 %v995
        %v4153 = vunpack.c.l.b16 %v996
        %v4154 = vunpack.c.h.b16 %v996
        %v4155 = vunpack.c.l.b16 %v997
        %v4156 = vunpack.c.h.b16 %v997
        %v4157 = vunpack.c.l.b16 %v998
        %v4158 = vunpack.c.h.b16 %v998
        %v4159 = vunpack.c.l.b16 %v999
        %v4160 = vunpack.c.h.b16 %v999
        %v4161 = vunpack.c.l.b16 %v1000
        %v4162 = vunpack.c.h.b16 %v1000
        %v4163 = vunpack.c.l.b16 %v1001
        %v4164 = vunpack.c.h.b16 %v1001
        %v4165 = vunpack.c.l.b16 %v1002
        %v4166 = vunpack.c.h.b16 %v1002
        %v4167 = vunpack.c.l.b16 %v1003
        %v4168 = vunpack.c.h.b16 %v1003
        %v4169 = vunpack.c.l.b16 %v1004
        %v4170 = vunpack.c.h.b16 %v1004
        %v4171 = vunpack.c.l.b16 %v1005
        %v4172 = vunpack.c.h.b16 %v1005
        %v4173 = vunpack.c.l.b16 %v1006
        %v4174 = vunpack.c.h.b16 %v1006
        %v4175 = vunpack.c.l.b16 %v1007
        %v4176 = vunpack.c.h.b16 %v1007
        %v4177 = vunpack.c.l.b16 %v1008
        %v4178 = vunpack.c.h.b16 %v1008
        %v4179 = vunpack.c.l.b16 %v1009
        %v4180 = vunpack.c.h.b16 %v1009
        %v4181 = vunpack.c.l.b16 %v1010
        %v4182 = vunpack.c.h.b16 %v1010
        %v4183 = vunpack.c.l.b16 %v1011
        %v4184 = vunpack.c.h.b16 %v1011
        %v4185 = vunpack.c.l.b16 %v1012
        %v4186 = vunpack.c.h.b16 %v1012
        %v4187 = vunpack.c.l.b16 %v1013
        %v4188 = vunpack.c.h.b16 %v1013
        %v4189 = vunpack.c.l.b16 %v1014
        %v4190 = vunpack.c.h.b16 %v1014
        %v4191 = vunpack.c.l.b16 %v1015
        %v4192 = vunpack.c.h.b16 %v1015
        %v4193 = vunpack.c.l.b16 %v1016
        %v4194 = vunpack.c.h.b16 %v1016
        %v4195 = vunpack.c.l.b16 %v1017
        %v4196 = vunpack.c.h.b16 %v1017
        %v4197 = vunpack.c.l.b16 %v1018
        %v4198 = vunpack.c.h.b16 %v1018
        %v4199 = vunpack.c.l.b16 %v1019
        %v4200 = vunpack.c.h.b16 %v1019
        %v4201 = vunpack.c.l.b16 %v1020
        %v4202 = vunpack.c.h.b16 %v1020
        %v4203 = vunpack.c.l.b16 %v1021
        %v4204 = vunpack.c.h.b16 %v1021
        %v4205 = vunpack.c.l.b16 %v1022
        %v4206 = vunpack.c.h.b16 %v1022
        %v4207 = vunpack.c.l.b16 %v1023
        %v4208 = vunpack.c.h.b16 %v1023
        %v4209 = vunpack.c.l.b16 %v1024
        %v4210 = vunpack.c.h.b16 %v1024
        %v4211 = vunpack.c.l.b16 %v1025
        %v4212 = vunpack.c.h.b16 %v1025
        %v4213 = vunpack.c.l.b16 %v1026
        %v4214 = vunpack.c.h.b16 %v1026
        %v4215 = vunpack.c.l.b16 %v1027
        %v4216 = vunpack.c.h.b16 %v1027
        %v4217 = vunpack.c.l.b16 %v1028
        %v4218 = vunpack.c.h.b16 %v1028
        %v4219 = vunpack.c.l.b16 %v1029
        %v4220 = vunpack.c.h.b16 %v1029
        %v4221 = vunpack.c.l.b16 %v1030
        %v4222 = vunpack.c.h.b16 %v1030
        %v4223 = vunpack.c.l.b16 %v1031
        %v4224 = vunpack.c.h.b16 %v1031
        %v4225 = vunpack.c.l.b16 %v1032
        %v4226 = vunpack.c.h.b16 %v1032
        %v4227 = vunpack.c.l.b16 %v1033
        %v4228 = vunpack.c.h.b16 %v1033
        %v4229 = vunpack.c.l.b16 %v1034
        %v4230 = vunpack.c.h.b16 %v1034
        %v4231 = vunpack.c.l.b16 %v1035
        %v4232 = vunpack.c.h.b16 %v1035
        %v4233 = vunpack.c.l.b16 %v1036
        %v4234 = vunpack.c.h.b16 %v1036
        %v4235 = vunpack.c.l.b16 %v1037
        %v4236 = vunpack.c.h.b16 %v1037
        %v4237 = vunpack.c.l.b16 %v1038
        %v4238 = vunpack.c.h.b16 %v1038
        %v4239 = vunpack.c.l.b16 %v1039
        %v4240 = vunpack.c.h.b16 %v1039
        %v4241 = vunpack.c.l.b16 %v1040
        %v4242 = vunpack.c.h.b16 %v1040
        %v4243 = vunpack.c.l.b16 %v1041
        %v4244 = vunpack.c.h.b16 %v1041
        %v4245 = vunpack.c.l.b16 %v1042
        %v4246 = vunpack.c.h.b16 %v1042
        %v4247 = vunpack.c.l.b16 %v1043
        %v4248 = vunpack.c.h.b16 %v1043
        %v4249 = vunpack.c.l.b16 %v1044
        %v4250 = vunpack.c.h.b16 %v1044
        %v4251 = vunpack.c.l.b16 %v1045
        %v4252 = vunpack.c.h.b16 %v1045
        %v4253 = vunpack.c.l.b16 %v1046
        %v4254 = vunpack.c.h.b16 %v1046
        %v4255 = vunpack.c.l.b16 %v1047
        %v4256 = vunpack.c.h.b16 %v1047
        %v4257 = vunpack.c.l.b16 %v1048
        %v4258 = vunpack.c.h.b16 %v1048
        %v4259 = vunpack.c.l.b16 %v1049
        %v4260 = vunpack.c.h.b16 %v1049
        %v4261 = vunpack.c.l.b16 %v1050
        %v4262 = vunpack.c.h.b16 %v1050
        %v4263 = vunpack.c.l.b16 %v1051
        %v4264 = vunpack.c.h.b16 %v1051
        %v4265 = vunpack.c.l.b16 %v1052
        %v4266 = vunpack.c.h.b16 %v1052
        %v4267 = vunpack.c.l.b16 %v1053
        %v4268 = vunpack.c.h.b16 %v1053
        %v4269 = vunpack.c.l.b16 %v1054
        %v4270 = vunpack.c.h.b16 %v1054
        %v4271 = vunpack.c.l.b16 %v1055
        %v4272 = vunpack.c.h.b16 %v1055
        %v4273 = vunpack.c.l.b16 %v1056
        %v4274 = vunpack.c.h.b16 %v1056
        %v4275 = vunpack.c.l.b16 %v1057
        %v4276 = vunpack.c.h.b16 %v1057
        %v4277 = vunpack.c.l.b16 %v1058
        %v4278 = vunpack.c.h.b16 %v1058
        %v4279 = vunpack.c.l.b16 %v1059
        %v4280 = vunpack.c.h.b16 %v1059
        %v4281 = vunpack.c.l.b16 %v1060
        %v4282 = vunpack.c.h.b16 %v1060
        %v4283 = vunpack.c.l.b16 %v1061
        %v4284 = vunpack.c.h.b16 %v1061
        %v4285 = vunpack.c.l.b16 %v1062
        %v4286 = vunpack.c.h.b16 %v1062
        %v4287 = vunpack.c.l.b16 %v1063
        %v4288 = vunpack.c.h.b16 %v1063
        %v4289 = vunpack.c.l.b16 %v1064
        %v4290 = vunpack.c.h.b16 %v1064
        %v4291 = vunpack.c.l.b16 %v1065
        %v4292 = vunpack.c.h.b16 %v1065
        %v4293 = vunpack.c.l.b16 %v1066
        %v4294 = vunpack.c.h.b16 %v1066
        %v4295 = vunpack.c.l.b16 %v1067
        %v4296 = vunpack.c.h.b16 %v1067
        %v4297 = vunpack.c.l.b16 %v1068
        %v4298 = vunpack.c.h.b16 %v1068
        %v4299 = vunpack.c.l.b16 %v1069
        %v4300 = vunpack.c.h.b16 %v1069
        %v4301 = vunpack.c.l.b16 %v1070
        %v4302 = vunpack.c.h.b16 %v1070
        %v4303 = vunpack.c.l.b16 %v1071
        %v4304 = vunpack.c.h.b16 %v1071
        %v4305 = vunpack.c.l.b16 %v1072
        %v4306 = vunpack.c.h.b16 %v1072
        %v4307 = vunpack.c.l.b16 %v1073
        %v4308 = vunpack.c.h.b16 %v1073
        %v4309 = vunpack.c.l.b16 %v1074
        %v4310 = vunpack.c.h.b16 %v1074
        %v4311 = vunpack.c.l.b16 %v1075
        %v4312 = vunpack.c.h.b16 %v1075
        %v4313 = vunpack.c.l.b16 %v1076
        %v4314 = vunpack.c.h.b16 %v1076
        %v4315 = vunpack.c.l.b16 %v1077
        %v4316 = vunpack.c.h.b16 %v1077
        %v4317 = vunpack.c.l.b16 %v1078
        %v4318 = vunpack.c.h.b16 %v1078
        %v4319 = vunpack.c.l.b16 %v1079
        %v4320 = vunpack.c.h.b16 %v1079
        %v4321 = vunpack.c.l.b16 %v1080
        %v4322 = vunpack.c.h.b16 %v1080
        %v4323 = vunpack.c.l.b16 %v1081
        %v4324 = vunpack.c.h.b16 %v1081
        %v4325 = vunpack.c.l.b16 %v1082
        %v4326 = vunpack.c.h.b16 %v1082
        %v4327 = vunpack.c.l.b16 %v1083
        %v4328 = vunpack.c.h.b16 %v1083
        %v4329 = vunpack.c.l.b16 %v1084
        %v4330 = vunpack.c.h.b16 %v1084
        %v4331 = vunpack.c.l.b16 %v1085
        %v4332 = vunpack.c.h.b16 %v1085
        %v4333 = vunpack.c.l.b16 %v1086
        %v4334 = vunpack.c.h.b16 %v1086
        %v4335 = vunpack.c.l.b16 %v1087
        %v4336 = vunpack.c.h.b16 %v1087
        %v4337 = vunpack.c.l.b16 %v1088
        %v4338 = vunpack.c.h.b16 %v1088
        %v4339 = vunpack.c.l.b16 %v1089
        %v4340 = vunpack.c.h.b16 %v1089
        %v4341 = vunpack.c.l.b16 %v1090
        %v4342 = vunpack.c.h.b16 %v1090
        %v4343 = vunpack.c.l.b16 %v1091
        %v4344 = vunpack.c.h.b16 %v1091
        %v4345 = vunpack.c.l.b16 %v1092
        %v4346 = vunpack.c.h.b16 %v1092
        %v4347 = vunpack.c.l.b16 %v1093
        %v4348 = vunpack.c.h.b16 %v1093
        %v4349 = vunpack.c.l.b16 %v1094
        %v4350 = vunpack.c.h.b16 %v1094
        %v4351 = vunpack.c.l.b16 %v1095
        %v4352 = vunpack.c.h.b16 %v1095
        %v4353 = vunpack.c.l.b16 %v1096
        %v4354 = vunpack.c.h.b16 %v1096
        %v4355 = vunpack.c.l.b16 %v1097
        %v4356 = vunpack.c.h.b16 %v1097
        %v4357 = vunpack.c.l.b16 %v1098
        %v4358 = vunpack.c.h.b16 %v1098
        %v4359 = vunpack.c.l.b16 %v1099
        %v4360 = vunpack.c.h.b16 %v1099
        %v4361 = vunpack.c.l.b16 %v1100
        %v4362 = vunpack.c.h.b16 %v1100
        %v4363 = vunpack.c.l.b16 %v1101
        %v4364 = vunpack.c.h.b16 %v1101
        %v4365 = vunpack.c.l.b16 %v1102
        %v4366 = vunpack.c.h.b16 %v1102
        %v4367 = vunpack.c.l.b16 %v1103
        %v4368 = vunpack.c.h.b16 %v1103
        %v4369 = vunpack.c.l.b16 %v1104
        %v4370 = vunpack.c.h.b16 %v1104
        %v4371 = vunpack.c.l.b16 %v1105
        %v4372 = vunpack.c.h.b16 %v1105
        %v4373 = vunpack.c.l.b16 %v1106
        %v4374 = vunpack.c.h.b16 %v1106
        %v4375 = vunpack.c.l.b16 %v1107
        %v4376 = vunpack.c.h.b16 %v1107
        %v4377 = vunpack.c.l.b16 %v1108
        %v4378 = vunpack.c.h.b16 %v1108
        %v4379 = vunpack.c.l.b16 %v1109
        %v4380 = vunpack.c.h.b16 %v1109
        %v4381 = vunpack.c.l.b16 %v1110
        %v4382 = vunpack.c.h.b16 %v1110
        %v4383 = vunpack.c.l.b16 %v1111
        %v4384 = vunpack.c.h.b16 %v1111
        %v4385 = vunpack.c.l.b16 %v1112
        %v4386 = vunpack.c.h.b16 %v1112
        %v4387 = vunpack.c.l.b16 %v1113
        %v4388 = vunpack.c.h.b16 %v1113
        %v4389 = vunpack.c.l.b16 %v1114
        %v4390 = vunpack.c.h.b16 %v1114
        %v4391 = vunpack.c.l.b16 %v1115
        %v4392 = vunpack.c.h.b16 %v1115
        %v4393 = vunpack.c.l.b16 %v1116
        %v4394 = vunpack.c.h.b16 %v1116
        %v4395 = vunpack.c.l.b16 %v1117
        %v4396 = vunpack.c.h.b16 %v1117
        %v4397 = vunpack.c.l.b16 %v1118
        %v4398 = vunpack.c.h.b16 %v1118
        %v4399 = vunpack.c.l.b16 %v1119
        %v4400 = vunpack.c.h.b16 %v1119
        %v4401 = vunpack.c.l.b16 %v1120
        %v4402 = vunpack.c.h.b16 %v1120
        %v4403 = vunpack.c.l.b16 %v1121
        %v4404 = vunpack.c.h.b16 %v1121
        %v4405 = vunpack.c.l.b16 %v1122
        %v4406 = vunpack.c.h.b16 %v1122
        %v4407 = vunpack.c.l.b16 %v1123
        %v4408 = vunpack.c.h.b16 %v1123
        %v4409 = vunpack.c.l.b16 %v1124
        %v4410 = vunpack.c.h.b16 %v1124
        %v4411 = vunpack.c.l.b16 %v1125
        %v4412 = vunpack.c.h.b16 %v1125
        %v4413 = vunpack.c.l.b16 %v1126
        %v4414 = vunpack.c.h.b16 %v1126
        %v4415 = vunpack.c.l.b16 %v1127
        %v4416 = vunpack.c.h.b16 %v1127
        %v4417 = vunpack.c.l.b16 %v1128
        %v4418 = vunpack.c.h.b16 %v1128
        %v4419 = vunpack.c.l.b16 %v1129
        %v4420 = vunpack.c.h.b16 %v1129
        %v4421 = vunpack.c.l.b16 %v1130
        %v4422 = vunpack.c.h.b16 %v1130
        %v4423 = vunpack.c.l.b16 %v1131
        %v4424 = vunpack.c.h.b16 %v1131
        %v4425 = vunpack.c.l.b16 %v1132
        %v4426 = vunpack.c.h.b16 %v1132
        %v4427 = vunpack.c.l.b16 %v1133
        %v4428 = vunpack.c.h.b16 %v1133
        %v4429 = vunpack.c.l.b16 %v1134
        %v4430 = vunpack.c.h.b16 %v1134
        %v4431 = vunpack.c.l.b16 %v1135
        %v4432 = vunpack.c.h.b16 %v1135
        %v4433 = vunpack.c.l.b16 %v1136
        %v4434 = vunpack.c.h.b16 %v1136
        %v4435 = vunpack.c.l.b16 %v1137
        %v4436 = vunpack.c.h.b16 %v1137
        %v4437 = vunpack.c.l.b16 %v1138
        %v4438 = vunpack.c.h.b16 %v1138
        %v4439 = vunpack.c.l.b16 %v1139
        %v4440 = vunpack.c.h.b16 %v1139
        %v4441 = vunpack.c.l.b16 %v1140
        %v4442 = vunpack.c.h.b16 %v1140
        %v4443 = vunpack.c.l.b16 %v1141
        %v4444 = vunpack.c.h.b16 %v1141
        %v4445 = vunpack.c.l.b16 %v1142
        %v4446 = vunpack.c.h.b16 %v1142
        %v4447 = vunpack.c.l.b16 %v1143
        %v4448 = vunpack.c.h.b16 %v1143
        %v4449 = vunpack.c.l.b16 %v1144
        %v4450 = vunpack.c.h.b16 %v1144
        %v4451 = vunpack.c.l.b16 %v1145
        %v4452 = vunpack.c.h.b16 %v1145
        %v4453 = vunpack.c.l.b16 %v1146
        %v4454 = vunpack.c.h.b16 %v1146
        %v4455 = vunpack.c.l.b16 %v1147
        %v4456 = vunpack.c.h.b16 %v1147
        %v4457 = vunpack.c.l.b16 %v1148
        %v4458 = vunpack.c.h.b16 %v1148
        %v4459 = vunpack.c.l.b16 %v1149
        %v4460 = vunpack.c.h.b16 %v1149
        %v4461 = vunpack.c.l.b16 %v1150
        %v4462 = vunpack.c.h.b16 %v1150
        %v4463 = vunpack.c.l.b16 %v1151
        %v4464 = vunpack.c.h.b16 %v1151
        %v4465 = vunpack.c.l.b16 %v1152
        %v4466 = vunpack.c.h.b16 %v1152
        %v4467 = vunpack.c.l.b16 %v1153
        %v4468 = vunpack.c.h.b16 %v1153
        %v4469 = vunpack.c.l.b16 %v1154
        %v4470 = vunpack.c.h.b16 %v1154
        %v4471 = vunpack.c.l.b16 %v1155
        %v4472 = vunpack.c.h.b16 %v1155
        %v4473 = vunpack.c.l.b16 %v1156
        %v4474 = vunpack.c.h.b16 %v1156
        %v4475 = vunpack.c.l.b16 %v1157
        %v4476 = vunpack.c.h.b16 %v1157
        %v4477 = vunpack.c.l.b16 %v1158
        %v4478 = vunpack.c.h.b16 %v1158
        %v4479 = vunpack.c.l.b16 %v1159
        %v4480 = vunpack.c.h.b16 %v1159
        %v4481 = vunpack.c.l.b16 %v1160
        %v4482 = vunpack.c.h.b16 %v1160
        %v4483 = vunpack.c.l.b16 %v1161
        %v4484 = vunpack.c.h.b16 %v1161
        %v4485 = vunpack.c.l.b16 %v1162
        %v4486 = vunpack.c.h.b16 %v1162
        %v4487 = vunpack.c.l.b16 %v1163
        %v4488 = vunpack.c.h.b16 %v1163
        %v4489 = vunpack.c.l.b16 %v1164
        %v4490 = vunpack.c.h.b16 %v1164
        %v4491 = vunpack.c.l.b16 %v1165
        %v4492 = vunpack.c.h.b16 %v1165
        %v4493 = vunpack.c.l.b16 %v1166
        %v4494 = vunpack.c.h.b16 %v1166
        %v4495 = vunpack.c.l.b16 %v1167
        %v4496 = vunpack.c.h.b16 %v1167
        %v4497 = vunpack.c.l.b16 %v1168
        %v4498 = vunpack.c.h.b16 %v1168
        %v4499 = vunpack.c.l.b16 %v1169
        %v4500 = vunpack.c.h.b16 %v1169
        %v4501 = vunpack.c.l.b16 %v1170
        %v4502 = vunpack.c.h.b16 %v1170
        %v4503 = vunpack.c.l.b16 %v1171
        %v4504 = vunpack.c.h.b16 %v1171
        %v4505 = vunpack.c.l.b16 %v1172
        %v4506 = vunpack.c.h.b16 %v1172
        %v4507 = vunpack.c.l.b16 %v1173
        %v4508 = vunpack.c.h.b16 %v1173
        %v4509 = vunpack.c.l.b16 %v1174
        %v4510 = vunpack.c.h.b16 %v1174
        %v4511 = vunpack.c.l.b16 %v1175
        %v4512 = vunpack.c.h.b16 %v1175
        %v4513 = vunpack.c.l.b16 %v1176
        %v4514 = vunpack.c.h.b16 %v1176
        %v4515 = vunpack.c.l.b16 %v1177
        %v4516 = vunpack.c.h.b16 %v1177
        %v4517 = vunpack.c.l.b16 %v1178
        %v4518 = vunpack.c.h.b16 %v1178
        %v4519 = vunpack.c.l.b16 %v1179
        %v4520 = vunpack.c.h.b16 %v1179
        %v4521 = vunpack.c.l.b16 %v1180
        %v4522 = vunpack.c.h.b16 %v1180
        %v4523 = vunpack.c.l.b16 %v1181
        %v4524 = vunpack.c.h.b16 %v1181
        %v4525 = vunpack.c.l.b16 %v1182
        %v4526 = vunpack.c.h.b16 %v1182
        %v4527 = vunpack.c.l.b16 %v1183
        %v4528 = vunpack.c.h.b16 %v1183
        %v4529 = vunpack.c.l.b16 %v1184
        %v4530 = vunpack.c.h.b16 %v1184
        %v4531 = vunpack.c.l.b16 %v1185
        %v4532 = vunpack.c.h.b16 %v1185
        %v4533 = vunpack.c.l.b16 %v1186
        %v4534 = vunpack.c.h.b16 %v1186
        %v4535 = vunpack.c.l.b16 %v1187
        %v4536 = vunpack.c.h.b16 %v1187
        %v4537 = vunpack.c.l.b16 %v1188
        %v4538 = vunpack.c.h.b16 %v1188
        %v4539 = vunpack.c.l.b16 %v1189
        %v4540 = vunpack.c.h.b16 %v1189
        %v4541 = vunpack.c.l.b16 %v1190
        %v4542 = vunpack.c.h.b16 %v1190
        %v4543 = vunpack.c.l.b16 %v1191
        %v4544 = vunpack.c.h.b16 %v1191
        %v4545 = vunpack.c.l.b16 %v1192
        %v4546 = vunpack.c.h.b16 %v1192
        %v4547 = vunpack.c.l.b16 %v1193
        %v4548 = vunpack.c.h.b16 %v1193
        %v4549 = vunpack.c.l.b16 %v1194
        %v4550 = vunpack.c.h.b16 %v1194
        %v4551 = vunpack.c.l.b16 %v1195
        %v4552 = vunpack.c.h.b16 %v1195
        %v4553 = vunpack.c.l.b16 %v1196
        %v4554 = vunpack.c.h.b16 %v1196
        %v4555 = vunpack.c.l.b16 %v1197
        %v4556 = vunpack.c.h.b16 %v1197
        %v4557 = vunpack.c.l.b16 %v1198
        %v4558 = vunpack.c.h.b16 %v1198
        %v4559 = vunpack.c.l.b16 %v1199
        %v4560 = vunpack.c.h.b16 %v1199
        %v4561 = vunpack.c.l.b16 %v1200
        %v4562 = vunpack.c.h.b16 %v1200
        %v4563 = vunpack.c.l.b16 %v1201
        %v4564 = vunpack.c.h.b16 %v1201
        %v4565 = vunpack.c.l.b16 %v1202
        %v4566 = vunpack.c.h.b16 %v1202
        %v4567 = vunpack.c.l.b16 %v1203
        %v4568 = vunpack.c.h.b16 %v1203
        %v4569 = vunpack.c.l.b16 %v1204
        %v4570 = vunpack.c.h.b16 %v1204
        %v4571 = vunpack.c.l.b16 %v1205
        %v4572 = vunpack.c.h.b16 %v1205
        %v4573 = vunpack.c.l.b16 %v1206
        %v4574 = vunpack.c.h.b16 %v1206
        %v4575 = vunpack.c.l.b16 %v1207
        %v4576 = vunpack.c.h.b16 %v1207
        %v4577 = vunpack.c.l.b16 %v1208
        %v4578 = vunpack.c.h.b16 %v1208
        %v4579 = vunpack.c.l.b16 %v1209
        %v4580 = vunpack.c.h.b16 %v1209
        %v4581 = vunpack.c.l.b16 %v1210
        %v4582 = vunpack.c.h.b16 %v1210
        %v4583 = vunpack.c.l.b16 %v1211
        %v4584 = vunpack.c.h.b16 %v1211
        %v4585 = vunpack.c.l.b16 %v1212
        %v4586 = vunpack.c.h.b16 %v1212
        %v4587 = vunpack.c.l.b16 %v1213
        %v4588 = vunpack.c.h.b16 %v1213
        %v4589 = vunpack.c.l.b16 %v1214
        %v4590 = vunpack.c.h.b16 %v1214
        %v4591 = vunpack.c.l.b16 %v1215
        %v4592 = vunpack.c.h.b16 %v1215
        %v4593 = vunpack.c.l.b16 %v1216
        %v4594 = vunpack.c.h.b16 %v1216
        %v4595 = vunpack.c.l.b16 %v1217
        %v4596 = vunpack.c.h.b16 %v1217
        %v4597 = vunpack.c.l.b16 %v1218
        %v4598 = vunpack.c.h.b16 %v1218
        %v4599 = vunpack.c.l.b16 %v1219
        %v4600 = vunpack.c.h.b16 %v1219
        %v4601 = vunpack.c.l.b16 %v1220
        %v4602 = vunpack.c.h.b16 %v1220
        %v4603 = vunpack.c.l.b16 %v1221
        %v4604 = vunpack.c.h.b16 %v1221
        %v4605 = vunpack.c.l.b16 %v1222
        %v4606 = vunpack.c.h.b16 %v1222
        %v4607 = vunpack.c.l.b16 %v1223
        %v4608 = vunpack.c.h.b16 %v1223
        %v4609 = vunpack.c.l.b16 %v1224
        %v4610 = vunpack.c.h.b16 %v1224
        %v4611 = vunpack.c.l.b16 %v1225
        %v4612 = vunpack.c.h.b16 %v1225
        %v4613 = vunpack.c.l.b16 %v1226
        %v4614 = vunpack.c.h.b16 %v1226
        %v4615 = vunpack.c.l.b16 %v1227
        %v4616 = vunpack.c.h.b16 %v1227
        %v4617 = vunpack.c.l.b16 %v1228
        %v4618 = vunpack.c.h.b16 %v1228
        %v4619 = vunpack.c.l.b16 %v1229
        %v4620 = vunpack.c.h.b16 %v1229
        %v4621 = vunpack.c.l.b16 %v1230
        %v4622 = vunpack.c.h.b16 %v1230
        %v4623 = vunpack.c.l.b16 %v1231
        %v4624 = vunpack.c.h.b16 %v1231
        %v4625 = vunpack.c.l.b16 %v1232
        %v4626 = vunpack.c.h.b16 %v1232
        %v4627 = vunpack.c.l.b16 %v1233
        %v4628 = vunpack.c.h.b16 %v1233
        %v4629 = vunpack.c.l.b16 %v1234
        %v4630 = vunpack.c.h.b16 %v1234
        %v4631 = vunpack.c.l.b16 %v1235
        %v4632 = vunpack.c.h.b16 %v1235
        %v4633 = vunpack.c.l.b16 %v1236
        %v4634 = vunpack.c.h.b16 %v1236
        %v4635 = vunpack.c.l.b16 %v1237
        %v4636 = vunpack.c.h.b16 %v1237
        %v4637 = vunpack.c.l.b16 %v1238
        %v4638 = vunpack.c.h.b16 %v1238
        %v4639 = vunpack.c.l.b16 %v1239
        %v4640 = vunpack.c.h.b16 %v1239
        %v4641 = vunpack.c.l.b16 %v1240
        %v4642 = vunpack.c.h.b16 %v1240
        %v4643 = vunpack.c.l.b16 %v1241
        %v4644 = vunpack.c.h.b16 %v1241
        %v4645 = vunpack.c.l.b16 %v1242
        %v4646 = vunpack.c.h.b16 %v1242
        %v4647 = vunpack.c.l.b16 %v1243
        %v4648 = vunpack.c.h.b16 %v1243
        %v4649 = vunpack.c.l.b16 %v1244
        %v4650 = vunpack.c.h.b16 %v1244
        %v4651 = vunpack.c.l.b16 %v1245
        %v4652 = vunpack.c.h.b16 %v1245
        %v4653 = vunpack.c.l.b16 %v1246
        %v4654 = vunpack.c.h.b16 %v1246
        %v4655 = vunpack.c.l.b16 %v1247
        %v4656 = vunpack.c.h.b16 %v1247
        %v4657 = vunpack.c.l.b16 %v1248
        %v4658 = vunpack.c.h.b16 %v1248
        %v4659 = vunpack.c.l.b16 %v1249
        %v4660 = vunpack.c.h.b16 %v1249
        %v4661 = vunpack.c.l.b16 %v1250
        %v4662 = vunpack.c.h.b16 %v1250
        %v4663 = vunpack.c.l.b16 %v1251
        %v4664 = vunpack.c.h.b16 %v1251
        %v4665 = vunpack.c.l.b16 %v1252
        %v4666 = vunpack.c.h.b16 %v1252
        %v4667 = vunpack.c.l.b16 %v1253
        %v4668 = vunpack.c.h.b16 %v1253
        %v4669 = vunpack.c.l.b16 %v1254
        %v4670 = vunpack.c.h.b16 %v1254
        %v4671 = vunpack.c.l.b16 %v1255
        %v4672 = vunpack.c.h.b16 %v1255
        %v4673 = vunpack.c.l.b16 %v1256
        %v4674 = vunpack.c.h.b16 %v1256
        %v4675 = vunpack.c.l.b16 %v1257
        %v4676 = vunpack.c.h.b16 %v1257
        %v4677 = vunpack.c.l.b16 %v1258
        %v4678 = vunpack.c.h.b16 %v1258
        %v4679 = vunpack.c.l.b16 %v1259
        %v4680 = vunpack.c.h.b16 %v1259
        %v4681 = vunpack.c.l.b16 %v1260
        %v4682 = vunpack.c.h.b16 %v1260
        %v4683 = vunpack.c.l.b16 %v1261
        %v4684 = vunpack.c.h.b16 %v1261
        %v4685 = vunpack.c.l.b16 %v1262
        %v4686 = vunpack.c.h.b16 %v1262
        %v4687 = vunpack.c.l.b16 %v1263
        %v4688 = vunpack.c.h.b16 %v1263
        %v4689 = vunpack.c.l.b16 %v1264
        %v4690 = vunpack.c.h.b16 %v1264
        %v4691 = vunpack.c.l.b16 %v1265
        %v4692 = vunpack.c.h.b16 %v1265
        %v4693 = vunpack.c.l.b16 %v1266
        %v4694 = vunpack.c.h.b16 %v1266
        %v4695 = vunpack.c.l.b16 %v1267
        %v4696 = vunpack.c.h.b16 %v1267
        %v4697 = vunpack.c.l.b16 %v1268
        %v4698 = vunpack.c.h.b16 %v1268
        %v4699 = vunpack.c.l.b16 %v1269
        %v4700 = vunpack.c.h.b16 %v1269
        %v4701 = vunpack.c.l.b16 %v1270
        %v4702 = vunpack.c.h.b16 %v1270
        %v4703 = vunpack.c.l.b16 %v1271
        %v4704 = vunpack.c.h.b16 %v1271
        %v4705 = vunpack.c.l.b16 %v1272
        %v4706 = vunpack.c.h.b16 %v1272
        %v4707 = vunpack.c.l.b16 %v1273
        %v4708 = vunpack.c.h.b16 %v1273
        %v4709 = vunpack.c.l.b16 %v1274
        %v4710 = vunpack.c.h.b16 %v1274
        %v4711 = vunpack.c.l.b16 %v1275
        %v4712 = vunpack.c.h.b16 %v1275
        %v4713 = vunpack.c.l.b16 %v1276
        %v4714 = vunpack.c.h.b16 %v1276
        %v4715 = vunpack.c.l.b16 %v1277
        %v4716 = vunpack.c.h.b16 %v1277
        %v4717 = vunpack.c.l.b16 %v1278
        %v4718 = vunpack.c.h.b16 %v1278
        %v4719 = vunpack.c.l.b16 %v1279
        %v4720 = vunpack.c.h.b16 %v1279
        %v4721 = vunpack.c.l.b16 %v1280
        %v4722 = vunpack.c.h.b16 %v1280
        %v4723 = vunpack.c.l.b16 %v1281
        %v4724 = vunpack.c.h.b16 %v1281
        %v4725 = vunpack.c.l.b16 %v1282
        %v4726 = vunpack.c.h.b16 %v1282
        %v4727 = vunpack.c.l.b16 %v1283
        %v4728 = vunpack.c.h.b16 %v1283
        %v4729 = vunpack.c.l.b16 %v1284
        %v4730 = vunpack.c.h.b16 %v1284
        %v4731 = vunpack.c.l.b16 %v1285
        %v4732 = vunpack.c.h.b16 %v1285
        %v4733 = vunpack.c.l.b16 %v1286
        %v4734 = vunpack.c.h.b16 %v1286
        %v4735 = vunpack.c.l.b16 %v1287
        %v4736 = vunpack.c.h.b16 %v1287
        %v4737 = vunpack.c.l.b16 %v1288
        %v4738 = vunpack.c.h.b16 %v1288
        %v4739 = vunpack.c.l.b16 %v1289
        %v4740 = vunpack.c.h.b16 %v1289
        %v4741 = vunpack.c.l.b16 %v1290
        %v4742 = vunpack.c.h.b16 %v1290
        %v4743 = vunpack.c.l.b16 %v1291
        %v4744 = vunpack.c.h.b16 %v1291
        %v4745 = vunpack.c.l.b16 %v1292
        %v4746 = vunpack.c.h.b16 %v1292
        %v4747 = vunpack.c.l.b16 %v1293
        %v4748 = vunpack.c.h.b16 %v1293
        %v4749 = vunpack.c.l.b16 %v1294
        %v4750 = vunpack.c.h.b16 %v1294
        %v4751 = vunpack.c.l.b16 %v1295
        %v4752 = vunpack.c.h.b16 %v1295
        %v4753 = vunpack.c.l.b16 %v1296
        %v4754 = vunpack.c.h.b16 %v1296
        %v4755 = vunpack.c.l.b16 %v1297
        %v4756 = vunpack.c.h.b16 %v1297
        %v4757 = vunpack.c.l.b16 %v1298
        %v4758 = vunpack.c.h.b16 %v1298
        %v4759 = vunpack.c.l.b16 %v1299
        %v4760 = vunpack.c.h.b16 %v1299
        %v4761 = vunpack.c.l.b16 %v1300
        %v4762 = vunpack.c.h.b16 %v1300
        %v4763 = vunpack.c.l.b16 %v1301
        %v4764 = vunpack.c.h.b16 %v1301
        %v4765 = vunpack.c.l.b16 %v1302
        %v4766 = vunpack.c.h.b16 %v1302
        %v4767 = vunpack.c.l.b16 %v1303
        %v4768 = vunpack.c.h.b16 %v1303
        %v4769 = vunpack.c.l.b16 %v1304
        %v4770 = vunpack.c.h.b16 %v1304
        %v4771 = vunpack.c.l.b16 %v1305
        %v4772 = vunpack.c.h.b16 %v1305
        %v4773 = vunpack.c.l.b16 %v1306
        %v4774 = vunpack.c.h.b16 %v1306
        %v4775 = vunpack.c.l.b16 %v1307
        %v4776 = vunpack.c.h.b16 %v1307
        %v4777 = vunpack.c.l.b16 %v1308
        %v4778 = vunpack.c.h.b16 %v1308
        %v4779 = vunpack.c.l.b16 %v1309
        %v4780 = vunpack.c.h.b16 %v1309
        %v4781 = vunpack.c.l.b16 %v1310
        %v4782 = vunpack.c.h.b16 %v1310
        %v4783 = vunpack.c.l.b16 %v1311
        %v4784 = vunpack.c.h.b16 %v1311
        %v4785 = vunpack.c.l.b16 %v1312
        %v4786 = vunpack.c.h.b16 %v1312
        %v4787 = vunpack.c.l.b16 %v1313
        %v4788 = vunpack.c.h.b16 %v1313
        %v4789 = vunpack.c.l.b16 %v1314
        %v4790 = vunpack.c.h.b16 %v1314
        %v4791 = vunpack.c.l.b16 %v1315
        %v4792 = vunpack.c.h.b16 %v1315
        %v4793 = vunpack.c.l.b16 %v1316
        %v4794 = vunpack.c.h.b16 %v1316
        %v4795 = vunpack.c.l.b16 %v1317
        %v4796 = vunpack.c.h.b16 %v1317
        %v4797 = vunpack.c.l.b16 %v1318
        %v4798 = vunpack.c.h.b16 %v1318
        %v4799 = vunpack.c.l.b16 %v1319
        %v4800 = vunpack.c.h.b16 %v1319
        %v4801 = vunpack.c.l.b16 %v1320
        %v4802 = vunpack.c.h.b16 %v1320
        %v4803 = vunpack.c.l.b16 %v1321
        %v4804 = vunpack.c.h.b16 %v1321
        %v4805 = vunpack.c.l.b16 %v1322
        %v4806 = vunpack.c.h.b16 %v1322
        %v4807 = vunpack.c.l.b16 %v1323
        %v4808 = vunpack.c.h.b16 %v1323
        %v4809 = vunpack.c.l.b16 %v1324
        %v4810 = vunpack.c.h.b16 %v1324
        %v4811 = vunpack.c.l.b16 %v1325
        %v4812 = vunpack.c.h.b16 %v1325
        %v4813 = vunpack.c.l.b16 %v1326
        %v4814 = vunpack.c.h.b16 %v1326
        %v4815 = vunpack.c.l.b16 %v1327
        %v4816 = vunpack.c.h.b16 %v1327
        %v4817 = vunpack.c.l.b16 %v1328
        %v4818 = vunpack.c.h.b16 %v1328
        %v4819 = vunpack.c.l.b16 %v1329
        %v4820 = vunpack.c.h.b16 %v1329
        %v4821 = vunpack.c.l.b16 %v1330
        %v4822 = vunpack.c.h.b16 %v1330
        %v4823 = vunpack.c.l.b16 %v1331
        %v4824 = vunpack.c.h.b16 %v1331
        %v4825 = vunpack.c.l.b16 %v1332
        %v4826 = vunpack.c.h.b16 %v1332
        %v4827 = vunpack.c.l.b16 %v1333
        %v4828 = vunpack.c.h.b16 %v1333
        %v4829 = vunpack.c.l.b16 %v1334
        %v4830 = vunpack.c.h.b16 %v1334
        %v4831 = vunpack.c.l.b16 %v1335
        %v4832 = vunpack.c.h.b16 %v1335
        %v4833 = vunpack.c.l.b16 %v1336
        %v4834 = vunpack.c.h.b16 %v1336
        %v4835 = vunpack.c.l.b16 %v1337
        %v4836 = vunpack.c.h.b16 %v1337
        %v4837 = vunpack.c.l.b16 %v1338
        %v4838 = vunpack.c.h.b16 %v1338
        %v4839 = vunpack.c.l.b16 %v1339
        %v4840 = vunpack.c.h.b16 %v1339
        %v4841 = vunpack.c.l.b16 %v1340
        %v4842 = vunpack.c.h.b16 %v1340
        %v4843 = vunpack.c.l.b16 %v1341
        %v4844 = vunpack.c.h.b16 %v1341
        %v4845 = vunpack.c.l.b16 %v1342
        %v4846 = vunpack.c.h.b16 %v1342
        %v4847 = vunpack.c.l.b16 %v1343
        %v4848 = vunpack.c.h.b16 %v1343
        %v4849 = vunpack.c.l.b16 %v1344
        %v4850 = vunpack.c.h.b16 %v1344
        %v4851 = vunpack.c.l.b16 %v1345
        %v4852 = vunpack.c.h.b16 %v1345
        %v4853 = vunpack.c.l.b16 %v1346
        %v4854 = vunpack.c.h.b16 %v1346
        %v4855 = vunpack.c.l.b16 %v1347
        %v4856 = vunpack.c.h.b16 %v1347
        %v4857 = vunpack.c.l.b16 %v1348
        %v4858 = vunpack.c.h.b16 %v1348
        %v4859 = vunpack.c.l.b16 %v1349
        %v4860 = vunpack.c.h.b16 %v1349
        %v4861 = vunpack.c.l.b16 %v1350
        %v4862 = vunpack.c.h.b16 %v1350
        %v4863 = vunpack.c.l.b16 %v1351
        %v4864 = vunpack.c.h.b16 %v1351
        %v4865 = vunpack.c.l.b16 %v1352
        %v4866 = vunpack.c.h.b16 %v1352
        %v4867 = vunpack.c.l.b16 %v1353
        %v4868 = vunpack.c.h.b16 %v1353
        %v4869 = vunpack.c.l.b16 %v1354
        %v4870 = vunpack.c.h.b16 %v1354
        %v4871 = vunpack.c.l.b16 %v1355
        %v4872 = vunpack.c.h.b16 %v1355
        %v4873 = vunpack.c.l.b16 %v1356
        %v4874 = vunpack.c.h.b16 %v1356
        %v4875 = vunpack.c.l.b16 %v1357
        %v4876 = vunpack.c.h.b16 %v1357
        %v4877 = vunpack.c.l.b16 %v1358
        %v4878 = vunpack.c.h.b16 %v1358
        %v4879 = vunpack.c.l.b16 %v1359
        %v4880 = vunpack.c.h.b16 %v1359
        %v4881 = vunpack.c.l.b16 %v1360
        %v4882 = vunpack.c.h.b16 %v1360
        %v4883 = vunpack.c.l.b16 %v1361
        %v4884 = vunpack.c.h.b16 %v1361
        %v4885 = vunpack.c.l.b16 %v1362
        %v4886 = vunpack.c.h.b16 %v1362
        %v4887 = vunpack.c.l.b16 %v1363
        %v4888 = vunpack.c.h.b16 %v1363
        %v4889 = vunpack.c.l.b16 %v1364
        %v4890 = vunpack.c.h.b16 %v1364
        %v4891 = vunpack.c.l.b16 %v1365
        %v4892 = vunpack.c.h.b16 %v1365
        %v4893 = vunpack.c.l.b16 %v1366
        %v4894 = vunpack.c.h.b16 %v1366
        %v4895 = vunpack.c.l.b16 %v1367
        %v4896 = vunpack.c.h.b16 %v1367
        %v4897 = vunpack.c.l.b16 %v1368
        %v4898 = vunpack.c.h.b16 %v1368
        %v4899 = vunpack.c.l.b16 %v1369
        %v4900 = vunpack.c.h.b16 %v1369
        %v4901 = vunpack.c.l.b16 %v1370
        %v4902 = vunpack.c.h.b16 %v1370
        %v4903 = vunpack.c.l.b16 %v1371
        %v4904 = vunpack.c.h.b16 %v1371
        %v4905 = vunpack.c.l.b16 %v1372
        %v4906 = vunpack.c.h.b16 %v1372
        %v4907 = vunpack.c.l.b16 %v1373
        %v4908 = vunpack.c.h.b16 %v1373
        %v4909 = vunpack.c.l.b16 %v1374
        %v4910 = vunpack.c.h.b16 %v1374
        %v4911 = vunpack.c.l.b16 %v1375
        %v4912 = vunpack.c.h.b16 %v1375
        %v4913 = vunpack.c.l.b16 %v1376
        %v4914 = vunpack.c.h.b16 %v1376
        %v4915 = vunpack.c.l.b16 %v1377
        %v4916 = vunpack.c.h.b16 %v1377
        %v4917 = vunpack.c.l.b16 %v1378
        %v4918 = vunpack.c.h.b16 %v1378
        %v4919 = vunpack.c.l.b16 %v1379
        %v4920 = vunpack.c.h.b16 %v1379
        %v4921 = vunpack.c.l.b16 %v1380
        %v4922 = vunpack.c.h.b16 %v1380
        %v4923 = vunpack.c.l.b16 %v1381
        %v4924 = vunpack.c.h.b16 %v1381
        %v4925 = vunpack.c.l.b16 %v1382
        %v4926 = vunpack.c.h.b16 %v1382
        %v4927 = vunpack.c.l.b16 %v1383
        %v4928 = vunpack.c.h.b16 %v1383
        %v4929 = vunpack.c.l.b16 %v1384
        %v4930 = vunpack.c.h.b16 %v1384
        %v4931 = vunpack.c.l.b16 %v1385
        %v4932 = vunpack.c.h.b16 %v1385
        %v4933 = vunpack.c.l.b16 %v1386
        %v4934 = vunpack.c.h.b16 %v1386
        %v4935 = vunpack.c.l.b16 %v1387
        %v4936 = vunpack.c.h.b16 %v1387
        %v4937 = vunpack.c.l.b16 %v1388
        %v4938 = vunpack.c.h.b16 %v1388
        %v4939 = vunpack.c.l.b16 %v1389
        %v4940 = vunpack.c.h.b16 %v1389
        %v4941 = vunpack.c.l.b16 %v1390
        %v4942 = vunpack.c.h.b16 %v1390
        %v4943 = vunpack.c.l.b16 %v1391
        %v4944 = vunpack.c.h.b16 %v1391
        %v4945 = vunpack.c.l.b16 %v1392
        %v4946 = vunpack.c.h.b16 %v1392
        %v4947 = vunpack.c.l.b16 %v1393
        %v4948 = vunpack.c.h.b16 %v1393
        %v4949 = vunpack.c.l.b16 %v1394
        %v4950 = vunpack.c.h.b16 %v1394
        %v4951 = vunpack.c.l.b16 %v1395
        %v4952 = vunpack.c.h.b16 %v1395
        %v4953 = vunpack.c.l.b16 %v1396
        %v4954 = vunpack.c.h.b16 %v1396
        %v4955 = vunpack.c.l.b16 %v1397
        %v4956 = vunpack.c.h.b16 %v1397
        %v4957 = vunpack.c.l.b16 %v1398
        %v4958 = vunpack.c.h.b16 %v1398
        %v4959 = vunpack.c.l.b16 %v1399
        %v4960 = vunpack.c.h.b16 %v1399
        %v4961 = vunpack.c.l.b16 %v1400
        %v4962 = vunpack.c.h.b16 %v1400
        %v4963 = vunpack.c.l.b16 %v1401
        %v4964 = vunpack.c.h.b16 %v1401
        %v4965 = vunpack.c.l.b16 %v1402
        %v4966 = vunpack.c.h.b16 %v1402
        %v4967 = vunpack.c.l.b16 %v1403
        %v4968 = vunpack.c.h.b16 %v1403
        %v4969 = vunpack.c.l.b16 %v1404
        %v4970 = vunpack.c.h.b16 %v1404
        %v4971 = vunpack.c.l.b16 %v1405
        %v4972 = vunpack.c.h.b16 %v1405
        %v4973 = vunpack.c.l.b16 %v1406
        %v4974 = vunpack.c.h.b16 %v1406
        %v4975 = vunpack.c.l.b16 %v1407
        %v4976 = vunpack.c.h.b16 %v1407
        %v4977 = vunpack.c.l.b16 %v1408
        %v4978 = vunpack.c.h.b16 %v1408
        %v4979 = vunpack.c.l.b16 %v1409
        %v4980 = vunpack.c.h.b16 %v1409
        %v4981 = vunpack.c.l.b16 %v1410
        %v4982 = vunpack.c.h.b16 %v1410
        %v4983 = vunpack.c.l.b16 %v1411
        %v4984 = vunpack.c.h.b16 %v1411
        %v4985 = vunpack.c.l.b16 %v1412
        %v4986 = vunpack.c.h.b16 %v1412
        %v4987 = vunpack.c.l.b16 %v1413
        %v4988 = vunpack.c.h.b16 %v1413
        %v4989 = vunpack.c.l.b16 %v1414
        %v4990 = vunpack.c.h.b16 %v1414
        %v4991 = vunpack.c.l.b16 %v1415
        %v4992 = vunpack.c.h.b16 %v1415
        %v4993 = vunpack.c.l.b16 %v1416
        %v4994 = vunpack.c.h.b16 %v1416
        %v4995 = vunpack.c.l.b16 %v1417
        %v4996 = vunpack.c.h.b16 %v1417
        %v4997 = vunpack.c.l.b16 %v1418
        %v4998 = vunpack.c.h.b16 %v1418
        %v4999 = vunpack.c.l.b16 %v1419
        %v5000 = vunpack.c.h.b16 %v1419
        %v5001 = vunpack.c.l.b16 %v1420
        %v5002 = vunpack.c.h.b16 %v1420
        %v5003 = vunpack.c.l.b16 %v1421
        %v5004 = vunpack.c.h.b16 %v1421
        %v5005 = vunpack.c.l.b16 %v1422
        %v5006 = vunpack.c.h.b16 %v1422
        %v5007 = vpack.c.b16 %v4113, %v4111
        %v5008 = vpack.c.b16 %v4114, %v4112
        %v5009 = vpack.c.b16 %v4117, %v4115
        %v5010 = vpack.c.b16 %v4118, %v4116
        %v5011 = vpack.c.b16 %v4121, %v4119
        %v5012 = vpack.c.b16 %v4122, %v4120
        %v5013 = vpack.c.b16 %v4125, %v4123
        %v5014 = vpack.c.b16 %v4126, %v4124
        %v5015 = vpack.c.b16 %v4129, %v4127
        %v5016 = vpack.c.b16 %v4130, %v4128
        %v5017 = vpack.c.b16 %v4133, %v4131
        %v5018 = vpack.c.b16 %v4134, %v4132
        %v5019 = vpack.c.b16 %v4137, %v4135
        %v5020 = vpack.c.b16 %v4138, %v4136
        %v5021 = vpack.c.b16 %v4141, %v4139
        %v5022 = vpack.c.b16 %v4142, %v4140
        %v5023 = vpack.c.b16 %v4145, %v4143
        %v5024 = vpack.c.b16 %v4146, %v4144
        %v5025 = vpack.c.b16 %v4149, %v4147
        %v5026 = vpack.c.b16 %v4150, %v4148
        %v5027 = vpack.c.b16 %v4153, %v4151
        %v5028 = vpack.c.b16 %v4154, %v4152
        %v5029 = vpack.c.b16 %v4157, %v4155
        %v5030 = vpack.c.b16 %v4158, %v4156
        %v5031 = vpack.c.b16 %v4161, %v4159
        %v5032 = vpack.c.b16 %v4162, %v4160
        %v5033 = vpack.c.b16 %v4165, %v4163
        %v5034 = vpack.c.b16 %v4166, %v4164
        %v5035 = vpack.c.b16 %v4169, %v4167
        %v5036 = vpack.c.b16 %v4170, %v4168
        %v5037 = vpack.c.b16 %v4173, %v4171
        %v5038 = vpack.c.b16 %v4174, %v4172
        %v5039 = vpack.c.b16 %v4177, %v4175
        %v5040 = vpack.c.b16 %v4178, %v4176
        %v5041 = vpack.c.b16 %v4181, %v4179
        %v5042 = vpack.c.b16 %v4182, %v4180
        %v5043 = vpack.c.b16 %v4185, %v4183
        %v5044 = vpack.c.b16 %v4186, %v4184
        %v5045 = vpack.c.b16 %v4189, %v4187
        %v5046 = vpack.c.b16 %v4190, %v4188
        %v5047 = vpack.c.b16 %v4193, %v4191
        %v5048 = vpack.c.b16 %v4194, %v4192
        %v5049 = vpack.c.b16 %v4197, %v4195
        %v5050 = vpack.c.b16 %v4198, %v4196
        %v5051 = vpack.c.b16 %v4201, %v4199
        %v5052 = vpack.c.b16 %v4202, %v4200
        %v5053 = vpack.c.b16 %v4205, %v4203
        %v5054 = vpack.c.b16 %v4206, %v4204
        %v5055 = vpack.c.b16 %v4209, %v4207
        %v5056 = vpack.c.b16 %v4210, %v4208
        %v5057 = vpack.c.b16 %v4213, %v4211
        %v5058 = vpack.c.b16 %v4214, %v4212
        %v5059 = vpack.c.b16 %v4217, %v4215
        %v5060 = vpack.c.b16 %v4218, %v4216
        %v5061 = vpack.c.b16 %v4221, %v4219
        %v5062 = vpack.c.b16 %v4222, %v4220
        %v5063 = vpack.c.b16 %v4225, %v4223
        %v5064 = vpack.c.b16 %v4226, %v4224
        %v5065 = vpack.c.b16 %v4229, %v4227
        %v5066 = vpack.c.b16 %v4230, %v4228
        %v5067 = vpack.c.b16 %v4233, %v4231
        %v5068 = vpack.c.b16 %v4234, %v4232
        %v5069 = vpack.c.b16 %v4237, %v4235
        %v5070 = vpack.c.b16 %v4238, %v4236
        %v5071 = vpack.c.b16 %v4241, %v4239
        %v5072 = vpack.c.b16 %v4242, %v4240
        %v5073 = vpack.c.b16 %v4245, %v4243
        %v5074 = vpack.c.b16 %v4246, %v4244
        %v5075 = vpack.c.b16 %v4249, %v4247
        %v5076 = vpack.c.b16 %v4250, %v4248
        %v5077 = vpack.c.b16 %v4253, %v4251
        %v5078 = vpack.c.b16 %v4254, %v4252
        %v5079 = vpack.c.b16 %v4257, %v4255
        %v5080 = vpack.c.b16 %v4258, %v4256
        %v5081 = vpack.c.b16 %v4261, %v4259
        %v5082 = vpack.c.b16 %v4262, %v4260
        %v5083 = vpack.c.b16 %v4265, %v4263
        %v5084 = vpack.c.b16 %v4266, %v4264
        %v5085 = vpack.c.b16 %v4269, %v4267
        %v5086 = vpack.c.b16 %v4270, %v4268
        %v5087 = vpack.c.b16 %v4273, %v4271
        %v5088 = vpack.c.b16 %v4274, %v4272
        %v5089 = vpack.c.b16 %v4277, %v4275
        %v5090 = vpack.c.b16 %v4278, %v4276
        %v5091 = vpack.c.b16 %v4281, %v4279
        %v5092 = vpack.c.b16 %v4282, %v4280
        %v5093 = vpack.c.b16 %v4285, %v4283
        %v5094 = vpack.c.b16 %v4286, %v4284
        %v5095 = vpack.c.b16 %v4289, %v4287
        %v5096 = vpack.c.b16 %v4290, %v4288
        %v5097 = vpack.c.b16 %v4293, %v4291
        %v5098 = vpack.c.b16 %v4294, %v4292
        %v5099 = vpack.c.b16 %v4297, %v4295
        %v5100 = vpack.c.b16 %v4298, %v4296
        %v5101 = vpack.c.b16 %v4301, %v4299
        %v5102 = vpack.c.b16 %v4302, %v4300
        %v5103 = vpack.c.b16 %v4305, %v4303
        %v5104 = vpack.c.b16 %v4306, %v4304
        %v5105 = vpack.c.b16 %v4309, %v4307
        %v5106 = vpack.c.b16 %v4310, %v4308
        %v5107 = vpack.c.b16 %v4313, %v4311
        %v5108 = vpack.c.b16 %v4314, %v4312
        %v5109 = vpack.c.b16 %v4317, %v4315
        %v5110 = vpack.c.b16 %v4318, %v4316
        %v5111 = vpack.c.b16 %v4321, %v4319
        %v5112 = vpack.c.b16 %v4322, %v4320
        %v5113 = vpack.c.b16 %v4325, %v4323
        %v5114 = vpack.c.b16 %v4326, %v4324
        %v5115 = vpack.c.b16 %v4329, %v4327
        %v5116 = vpack.c.b16 %v4330, %v4328
        %v5117 = vpack.c.b16 %v4333, %v4331
        %v5118 = vpack.c.b16 %v4334, %v4332
        %v5119 = vpack.c.b16 %v4337, %v4335
        %v5120 = vpack.c.b16 %v4338, %v4336
        %v5121 = vpack.c.b16 %v4341, %v4339
        %v5122 = vpack.c.b16 %v4342, %v4340
        %v5123 = vpack.c.b16 %v4345, %v4343
        %v5124 = vpack.c.b16 %v4346, %v4344
        %v5125 = vpack.c.b16 %v4349, %v4347
        %v5126 = vpack.c.b16 %v4350, %v4348
        %v5127 = vpack.c.b16 %v4353, %v4351
        %v5128 = vpack.c.b16 %v4354, %v4352
        %v5129 = vpack.c.b16 %v4357, %v4355
        %v5130 = vpack.c.b16 %v4358, %v4356
        %v5131 = vpack.c.b16 %v4361, %v4359
        %v5132 = vpack.c.b16 %v4362, %v4360
        %v5133 = vpack.c.b16 %v4365, %v4363
        %v5134 = vpack.c.b16 %v4366, %v4364
        %v5135 = vpack.c.b16 %v4369, %v4367
        %v5136 = vpack.c.b16 %v4370, %v4368
        %v5137 = vpack.c.b16 %v4373, %v4371
        %v5138 = vpack.c.b16 %v4374, %v4372
        %v5139 = vpack.c.b16 %v4377, %v4375
        %v5140 = vpack.c.b16 %v4378, %v4376
        %v5141 = vpack.c.b16 %v4381, %v4379
        %v5142 = vpack.c.b16 %v4382, %v4380
        %v5143 = vpack.c.b16 %v4385, %v4383
        %v5144 = vpack.c.b16 %v4386, %v4384
        %v5145 = vpack.c.b16 %v4389, %v4387
        %v5146 = vpack.c.b16 %v4390, %v4388
        %v5147 = vpack.c.b16 %v4393, %v4391
        %v5148 = vpack.c.b16 %v4394, %v4392
        %v5149 = vpack.c.b16 %v4397, %v4395
        %v5150 = vpack.c.b16 %v4398, %v4396
        %v5151 = vpack.c.b16 %v4401, %v4399
        %v5152 = vpack.c.b16 %v4402, %v4400
        %v5153 = vpack.c.b16 %v4405, %v4403
        %v5154 = vpack.c.b16 %v4406, %v4404
        %v5155 = vpack.c.b16 %v4409, %v4407
        %v5156 = vpack.c.b16 %v4410, %v4408
        %v5157 = vpack.c.b16 %v4413, %v4411
        %v5158 = vpack.c.b16 %v4414, %v4412
        %v5159 = vpack.c.b16 %v4417, %v4415
        %v5160 = vpack.c.b16 %v4418, %v4416
        %v5161 = vpack.c.b16 %v4421, %v4419
        %v5162 = vpack.c.b16 %v4422, %v4420
        %v5163 = vpack.c.b16 %v4425, %v4423
        %v5164 = vpack.c.b16 %v4426, %v4424
        %v5165 = vpack.c.b16 %v4429, %v4427
        %v5166 = vpack.c.b16 %v4430, %v4428
        %v5167 = vpack.c.b16 %v4433, %v4431
        %v5168 = vpack.c.b16 %v4434, %v4432
        %v5169 = vpack.c.b16 %v4437, %v4435
        %v5170 = vpack.c.b16 %v4438, %v4436
        %v5171 = vpack.c.b16 %v4441, %v4439
        %v5172 = vpack.c.b16 %v4442, %v4440
        %v5173 = vpack.c.b16 %v4445, %v4443
        %v5174 = vpack.c.b16 %v4446, %v4444
        %v5175 = vpack.c.b16 %v4449, %v4447
        %v5176 = vpack.c.b16 %v4450, %v4448
        %v5177 = vpack.c.b16 %v4453, %v4451
        %v5178 = vpack.c.b16 %v4454, %v4452
        %v5179 = vpack.c.b16 %v4457, %v4455
        %v5180 = vpack.c.b16 %v4458, %v4456
        %v5181 = vpack.c.b16 %v4461, %v4459
        %v5182 = vpack.c.b16 %v4462, %v4460
        %v5183 = vpack.c.b16 %v4465, %v4463
        %v5184 = vpack.c.b16 %v4466, %v4464
        %v5185 = vpack.c.b16 %v4469, %v4467
        %v5186 = vpack.c.b16 %v4470, %v4468
        %v5187 = vpack.c.b16 %v4473, %v4471
        %v5188 = vpack.c.b16 %v4474, %v4472
        %v5189 = vpack.c.b16 %v4477, %v4475
        %v5190 = vpack.c.b16 %v4478, %v4476
        %v5191 = vpack.c.b16 %v4481, %v4479
        %v5192 = vpack.c.b16 %v4482, %v4480
        %v5193 = vpack.c.b16 %v4485, %v4483
        %v5194 = vpack.c.b16 %v4486, %v4484
        %v5195 = vpack.c.b16 %v4489, %v4487
        %v5196 = vpack.c.b16 %v4490, %v4488
        %v5197 = vpack.c.b16 %v4493, %v4491
        %v5198 = vpack.c.b16 %v4494, %v4492
        %v5199 = vpack.c.b16 %v4497, %v4495
        %v5200 = vpack.c.b16 %v4498, %v4496
        %v5201 = vpack.c.b16 %v4501, %v4499
        %v5202 = vpack.c.b16 %v4502, %v4500
        %v5203 = vpack.c.b16 %v4505, %v4503
        %v5204 = vpack.c.b16 %v4506, %v4504
        %v5205 = vpack.c.b16 %v4509, %v4507
        %v5206 = vpack.c.b16 %v4510, %v4508
        %v5207 = vpack.c.b16 %v4513, %v4511
        %v5208 = vpack.c.b16 %v4514, %v4512
        %v5209 = vpack.c.b16 %v4517, %v4515
        %v5210 = vpack.c.b16 %v4518, %v4516
        %v5211 = vpack.c.b16 %v4521, %v4519
        %v5212 = vpack.c.b16 %v4522, %v4520
        %v5213 = vpack.c.b16 %v4525, %v4523
        %v5214 = vpack.c.b16 %v4526, %v4524
        %v5215 = vpack.c.b16 %v4529, %v4527
        %v5216 = vpack.c.b16 %v4530, %v4528
        %v5217 = vpack.c.b16 %v4533, %v4531
        %v5218 = vpack.c.b16 %v4534, %v4532
        %v5219 = vpack.c.b16 %v4537, %v4535
        %v5220 = vpack.c.b16 %v4538, %v4536
        %v5221 = vpack.c.b16 %v4541, %v4539
        %v5222 = vpack.c.b16 %v4542, %v4540
        %v5223 = vpack.c.b16 %v4545, %v4543
        %v5224 = vpack.c.b16 %v4546, %v4544
        %v5225 = vpack.c.b16 %v4549, %v4547
        %v5226 = vpack.c.b16 %v4550, %v4548
        %v5227 = vpack.c.b16 %v4553, %v4551
        %v5228 = vpack.c.b16 %v4554, %v4552
        %v5229 = vpack.c.b16 %v4557, %v4555
        %v5230 = vpack.c.b16 %v4558, %v4556
        %v5231 = vpack.c.b16 %v4561, %v4559
        %v5232 = vpack.c.b16 %v4562, %v4560
        %v5233 = vpack.c.b16 %v4565, %v4563
        %v5234 = vpack.c.b16 %v4566, %v4564
        %v5235 = vpack.c.b16 %v4569, %v4567
        %v5236 = vpack.c.b16 %v4570, %v4568
        %v5237 = vpack.c.b16 %v4573, %v4571
        %v5238 = vpack.c.b16 %v4574, %v4572
        %v5239 = vpack.c.b16 %v4577, %v4575
        %v5240 = vpack.c.b16 %v4578, %v4576
        %v5241 = vpack.c.b16 %v4581, %v4579
        %v5242 = vpack.c.b16 %v4582, %v4580
        %v5243 = vpack.c.b16 %v4585, %v4583
        %v5244 = vpack.c.b16 %v4586, %v4584
        %v5245 = vpack.c.b16 %v4589, %v4587
        %v5246 = vpack.c.b16 %v4590, %v4588
        %v5247 = vpack.c.b16 %v4593, %v4591
        %v5248 = vpack.c.b16 %v4594, %v4592
        %v5249 = vpack.c.b16 %v4597, %v4595
        %v5250 = vpack.c.b16 %v4598, %v4596
        %v5251 = vpack.c.b16 %v4601, %v4599
        %v5252 = vpack.c.b16 %v4602, %v4600
        %v5253 = vpack.c.b16 %v4605, %v4603
        %v5254 = vpack.c.b16 %v4606, %v4604
        %v5255 = vpack.c.b16 %v4609, %v4607
        %v5256 = vpack.c.b16 %v4610, %v4608
        %v5257 = vpack.c.b16 %v4613, %v4611
        %v5258 = vpack.c.b16 %v4614, %v4612
        %v5259 = vpack.c.b16 %v4617, %v4615
        %v5260 = vpack.c.b16 %v4618, %v4616
        %v5261 = vpack.c.b16 %v4621, %v4619
        %v5262 = vpack.c.b16 %v4622, %v4620
        %v5263 = vpack.c.b16 %v4625, %v4623
        %v5264 = vpack.c.b16 %v4626, %v4624
        %v5265 = vpack.c.b16 %v4629, %v4627
        %v5266 = vpack.c.b16 %v4630, %v4628
        %v5267 = vpack.c.b16 %v4633, %v4631
        %v5268 = vpack.c.b16 %v4634, %v4632
        %v5269 = vpack.c.b16 %v4637, %v4635
        %v5270 = vpack.c.b16 %v4638, %v4636
        %v5271 = vpack.c.b16 %v4641, %v4639
        %v5272 = vpack.c.b16 %v4642, %v4640
        %v5273 = vpack.c.b16 %v4645, %v4643
        %v5274 = vpack.c.b16 %v4646, %v4644
        %v5275 = vpack.c.b16 %v4649, %v4647
        %v5276 = vpack.c.b16 %v4650, %v4648
        %v5277 = vpack.c.b16 %v4653, %v4651
        %v5278 = vpack.c.b16 %v4654, %v4652
        %v5279 = vpack.c.b16 %v4657, %v4655
        %v5280 = vpack.c.b16 %v4658, %v4656
        %v5281 = vpack.c.b16 %v4661, %v4659
        %v5282 = vpack.c.b16 %v4662, %v4660
        %v5283 = vpack.c.b16 %v4665, %v4663
        %v5284 = vpack.c.b16 %v4666, %v4664
        %v5285 = vpack.c.b16 %v4669, %v4667
        %v5286 = vpack.c.b16 %v4670, %v4668
        %v5287 = vpack.c.b16 %v4673, %v4671
        %v5288 = vpack.c.b16 %v4674, %v4672
        %v5289 = vpack.c.b16 %v4677, %v4675
        %v5290 = vpack.c.b16 %v4678, %v4676
        %v5291 = vpack.c.b16 %v4681, %v4679
        %v5292 = vpack.c.b16 %v4682, %v4680
        %v5293 = vpack.c.b16 %v4685, %v4683
        %v5294 = vpack.c.b16 %v4686, %v4684
        %v5295 = vpack.c.b16 %v4689, %v4687
        %v5296 = vpack.c.b16 %v4690, %v4688
        %v5297 = vpack.c.b16 %v4693, %v4691
        %v5298 = vpack.c.b16 %v4694, %v4692
        %v5299 = vpack.c.b16 %v4697, %v4695
        %v5300 = vpack.c.b16 %v4698, %v4696
        %v5301 = vpack.c.b16 %v4701, %v4699
        %v5302 = vpack.c.b16 %v4702, %v4700
        %v5303 = vpack.c.b16 %v4705, %v4703
        %v5304 = vpack.c.b16 %v4706, %v4704
        %v5305 = vpack.c.b16 %v4709, %v4707
        %v5306 = vpack.c.b16 %v4710, %v4708
        %v5307 = vpack.c.b16 %v4713, %v4711
        %v5308 = vpack.c.b16 %v4714, %v4712
        %v5309 = vpack.c.b16 %v4717, %v4715
        %v5310 = vpack.c.b16 %v4718, %v4716
        %v5311 = vpack.c.b16 %v4721, %v4719
        %v5312 = vpack.c.b16 %v4722, %v4720
        %v5313 = vpack.c.b16 %v4725, %v4723
        %v5314 = vpack.c.b16 %v4726, %v4724
        %v5315 = vpack.c.b16 %v4729, %v4727
        %v5316 = vpack.c.b16 %v4730, %v4728
        %v5317 = vpack.c.b16 %v4733, %v4731
        %v5318 = vpack.c.b16 %v4734, %v4732
        %v5319 = vpack.c.b16 %v4737, %v4735
        %v5320 = vpack.c.b16 %v4738, %v4736
        %v5321 = vpack.c.b16 %v4741, %v4739
        %v5322 = vpack.c.b16 %v4742, %v4740
        %v5323 = vpack.c.b16 %v4745, %v4743
        %v5324 = vpack.c.b16 %v4746, %v4744
        %v5325 = vpack.c.b16 %v4749, %v4747
        %v5326 = vpack.c.b16 %v4750, %v4748
        %v5327 = vpack.c.b16 %v4753, %v4751
        %v5328 = vpack.c.b16 %v4754, %v4752
        %v5329 = vpack.c.b16 %v4757, %v4755
        %v5330 = vpack.c.b16 %v4758, %v4756
        %v5331 = vpack.c.b16 %v4761, %v4759
        %v5332 = vpack.c.b16 %v4762, %v4760
        %v5333 = vpack.c.b16 %v4765, %v4763
        %v5334 = vpack.c.b16 %v4766, %v4764
        %v5335 = vpack.c.b16 %v4769, %v4767
        %v5336 = vpack.c.b16 %v4770, %v4768
        %v5337 = vpack.c.b16 %v4773, %v4771
        %v5338 = vpack.c.b16 %v4774, %v4772
        %v5339 = vpack.c.b16 %v4777, %v4775
        %v5340 = vpack.c.b16 %v4778, %v4776
        %v5341 = vpack.c.b16 %v4781, %v4779
        %v5342 = vpack.c.b16 %v4782, %v4780
        %v5343 = vpack.c.b16 %v4785, %v4783
        %v5344 = vpack.c.b16 %v4786, %v4784
        %v5345 = vpack.c.b16 %v4789, %v4787
        %v5346 = vpack.c.b16 %v4790, %v4788
        %v5347 = vpack.c.b16 %v4793, %v4791
        %v5348 = vpack.c.b16 %v4794, %v4792
        %v5349 = vpack.c.b16 %v4797, %v4795
        %v5350 = vpack.c.b16 %v4798, %v4796
        %v5351 = vpack.c.b16 %v4801, %v4799
        %v5352 = vpack.c.b16 %v4802, %v4800
        %v5353 = vpack.c.b16 %v4805, %v4803
        %v5354 = vpack.c.b16 %v4806, %v4804
        %v5355 = vpack.c.b16 %v4809, %v4807
        %v5356 = vpack.c.b16 %v4810, %v4808
        %v5357 = vpack.c.b16 %v4813, %v4811
        %v5358 = vpack.c.b16 %v4814, %v4812
        %v5359 = vpack.c.b16 %v4817, %v4815
        %v5360 = vpack.c.b16 %v4818, %v4816
        %v5361 = vpack.c.b16 %v4821, %v4819
        %v5362 = vpack.c.b16 %v4822, %v4820
        %v5363 = vpack.c.b16 %v4825, %v4823
        %v5364 = vpack.c.b16 %v4826, %v4824
        %v5365 = vpack.c.b16 %v4829, %v4827
        %v5366 = vpack.c.b16 %v4830, %v4828
        %v5367 = vpack.c.b16 %v4833, %v4831
        %v5368 = vpack.c.b16 %v4834, %v4832
        %v5369 = vpack.c.b16 %v4837, %v4835
        %v5370 = vpack.c.b16 %v4838, %v4836
        %v5371 = vpack.c.b16 %v4841, %v4839
        %v5372 = vpack.c.b16 %v4842, %v4840
        %v5373 = vpack.c.b16 %v4845, %v4843
        %v5374 = vpack.c.b16 %v4846, %v4844
        %v5375 = vpack.c.b16 %v4849, %v4847
        %v5376 = vpack.c.b16 %v4850, %v4848
        %v5377 = vpack.c.b16 %v4853, %v4851
        %v5378 = vpack.c.b16 %v4854, %v4852
        %v5379 = vpack.c.b16 %v4857, %v4855
        %v5380 = vpack.c.b16 %v4858, %v4856
        %v5381 = vpack.c.b16 %v4861, %v4859
        %v5382 = vpack.c.b16 %v4862, %v4860
        %v5383 = vpack.c.b16 %v4865, %v4863
        %v5384 = vpack.c.b16 %v4866, %v4864
        %v5385 = vpack.c.b16 %v4869, %v4867
        %v5386 = vpack.c.b16 %v4870, %v4868
        %v5387 = vpack.c.b16 %v4873, %v4871
        %v5388 = vpack.c.b16 %v4874, %v4872
        %v5389 = vpack.c.b16 %v4877, %v4875
        %v5390 = vpack.c.b16 %v4878, %v4876
        %v5391 = vpack.c.b16 %v4881, %v4879
        %v5392 = vpack.c.b16 %v4882, %v4880
        %v5393 = vpack.c.b16 %v4885, %v4883
        %v5394 = vpack.c.b16 %v4886, %v4884
        %v5395 = vpack.c.b16 %v4889, %v4887
        %v5396 = vpack.c.b16 %v4890, %v4888
        %v5397 = vpack.c.b16 %v4893, %v4891
        %v5398 = vpack.c.b16 %v4894, %v4892
        %v5399 = vpack.c.b16 %v4897, %v4895
        %v5400 = vpack.c.b16 %v4898, %v4896
        %v5401 = vpack.c.b16 %v4901, %v4899
        %v5402 = vpack.c.b16 %v4902, %v4900
        %v5403 = vpack.c.b16 %v4905, %v4903
        %v5404 = vpack.c.b16 %v4906, %v4904
        %v5405 = vpack.c.b16 %v4909, %v4907
        %v5406 = vpack.c.b16 %v4910, %v4908
        %v5407 = vpack.c.b16 %v4913, %v4911
        %v5408 = vpack.c.b16 %v4914, %v4912
        %v5409 = vpack.c.b16 %v4917, %v4915
        %v5410 = vpack.c.b16 %v4918, %v4916
        %v5411 = vpack.c.b16 %v4921, %v4919
        %v5412 = vpack.c.b16 %v4922, %v4920
        %v5413 = vpack.c.b16 %v4925, %v4923
        %v5414 = vpack.c.b16 %v4926, %v4924
        %v5415 = vpack.c.b16 %v4929, %v4927
        %v5416 = vpack.c.b16 %v4930, %v4928
        %v5417 = vpack.c.b16 %v4933, %v4931
        %v5418 = vpack.c.b16 %v4934, %v4932
        %v5419 = vpack.c.b16 %v4937, %v4935
        %v5420 = vpack.c.b16 %v4938, %v4936
        %v5421 = vpack.c.b16 %v4941, %v4939
        %v5422 = vpack.c.b16 %v4942, %v4940
        %v5423 = vpack.c.b16 %v4945, %v4943
        %v5424 = vpack.c.b16 %v4946, %v4944
        %v5425 = vpack.c.b16 %v4949, %v4947
        %v5426 = vpack.c.b16 %v4950, %v4948
        %v5427 = vpack.c.b16 %v4953, %v4951
        %v5428 = vpack.c.b16 %v4954, %v4952
        %v5429 = vpack.c.b16 %v4957, %v4955
        %v5430 = vpack.c.b16 %v4958, %v4956
        %v5431 = vpack.c.b16 %v4961, %v4959
        %v5432 = vpack.c.b16 %v4962, %v4960
        %v5433 = vpack.c.b16 %v4965, %v4963
        %v5434 = vpack.c.b16 %v4966, %v4964
        %v5435 = vpack.c.b16 %v4969, %v4967
        %v5436 = vpack.c.b16 %v4970, %v4968
        %v5437 = vpack.c.b16 %v4973, %v4971
        %v5438 = vpack.c.b16 %v4974, %v4972
        %v5439 = vpack.c.b16 %v4977, %v4975
        %v5440 = vpack.c.b16 %v4978, %v4976
        %v5441 = vpack.c.b16 %v4981, %v4979
        %v5442 = vpack.c.b16 %v4982, %v4980
        %v5443 = vpack.c.b16 %v4985, %v4983
        %v5444 = vpack.c.b16 %v4986, %v4984
        %v5445 = vpack.c.b16 %v4989, %v4987
        %v5446 = vpack.c.b16 %v4990, %v4988
        %v5447 = vpack.c.b16 %v4993, %v4991
        %v5448 = vpack.c.b16 %v4994, %v4992
        %v5449 = vpack.c.b16 %v4997, %v4995
        %v5450 = vpack.c.b16 %v4998, %v4996
        %v5451 = vpack.c.b16 %v5001, %v4999
        %v5452 = vpack.c.b16 %v5002, %v5000
        %v5453 = vpack.c.b16 %v5005, %v5003
        %v5454 = vpack.c.b16 %v5006, %v5004
        %5903 = vmatprep.subr.bf16.mxu0 %v5008
        %5904 = vmatpush1.bf16.msra.mxu0 %v5007
        %5905 = vmatprep.subr.bf16.mxu0 %v5010
        %5906 = vmatpush1.bf16.msra.mxu0 %v5009
        %5907 = vmatprep.subr.bf16.mxu0 %v5012
        %5908 = vmatpush1.bf16.msra.mxu0 %v5011
        %5909 = vmatprep.subr.bf16.mxu0 %v5014
        %5910 = vmatpush1.bf16.msra.mxu0 %v5013
        %5911 = vmatprep.subr.bf16.mxu0 %v5016
        %5912 = vmatpush1.bf16.msra.mxu0 %v5015
        %5913 = vmatprep.subr.bf16.mxu0 %v5018
        %5914 = vmatpush1.bf16.msra.mxu0 %v5017
        %5915 = vmatprep.subr.bf16.mxu0 %v5020
        %5916 = vmatpush1.bf16.msra.mxu0 %v5019
        %5917 = vmatprep.subr.bf16.mxu0 %v5022
        %5918 = vmatpush1.bf16.msra.mxu0 %v5021
        %5919 = vmatprep.subr.bf16.mxu0 %v5024
        %5920 = vmatpush1.bf16.msra.mxu0 %v5023
        %5921 = vmatprep.subr.bf16.mxu0 %v5026
        %5922 = vmatpush1.bf16.msra.mxu0 %v5025
        %5923 = vmatprep.subr.bf16.mxu0 %v5028
        %5924 = vmatpush1.bf16.msra.mxu0 %v5027
        %5925 = vmatprep.subr.bf16.mxu0 %v5030
        %5926 = vmatpush1.bf16.msra.mxu0 %v5029
        %5927 = vmatprep.subr.bf16.mxu0 %v5032
        %5928 = vmatpush1.bf16.msra.mxu0 %v5031
        %5929 = vmatprep.subr.bf16.mxu0 %v5034
        %5930 = vmatpush1.bf16.msra.mxu0 %v5033
        %5931 = vmatprep.subr.bf16.mxu0 %v5036
        %5932 = vmatpush1.bf16.msra.mxu0 %v5035
        %5933 = vmatprep.subr.bf16.mxu0 %v5038
        %5934 = vmatpush1.bf16.msra.mxu0 %v5037
        %5935 = vmatprep.mubr.bf16.mxu0 %v2768
        %5936 = vmatmul.mubr.bf16.gmra.mrb[0].mxu0 %v2767
        %v5937 = vpop.f32.mrb[0].mxu0
        %v5938 = vadd.f32 0.0, %v5937
        %v5939 = vpop.f32.mrb[0].mxu0
        %v5940 = vadd.f32 0.0, %v5939
        %v5941 = vpop.f32.mrb[0].mxu0
        %v5942 = vadd.f32 0.0, %v5941
        %v5943 = vpop.f32.mrb[0].mxu0
        %v5944 = vadd.f32 0.0, %v5943
        %5945 = vmatprep.mubr.bf16.mxu0 %v2796
        %5946 = vmatmul.mubr.bf16.gmra.mrb[0].mxu0 %v2795
        %v5947 = vpop.f32.mrb[0].mxu0
        %v5948 = vadd.f32 0.0, %v5947
        %v5949 = vpop.f32.mrb[0].mxu0
        %v5950 = vadd.f32 0.0, %v5949
        %v5951 = vpop.f32.mrb[0].mxu0
        %v5952 = vadd.f32 0.0, %v5951
        %v5953 = vpop.f32.mrb[0].mxu0
        %v5954 = vadd.f32 0.0, %v5953
        %5955 = vmatprep.mubr.bf16.mxu0 %v2824
        %5956 = vmatmul.mubr.bf16.gmra.mrb[0].mxu0 %v2823
        %v5957 = vpop.f32.mrb[0].mxu0
        %v5958 = vadd.f32 0.0, %v5957
        %v5959 = vpop.f32.mrb[0].mxu0
        %v5960 = vadd.f32 0.0, %v5959
        %v5961 = vpop.f32.mrb[0].mxu0
        %v5962 = vadd.f32 0.0, %v5961
        %v5963 = vpop.f32.mrb[0].mxu0
        %v5964 = vadd.f32 0.0, %v5963
        %5965 = vmatprep.mubr.bf16.mxu0 %v2852
        %5966 = vmatmul.mubr.bf16.gmra.mrb[0].mxu0 %v2851
        %v5967 = vpop.f32.mrb[0].mxu0
        %v5968 = vadd.f32 0.0, %v5967
        %v5969 = vpop.f32.mrb[0].mxu0
        %v5970 = vadd.f32 0.0, %v5969
        %v5971 = vpop.f32.mrb[0].mxu0
        %v5972 = vadd.f32 0.0, %v5971
        %v5973 = vpop.f32.mrb[0].mxu0
        %v5974 = vadd.f32 0.0, %v5973
        %5975 = vmatprep.mubr.bf16.mxu0 %v2880
        %5976 = vmatmul.mubr.bf16.gmra.mrb[0].mxu0 %v2879
        %v5977 = vpop.f32.mrb[0].mxu0
        %v5978 = vadd.f32 0.0, %v5977
        %v5979 = vpop.f32.mrb[0].mxu0
        %v5980 = vadd.f32 0.0, %v5979
        %v5981 = vpop.f32.mrb[0].mxu0
        %v5982 = vadd.f32 0.0, %v5981
        %v5983 = vpop.f32.mrb[0].mxu0
        %v5984 = vadd.f32 0.0, %v5983
        %5985 = vmatprep.mubr.bf16.mxu0 %v2908
        %5986 = vmatmul.mubr.bf16.gmra.mrb[0].mxu0 %v2907
        %v5987 = vpop.f32.mrb[0].mxu0
        %v5988 = vadd.f32 0.0, %v5987
        %v5989 = vpop.f32.mrb[0].mxu0
        %v5990 = vadd.f32 0.0, %v5989
        %v5991 = vpop.f32.mrb[0].mxu0
        %v5992 = vadd.f32 0.0, %v5991
        %v5993 = vpop.f32.mrb[0].mxu0
        %v5994 = vadd.f32 0.0, %v5993
        %5995 = vmatprep.mubr.bf16.mxu0 %v2936
        %5996 = vmatmul.mubr.bf16.gmra.mrb[0].mxu0 %v2935
        %v5997 = vpop.f32.mrb[0].mxu0
        %v5998 = vadd.f32 0.0, %v5997
        %v5999 = vpop.f32.mrb[0].mxu0
        %v6000 = vadd.f32 0.0, %v5999
        %v6001 = vpop.f32.mrb[0].mxu0
        %v6002 = vadd.f32 0.0, %v6001
        %v6003 = vpop.f32.mrb[0].mxu0
        %v6004 = vadd.f32 0.0, %v6003
        %6005 = vmatprep.mubr.bf16.mxu0 %v2964
        %6006 = vmatmul.mubr.bf16.gmra.mrb[0].mxu0 %v2963
        %v6007 = vpop.f32.mrb[0].mxu0
        %v6008 = vadd.f32 0.0, %v6007
        %v6009 = vpop.f32.mrb[0].mxu0
        %v6010 = vadd.f32 0.0, %v6009
        %v6011 = vpop.f32.mrb[0].mxu0
        %v6012 = vadd.f32 0.0, %v6011
        %v6013 = vpop.f32.mrb[0].mxu0
        %v6014 = vadd.f32 0.0, %v6013
        %6015 = vmatprep.mubr.bf16.mxu0 %v2992
        %6016 = vmatmul.mubr.bf16.gmra.mrb[0].mxu0 %v2991
        %v6017 = vpop.f32.mrb[0].mxu0
        %v6018 = vadd.f32 0.0, %v6017
        %v6019 = vpop.f32.mrb[0].mxu0
        %v6020 = vadd.f32 0.0, %v6019
        %v6021 = vpop.f32.mrb[0].mxu0
        %v6022 = vadd.f32 0.0, %v6021
        %v6023 = vpop.f32.mrb[0].mxu0
        %v6024 = vadd.f32 0.0, %v6023
        %6025 = vmatprep.mubr.bf16.mxu0 %v3020
        %6026 = vmatmul.mubr.bf16.gmra.mrb[0].mxu0 %v3019
        %v6027 = vpop.f32.mrb[0].mxu0
        %v6028 = vadd.f32 0.0, %v6027
        %v6029 = vpop.f32.mrb[0].mxu0
        %v6030 = vadd.f32 0.0, %v6029
        %v6031 = vpop.f32.mrb[0].mxu0
        %v6032 = vadd.f32 0.0, %v6031
        %v6033 = vpop.f32.mrb[0].mxu0
        %v6034 = vadd.f32 0.0, %v6033
        %6035 = vmatprep.mubr.bf16.mxu0 %v3048
        %6036 = vmatmul.mubr.bf16.gmra.mrb[0].mxu0 %v3047
        %v6037 = vpop.f32.mrb[0].mxu0
        %v6038 = vadd.f32 0.0, %v6037
        %v6039 = vpop.f32.mrb[0].mxu0
        %v6040 = vadd.f32 0.0, %v6039
        %v6041 = vpop.f32.mrb[0].mxu0
        %v6042 = vadd.f32 0.0, %v6041
        %v6043 = vpop.f32.mrb[0].mxu0
        %v6044 = vadd.f32 0.0, %v6043
        %6045 = vmatprep.mubr.bf16.mxu0 %v3076
        %6046 = vmatmul.mubr.bf16.gmra.mrb[0].mxu0 %v3075
        %v6047 = vpop.f32.mrb[0].mxu0
        %v6048 = vadd.f32 0.0, %v6047
        %v6049 = vpop.f32.mrb[0].mxu0
        %v6050 = vadd.f32 0.0, %v6049
        %v6051 = vpop.f32.mrb[0].mxu0
        %v6052 = vadd.f32 0.0, %v6051
        %v6053 = vpop.f32.mrb[0].mxu0
        %v6054 = vadd.f32 0.0, %v6053
        %6055 = vmatprep.mubr.bf16.mxu0 %v3104
        %6056 = vmatmul.mubr.bf16.gmra.mrb[0].mxu0 %v3103
        %v6057 = vpop.f32.mrb[0].mxu0
        %v6058 = vadd.f32 0.0, %v6057
        %v6059 = vpop.f32.mrb[0].mxu0
        %v6060 = vadd.f32 0.0, %v6059
        %v6061 = vpop.f32.mrb[0].mxu0
        %v6062 = vadd.f32 0.0, %v6061
        %v6063 = vpop.f32.mrb[0].mxu0
        %v6064 = vadd.f32 0.0, %v6063
        %6065 = vmatprep.mubr.bf16.mxu0 %v3132
        %6066 = vmatmul.mubr.bf16.gmra.mrb[0].mxu0 %v3131
        %v6067 = vpop.f32.mrb[0].mxu0
        %v6068 = vadd.f32 0.0, %v6067
        %v6069 = vpop.f32.mrb[0].mxu0
        %v6070 = vadd.f32 0.0, %v6069
        %v6071 = vpop.f32.mrb[0].mxu0
        %v6072 = vadd.f32 0.0, %v6071
        %v6073 = vpop.f32.mrb[0].mxu0
        %v6074 = vadd.f32 0.0, %v6073
        %6075 = vmatprep.mubr.bf16.mxu0 %v3160
        %6076 = vmatmul.mubr.bf16.gmra.mrb[0].mxu0 %v3159
        %v6077 = vpop.f32.mrb[0].mxu0
        %v6078 = vadd.f32 0.0, %v6077
        %v6079 = vpop.f32.mrb[0].mxu0
        %v6080 = vadd.f32 0.0, %v6079
        %v6081 = vpop.f32.mrb[0].mxu0
        %v6082 = vadd.f32 0.0, %v6081
        %v6083 = vpop.f32.mrb[0].mxu0
        %v6084 = vadd.f32 0.0, %v6083
        %6085 = vmatprep.mubr.bf16.mxu0 %v3188
        %6086 = vmatmul.mubr.bf16.gmra.mrb[0].mxu0 %v3187
        %v6087 = vpop.f32.mrb[0].mxu0
        %v6088 = vadd.f32 0.0, %v6087
        %v6089 = vpop.f32.mrb[0].mxu0
        %v6090 = vadd.f32 0.0, %v6089
        %v6091 = vpop.f32.mrb[0].mxu0
        %v6092 = vadd.f32 0.0, %v6091
        %v6093 = vpop.f32.mrb[0].mxu0
        %v6094 = vadd.f32 0.0, %v6093
        %6095 = vdwg.mxu0
        %6096 = vmatprep.subr.bf16.mxu0 %v5040
        %6097 = vmatpush1.bf16.msra.mxu0 %v5039
        %6098 = vmatprep.subr.bf16.mxu0 %v5042
        %6099 = vmatpush1.bf16.msra.mxu0 %v5041
        %6100 = vmatprep.subr.bf16.mxu0 %v5044
        %6101 = vmatpush1.bf16.msra.mxu0 %v5043
        %6102 = vmatprep.subr.bf16.mxu0 %v5046
        %6103 = vmatpush1.bf16.msra.mxu0 %v5045
        %6104 = vmatprep.subr.bf16.mxu0 %v5048
        %6105 = vmatpush1.bf16.msra.mxu0 %v5047
        %6106 = vmatprep.subr.bf16.mxu0 %v5050
        %6107 = vmatpush1.bf16.msra.mxu0 %v5049
        %6108 = vmatprep.subr.bf16.mxu0 %v5052
        %6109 = vmatpush1.bf16.msra.mxu0 %v5051
        %6110 = vmatprep.subr.bf16.mxu0 %v5054
        %6111 = vmatpush1.bf16.msra.mxu0 %v5053
        %6112 = vmatprep.subr.bf16.mxu0 %v5056
        %6113 = vmatpush1.bf16.msra.mxu0 %v5055
        %6114 = vmatprep.subr.bf16.mxu0 %v5058
        %6115 = vmatpush1.bf16.msra.mxu0 %v5057
        %6116 = vmatprep.subr.bf16.mxu0 %v5060
        %6117 = vmatpush1.bf16.msra.mxu0 %v5059
        %6118 = vmatprep.subr.bf16.mxu0 %v5062
        %6119 = vmatpush1.bf16.msra.mxu0 %v5061
        %6120 = vmatprep.subr.bf16.mxu0 %v5064
        %6121 = vmatpush1.bf16.msra.mxu0 %v5063
        %6122 = vmatprep.subr.bf16.mxu0 %v5066
        %6123 = vmatpush1.bf16.msra.mxu0 %v5065
        %6124 = vmatprep.subr.bf16.mxu0 %v5068
        %6125 = vmatpush1.bf16.msra.mxu0 %v5067
        %6126 = vmatprep.subr.bf16.mxu0 %v5070
        %6127 = vmatpush1.bf16.msra.mxu0 %v5069
        %6128 = vmatprep.mubr.bf16.mxu0 %v2770
        %6129 = vmatmul.mubr.bf16.gmra.mrb[0].mxu0 %v2769
        %v6130 = vpop.f32.mrb[0].mxu0
        %v6131 = vadd.f32 %v5938, %v6130
        %v6132 = vpop.f32.mrb[0].mxu0
        %v6133 = vadd.f32 %v5940, %v6132
        %v6134 = vpop.f32.mrb[0].mxu0
        %v6135 = vadd.f32 %v5942, %v6134
        %v6136 = vpop.f32.mrb[0].mxu0
        %v6137 = vadd.f32 %v5944, %v6136
        %6138 = vmatprep.mubr.bf16.mxu0 %v2798
        %6139 = vmatmul.mubr.bf16.gmra.mrb[0].mxu0 %v2797
        %v6140 = vpop.f32.mrb[0].mxu0
        %v6141 = vadd.f32 %v5948, %v6140
        %v6142 = vpop.f32.mrb[0].mxu0
        %v6143 = vadd.f32 %v5950, %v6142
        %v6144 = vpop.f32.mrb[0].mxu0
        %v6145 = vadd.f32 %v5952, %v6144
        %v6146 = vpop.f32.mrb[0].mxu0
        %v6147 = vadd.f32 %v5954, %v6146
        %6148 = vmatprep.mubr.bf16.mxu0 %v2826
        %6149 = vmatmul.mubr.bf16.gmra.mrb[0].mxu0 %v2825
        %v6150 = vpop.f32.mrb[0].mxu0
        %v6151 = vadd.f32 %v5958, %v6150
        %v6152 = vpop.f32.mrb[0].mxu0
        %v6153 = vadd.f32 %v5960, %v6152
        %v6154 = vpop.f32.mrb[0].mxu0
        %v6155 = vadd.f32 %v5962, %v6154
        %v6156 = vpop.f32.mrb[0].mxu0
        %v6157 = vadd.f32 %v5964, %v6156
        %6158 = vmatprep.mubr.bf16.mxu0 %v2854
        %6159 = vmatmul.mubr.bf16.gmra.mrb[0].mxu0 %v2853
        %v6160 = vpop.f32.mrb[0].mxu0
        %v6161 = vadd.f32 %v5968, %v6160
        %v6162 = vpop.f32.mrb[0].mxu0
        %v6163 = vadd.f32 %v5970, %v6162
        %v6164 = vpop.f32.mrb[0].mxu0
        %v6165 = vadd.f32 %v5972, %v6164
        %v6166 = vpop.f32.mrb[0].mxu0
        %v6167 = vadd.f32 %v5974, %v6166
        %6168 = vmatprep.mubr.bf16.mxu0 %v2882
        %6169 = vmatmul.mubr.bf16.gmra.mrb[0].mxu0 %v2881
        %v6170 = vpop.f32.mrb[0].mxu0
        %v6171 = vadd.f32 %v5978, %v6170
        %v6172 = vpop.f32.mrb[0].mxu0
        %v6173 = vadd.f32 %v5980, %v6172
        %v6174 = vpop.f32.mrb[0].mxu0
        %v6175 = vadd.f32 %v5982, %v6174
        %v6176 = vpop.f32.mrb[0].mxu0
        %v6177 = vadd.f32 %v5984, %v6176
        %6178 = vmatprep.mubr.bf16.mxu0 %v2910
        %6179 = vmatmul.mubr.bf16.gmra.mrb[0].mxu0 %v2909
        %v6180 = vpop.f32.mrb[0].mxu0
        %v6181 = vadd.f32 %v5988, %v6180
        %v6182 = vpop.f32.mrb[0].mxu0
        %v6183 = vadd.f32 %v5990, %v6182
        %v6184 = vpop.f32.mrb[0].mxu0
        %v6185 = vadd.f32 %v5992, %v6184
        %v6186 = vpop.f32.mrb[0].mxu0
        %v6187 = vadd.f32 %v5994, %v6186
        %6188 = vmatprep.mubr.bf16.mxu0 %v2938
        %6189 = vmatmul.mubr.bf16.gmra.mrb[0].mxu0 %v2937
        %v6190 = vpop.f32.mrb[0].mxu0
        %v6191 = vadd.f32 %v5998, %v6190
        %v6192 = vpop.f32.mrb[0].mxu0
        %v6193 = vadd.f32 %v6000, %v6192
        %v6194 = vpop.f32.mrb[0].mxu0
        %v6195 = vadd.f32 %v6002, %v6194
        %v6196 = vpop.f32.mrb[0].mxu0
        %v6197 = vadd.f32 %v6004, %v6196
        %6198 = vmatprep.mubr.bf16.mxu0 %v2966
        %6199 = vmatmul.mubr.bf16.gmra.mrb[0].mxu0 %v2965
        %v6200 = vpop.f32.mrb[0].mxu0
        %v6201 = vadd.f32 %v6008, %v6200
        %v6202 = vpop.f32.mrb[0].mxu0
        %v6203 = vadd.f32 %v6010, %v6202
        %v6204 = vpop.f32.mrb[0].mxu0
        %v6205 = vadd.f32 %v6012, %v6204
        %v6206 = vpop.f32.mrb[0].mxu0
        %v6207 = vadd.f32 %v6014, %v6206
        %6208 = vmatprep.mubr.bf16.mxu0 %v2994
        %6209 = vmatmul.mubr.bf16.gmra.mrb[0].mxu0 %v2993
        %v6210 = vpop.f32.mrb[0].mxu0
        %v6211 = vadd.f32 %v6018, %v6210
        %v6212 = vpop.f32.mrb[0].mxu0
        %v6213 = vadd.f32 %v6020, %v6212
        %v6214 = vpop.f32.mrb[0].mxu0
        %v6215 = vadd.f32 %v6022, %v6214
        %v6216 = vpop.f32.mrb[0].mxu0
        %v6217 = vadd.f32 %v6024, %v6216
        %6218 = vmatprep.mubr.bf16.mxu0 %v3022
        %6219 = vmatmul.mubr.bf16.gmra.mrb[0].mxu0 %v3021
        %v6220 = vpop.f32.mrb[0].mxu0
        %v6221 = vadd.f32 %v6028, %v6220
        %v6222 = vpop.f32.mrb[0].mxu0
        %v6223 = vadd.f32 %v6030, %v6222
        %v6224 = vpop.f32.mrb[0].mxu0
        %v6225 = vadd.f32 %v6032, %v6224
        %v6226 = vpop.f32.mrb[0].mxu0
        %v6227 = vadd.f32 %v6034, %v6226
        %6228 = vmatprep.mubr.bf16.mxu0 %v3050
        %6229 = vmatmul.mubr.bf16.gmra.mrb[0].mxu0 %v3049
        %v6230 = vpop.f32.mrb[0].mxu0
        %v6231 = vadd.f32 %v6038, %v6230
        %v6232 = vpop.f32.mrb[0].mxu0
        %v6233 = vadd.f32 %v6040, %v6232
        %v6234 = vpop.f32.mrb[0].mxu0
        %v6235 = vadd.f32 %v6042, %v6234
        %v6236 = vpop.f32.mrb[0].mxu0
        %v6237 = vadd.f32 %v6044, %v6236
        %6238 = vmatprep.mubr.bf16.mxu0 %v3078
        %6239 = vmatmul.mubr.bf16.gmra.mrb[0].mxu0 %v3077
        %v6240 = vpop.f32.mrb[0].mxu0
        %v6241 = vadd.f32 %v6048, %v6240
        %v6242 = vpop.f32.mrb[0].mxu0
        %v6243 = vadd.f32 %v6050, %v6242
        %v6244 = vpop.f32.mrb[0].mxu0
        %v6245 = vadd.f32 %v6052, %v6244
        %v6246 = vpop.f32.mrb[0].mxu0
        %v6247 = vadd.f32 %v6054, %v6246
        %6248 = vmatprep.mubr.bf16.mxu0 %v3106
        %6249 = vmatmul.mubr.bf16.gmra.mrb[0].mxu0 %v3105
        %v6250 = vpop.f32.mrb[0].mxu0
        %v6251 = vadd.f32 %v6058, %v6250
        %v6252 = vpop.f32.mrb[0].mxu0
        %v6253 = vadd.f32 %v6060, %v6252
        %v6254 = vpop.f32.mrb[0].mxu0
        %v6255 = vadd.f32 %v6062, %v6254
        %v6256 = vpop.f32.mrb[0].mxu0
        %v6257 = vadd.f32 %v6064, %v6256
        %6258 = vmatprep.mubr.bf16.mxu0 %v3134
        %6259 = vmatmul.mubr.bf16.gmra.mrb[0].mxu0 %v3133
        %v6260 = vpop.f32.mrb[0].mxu0
        %v6261 = vadd.f32 %v6068, %v6260
        %v6262 = vpop.f32.mrb[0].mxu0
        %v6263 = vadd.f32 %v6070, %v6262
        %v6264 = vpop.f32.mrb[0].mxu0
        %v6265 = vadd.f32 %v6072, %v6264
        %v6266 = vpop.f32.mrb[0].mxu0
        %v6267 = vadd.f32 %v6074, %v6266
        %6268 = vmatprep.mubr.bf16.mxu0 %v3162
        %6269 = vmatmul.mubr.bf16.gmra.mrb[0].mxu0 %v3161
        %v6270 = vpop.f32.mrb[0].mxu0
        %v6271 = vadd.f32 %v6078, %v6270
        %v6272 = vpop.f32.mrb[0].mxu0
        %v6273 = vadd.f32 %v6080, %v6272
        %v6274 = vpop.f32.mrb[0].mxu0
        %v6275 = vadd.f32 %v6082, %v6274
        %v6276 = vpop.f32.mrb[0].mxu0
        %v6277 = vadd.f32 %v6084, %v6276
        %6278 = vmatprep.mubr.bf16.mxu0 %v3190
        %6279 = vmatmul.mubr.bf16.gmra.mrb[0].mxu0 %v3189
        %v6280 = vpop.f32.mrb[0].mxu0
        %v6281 = vadd.f32 %v6088, %v6280
        %v6282 = vpop.f32.mrb[0].mxu0
        %v6283 = vadd.f32 %v6090, %v6282
        %v6284 = vpop.f32.mrb[0].mxu0
        %v6285 = vadd.f32 %v6092, %v6284
        %v6286 = vpop.f32.mrb[0].mxu0
        %v6287 = vadd.f32 %v6094, %v6286
        %6288 = vdwg.mxu0
        %6289 = vmatprep.subr.bf16.mxu0 %v5072
        %6290 = vmatpush1.bf16.msra.mxu0 %v5071
        %6291 = vmatprep.subr.bf16.mxu0 %v5074
        %6292 = vmatpush1.bf16.msra.mxu0 %v5073
        %6293 = vmatprep.subr.bf16.mxu0 %v5076
        %6294 = vmatpush1.bf16.msra.mxu0 %v5075
        %6295 = vmatprep.subr.bf16.mxu0 %v5078
        %6296 = vmatpush1.bf16.msra.mxu0 %v5077
        %6297 = vmatprep.subr.bf16.mxu0 %v5080
        %6298 = vmatpush1.bf16.msra.mxu0 %v5079
        %6299 = vmatprep.subr.bf16.mxu0 %v5082
        %6300 = vmatpush1.bf16.msra.mxu0 %v5081
        %6301 = vmatprep.subr.bf16.mxu0 %v5084
        %6302 = vmatpush1.bf16.msra.mxu0 %v5083
        %6303 = vmatprep.subr.bf16.mxu0 %v5086
        %6304 = vmatpush1.bf16.msra.mxu0 %v5085
        %6305 = vmatprep.subr.bf16.mxu0 %v5088
        %6306 = vmatpush1.bf16.msra.mxu0 %v5087
        %6307 = vmatprep.subr.bf16.mxu0 %v5090
        %6308 = vmatpush1.bf16.msra.mxu0 %v5089
        %6309 = vmatprep.subr.bf16.mxu0 %v5092
        %6310 = vmatpush1.bf16.msra.mxu0 %v5091
        %6311 = vmatprep.subr.bf16.mxu0 %v5094
        %6312 = vmatpush1.bf16.msra.mxu0 %v5093
        %6313 = vmatprep.subr.bf16.mxu0 %v5096
        %6314 = vmatpush1.bf16.msra.mxu0 %v5095
        %6315 = vmatprep.subr.bf16.mxu0 %v5098
        %6316 = vmatpush1.bf16.msra.mxu0 %v5097
        %6317 = vmatprep.subr.bf16.mxu0 %v5100
        %6318 = vmatpush1.bf16.msra.mxu0 %v5099
        %6319 = vmatprep.subr.bf16.mxu0 %v5102
        %6320 = vmatpush1.bf16.msra.mxu0 %v5101
        %6321 = vmatprep.mubr.bf16.mxu0 %v2772
        %6322 = vmatmul.mubr.bf16.gmra.mrb[0].mxu0 %v2771
        %v6323 = vpop.f32.mrb[0].mxu0
        %v6324 = vadd.f32 %v6131, %v6323
        %v6325 = vpop.f32.mrb[0].mxu0
        %v6326 = vadd.f32 %v6133, %v6325
        %v6327 = vpop.f32.mrb[0].mxu0
        %v6328 = vadd.f32 %v6135, %v6327
        %v6329 = vpop.f32.mrb[0].mxu0
        %v6330 = vadd.f32 %v6137, %v6329
        %6331 = vmatprep.mubr.bf16.mxu0 %v2800
        %6332 = vmatmul.mubr.bf16.gmra.mrb[0].mxu0 %v2799
        %v6333 = vpop.f32.mrb[0].mxu0
        %v6334 = vadd.f32 %v6141, %v6333
        %v6335 = vpop.f32.mrb[0].mxu0
        %v6336 = vadd.f32 %v6143, %v6335
        %v6337 = vpop.f32.mrb[0].mxu0
        %v6338 = vadd.f32 %v6145, %v6337
        %v6339 = vpop.f32.mrb[0].mxu0
        %v6340 = vadd.f32 %v6147, %v6339
        %6341 = vmatprep.mubr.bf16.mxu0 %v2828
        %6342 = vmatmul.mubr.bf16.gmra.mrb[0].mxu0 %v2827
        %v6343 = vpop.f32.mrb[0].mxu0
        %v6344 = vadd.f32 %v6151, %v6343
        %v6345 = vpop.f32.mrb[0].mxu0
        %v6346 = vadd.f32 %v6153, %v6345
        %v6347 = vpop.f32.mrb[0].mxu0
        %v6348 = vadd.f32 %v6155, %v6347
        %v6349 = vpop.f32.mrb[0].mxu0
        %v6350 = vadd.f32 %v6157, %v6349
        %6351 = vmatprep.mubr.bf16.mxu0 %v2856
        %6352 = vmatmul.mubr.bf16.gmra.mrb[0].mxu0 %v2855
        %v6353 = vpop.f32.mrb[0].mxu0
        %v6354 = vadd.f32 %v6161, %v6353
        %v6355 = vpop.f32.mrb[0].mxu0
        %v6356 = vadd.f32 %v6163, %v6355
        %v6357 = vpop.f32.mrb[0].mxu0
        %v6358 = vadd.f32 %v6165, %v6357
        %v6359 = vpop.f32.mrb[0].mxu0
        %v6360 = vadd.f32 %v6167, %v6359
        %6361 = vmatprep.mubr.bf16.mxu0 %v2884
        %6362 = vmatmul.mubr.bf16.gmra.mrb[0].mxu0 %v2883
        %v6363 = vpop.f32.mrb[0].mxu0
        %v6364 = vadd.f32 %v6171, %v6363
        %v6365 = vpop.f32.mrb[0].mxu0
        %v6366 = vadd.f32 %v6173, %v6365
        %v6367 = vpop.f32.mrb[0].mxu0
        %v6368 = vadd.f32 %v6175, %v6367
        %v6369 = vpop.f32.mrb[0].mxu0
        %v6370 = vadd.f32 %v6177, %v6369
        %6371 = vmatprep.mubr.bf16.mxu0 %v2912
        %6372 = vmatmul.mubr.bf16.gmra.mrb[0].mxu0 %v2911
        %v6373 = vpop.f32.mrb[0].mxu0
        %v6374 = vadd.f32 %v6181, %v6373
        %v6375 = vpop.f32.mrb[0].mxu0
        %v6376 = vadd.f32 %v6183, %v6375
        %v6377 = vpop.f32.mrb[0].mxu0
        %v6378 = vadd.f32 %v6185, %v6377
        %v6379 = vpop.f32.mrb[0].mxu0
        %v6380 = vadd.f32 %v6187, %v6379
        %6381 = vmatprep.mubr.bf16.mxu0 %v2940
        %6382 = vmatmul.mubr.bf16.gmra.mrb[0].mxu0 %v2939
        %v6383 = vpop.f32.mrb[0].mxu0
        %v6384 = vadd.f32 %v6191, %v6383
        %v6385 = vpop.f32.mrb[0].mxu0
        %v6386 = vadd.f32 %v6193, %v6385
        %v6387 = vpop.f32.mrb[0].mxu0
        %v6388 = vadd.f32 %v6195, %v6387
        %v6389 = vpop.f32.mrb[0].mxu0
        %v6390 = vadd.f32 %v6197, %v6389
        %6391 = vmatprep.mubr.bf16.mxu0 %v2968
        %6392 = vmatmul.mubr.bf16.gmra.mrb[0].mxu0 %v2967
        %v6393 = vpop.f32.mrb[0].mxu0
        %v6394 = vadd.f32 %v6201, %v6393
        %v6395 = vpop.f32.mrb[0].mxu0
        %v6396 = vadd.f32 %v6203, %v6395
        %v6397 = vpop.f32.mrb[0].mxu0
        %v6398 = vadd.f32 %v6205, %v6397
        %v6399 = vpop.f32.mrb[0].mxu0
        %v6400 = vadd.f32 %v6207, %v6399
        %6401 = vmatprep.mubr.bf16.mxu0 %v2996
        %6402 = vmatmul.mubr.bf16.gmra.mrb[0].mxu0 %v2995
        %v6403 = vpop.f32.mrb[0].mxu0
        %v6404 = vadd.f32 %v6211, %v6403
        %v6405 = vpop.f32.mrb[0].mxu0
        %v6406 = vadd.f32 %v6213, %v6405
        %v6407 = vpop.f32.mrb[0].mxu0
        %v6408 = vadd.f32 %v6215, %v6407
        %v6409 = vpop.f32.mrb[0].mxu0
        %v6410 = vadd.f32 %v6217, %v6409
        %6411 = vmatprep.mubr.bf16.mxu0 %v3024
        %6412 = vmatmul.mubr.bf16.gmra.mrb[0].mxu0 %v3023
        %v6413 = vpop.f32.mrb[0].mxu0
        %v6414 = vadd.f32 %v6221, %v6413
        %v6415 = vpop.f32.mrb[0].mxu0
        %v6416 = vadd.f32 %v6223, %v6415
        %v6417 = vpop.f32.mrb[0].mxu0
        %v6418 = vadd.f32 %v6225, %v6417
        %v6419 = vpop.f32.mrb[0].mxu0
        %v6420 = vadd.f32 %v6227, %v6419
        %6421 = vmatprep.mubr.bf16.mxu0 %v3052
        %6422 = vmatmul.mubr.bf16.gmra.mrb[0].mxu0 %v3051
        %v6423 = vpop.f32.mrb[0].mxu0
        %v6424 = vadd.f32 %v6231, %v6423
        %v6425 = vpop.f32.mrb[0].mxu0
        %v6426 = vadd.f32 %v6233, %v6425
        %v6427 = vpop.f32.mrb[0].mxu0
        %v6428 = vadd.f32 %v6235, %v6427
        %v6429 = vpop.f32.mrb[0].mxu0
        %v6430 = vadd.f32 %v6237, %v6429
        %6431 = vmatprep.mubr.bf16.mxu0 %v3080
        %6432 = vmatmul.mubr.bf16.gmra.mrb[0].mxu0 %v3079
        %v6433 = vpop.f32.mrb[0].mxu0
        %v6434 = vadd.f32 %v6241, %v6433
        %v6435 = vpop.f32.mrb[0].mxu0
        %v6436 = vadd.f32 %v6243, %v6435
        %v6437 = vpop.f32.mrb[0].mxu0
        %v6438 = vadd.f32 %v6245, %v6437
        %v6439 = vpop.f32.mrb[0].mxu0
        %v6440 = vadd.f32 %v6247, %v6439
        %6441 = vmatprep.mubr.bf16.mxu0 %v3108
        %6442 = vmatmul.mubr.bf16.gmra.mrb[0].mxu0 %v3107
        %v6443 = vpop.f32.mrb[0].mxu0
        %v6444 = vadd.f32 %v6251, %v6443
        %v6445 = vpop.f32.mrb[0].mxu0
        %v6446 = vadd.f32 %v6253, %v6445
        %v6447 = vpop.f32.mrb[0].mxu0
        %v6448 = vadd.f32 %v6255, %v6447
        %v6449 = vpop.f32.mrb[0].mxu0
        %v6450 = vadd.f32 %v6257, %v6449
        %6451 = vmatprep.mubr.bf16.mxu0 %v3136
        %6452 = vmatmul.mubr.bf16.gmra.mrb[0].mxu0 %v3135
        %v6453 = vpop.f32.mrb[0].mxu0
        %v6454 = vadd.f32 %v6261, %v6453
        %v6455 = vpop.f32.mrb[0].mxu0
        %v6456 = vadd.f32 %v6263, %v6455
        %v6457 = vpop.f32.mrb[0].mxu0
        %v6458 = vadd.f32 %v6265, %v6457
        %v6459 = vpop.f32.mrb[0].mxu0
        %v6460 = vadd.f32 %v6267, %v6459
        %6461 = vmatprep.mubr.bf16.mxu0 %v3164
        %6462 = vmatmul.mubr.bf16.gmra.mrb[0].mxu0 %v3163
        %v6463 = vpop.f32.mrb[0].mxu0
        %v6464 = vadd.f32 %v6271, %v6463
        %v6465 = vpop.f32.mrb[0].mxu0
        %v6466 = vadd.f32 %v6273, %v6465
        %v6467 = vpop.f32.mrb[0].mxu0
        %v6468 = vadd.f32 %v6275, %v6467
        %v6469 = vpop.f32.mrb[0].mxu0
        %v6470 = vadd.f32 %v6277, %v6469
        %6471 = vmatprep.mubr.bf16.mxu0 %v3192
        %6472 = vmatmul.mubr.bf16.gmra.mrb[0].mxu0 %v3191
        %v6473 = vpop.f32.mrb[0].mxu0
        %v6474 = vadd.f32 %v6281, %v6473
        %v6475 = vpop.f32.mrb[0].mxu0
        %v6476 = vadd.f32 %v6283, %v6475
        %v6477 = vpop.f32.mrb[0].mxu0
        %v6478 = vadd.f32 %v6285, %v6477
        %v6479 = vpop.f32.mrb[0].mxu0
        %v6480 = vadd.f32 %v6287, %v6479
        %6481 = vdwg.mxu0
        %6482 = vmatprep.subr.bf16.mxu0 %v5104
        %6483 = vmatpush1.bf16.msra.mxu0 %v5103
        %6484 = vmatprep.subr.bf16.mxu0 %v5106
        %6485 = vmatpush1.bf16.msra.mxu0 %v5105
        %6486 = vmatprep.subr.bf16.mxu0 %v5108
        %6487 = vmatpush1.bf16.msra.mxu0 %v5107
        %6488 = vmatprep.subr.bf16.mxu0 %v5110
        %6489 = vmatpush1.bf16.msra.mxu0 %v5109
        %6490 = vmatprep.subr.bf16.mxu0 %v5112
        %6491 = vmatpush1.bf16.msra.mxu0 %v5111
        %6492 = vmatprep.subr.bf16.mxu0 %v5114
        %6493 = vmatpush1.bf16.msra.mxu0 %v5113
        %6494 = vmatprep.subr.bf16.mxu0 %v5116
        %6495 = vmatpush1.bf16.msra.mxu0 %v5115
        %6496 = vmatprep.subr.bf16.mxu0 %v5118
        %6497 = vmatpush1.bf16.msra.mxu0 %v5117
        %6498 = vmatprep.subr.bf16.mxu0 %v5120
        %6499 = vmatpush1.bf16.msra.mxu0 %v5119
        %6500 = vmatprep.subr.bf16.mxu0 %v5122
        %6501 = vmatpush1.bf16.msra.mxu0 %v5121
        %6502 = vmatprep.subr.bf16.mxu0 %v5124
        %6503 = vmatpush1.bf16.msra.mxu0 %v5123
        %6504 = vmatprep.subr.bf16.mxu0 %v5126
        %6505 = vmatpush1.bf16.msra.mxu0 %v5125
        %6506 = vmatprep.subr.bf16.mxu0 %v5128
        %6507 = vmatpush1.bf16.msra.mxu0 %v5127
        %6508 = vmatprep.subr.bf16.mxu0 %v5130
        %6509 = vmatpush1.bf16.msra.mxu0 %v5129
        %6510 = vmatprep.subr.bf16.mxu0 %v5132
        %6511 = vmatpush1.bf16.msra.mxu0 %v5131
        %6512 = vmatprep.subr.bf16.mxu0 %v5134
        %6513 = vmatpush1.bf16.msra.mxu0 %v5133
        %6514 = vmatprep.mubr.bf16.mxu0 %v2774
        %6515 = vmatmul.mubr.bf16.gmra.mrb[0].mxu0 %v2773
        %v6516 = vpop.f32.mrb[0].mxu0
        %v6517 = vadd.f32 %v6324, %v6516
        %v6518 = vpop.f32.mrb[0].mxu0
        %v6519 = vadd.f32 %v6326, %v6518
        %v6520 = vpop.f32.mrb[0].mxu0
        %v6521 = vadd.f32 %v6328, %v6520
        %v6522 = vpop.f32.mrb[0].mxu0
        %v6523 = vadd.f32 %v6330, %v6522
        %6524 = vmatprep.mubr.bf16.mxu0 %v2802
        %6525 = vmatmul.mubr.bf16.gmra.mrb[0].mxu0 %v2801
        %v6526 = vpop.f32.mrb[0].mxu0
        %v6527 = vadd.f32 %v6334, %v6526
        %v6528 = vpop.f32.mrb[0].mxu0
        %v6529 = vadd.f32 %v6336, %v6528
        %v6530 = vpop.f32.mrb[0].mxu0
        %v6531 = vadd.f32 %v6338, %v6530
        %v6532 = vpop.f32.mrb[0].mxu0
        %v6533 = vadd.f32 %v6340, %v6532
        %6534 = vmatprep.mubr.bf16.mxu0 %v2830
        %6535 = vmatmul.mubr.bf16.gmra.mrb[0].mxu0 %v2829
        %v6536 = vpop.f32.mrb[0].mxu0
        %v6537 = vadd.f32 %v6344, %v6536
        %v6538 = vpop.f32.mrb[0].mxu0
        %v6539 = vadd.f32 %v6346, %v6538
        %v6540 = vpop.f32.mrb[0].mxu0
        %v6541 = vadd.f32 %v6348, %v6540
        %v6542 = vpop.f32.mrb[0].mxu0
        %v6543 = vadd.f32 %v6350, %v6542
        %6544 = vmatprep.mubr.bf16.mxu0 %v2858
        %6545 = vmatmul.mubr.bf16.gmra.mrb[0].mxu0 %v2857
        %v6546 = vpop.f32.mrb[0].mxu0
        %v6547 = vadd.f32 %v6354, %v6546
        %v6548 = vpop.f32.mrb[0].mxu0
        %v6549 = vadd.f32 %v6356, %v6548
        %v6550 = vpop.f32.mrb[0].mxu0
        %v6551 = vadd.f32 %v6358, %v6550
        %v6552 = vpop.f32.mrb[0].mxu0
        %v6553 = vadd.f32 %v6360, %v6552
        %6554 = vmatprep.mubr.bf16.mxu0 %v2886
        %6555 = vmatmul.mubr.bf16.gmra.mrb[0].mxu0 %v2885
        %v6556 = vpop.f32.mrb[0].mxu0
        %v6557 = vadd.f32 %v6364, %v6556
        %v6558 = vpop.f32.mrb[0].mxu0
        %v6559 = vadd.f32 %v6366, %v6558
        %v6560 = vpop.f32.mrb[0].mxu0
        %v6561 = vadd.f32 %v6368, %v6560
        %v6562 = vpop.f32.mrb[0].mxu0
        %v6563 = vadd.f32 %v6370, %v6562
        %6564 = vmatprep.mubr.bf16.mxu0 %v2914
        %6565 = vmatmul.mubr.bf16.gmra.mrb[0].mxu0 %v2913
        %v6566 = vpop.f32.mrb[0].mxu0
        %v6567 = vadd.f32 %v6374, %v6566
        %v6568 = vpop.f32.mrb[0].mxu0
        %v6569 = vadd.f32 %v6376, %v6568
        %v6570 = vpop.f32.mrb[0].mxu0
        %v6571 = vadd.f32 %v6378, %v6570
        %v6572 = vpop.f32.mrb[0].mxu0
        %v6573 = vadd.f32 %v6380, %v6572
        %6574 = vmatprep.mubr.bf16.mxu0 %v2942
        %6575 = vmatmul.mubr.bf16.gmra.mrb[0].mxu0 %v2941
        %v6576 = vpop.f32.mrb[0].mxu0
        %v6577 = vadd.f32 %v6384, %v6576
        %v6578 = vpop.f32.mrb[0].mxu0
        %v6579 = vadd.f32 %v6386, %v6578
        %v6580 = vpop.f32.mrb[0].mxu0
        %v6581 = vadd.f32 %v6388, %v6580
        %v6582 = vpop.f32.mrb[0].mxu0
        %v6583 = vadd.f32 %v6390, %v6582
        %6584 = vmatprep.mubr.bf16.mxu0 %v2970
        %6585 = vmatmul.mubr.bf16.gmra.mrb[0].mxu0 %v2969
        %v6586 = vpop.f32.mrb[0].mxu0
        %v6587 = vadd.f32 %v6394, %v6586
        %v6588 = vpop.f32.mrb[0].mxu0
        %v6589 = vadd.f32 %v6396, %v6588
        %v6590 = vpop.f32.mrb[0].mxu0
        %v6591 = vadd.f32 %v6398, %v6590
        %v6592 = vpop.f32.mrb[0].mxu0
        %v6593 = vadd.f32 %v6400, %v6592
        %6594 = vmatprep.mubr.bf16.mxu0 %v2998
        %6595 = vmatmul.mubr.bf16.gmra.mrb[0].mxu0 %v2997
        %v6596 = vpop.f32.mrb[0].mxu0
        %v6597 = vadd.f32 %v6404, %v6596
        %v6598 = vpop.f32.mrb[0].mxu0
        %v6599 = vadd.f32 %v6406, %v6598
        %v6600 = vpop.f32.mrb[0].mxu0
        %v6601 = vadd.f32 %v6408, %v6600
        %v6602 = vpop.f32.mrb[0].mxu0
        %v6603 = vadd.f32 %v6410, %v6602
        %6604 = vmatprep.mubr.bf16.mxu0 %v3026
        %6605 = vmatmul.mubr.bf16.gmra.mrb[0].mxu0 %v3025
        %v6606 = vpop.f32.mrb[0].mxu0
        %v6607 = vadd.f32 %v6414, %v6606
        %v6608 = vpop.f32.mrb[0].mxu0
        %v6609 = vadd.f32 %v6416, %v6608
        %v6610 = vpop.f32.mrb[0].mxu0
        %v6611 = vadd.f32 %v6418, %v6610
        %v6612 = vpop.f32.mrb[0].mxu0
        %v6613 = vadd.f32 %v6420, %v6612
        %6614 = vmatprep.mubr.bf16.mxu0 %v3054
        %6615 = vmatmul.mubr.bf16.gmra.mrb[0].mxu0 %v3053
        %v6616 = vpop.f32.mrb[0].mxu0
        %v6617 = vadd.f32 %v6424, %v6616
        %v6618 = vpop.f32.mrb[0].mxu0
        %v6619 = vadd.f32 %v6426, %v6618
        %v6620 = vpop.f32.mrb[0].mxu0
        %v6621 = vadd.f32 %v6428, %v6620
        %v6622 = vpop.f32.mrb[0].mxu0
        %v6623 = vadd.f32 %v6430, %v6622
        %6624 = vmatprep.mubr.bf16.mxu0 %v3082
        %6625 = vmatmul.mubr.bf16.gmra.mrb[0].mxu0 %v3081
        %v6626 = vpop.f32.mrb[0].mxu0
        %v6627 = vadd.f32 %v6434, %v6626
        %v6628 = vpop.f32.mrb[0].mxu0
        %v6629 = vadd.f32 %v6436, %v6628
        %v6630 = vpop.f32.mrb[0].mxu0
        %v6631 = vadd.f32 %v6438, %v6630
        %v6632 = vpop.f32.mrb[0].mxu0
        %v6633 = vadd.f32 %v6440, %v6632
        %6634 = vmatprep.mubr.bf16.mxu0 %v3110
        %6635 = vmatmul.mubr.bf16.gmra.mrb[0].mxu0 %v3109
        %v6636 = vpop.f32.mrb[0].mxu0
        %v6637 = vadd.f32 %v6444, %v6636
        %v6638 = vpop.f32.mrb[0].mxu0
        %v6639 = vadd.f32 %v6446, %v6638
        %v6640 = vpop.f32.mrb[0].mxu0
        %v6641 = vadd.f32 %v6448, %v6640
        %v6642 = vpop.f32.mrb[0].mxu0
        %v6643 = vadd.f32 %v6450, %v6642
        %6644 = vmatprep.mubr.bf16.mxu0 %v3138
        %6645 = vmatmul.mubr.bf16.gmra.mrb[0].mxu0 %v3137
        %v6646 = vpop.f32.mrb[0].mxu0
        %v6647 = vadd.f32 %v6454, %v6646
        %v6648 = vpop.f32.mrb[0].mxu0
        %v6649 = vadd.f32 %v6456, %v6648
        %v6650 = vpop.f32.mrb[0].mxu0
        %v6651 = vadd.f32 %v6458, %v6650
        %v6652 = vpop.f32.mrb[0].mxu0
        %v6653 = vadd.f32 %v6460, %v6652
        %6654 = vmatprep.mubr.bf16.mxu0 %v3166
        %6655 = vmatmul.mubr.bf16.gmra.mrb[0].mxu0 %v3165
        %v6656 = vpop.f32.mrb[0].mxu0
        %v6657 = vadd.f32 %v6464, %v6656
        %v6658 = vpop.f32.mrb[0].mxu0
        %v6659 = vadd.f32 %v6466, %v6658
        %v6660 = vpop.f32.mrb[0].mxu0
        %v6661 = vadd.f32 %v6468, %v6660
        %v6662 = vpop.f32.mrb[0].mxu0
        %v6663 = vadd.f32 %v6470, %v6662
        %6664 = vmatprep.mubr.bf16.mxu0 %v3194
        %6665 = vmatmul.mubr.bf16.gmra.mrb[0].mxu0 %v3193
        %v6666 = vpop.f32.mrb[0].mxu0
        %v6667 = vadd.f32 %v6474, %v6666
        %v6668 = vpop.f32.mrb[0].mxu0
        %v6669 = vadd.f32 %v6476, %v6668
        %v6670 = vpop.f32.mrb[0].mxu0
        %v6671 = vadd.f32 %v6478, %v6670
        %v6672 = vpop.f32.mrb[0].mxu0
        %v6673 = vadd.f32 %v6480, %v6672
        %6674 = vdwg.mxu0
        %6675 = vmatprep.subr.bf16.mxu0 %v5136
        %6676 = vmatpush1.bf16.msra.mxu0 %v5135
        %6677 = vmatprep.subr.bf16.mxu0 %v5138
        %6678 = vmatpush1.bf16.msra.mxu0 %v5137
        %6679 = vmatprep.subr.bf16.mxu0 %v5140
        %6680 = vmatpush1.bf16.msra.mxu0 %v5139
        %6681 = vmatprep.subr.bf16.mxu0 %v5142
        %6682 = vmatpush1.bf16.msra.mxu0 %v5141
        %6683 = vmatprep.subr.bf16.mxu0 %v5144
        %6684 = vmatpush1.bf16.msra.mxu0 %v5143
        %6685 = vmatprep.subr.bf16.mxu0 %v5146
        %6686 = vmatpush1.bf16.msra.mxu0 %v5145
        %6687 = vmatprep.subr.bf16.mxu0 %v5148
        %6688 = vmatpush1.bf16.msra.mxu0 %v5147
        %6689 = vmatprep.subr.bf16.mxu0 %v5150
        %6690 = vmatpush1.bf16.msra.mxu0 %v5149
        %6691 = vmatprep.subr.bf16.mxu0 %v5152
        %6692 = vmatpush1.bf16.msra.mxu0 %v5151
        %6693 = vmatprep.subr.bf16.mxu0 %v5154
        %6694 = vmatpush1.bf16.msra.mxu0 %v5153
        %6695 = vmatprep.subr.bf16.mxu0 %v5156
        %6696 = vmatpush1.bf16.msra.mxu0 %v5155
        %6697 = vmatprep.subr.bf16.mxu0 %v5158
        %6698 = vmatpush1.bf16.msra.mxu0 %v5157
        %6699 = vmatprep.subr.bf16.mxu0 %v5160
        %6700 = vmatpush1.bf16.msra.mxu0 %v5159
        %6701 = vmatprep.subr.bf16.mxu0 %v5162
        %6702 = vmatpush1.bf16.msra.mxu0 %v5161
        %6703 = vmatprep.subr.bf16.mxu0 %v5164
        %6704 = vmatpush1.bf16.msra.mxu0 %v5163
        %6705 = vmatprep.subr.bf16.mxu0 %v5166
        %6706 = vmatpush1.bf16.msra.mxu0 %v5165
        %6707 = vmatprep.mubr.bf16.mxu0 %v2776
        %6708 = vmatmul.mubr.bf16.gmra.mrb[0].mxu0 %v2775
        %v6709 = vpop.f32.mrb[0].mxu0
        %v6710 = vadd.f32 %v6517, %v6709
        %v6711 = vpop.f32.mrb[0].mxu0
        %v6712 = vadd.f32 %v6519, %v6711
        %v6713 = vpop.f32.mrb[0].mxu0
        %v6714 = vadd.f32 %v6521, %v6713
        %v6715 = vpop.f32.mrb[0].mxu0
        %v6716 = vadd.f32 %v6523, %v6715
        %6717 = vmatprep.mubr.bf16.mxu0 %v2804
        %6718 = vmatmul.mubr.bf16.gmra.mrb[0].mxu0 %v2803
        %v6719 = vpop.f32.mrb[0].mxu0
        %v6720 = vadd.f32 %v6527, %v6719
        %v6721 = vpop.f32.mrb[0].mxu0
        %v6722 = vadd.f32 %v6529, %v6721
        %v6723 = vpop.f32.mrb[0].mxu0
        %v6724 = vadd.f32 %v6531, %v6723
        %v6725 = vpop.f32.mrb[0].mxu0
        %v6726 = vadd.f32 %v6533, %v6725
        %6727 = vmatprep.mubr.bf16.mxu0 %v2832
        %6728 = vmatmul.mubr.bf16.gmra.mrb[0].mxu0 %v2831
        %v6729 = vpop.f32.mrb[0].mxu0
        %v6730 = vadd.f32 %v6537, %v6729
        %v6731 = vpop.f32.mrb[0].mxu0
        %v6732 = vadd.f32 %v6539, %v6731
        %v6733 = vpop.f32.mrb[0].mxu0
        %v6734 = vadd.f32 %v6541, %v6733
        %v6735 = vpop.f32.mrb[0].mxu0
        %v6736 = vadd.f32 %v6543, %v6735
        %6737 = vmatprep.mubr.bf16.mxu0 %v2860
        %6738 = vmatmul.mubr.bf16.gmra.mrb[0].mxu0 %v2859
        %v6739 = vpop.f32.mrb[0].mxu0
        %v6740 = vadd.f32 %v6547, %v6739
        %v6741 = vpop.f32.mrb[0].mxu0
        %v6742 = vadd.f32 %v6549, %v6741
        %v6743 = vpop.f32.mrb[0].mxu0
        %v6744 = vadd.f32 %v6551, %v6743
        %v6745 = vpop.f32.mrb[0].mxu0
        %v6746 = vadd.f32 %v6553, %v6745
        %6747 = vmatprep.mubr.bf16.mxu0 %v2888
        %6748 = vmatmul.mubr.bf16.gmra.mrb[0].mxu0 %v2887
        %v6749 = vpop.f32.mrb[0].mxu0
        %v6750 = vadd.f32 %v6557, %v6749
        %v6751 = vpop.f32.mrb[0].mxu0
        %v6752 = vadd.f32 %v6559, %v6751
        %v6753 = vpop.f32.mrb[0].mxu0
        %v6754 = vadd.f32 %v6561, %v6753
        %v6755 = vpop.f32.mrb[0].mxu0
        %v6756 = vadd.f32 %v6563, %v6755
        %6757 = vmatprep.mubr.bf16.mxu0 %v2916
        %6758 = vmatmul.mubr.bf16.gmra.mrb[0].mxu0 %v2915
        %v6759 = vpop.f32.mrb[0].mxu0
        %v6760 = vadd.f32 %v6567, %v6759
        %v6761 = vpop.f32.mrb[0].mxu0
        %v6762 = vadd.f32 %v6569, %v6761
        %v6763 = vpop.f32.mrb[0].mxu0
        %v6764 = vadd.f32 %v6571, %v6763
        %v6765 = vpop.f32.mrb[0].mxu0
        %v6766 = vadd.f32 %v6573, %v6765
        %6767 = vmatprep.mubr.bf16.mxu0 %v2944
        %6768 = vmatmul.mubr.bf16.gmra.mrb[0].mxu0 %v2943
        %v6769 = vpop.f32.mrb[0].mxu0
        %v6770 = vadd.f32 %v6577, %v6769
        %v6771 = vpop.f32.mrb[0].mxu0
        %v6772 = vadd.f32 %v6579, %v6771
        %v6773 = vpop.f32.mrb[0].mxu0
        %v6774 = vadd.f32 %v6581, %v6773
        %v6775 = vpop.f32.mrb[0].mxu0
        %v6776 = vadd.f32 %v6583, %v6775
        %6777 = vmatprep.mubr.bf16.mxu0 %v2972
        %6778 = vmatmul.mubr.bf16.gmra.mrb[0].mxu0 %v2971
        %v6779 = vpop.f32.mrb[0].mxu0
        %v6780 = vadd.f32 %v6587, %v6779
        %v6781 = vpop.f32.mrb[0].mxu0
        %v6782 = vadd.f32 %v6589, %v6781
        %v6783 = vpop.f32.mrb[0].mxu0
        %v6784 = vadd.f32 %v6591, %v6783
        %v6785 = vpop.f32.mrb[0].mxu0
        %v6786 = vadd.f32 %v6593, %v6785
        %6787 = vmatprep.mubr.bf16.mxu0 %v3000
        %6788 = vmatmul.mubr.bf16.gmra.mrb[0].mxu0 %v2999
        %v6789 = vpop.f32.mrb[0].mxu0
        %v6790 = vadd.f32 %v6597, %v6789
        %v6791 = vpop.f32.mrb[0].mxu0
        %v6792 = vadd.f32 %v6599, %v6791
        %v6793 = vpop.f32.mrb[0].mxu0
        %v6794 = vadd.f32 %v6601, %v6793
        %v6795 = vpop.f32.mrb[0].mxu0
        %v6796 = vadd.f32 %v6603, %v6795
        %6797 = vmatprep.mubr.bf16.mxu0 %v3028
        %6798 = vmatmul.mubr.bf16.gmra.mrb[0].mxu0 %v3027
        %v6799 = vpop.f32.mrb[0].mxu0
        %v6800 = vadd.f32 %v6607, %v6799
        %v6801 = vpop.f32.mrb[0].mxu0
        %v6802 = vadd.f32 %v6609, %v6801
        %v6803 = vpop.f32.mrb[0].mxu0
        %v6804 = vadd.f32 %v6611, %v6803
        %v6805 = vpop.f32.mrb[0].mxu0
        %v6806 = vadd.f32 %v6613, %v6805
        %6807 = vmatprep.mubr.bf16.mxu0 %v3056
        %6808 = vmatmul.mubr.bf16.gmra.mrb[0].mxu0 %v3055
        %v6809 = vpop.f32.mrb[0].mxu0
        %v6810 = vadd.f32 %v6617, %v6809
        %v6811 = vpop.f32.mrb[0].mxu0
        %v6812 = vadd.f32 %v6619, %v6811
        %v6813 = vpop.f32.mrb[0].mxu0
        %v6814 = vadd.f32 %v6621, %v6813
        %v6815 = vpop.f32.mrb[0].mxu0
        %v6816 = vadd.f32 %v6623, %v6815
        %6817 = vmatprep.mubr.bf16.mxu0 %v3084
        %6818 = vmatmul.mubr.bf16.gmra.mrb[0].mxu0 %v3083
        %v6819 = vpop.f32.mrb[0].mxu0
        %v6820 = vadd.f32 %v6627, %v6819
        %v6821 = vpop.f32.mrb[0].mxu0
        %v6822 = vadd.f32 %v6629, %v6821
        %v6823 = vpop.f32.mrb[0].mxu0
        %v6824 = vadd.f32 %v6631, %v6823
        %v6825 = vpop.f32.mrb[0].mxu0
        %v6826 = vadd.f32 %v6633, %v6825
        %6827 = vmatprep.mubr.bf16.mxu0 %v3112
        %6828 = vmatmul.mubr.bf16.gmra.mrb[0].mxu0 %v3111
        %v6829 = vpop.f32.mrb[0].mxu0
        %v6830 = vadd.f32 %v6637, %v6829
        %v6831 = vpop.f32.mrb[0].mxu0
        %v6832 = vadd.f32 %v6639, %v6831
        %v6833 = vpop.f32.mrb[0].mxu0
        %v6834 = vadd.f32 %v6641, %v6833
        %v6835 = vpop.f32.mrb[0].mxu0
        %v6836 = vadd.f32 %v6643, %v6835
        %6837 = vmatprep.mubr.bf16.mxu0 %v3140
        %6838 = vmatmul.mubr.bf16.gmra.mrb[0].mxu0 %v3139
        %v6839 = vpop.f32.mrb[0].mxu0
        %v6840 = vadd.f32 %v6647, %v6839
        %v6841 = vpop.f32.mrb[0].mxu0
        %v6842 = vadd.f32 %v6649, %v6841
        %v6843 = vpop.f32.mrb[0].mxu0
        %v6844 = vadd.f32 %v6651, %v6843
        %v6845 = vpop.f32.mrb[0].mxu0
        %v6846 = vadd.f32 %v6653, %v6845
        %6847 = vmatprep.mubr.bf16.mxu0 %v3168
        %6848 = vmatmul.mubr.bf16.gmra.mrb[0].mxu0 %v3167
        %v6849 = vpop.f32.mrb[0].mxu0
        %v6850 = vadd.f32 %v6657, %v6849
        %v6851 = vpop.f32.mrb[0].mxu0
        %v6852 = vadd.f32 %v6659, %v6851
        %v6853 = vpop.f32.mrb[0].mxu0
        %v6854 = vadd.f32 %v6661, %v6853
        %v6855 = vpop.f32.mrb[0].mxu0
        %v6856 = vadd.f32 %v6663, %v6855
        %6857 = vmatprep.mubr.bf16.mxu0 %v3196
        %6858 = vmatmul.mubr.bf16.gmra.mrb[0].mxu0 %v3195
        %v6859 = vpop.f32.mrb[0].mxu0
        %v6860 = vadd.f32 %v6667, %v6859
        %v6861 = vpop.f32.mrb[0].mxu0
        %v6862 = vadd.f32 %v6669, %v6861
        %v6863 = vpop.f32.mrb[0].mxu0
        %v6864 = vadd.f32 %v6671, %v6863
        %v6865 = vpop.f32.mrb[0].mxu0
        %v6866 = vadd.f32 %v6673, %v6865
        %6867 = vdwg.mxu0
        %6868 = vmatprep.subr.bf16.mxu0 %v5168
        %6869 = vmatpush1.bf16.msra.mxu0 %v5167
        %6870 = vmatprep.subr.bf16.mxu0 %v5170
        %6871 = vmatpush1.bf16.msra.mxu0 %v5169
        %6872 = vmatprep.subr.bf16.mxu0 %v5172
        %6873 = vmatpush1.bf16.msra.mxu0 %v5171
        %6874 = vmatprep.subr.bf16.mxu0 %v5174
        %6875 = vmatpush1.bf16.msra.mxu0 %v5173
        %6876 = vmatprep.subr.bf16.mxu0 %v5176
        %6877 = vmatpush1.bf16.msra.mxu0 %v5175
        %6878 = vmatprep.subr.bf16.mxu0 %v5178
        %6879 = vmatpush1.bf16.msra.mxu0 %v5177
        %6880 = vmatprep.subr.bf16.mxu0 %v5180
        %6881 = vmatpush1.bf16.msra.mxu0 %v5179
        %6882 = vmatprep.subr.bf16.mxu0 %v5182
        %6883 = vmatpush1.bf16.msra.mxu0 %v5181
        %6884 = vmatprep.subr.bf16.mxu0 %v5184
        %6885 = vmatpush1.bf16.msra.mxu0 %v5183
        %6886 = vmatprep.subr.bf16.mxu0 %v5186
        %6887 = vmatpush1.bf16.msra.mxu0 %v5185
        %6888 = vmatprep.subr.bf16.mxu0 %v5188
        %6889 = vmatpush1.bf16.msra.mxu0 %v5187
        %6890 = vmatprep.subr.bf16.mxu0 %v5190
        %6891 = vmatpush1.bf16.msra.mxu0 %v5189
        %6892 = vmatprep.subr.bf16.mxu0 %v5192
        %6893 = vmatpush1.bf16.msra.mxu0 %v5191
        %6894 = vmatprep.subr.bf16.mxu0 %v5194
        %6895 = vmatpush1.bf16.msra.mxu0 %v5193
        %6896 = vmatprep.subr.bf16.mxu0 %v5196
        %6897 = vmatpush1.bf16.msra.mxu0 %v5195
        %6898 = vmatprep.subr.bf16.mxu0 %v5198
        %6899 = vmatpush1.bf16.msra.mxu0 %v5197
        %6900 = vmatprep.mubr.bf16.mxu0 %v2778
        %6901 = vmatmul.mubr.bf16.gmra.mrb[0].mxu0 %v2777
        %v6902 = vpop.f32.mrb[0].mxu0
        %v6903 = vadd.f32 %v6710, %v6902
        %v6904 = vpop.f32.mrb[0].mxu0
        %v6905 = vadd.f32 %v6712, %v6904
        %v6906 = vpop.f32.mrb[0].mxu0
        %v6907 = vadd.f32 %v6714, %v6906
        %v6908 = vpop.f32.mrb[0].mxu0
        %v6909 = vadd.f32 %v6716, %v6908
        %6910 = vmatprep.mubr.bf16.mxu0 %v2806
        %6911 = vmatmul.mubr.bf16.gmra.mrb[0].mxu0 %v2805
        %v6912 = vpop.f32.mrb[0].mxu0
        %v6913 = vadd.f32 %v6720, %v6912
        %v6914 = vpop.f32.mrb[0].mxu0
        %v6915 = vadd.f32 %v6722, %v6914
        %v6916 = vpop.f32.mrb[0].mxu0
        %v6917 = vadd.f32 %v6724, %v6916
        %v6918 = vpop.f32.mrb[0].mxu0
        %v6919 = vadd.f32 %v6726, %v6918
        %6920 = vmatprep.mubr.bf16.mxu0 %v2834
        %6921 = vmatmul.mubr.bf16.gmra.mrb[0].mxu0 %v2833
        %v6922 = vpop.f32.mrb[0].mxu0
        %v6923 = vadd.f32 %v6730, %v6922
        %v6924 = vpop.f32.mrb[0].mxu0
        %v6925 = vadd.f32 %v6732, %v6924
        %v6926 = vpop.f32.mrb[0].mxu0
        %v6927 = vadd.f32 %v6734, %v6926
        %v6928 = vpop.f32.mrb[0].mxu0
        %v6929 = vadd.f32 %v6736, %v6928
        %6930 = vmatprep.mubr.bf16.mxu0 %v2862
        %6931 = vmatmul.mubr.bf16.gmra.mrb[0].mxu0 %v2861
        %v6932 = vpop.f32.mrb[0].mxu0
        %v6933 = vadd.f32 %v6740, %v6932
        %v6934 = vpop.f32.mrb[0].mxu0
        %v6935 = vadd.f32 %v6742, %v6934
        %v6936 = vpop.f32.mrb[0].mxu0
        %v6937 = vadd.f32 %v6744, %v6936
        %v6938 = vpop.f32.mrb[0].mxu0
        %v6939 = vadd.f32 %v6746, %v6938
        %6940 = vmatprep.mubr.bf16.mxu0 %v2890
        %6941 = vmatmul.mubr.bf16.gmra.mrb[0].mxu0 %v2889
        %v6942 = vpop.f32.mrb[0].mxu0
        %v6943 = vadd.f32 %v6750, %v6942
        %v6944 = vpop.f32.mrb[0].mxu0
        %v6945 = vadd.f32 %v6752, %v6944
        %v6946 = vpop.f32.mrb[0].mxu0
        %v6947 = vadd.f32 %v6754, %v6946
        %v6948 = vpop.f32.mrb[0].mxu0
        %v6949 = vadd.f32 %v6756, %v6948
        %6950 = vmatprep.mubr.bf16.mxu0 %v2918
        %6951 = vmatmul.mubr.bf16.gmra.mrb[0].mxu0 %v2917
        %v6952 = vpop.f32.mrb[0].mxu0
        %v6953 = vadd.f32 %v6760, %v6952
        %v6954 = vpop.f32.mrb[0].mxu0
        %v6955 = vadd.f32 %v6762, %v6954
        %v6956 = vpop.f32.mrb[0].mxu0
        %v6957 = vadd.f32 %v6764, %v6956
        %v6958 = vpop.f32.mrb[0].mxu0
        %v6959 = vadd.f32 %v6766, %v6958
        %6960 = vmatprep.mubr.bf16.mxu0 %v2946
        %6961 = vmatmul.mubr.bf16.gmra.mrb[0].mxu0 %v2945
        %v6962 = vpop.f32.mrb[0].mxu0
        %v6963 = vadd.f32 %v6770, %v6962
        %v6964 = vpop.f32.mrb[0].mxu0
        %v6965 = vadd.f32 %v6772, %v6964
        %v6966 = vpop.f32.mrb[0].mxu0
        %v6967 = vadd.f32 %v6774, %v6966
        %v6968 = vpop.f32.mrb[0].mxu0
        %v6969 = vadd.f32 %v6776, %v6968
        %6970 = vmatprep.mubr.bf16.mxu0 %v2974
        %6971 = vmatmul.mubr.bf16.gmra.mrb[0].mxu0 %v2973
        %v6972 = vpop.f32.mrb[0].mxu0
        %v6973 = vadd.f32 %v6780, %v6972
        %v6974 = vpop.f32.mrb[0].mxu0
        %v6975 = vadd.f32 %v6782, %v6974
        %v6976 = vpop.f32.mrb[0].mxu0
        %v6977 = vadd.f32 %v6784, %v6976
        %v6978 = vpop.f32.mrb[0].mxu0
        %v6979 = vadd.f32 %v6786, %v6978
        %6980 = vmatprep.mubr.bf16.mxu0 %v3002
        %6981 = vmatmul.mubr.bf16.gmra.mrb[0].mxu0 %v3001
        %v6982 = vpop.f32.mrb[0].mxu0
        %v6983 = vadd.f32 %v6790, %v6982
        %v6984 = vpop.f32.mrb[0].mxu0
        %v6985 = vadd.f32 %v6792, %v6984
        %v6986 = vpop.f32.mrb[0].mxu0
        %v6987 = vadd.f32 %v6794, %v6986
        %v6988 = vpop.f32.mrb[0].mxu0
        %v6989 = vadd.f32 %v6796, %v6988
        %6990 = vmatprep.mubr.bf16.mxu0 %v3030
        %6991 = vmatmul.mubr.bf16.gmra.mrb[0].mxu0 %v3029
        %v6992 = vpop.f32.mrb[0].mxu0
        %v6993 = vadd.f32 %v6800, %v6992
        %v6994 = vpop.f32.mrb[0].mxu0
        %v6995 = vadd.f32 %v6802, %v6994
        %v6996 = vpop.f32.mrb[0].mxu0
        %v6997 = vadd.f32 %v6804, %v6996
        %v6998 = vpop.f32.mrb[0].mxu0
        %v6999 = vadd.f32 %v6806, %v6998
        %7000 = vmatprep.mubr.bf16.mxu0 %v3058
        %7001 = vmatmul.mubr.bf16.gmra.mrb[0].mxu0 %v3057
        %v7002 = vpop.f32.mrb[0].mxu0
        %v7003 = vadd.f32 %v6810, %v7002
        %v7004 = vpop.f32.mrb[0].mxu0
        %v7005 = vadd.f32 %v6812, %v7004
        %v7006 = vpop.f32.mrb[0].mxu0
        %v7007 = vadd.f32 %v6814, %v7006
        %v7008 = vpop.f32.mrb[0].mxu0
        %v7009 = vadd.f32 %v6816, %v7008
        %7010 = vmatprep.mubr.bf16.mxu0 %v3086
        %7011 = vmatmul.mubr.bf16.gmra.mrb[0].mxu0 %v3085
        %v7012 = vpop.f32.mrb[0].mxu0
        %v7013 = vadd.f32 %v6820, %v7012
        %v7014 = vpop.f32.mrb[0].mxu0
        %v7015 = vadd.f32 %v6822, %v7014
        %v7016 = vpop.f32.mrb[0].mxu0
        %v7017 = vadd.f32 %v6824, %v7016
        %v7018 = vpop.f32.mrb[0].mxu0
        %v7019 = vadd.f32 %v6826, %v7018
        %7020 = vmatprep.mubr.bf16.mxu0 %v3114
        %7021 = vmatmul.mubr.bf16.gmra.mrb[0].mxu0 %v3113
        %v7022 = vpop.f32.mrb[0].mxu0
        %v7023 = vadd.f32 %v6830, %v7022
        %v7024 = vpop.f32.mrb[0].mxu0
        %v7025 = vadd.f32 %v6832, %v7024
        %v7026 = vpop.f32.mrb[0].mxu0
        %v7027 = vadd.f32 %v6834, %v7026
        %v7028 = vpop.f32.mrb[0].mxu0
        %v7029 = vadd.f32 %v6836, %v7028
        %7030 = vmatprep.mubr.bf16.mxu0 %v3142
        %7031 = vmatmul.mubr.bf16.gmra.mrb[0].mxu0 %v3141
        %v7032 = vpop.f32.mrb[0].mxu0
        %v7033 = vadd.f32 %v6840, %v7032
        %v7034 = vpop.f32.mrb[0].mxu0
        %v7035 = vadd.f32 %v6842, %v7034
        %v7036 = vpop.f32.mrb[0].mxu0
        %v7037 = vadd.f32 %v6844, %v7036
        %v7038 = vpop.f32.mrb[0].mxu0
        %v7039 = vadd.f32 %v6846, %v7038
        %7040 = vmatprep.mubr.bf16.mxu0 %v3170
        %7041 = vmatmul.mubr.bf16.gmra.mrb[0].mxu0 %v3169
        %v7042 = vpop.f32.mrb[0].mxu0
        %v7043 = vadd.f32 %v6850, %v7042
        %v7044 = vpop.f32.mrb[0].mxu0
        %v7045 = vadd.f32 %v6852, %v7044
        %v7046 = vpop.f32.mrb[0].mxu0
        %v7047 = vadd.f32 %v6854, %v7046
        %v7048 = vpop.f32.mrb[0].mxu0
        %v7049 = vadd.f32 %v6856, %v7048
        %7050 = vmatprep.mubr.bf16.mxu0 %v3198
        %7051 = vmatmul.mubr.bf16.gmra.mrb[0].mxu0 %v3197
        %v7052 = vpop.f32.mrb[0].mxu0
        %v7053 = vadd.f32 %v6860, %v7052
        %v7054 = vpop.f32.mrb[0].mxu0
        %v7055 = vadd.f32 %v6862, %v7054
        %v7056 = vpop.f32.mrb[0].mxu0
        %v7057 = vadd.f32 %v6864, %v7056
        %v7058 = vpop.f32.mrb[0].mxu0
        %v7059 = vadd.f32 %v6866, %v7058
        %7060 = vdwg.mxu0
        %7061 = vmatprep.subr.bf16.mxu0 %v5200
        %7062 = vmatpush1.bf16.msra.mxu0 %v5199
        %7063 = vmatprep.subr.bf16.mxu0 %v5202
        %7064 = vmatpush1.bf16.msra.mxu0 %v5201
        %7065 = vmatprep.subr.bf16.mxu0 %v5204
        %7066 = vmatpush1.bf16.msra.mxu0 %v5203
        %7067 = vmatprep.subr.bf16.mxu0 %v5206
        %7068 = vmatpush1.bf16.msra.mxu0 %v5205
        %7069 = vmatprep.subr.bf16.mxu0 %v5208
        %7070 = vmatpush1.bf16.msra.mxu0 %v5207
        %7071 = vmatprep.subr.bf16.mxu0 %v5210
        %7072 = vmatpush1.bf16.msra.mxu0 %v5209
        %7073 = vmatprep.subr.bf16.mxu0 %v5212
        %7074 = vmatpush1.bf16.msra.mxu0 %v5211
        %7075 = vmatprep.subr.bf16.mxu0 %v5214
        %7076 = vmatpush1.bf16.msra.mxu0 %v5213
        %7077 = vmatprep.subr.bf16.mxu0 %v5216
        %7078 = vmatpush1.bf16.msra.mxu0 %v5215
        %7079 = vmatprep.subr.bf16.mxu0 %v5218
        %7080 = vmatpush1.bf16.msra.mxu0 %v5217
        %7081 = vmatprep.subr.bf16.mxu0 %v5220
        %7082 = vmatpush1.bf16.msra.mxu0 %v5219
        %7083 = vmatprep.subr.bf16.mxu0 %v5222
        %7084 = vmatpush1.bf16.msra.mxu0 %v5221
        %7085 = vmatprep.subr.bf16.mxu0 %v5224
        %7086 = vmatpush1.bf16.msra.mxu0 %v5223
        %7087 = vmatprep.subr.bf16.mxu0 %v5226
        %7088 = vmatpush1.bf16.msra.mxu0 %v5225
        %7089 = vmatprep.subr.bf16.mxu0 %v5228
        %7090 = vmatpush1.bf16.msra.mxu0 %v5227
        %7091 = vmatprep.subr.bf16.mxu0 %v5230
        %7092 = vmatpush1.bf16.msra.mxu0 %v5229
        %7093 = vmatprep.mubr.bf16.mxu0 %v2780
        %7094 = vmatmul.mubr.bf16.gmra.mrb[0].mxu0 %v2779
        %v7095 = vpop.f32.mrb[0].mxu0
        %v7096 = vadd.f32 %v6903, %v7095
        %v7097 = vpop.f32.mrb[0].mxu0
        %v7098 = vadd.f32 %v6905, %v7097
        %v7099 = vpop.f32.mrb[0].mxu0
        %v7100 = vadd.f32 %v6907, %v7099
        %v7101 = vpop.f32.mrb[0].mxu0
        %v7102 = vadd.f32 %v6909, %v7101
        %7103 = vmatprep.mubr.bf16.mxu0 %v2808
        %7104 = vmatmul.mubr.bf16.gmra.mrb[0].mxu0 %v2807
        %v7105 = vpop.f32.mrb[0].mxu0
        %v7106 = vadd.f32 %v6913, %v7105
        %v7107 = vpop.f32.mrb[0].mxu0
        %v7108 = vadd.f32 %v6915, %v7107
        %v7109 = vpop.f32.mrb[0].mxu0
        %v7110 = vadd.f32 %v6917, %v7109
        %v7111 = vpop.f32.mrb[0].mxu0
        %v7112 = vadd.f32 %v6919, %v7111
        %7113 = vmatprep.mubr.bf16.mxu0 %v2836
        %7114 = vmatmul.mubr.bf16.gmra.mrb[0].mxu0 %v2835
        %v7115 = vpop.f32.mrb[0].mxu0
        %v7116 = vadd.f32 %v6923, %v7115
        %v7117 = vpop.f32.mrb[0].mxu0
        %v7118 = vadd.f32 %v6925, %v7117
        %v7119 = vpop.f32.mrb[0].mxu0
        %v7120 = vadd.f32 %v6927, %v7119
        %v7121 = vpop.f32.mrb[0].mxu0
        %v7122 = vadd.f32 %v6929, %v7121
        %7123 = vmatprep.mubr.bf16.mxu0 %v2864
        %7124 = vmatmul.mubr.bf16.gmra.mrb[0].mxu0 %v2863
        %v7125 = vpop.f32.mrb[0].mxu0
        %v7126 = vadd.f32 %v6933, %v7125
        %v7127 = vpop.f32.mrb[0].mxu0
        %v7128 = vadd.f32 %v6935, %v7127
        %v7129 = vpop.f32.mrb[0].mxu0
        %v7130 = vadd.f32 %v6937, %v7129
        %v7131 = vpop.f32.mrb[0].mxu0
        %v7132 = vadd.f32 %v6939, %v7131
        %7133 = vmatprep.mubr.bf16.mxu0 %v2892
        %7134 = vmatmul.mubr.bf16.gmra.mrb[0].mxu0 %v2891
        %v7135 = vpop.f32.mrb[0].mxu0
        %v7136 = vadd.f32 %v6943, %v7135
        %v7137 = vpop.f32.mrb[0].mxu0
        %v7138 = vadd.f32 %v6945, %v7137
        %v7139 = vpop.f32.mrb[0].mxu0
        %v7140 = vadd.f32 %v6947, %v7139
        %v7141 = vpop.f32.mrb[0].mxu0
        %v7142 = vadd.f32 %v6949, %v7141
        %7143 = vmatprep.mubr.bf16.mxu0 %v2920
        %7144 = vmatmul.mubr.bf16.gmra.mrb[0].mxu0 %v2919
        %v7145 = vpop.f32.mrb[0].mxu0
        %v7146 = vadd.f32 %v6953, %v7145
        %v7147 = vpop.f32.mrb[0].mxu0
        %v7148 = vadd.f32 %v6955, %v7147
        %v7149 = vpop.f32.mrb[0].mxu0
        %v7150 = vadd.f32 %v6957, %v7149
        %v7151 = vpop.f32.mrb[0].mxu0
        %v7152 = vadd.f32 %v6959, %v7151
        %7153 = vmatprep.mubr.bf16.mxu0 %v2948
        %7154 = vmatmul.mubr.bf16.gmra.mrb[0].mxu0 %v2947
        %v7155 = vpop.f32.mrb[0].mxu0
        %v7156 = vadd.f32 %v6963, %v7155
        %v7157 = vpop.f32.mrb[0].mxu0
        %v7158 = vadd.f32 %v6965, %v7157
        %v7159 = vpop.f32.mrb[0].mxu0
        %v7160 = vadd.f32 %v6967, %v7159
        %v7161 = vpop.f32.mrb[0].mxu0
        %v7162 = vadd.f32 %v6969, %v7161
        %7163 = vmatprep.mubr.bf16.mxu0 %v2976
        %7164 = vmatmul.mubr.bf16.gmra.mrb[0].mxu0 %v2975
        %v7165 = vpop.f32.mrb[0].mxu0
        %v7166 = vadd.f32 %v6973, %v7165
        %v7167 = vpop.f32.mrb[0].mxu0
        %v7168 = vadd.f32 %v6975, %v7167
        %v7169 = vpop.f32.mrb[0].mxu0
        %v7170 = vadd.f32 %v6977, %v7169
        %v7171 = vpop.f32.mrb[0].mxu0
        %v7172 = vadd.f32 %v6979, %v7171
        %7173 = vmatprep.mubr.bf16.mxu0 %v3004
        %7174 = vmatmul.mubr.bf16.gmra.mrb[0].mxu0 %v3003
        %v7175 = vpop.f32.mrb[0].mxu0
        %v7176 = vadd.f32 %v6983, %v7175
        %v7177 = vpop.f32.mrb[0].mxu0
        %v7178 = vadd.f32 %v6985, %v7177
        %v7179 = vpop.f32.mrb[0].mxu0
        %v7180 = vadd.f32 %v6987, %v7179
        %v7181 = vpop.f32.mrb[0].mxu0
        %v7182 = vadd.f32 %v6989, %v7181
        %7183 = vmatprep.mubr.bf16.mxu0 %v3032
        %7184 = vmatmul.mubr.bf16.gmra.mrb[0].mxu0 %v3031
        %v7185 = vpop.f32.mrb[0].mxu0
        %v7186 = vadd.f32 %v6993, %v7185
        %v7187 = vpop.f32.mrb[0].mxu0
        %v7188 = vadd.f32 %v6995, %v7187
        %v7189 = vpop.f32.mrb[0].mxu0
        %v7190 = vadd.f32 %v6997, %v7189
        %v7191 = vpop.f32.mrb[0].mxu0
        %v7192 = vadd.f32 %v6999, %v7191
        %7193 = vmatprep.mubr.bf16.mxu0 %v3060
        %7194 = vmatmul.mubr.bf16.gmra.mrb[0].mxu0 %v3059
        %v7195 = vpop.f32.mrb[0].mxu0
        %v7196 = vadd.f32 %v7003, %v7195
        %v7197 = vpop.f32.mrb[0].mxu0
        %v7198 = vadd.f32 %v7005, %v7197
        %v7199 = vpop.f32.mrb[0].mxu0
        %v7200 = vadd.f32 %v7007, %v7199
        %v7201 = vpop.f32.mrb[0].mxu0
        %v7202 = vadd.f32 %v7009, %v7201
        %7203 = vmatprep.mubr.bf16.mxu0 %v3088
        %7204 = vmatmul.mubr.bf16.gmra.mrb[0].mxu0 %v3087
        %v7205 = vpop.f32.mrb[0].mxu0
        %v7206 = vadd.f32 %v7013, %v7205
        %v7207 = vpop.f32.mrb[0].mxu0
        %v7208 = vadd.f32 %v7015, %v7207
        %v7209 = vpop.f32.mrb[0].mxu0
        %v7210 = vadd.f32 %v7017, %v7209
        %v7211 = vpop.f32.mrb[0].mxu0
        %v7212 = vadd.f32 %v7019, %v7211
        %7213 = vmatprep.mubr.bf16.mxu0 %v3116
        %7214 = vmatmul.mubr.bf16.gmra.mrb[0].mxu0 %v3115
        %v7215 = vpop.f32.mrb[0].mxu0
        %v7216 = vadd.f32 %v7023, %v7215
        %v7217 = vpop.f32.mrb[0].mxu0
        %v7218 = vadd.f32 %v7025, %v7217
        %v7219 = vpop.f32.mrb[0].mxu0
        %v7220 = vadd.f32 %v7027, %v7219
        %v7221 = vpop.f32.mrb[0].mxu0
        %v7222 = vadd.f32 %v7029, %v7221
        %7223 = vmatprep.mubr.bf16.mxu0 %v3144
        %7224 = vmatmul.mubr.bf16.gmra.mrb[0].mxu0 %v3143
        %v7225 = vpop.f32.mrb[0].mxu0
        %v7226 = vadd.f32 %v7033, %v7225
        %v7227 = vpop.f32.mrb[0].mxu0
        %v7228 = vadd.f32 %v7035, %v7227
        %v7229 = vpop.f32.mrb[0].mxu0
        %v7230 = vadd.f32 %v7037, %v7229
        %v7231 = vpop.f32.mrb[0].mxu0
        %v7232 = vadd.f32 %v7039, %v7231
        %7233 = vmatprep.mubr.bf16.mxu0 %v3172
        %7234 = vmatmul.mubr.bf16.gmra.mrb[0].mxu0 %v3171
        %v7235 = vpop.f32.mrb[0].mxu0
        %v7236 = vadd.f32 %v7043, %v7235
        %v7237 = vpop.f32.mrb[0].mxu0
        %v7238 = vadd.f32 %v7045, %v7237
        %v7239 = vpop.f32.mrb[0].mxu0
        %v7240 = vadd.f32 %v7047, %v7239
        %v7241 = vpop.f32.mrb[0].mxu0
        %v7242 = vadd.f32 %v7049, %v7241
        %7243 = vmatprep.mubr.bf16.mxu0 %v3200
        %7244 = vmatmul.mubr.bf16.gmra.mrb[0].mxu0 %v3199
        %v7245 = vpop.f32.mrb[0].mxu0
        %v7246 = vadd.f32 %v7053, %v7245
        %v7247 = vpop.f32.mrb[0].mxu0
        %v7248 = vadd.f32 %v7055, %v7247
        %v7249 = vpop.f32.mrb[0].mxu0
        %v7250 = vadd.f32 %v7057, %v7249
        %v7251 = vpop.f32.mrb[0].mxu0
        %v7252 = vadd.f32 %v7059, %v7251
        %7253 = vdwg.mxu0
        %7254 = vmatprep.subr.bf16.mxu0 %v5232
        %7255 = vmatpush1.bf16.msra.mxu0 %v5231
        %7256 = vmatprep.subr.bf16.mxu0 %v5234
        %7257 = vmatpush1.bf16.msra.mxu0 %v5233
        %7258 = vmatprep.subr.bf16.mxu0 %v5236
        %7259 = vmatpush1.bf16.msra.mxu0 %v5235
        %7260 = vmatprep.subr.bf16.mxu0 %v5238
        %7261 = vmatpush1.bf16.msra.mxu0 %v5237
        %7262 = vmatprep.subr.bf16.mxu0 %v5240
        %7263 = vmatpush1.bf16.msra.mxu0 %v5239
        %7264 = vmatprep.subr.bf16.mxu0 %v5242
        %7265 = vmatpush1.bf16.msra.mxu0 %v5241
        %7266 = vmatprep.subr.bf16.mxu0 %v5244
        %7267 = vmatpush1.bf16.msra.mxu0 %v5243
        %7268 = vmatprep.subr.bf16.mxu0 %v5246
        %7269 = vmatpush1.bf16.msra.mxu0 %v5245
        %7270 = vmatprep.subr.bf16.mxu0 %v5248
        %7271 = vmatpush1.bf16.msra.mxu0 %v5247
        %7272 = vmatprep.subr.bf16.mxu0 %v5250
        %7273 = vmatpush1.bf16.msra.mxu0 %v5249
        %7274 = vmatprep.subr.bf16.mxu0 %v5252
        %7275 = vmatpush1.bf16.msra.mxu0 %v5251
        %7276 = vmatprep.subr.bf16.mxu0 %v5254
        %7277 = vmatpush1.bf16.msra.mxu0 %v5253
        %7278 = vmatprep.subr.bf16.mxu0 %v5256
        %7279 = vmatpush1.bf16.msra.mxu0 %v5255
        %7280 = vmatprep.subr.bf16.mxu0 %v5258
        %7281 = vmatpush1.bf16.msra.mxu0 %v5257
        %7282 = vmatprep.subr.bf16.mxu0 %v5260
        %7283 = vmatpush1.bf16.msra.mxu0 %v5259
        %7284 = vmatprep.subr.bf16.mxu0 %v5262
        %7285 = vmatpush1.bf16.msra.mxu0 %v5261
        %7286 = vmatprep.mubr.bf16.mxu0 %v2782
        %7287 = vmatmul.mubr.bf16.gmra.mrb[0].mxu0 %v2781
        %v7288 = vpop.f32.mrb[0].mxu0
        %v7289 = vadd.f32 %v7096, %v7288
        %v7290 = vpop.f32.mrb[0].mxu0
        %v7291 = vadd.f32 %v7098, %v7290
        %v7292 = vpop.f32.mrb[0].mxu0
        %v7293 = vadd.f32 %v7100, %v7292
        %v7294 = vpop.f32.mrb[0].mxu0
        %v7295 = vadd.f32 %v7102, %v7294
        %7296 = vmatprep.mubr.bf16.mxu0 %v2810
        %7297 = vmatmul.mubr.bf16.gmra.mrb[0].mxu0 %v2809
        %v7298 = vpop.f32.mrb[0].mxu0
        %v7299 = vadd.f32 %v7106, %v7298
        %v7300 = vpop.f32.mrb[0].mxu0
        %v7301 = vadd.f32 %v7108, %v7300
        %v7302 = vpop.f32.mrb[0].mxu0
        %v7303 = vadd.f32 %v7110, %v7302
        %v7304 = vpop.f32.mrb[0].mxu0
        %v7305 = vadd.f32 %v7112, %v7304
        %7306 = vmatprep.mubr.bf16.mxu0 %v2838
        %7307 = vmatmul.mubr.bf16.gmra.mrb[0].mxu0 %v2837
        %v7308 = vpop.f32.mrb[0].mxu0
        %v7309 = vadd.f32 %v7116, %v7308
        %v7310 = vpop.f32.mrb[0].mxu0
        %v7311 = vadd.f32 %v7118, %v7310
        %v7312 = vpop.f32.mrb[0].mxu0
        %v7313 = vadd.f32 %v7120, %v7312
        %v7314 = vpop.f32.mrb[0].mxu0
        %v7315 = vadd.f32 %v7122, %v7314
        %7316 = vmatprep.mubr.bf16.mxu0 %v2866
        %7317 = vmatmul.mubr.bf16.gmra.mrb[0].mxu0 %v2865
        %v7318 = vpop.f32.mrb[0].mxu0
        %v7319 = vadd.f32 %v7126, %v7318
        %v7320 = vpop.f32.mrb[0].mxu0
        %v7321 = vadd.f32 %v7128, %v7320
        %v7322 = vpop.f32.mrb[0].mxu0
        %v7323 = vadd.f32 %v7130, %v7322
        %v7324 = vpop.f32.mrb[0].mxu0
        %v7325 = vadd.f32 %v7132, %v7324
        %7326 = vmatprep.mubr.bf16.mxu0 %v2894
        %7327 = vmatmul.mubr.bf16.gmra.mrb[0].mxu0 %v2893
        %v7328 = vpop.f32.mrb[0].mxu0
        %v7329 = vadd.f32 %v7136, %v7328
        %v7330 = vpop.f32.mrb[0].mxu0
        %v7331 = vadd.f32 %v7138, %v7330
        %v7332 = vpop.f32.mrb[0].mxu0
        %v7333 = vadd.f32 %v7140, %v7332
        %v7334 = vpop.f32.mrb[0].mxu0
        %v7335 = vadd.f32 %v7142, %v7334
        %7336 = vmatprep.mubr.bf16.mxu0 %v2922
        %7337 = vmatmul.mubr.bf16.gmra.mrb[0].mxu0 %v2921
        %v7338 = vpop.f32.mrb[0].mxu0
        %v7339 = vadd.f32 %v7146, %v7338
        %v7340 = vpop.f32.mrb[0].mxu0
        %v7341 = vadd.f32 %v7148, %v7340
        %v7342 = vpop.f32.mrb[0].mxu0
        %v7343 = vadd.f32 %v7150, %v7342
        %v7344 = vpop.f32.mrb[0].mxu0
        %v7345 = vadd.f32 %v7152, %v7344
        %7346 = vmatprep.mubr.bf16.mxu0 %v2950
        %7347 = vmatmul.mubr.bf16.gmra.mrb[0].mxu0 %v2949
        %v7348 = vpop.f32.mrb[0].mxu0
        %v7349 = vadd.f32 %v7156, %v7348
        %v7350 = vpop.f32.mrb[0].mxu0
        %v7351 = vadd.f32 %v7158, %v7350
        %v7352 = vpop.f32.mrb[0].mxu0
        %v7353 = vadd.f32 %v7160, %v7352
        %v7354 = vpop.f32.mrb[0].mxu0
        %v7355 = vadd.f32 %v7162, %v7354
        %7356 = vmatprep.mubr.bf16.mxu0 %v2978
        %7357 = vmatmul.mubr.bf16.gmra.mrb[0].mxu0 %v2977
        %v7358 = vpop.f32.mrb[0].mxu0
        %v7359 = vadd.f32 %v7166, %v7358
        %v7360 = vpop.f32.mrb[0].mxu0
        %v7361 = vadd.f32 %v7168, %v7360
        %v7362 = vpop.f32.mrb[0].mxu0
        %v7363 = vadd.f32 %v7170, %v7362
        %v7364 = vpop.f32.mrb[0].mxu0
        %v7365 = vadd.f32 %v7172, %v7364
        %7366 = vmatprep.mubr.bf16.mxu0 %v3006
        %7367 = vmatmul.mubr.bf16.gmra.mrb[0].mxu0 %v3005
        %v7368 = vpop.f32.mrb[0].mxu0
        %v7369 = vadd.f32 %v7176, %v7368
        %v7370 = vpop.f32.mrb[0].mxu0
        %v7371 = vadd.f32 %v7178, %v7370
        %v7372 = vpop.f32.mrb[0].mxu0
        %v7373 = vadd.f32 %v7180, %v7372
        %v7374 = vpop.f32.mrb[0].mxu0
        %v7375 = vadd.f32 %v7182, %v7374
        %7376 = vmatprep.mubr.bf16.mxu0 %v3034
        %7377 = vmatmul.mubr.bf16.gmra.mrb[0].mxu0 %v3033
        %v7378 = vpop.f32.mrb[0].mxu0
        %v7379 = vadd.f32 %v7186, %v7378
        %v7380 = vpop.f32.mrb[0].mxu0
        %v7381 = vadd.f32 %v7188, %v7380
        %v7382 = vpop.f32.mrb[0].mxu0
        %v7383 = vadd.f32 %v7190, %v7382
        %v7384 = vpop.f32.mrb[0].mxu0
        %v7385 = vadd.f32 %v7192, %v7384
        %7386 = vmatprep.mubr.bf16.mxu0 %v3062
        %7387 = vmatmul.mubr.bf16.gmra.mrb[0].mxu0 %v3061
        %v7388 = vpop.f32.mrb[0].mxu0
        %v7389 = vadd.f32 %v7196, %v7388
        %v7390 = vpop.f32.mrb[0].mxu0
        %v7391 = vadd.f32 %v7198, %v7390
        %v7392 = vpop.f32.mrb[0].mxu0
        %v7393 = vadd.f32 %v7200, %v7392
        %v7394 = vpop.f32.mrb[0].mxu0
        %v7395 = vadd.f32 %v7202, %v7394
        %7396 = vmatprep.mubr.bf16.mxu0 %v3090
        %7397 = vmatmul.mubr.bf16.gmra.mrb[0].mxu0 %v3089
        %v7398 = vpop.f32.mrb[0].mxu0
        %v7399 = vadd.f32 %v7206, %v7398
        %v7400 = vpop.f32.mrb[0].mxu0
        %v7401 = vadd.f32 %v7208, %v7400
        %v7402 = vpop.f32.mrb[0].mxu0
        %v7403 = vadd.f32 %v7210, %v7402
        %v7404 = vpop.f32.mrb[0].mxu0
        %v7405 = vadd.f32 %v7212, %v7404
        %7406 = vmatprep.mubr.bf16.mxu0 %v3118
        %7407 = vmatmul.mubr.bf16.gmra.mrb[0].mxu0 %v3117
        %v7408 = vpop.f32.mrb[0].mxu0
        %v7409 = vadd.f32 %v7216, %v7408
        %v7410 = vpop.f32.mrb[0].mxu0
        %v7411 = vadd.f32 %v7218, %v7410
        %v7412 = vpop.f32.mrb[0].mxu0
        %v7413 = vadd.f32 %v7220, %v7412
        %v7414 = vpop.f32.mrb[0].mxu0
        %v7415 = vadd.f32 %v7222, %v7414
        %7416 = vmatprep.mubr.bf16.mxu0 %v3146
        %7417 = vmatmul.mubr.bf16.gmra.mrb[0].mxu0 %v3145
        %v7418 = vpop.f32.mrb[0].mxu0
        %v7419 = vadd.f32 %v7226, %v7418
        %v7420 = vpop.f32.mrb[0].mxu0
        %v7421 = vadd.f32 %v7228, %v7420
        %v7422 = vpop.f32.mrb[0].mxu0
        %v7423 = vadd.f32 %v7230, %v7422
        %v7424 = vpop.f32.mrb[0].mxu0
        %v7425 = vadd.f32 %v7232, %v7424
        %7426 = vmatprep.mubr.bf16.mxu0 %v3174
        %7427 = vmatmul.mubr.bf16.gmra.mrb[0].mxu0 %v3173
        %v7428 = vpop.f32.mrb[0].mxu0
        %v7429 = vadd.f32 %v7236, %v7428
        %v7430 = vpop.f32.mrb[0].mxu0
        %v7431 = vadd.f32 %v7238, %v7430
        %v7432 = vpop.f32.mrb[0].mxu0
        %v7433 = vadd.f32 %v7240, %v7432
        %v7434 = vpop.f32.mrb[0].mxu0
        %v7435 = vadd.f32 %v7242, %v7434
        %7436 = vmatprep.mubr.bf16.mxu0 %v3202
        %7437 = vmatmul.mubr.bf16.gmra.mrb[0].mxu0 %v3201
        %v7438 = vpop.f32.mrb[0].mxu0
        %v7439 = vadd.f32 %v7246, %v7438
        %v7440 = vpop.f32.mrb[0].mxu0
        %v7441 = vadd.f32 %v7248, %v7440
        %v7442 = vpop.f32.mrb[0].mxu0
        %v7443 = vadd.f32 %v7250, %v7442
        %v7444 = vpop.f32.mrb[0].mxu0
        %v7445 = vadd.f32 %v7252, %v7444
        %7446 = vdwg.mxu0
        %7447 = vmatprep.subr.bf16.mxu0 %v5264
        %7448 = vmatpush1.bf16.msra.mxu0 %v5263
        %7449 = vmatprep.subr.bf16.mxu0 %v5266
        %7450 = vmatpush1.bf16.msra.mxu0 %v5265
        %7451 = vmatprep.subr.bf16.mxu0 %v5268
        %7452 = vmatpush1.bf16.msra.mxu0 %v5267
        %7453 = vmatprep.subr.bf16.mxu0 %v5270
        %7454 = vmatpush1.bf16.msra.mxu0 %v5269
        %7455 = vmatprep.subr.bf16.mxu0 %v5272
        %7456 = vmatpush1.bf16.msra.mxu0 %v5271
        %7457 = vmatprep.subr.bf16.mxu0 %v5274
        %7458 = vmatpush1.bf16.msra.mxu0 %v5273
        %7459 = vmatprep.subr.bf16.mxu0 %v5276
        %7460 = vmatpush1.bf16.msra.mxu0 %v5275
        %7461 = vmatprep.subr.bf16.mxu0 %v5278
        %7462 = vmatpush1.bf16.msra.mxu0 %v5277
        %7463 = vmatprep.subr.bf16.mxu0 %v5280
        %7464 = vmatpush1.bf16.msra.mxu0 %v5279
        %7465 = vmatprep.subr.bf16.mxu0 %v5282
        %7466 = vmatpush1.bf16.msra.mxu0 %v5281
        %7467 = vmatprep.subr.bf16.mxu0 %v5284
        %7468 = vmatpush1.bf16.msra.mxu0 %v5283
        %7469 = vmatprep.subr.bf16.mxu0 %v5286
        %7470 = vmatpush1.bf16.msra.mxu0 %v5285
        %7471 = vmatprep.subr.bf16.mxu0 %v5288
        %7472 = vmatpush1.bf16.msra.mxu0 %v5287
        %7473 = vmatprep.subr.bf16.mxu0 %v5290
        %7474 = vmatpush1.bf16.msra.mxu0 %v5289
        %7475 = vmatprep.subr.bf16.mxu0 %v5292
        %7476 = vmatpush1.bf16.msra.mxu0 %v5291
        %7477 = vmatprep.subr.bf16.mxu0 %v5294
        %7478 = vmatpush1.bf16.msra.mxu0 %v5293
        %7479 = vmatprep.mubr.bf16.mxu0 %v2784
        %7480 = vmatmul.mubr.bf16.gmra.mrb[0].mxu0 %v2783
        %v7481 = vpop.f32.mrb[0].mxu0
        %v7482 = vadd.f32 %v7289, %v7481
        %v7483 = vpop.f32.mrb[0].mxu0
        %v7484 = vadd.f32 %v7291, %v7483
        %v7485 = vpop.f32.mrb[0].mxu0
        %v7486 = vadd.f32 %v7293, %v7485
        %v7487 = vpop.f32.mrb[0].mxu0
        %v7488 = vadd.f32 %v7295, %v7487
        %7489 = vmatprep.mubr.bf16.mxu0 %v2812
        %7490 = vmatmul.mubr.bf16.gmra.mrb[0].mxu0 %v2811
        %v7491 = vpop.f32.mrb[0].mxu0
        %v7492 = vadd.f32 %v7299, %v7491
        %v7493 = vpop.f32.mrb[0].mxu0
        %v7494 = vadd.f32 %v7301, %v7493
        %v7495 = vpop.f32.mrb[0].mxu0
        %v7496 = vadd.f32 %v7303, %v7495
        %v7497 = vpop.f32.mrb[0].mxu0
        %v7498 = vadd.f32 %v7305, %v7497
        %7499 = vmatprep.mubr.bf16.mxu0 %v2840
        %7500 = vmatmul.mubr.bf16.gmra.mrb[0].mxu0 %v2839
        %v7501 = vpop.f32.mrb[0].mxu0
        %v7502 = vadd.f32 %v7309, %v7501
        %v7503 = vpop.f32.mrb[0].mxu0
        %v7504 = vadd.f32 %v7311, %v7503
        %v7505 = vpop.f32.mrb[0].mxu0
        %v7506 = vadd.f32 %v7313, %v7505
        %v7507 = vpop.f32.mrb[0].mxu0
        %v7508 = vadd.f32 %v7315, %v7507
        %7509 = vmatprep.mubr.bf16.mxu0 %v2868
        %7510 = vmatmul.mubr.bf16.gmra.mrb[0].mxu0 %v2867
        %v7511 = vpop.f32.mrb[0].mxu0
        %v7512 = vadd.f32 %v7319, %v7511
        %v7513 = vpop.f32.mrb[0].mxu0
        %v7514 = vadd.f32 %v7321, %v7513
        %v7515 = vpop.f32.mrb[0].mxu0
        %v7516 = vadd.f32 %v7323, %v7515
        %v7517 = vpop.f32.mrb[0].mxu0
        %v7518 = vadd.f32 %v7325, %v7517
        %7519 = vmatprep.mubr.bf16.mxu0 %v2896
        %7520 = vmatmul.mubr.bf16.gmra.mrb[0].mxu0 %v2895
        %v7521 = vpop.f32.mrb[0].mxu0
        %v7522 = vadd.f32 %v7329, %v7521
        %v7523 = vpop.f32.mrb[0].mxu0
        %v7524 = vadd.f32 %v7331, %v7523
        %v7525 = vpop.f32.mrb[0].mxu0
        %v7526 = vadd.f32 %v7333, %v7525
        %v7527 = vpop.f32.mrb[0].mxu0
        %v7528 = vadd.f32 %v7335, %v7527
        %7529 = vmatprep.mubr.bf16.mxu0 %v2924
        %7530 = vmatmul.mubr.bf16.gmra.mrb[0].mxu0 %v2923
        %v7531 = vpop.f32.mrb[0].mxu0
        %v7532 = vadd.f32 %v7339, %v7531
        %v7533 = vpop.f32.mrb[0].mxu0
        %v7534 = vadd.f32 %v7341, %v7533
        %v7535 = vpop.f32.mrb[0].mxu0
        %v7536 = vadd.f32 %v7343, %v7535
        %v7537 = vpop.f32.mrb[0].mxu0
        %v7538 = vadd.f32 %v7345, %v7537
        %7539 = vmatprep.mubr.bf16.mxu0 %v2952
        %7540 = vmatmul.mubr.bf16.gmra.mrb[0].mxu0 %v2951
        %v7541 = vpop.f32.mrb[0].mxu0
        %v7542 = vadd.f32 %v7349, %v7541
        %v7543 = vpop.f32.mrb[0].mxu0
        %v7544 = vadd.f32 %v7351, %v7543
        %v7545 = vpop.f32.mrb[0].mxu0
        %v7546 = vadd.f32 %v7353, %v7545
        %v7547 = vpop.f32.mrb[0].mxu0
        %v7548 = vadd.f32 %v7355, %v7547
        %7549 = vmatprep.mubr.bf16.mxu0 %v2980
        %7550 = vmatmul.mubr.bf16.gmra.mrb[0].mxu0 %v2979
        %v7551 = vpop.f32.mrb[0].mxu0
        %v7552 = vadd.f32 %v7359, %v7551
        %v7553 = vpop.f32.mrb[0].mxu0
        %v7554 = vadd.f32 %v7361, %v7553
        %v7555 = vpop.f32.mrb[0].mxu0
        %v7556 = vadd.f32 %v7363, %v7555
        %v7557 = vpop.f32.mrb[0].mxu0
        %v7558 = vadd.f32 %v7365, %v7557
        %7559 = vmatprep.mubr.bf16.mxu0 %v3008
        %7560 = vmatmul.mubr.bf16.gmra.mrb[0].mxu0 %v3007
        %v7561 = vpop.f32.mrb[0].mxu0
        %v7562 = vadd.f32 %v7369, %v7561
        %v7563 = vpop.f32.mrb[0].mxu0
        %v7564 = vadd.f32 %v7371, %v7563
        %v7565 = vpop.f32.mrb[0].mxu0
        %v7566 = vadd.f32 %v7373, %v7565
        %v7567 = vpop.f32.mrb[0].mxu0
        %v7568 = vadd.f32 %v7375, %v7567
        %7569 = vmatprep.mubr.bf16.mxu0 %v3036
        %7570 = vmatmul.mubr.bf16.gmra.mrb[0].mxu0 %v3035
        %v7571 = vpop.f32.mrb[0].mxu0
        %v7572 = vadd.f32 %v7379, %v7571
        %v7573 = vpop.f32.mrb[0].mxu0
        %v7574 = vadd.f32 %v7381, %v7573
        %v7575 = vpop.f32.mrb[0].mxu0
        %v7576 = vadd.f32 %v7383, %v7575
        %v7577 = vpop.f32.mrb[0].mxu0
        %v7578 = vadd.f32 %v7385, %v7577
        %7579 = vmatprep.mubr.bf16.mxu0 %v3064
        %7580 = vmatmul.mubr.bf16.gmra.mrb[0].mxu0 %v3063
        %v7581 = vpop.f32.mrb[0].mxu0
        %v7582 = vadd.f32 %v7389, %v7581
        %v7583 = vpop.f32.mrb[0].mxu0
        %v7584 = vadd.f32 %v7391, %v7583
        %v7585 = vpop.f32.mrb[0].mxu0
        %v7586 = vadd.f32 %v7393, %v7585
        %v7587 = vpop.f32.mrb[0].mxu0
        %v7588 = vadd.f32 %v7395, %v7587
        %7589 = vmatprep.mubr.bf16.mxu0 %v3092
        %7590 = vmatmul.mubr.bf16.gmra.mrb[0].mxu0 %v3091
        %v7591 = vpop.f32.mrb[0].mxu0
        %v7592 = vadd.f32 %v7399, %v7591
        %v7593 = vpop.f32.mrb[0].mxu0
        %v7594 = vadd.f32 %v7401, %v7593
        %v7595 = vpop.f32.mrb[0].mxu0
        %v7596 = vadd.f32 %v7403, %v7595
        %v7597 = vpop.f32.mrb[0].mxu0
        %v7598 = vadd.f32 %v7405, %v7597
        %7599 = vmatprep.mubr.bf16.mxu0 %v3120
        %7600 = vmatmul.mubr.bf16.gmra.mrb[0].mxu0 %v3119
        %v7601 = vpop.f32.mrb[0].mxu0
        %v7602 = vadd.f32 %v7409, %v7601
        %v7603 = vpop.f32.mrb[0].mxu0
        %v7604 = vadd.f32 %v7411, %v7603
        %v7605 = vpop.f32.mrb[0].mxu0
        %v7606 = vadd.f32 %v7413, %v7605
        %v7607 = vpop.f32.mrb[0].mxu0
        %v7608 = vadd.f32 %v7415, %v7607
        %7609 = vmatprep.mubr.bf16.mxu0 %v3148
        %7610 = vmatmul.mubr.bf16.gmra.mrb[0].mxu0 %v3147
        %v7611 = vpop.f32.mrb[0].mxu0
        %v7612 = vadd.f32 %v7419, %v7611
        %v7613 = vpop.f32.mrb[0].mxu0
        %v7614 = vadd.f32 %v7421, %v7613
        %v7615 = vpop.f32.mrb[0].mxu0
        %v7616 = vadd.f32 %v7423, %v7615
        %v7617 = vpop.f32.mrb[0].mxu0
        %v7618 = vadd.f32 %v7425, %v7617
        %7619 = vmatprep.mubr.bf16.mxu0 %v3176
        %7620 = vmatmul.mubr.bf16.gmra.mrb[0].mxu0 %v3175
        %v7621 = vpop.f32.mrb[0].mxu0
        %v7622 = vadd.f32 %v7429, %v7621
        %v7623 = vpop.f32.mrb[0].mxu0
        %v7624 = vadd.f32 %v7431, %v7623
        %v7625 = vpop.f32.mrb[0].mxu0
        %v7626 = vadd.f32 %v7433, %v7625
        %v7627 = vpop.f32.mrb[0].mxu0
        %v7628 = vadd.f32 %v7435, %v7627
        %7629 = vmatprep.mubr.bf16.mxu0 %v3204
        %7630 = vmatmul.mubr.bf16.gmra.mrb[0].mxu0 %v3203
        %v7631 = vpop.f32.mrb[0].mxu0
        %v7632 = vadd.f32 %v7439, %v7631
        %v7633 = vpop.f32.mrb[0].mxu0
        %v7634 = vadd.f32 %v7441, %v7633
        %v7635 = vpop.f32.mrb[0].mxu0
        %v7636 = vadd.f32 %v7443, %v7635
        %v7637 = vpop.f32.mrb[0].mxu0
        %v7638 = vadd.f32 %v7445, %v7637
        %7639 = vdwg.mxu0
        %7640 = vmatprep.subr.bf16.mxu0 %v5296
        %7641 = vmatpush1.bf16.msra.mxu0 %v5295
        %7642 = vmatprep.subr.bf16.mxu0 %v5298
        %7643 = vmatpush1.bf16.msra.mxu0 %v5297
        %7644 = vmatprep.subr.bf16.mxu0 %v5300
        %7645 = vmatpush1.bf16.msra.mxu0 %v5299
        %7646 = vmatprep.subr.bf16.mxu0 %v5302
        %7647 = vmatpush1.bf16.msra.mxu0 %v5301
        %7648 = vmatprep.subr.bf16.mxu0 %v5304
        %7649 = vmatpush1.bf16.msra.mxu0 %v5303
        %7650 = vmatprep.subr.bf16.mxu0 %v5306
        %7651 = vmatpush1.bf16.msra.mxu0 %v5305
        %7652 = vmatprep.subr.bf16.mxu0 %v5308
        %7653 = vmatpush1.bf16.msra.mxu0 %v5307
        %7654 = vmatprep.subr.bf16.mxu0 %v5310
        %7655 = vmatpush1.bf16.msra.mxu0 %v5309
        %7656 = vmatprep.subr.bf16.mxu0 %v5312
        %7657 = vmatpush1.bf16.msra.mxu0 %v5311
        %7658 = vmatprep.subr.bf16.mxu0 %v5314
        %7659 = vmatpush1.bf16.msra.mxu0 %v5313
        %7660 = vmatprep.subr.bf16.mxu0 %v5316
        %7661 = vmatpush1.bf16.msra.mxu0 %v5315
        %7662 = vmatprep.subr.bf16.mxu0 %v5318
        %7663 = vmatpush1.bf16.msra.mxu0 %v5317
        %7664 = vmatprep.subr.bf16.mxu0 %v5320
        %7665 = vmatpush1.bf16.msra.mxu0 %v5319
        %7666 = vmatprep.subr.bf16.mxu0 %v5322
        %7667 = vmatpush1.bf16.msra.mxu0 %v5321
        %7668 = vmatprep.subr.bf16.mxu0 %v5324
        %7669 = vmatpush1.bf16.msra.mxu0 %v5323
        %7670 = vmatprep.subr.bf16.mxu0 %v5326
        %7671 = vmatpush1.bf16.msra.mxu0 %v5325
        %7672 = vmatprep.mubr.bf16.mxu0 %v2786
        %7673 = vmatmul.mubr.bf16.gmra.mrb[0].mxu0 %v2785
        %v7674 = vpop.f32.mrb[0].mxu0
        %v7675 = vadd.f32 %v7482, %v7674
        %v7676 = vpop.f32.mrb[0].mxu0
        %v7677 = vadd.f32 %v7484, %v7676
        %v7678 = vpop.f32.mrb[0].mxu0
        %v7679 = vadd.f32 %v7486, %v7678
        %v7680 = vpop.f32.mrb[0].mxu0
        %v7681 = vadd.f32 %v7488, %v7680
        %7682 = vmatprep.mubr.bf16.mxu0 %v2814
        %7683 = vmatmul.mubr.bf16.gmra.mrb[0].mxu0 %v2813
        %v7684 = vpop.f32.mrb[0].mxu0
        %v7685 = vadd.f32 %v7492, %v7684
        %v7686 = vpop.f32.mrb[0].mxu0
        %v7687 = vadd.f32 %v7494, %v7686
        %v7688 = vpop.f32.mrb[0].mxu0
        %v7689 = vadd.f32 %v7496, %v7688
        %v7690 = vpop.f32.mrb[0].mxu0
        %v7691 = vadd.f32 %v7498, %v7690
        %7692 = vmatprep.mubr.bf16.mxu0 %v2842
        %7693 = vmatmul.mubr.bf16.gmra.mrb[0].mxu0 %v2841
        %v7694 = vpop.f32.mrb[0].mxu0
        %v7695 = vadd.f32 %v7502, %v7694
        %v7696 = vpop.f32.mrb[0].mxu0
        %v7697 = vadd.f32 %v7504, %v7696
        %v7698 = vpop.f32.mrb[0].mxu0
        %v7699 = vadd.f32 %v7506, %v7698
        %v7700 = vpop.f32.mrb[0].mxu0
        %v7701 = vadd.f32 %v7508, %v7700
        %7702 = vmatprep.mubr.bf16.mxu0 %v2870
        %7703 = vmatmul.mubr.bf16.gmra.mrb[0].mxu0 %v2869
        %v7704 = vpop.f32.mrb[0].mxu0
        %v7705 = vadd.f32 %v7512, %v7704
        %v7706 = vpop.f32.mrb[0].mxu0
        %v7707 = vadd.f32 %v7514, %v7706
        %v7708 = vpop.f32.mrb[0].mxu0
        %v7709 = vadd.f32 %v7516, %v7708
        %v7710 = vpop.f32.mrb[0].mxu0
        %v7711 = vadd.f32 %v7518, %v7710
        %7712 = vmatprep.mubr.bf16.mxu0 %v2898
        %7713 = vmatmul.mubr.bf16.gmra.mrb[0].mxu0 %v2897
        %v7714 = vpop.f32.mrb[0].mxu0
        %v7715 = vadd.f32 %v7522, %v7714
        %v7716 = vpop.f32.mrb[0].mxu0
        %v7717 = vadd.f32 %v7524, %v7716
        %v7718 = vpop.f32.mrb[0].mxu0
        %v7719 = vadd.f32 %v7526, %v7718
        %v7720 = vpop.f32.mrb[0].mxu0
        %v7721 = vadd.f32 %v7528, %v7720
        %7722 = vmatprep.mubr.bf16.mxu0 %v2926
        %7723 = vmatmul.mubr.bf16.gmra.mrb[0].mxu0 %v2925
        %v7724 = vpop.f32.mrb[0].mxu0
        %v7725 = vadd.f32 %v7532, %v7724
        %v7726 = vpop.f32.mrb[0].mxu0
        %v7727 = vadd.f32 %v7534, %v7726
        %v7728 = vpop.f32.mrb[0].mxu0
        %v7729 = vadd.f32 %v7536, %v7728
        %v7730 = vpop.f32.mrb[0].mxu0
        %v7731 = vadd.f32 %v7538, %v7730
        %7732 = vmatprep.mubr.bf16.mxu0 %v2954
        %7733 = vmatmul.mubr.bf16.gmra.mrb[0].mxu0 %v2953
        %v7734 = vpop.f32.mrb[0].mxu0
        %v7735 = vadd.f32 %v7542, %v7734
        %v7736 = vpop.f32.mrb[0].mxu0
        %v7737 = vadd.f32 %v7544, %v7736
        %v7738 = vpop.f32.mrb[0].mxu0
        %v7739 = vadd.f32 %v7546, %v7738
        %v7740 = vpop.f32.mrb[0].mxu0
        %v7741 = vadd.f32 %v7548, %v7740
        %7742 = vmatprep.mubr.bf16.mxu0 %v2982
        %7743 = vmatmul.mubr.bf16.gmra.mrb[0].mxu0 %v2981
        %v7744 = vpop.f32.mrb[0].mxu0
        %v7745 = vadd.f32 %v7552, %v7744
        %v7746 = vpop.f32.mrb[0].mxu0
        %v7747 = vadd.f32 %v7554, %v7746
        %v7748 = vpop.f32.mrb[0].mxu0
        %v7749 = vadd.f32 %v7556, %v7748
        %v7750 = vpop.f32.mrb[0].mxu0
        %v7751 = vadd.f32 %v7558, %v7750
        %7752 = vmatprep.mubr.bf16.mxu0 %v3010
        %7753 = vmatmul.mubr.bf16.gmra.mrb[0].mxu0 %v3009
        %v7754 = vpop.f32.mrb[0].mxu0
        %v7755 = vadd.f32 %v7562, %v7754
        %v7756 = vpop.f32.mrb[0].mxu0
        %v7757 = vadd.f32 %v7564, %v7756
        %v7758 = vpop.f32.mrb[0].mxu0
        %v7759 = vadd.f32 %v7566, %v7758
        %v7760 = vpop.f32.mrb[0].mxu0
        %v7761 = vadd.f32 %v7568, %v7760
        %7762 = vmatprep.mubr.bf16.mxu0 %v3038
        %7763 = vmatmul.mubr.bf16.gmra.mrb[0].mxu0 %v3037
        %v7764 = vpop.f32.mrb[0].mxu0
        %v7765 = vadd.f32 %v7572, %v7764
        %v7766 = vpop.f32.mrb[0].mxu0
        %v7767 = vadd.f32 %v7574, %v7766
        %v7768 = vpop.f32.mrb[0].mxu0
        %v7769 = vadd.f32 %v7576, %v7768
        %v7770 = vpop.f32.mrb[0].mxu0
        %v7771 = vadd.f32 %v7578, %v7770
        %7772 = vmatprep.mubr.bf16.mxu0 %v3066
        %7773 = vmatmul.mubr.bf16.gmra.mrb[0].mxu0 %v3065
        %v7774 = vpop.f32.mrb[0].mxu0
        %v7775 = vadd.f32 %v7582, %v7774
        %v7776 = vpop.f32.mrb[0].mxu0
        %v7777 = vadd.f32 %v7584, %v7776
        %v7778 = vpop.f32.mrb[0].mxu0
        %v7779 = vadd.f32 %v7586, %v7778
        %v7780 = vpop.f32.mrb[0].mxu0
        %v7781 = vadd.f32 %v7588, %v7780
        %7782 = vmatprep.mubr.bf16.mxu0 %v3094
        %7783 = vmatmul.mubr.bf16.gmra.mrb[0].mxu0 %v3093
        %v7784 = vpop.f32.mrb[0].mxu0
        %v7785 = vadd.f32 %v7592, %v7784
        %v7786 = vpop.f32.mrb[0].mxu0
        %v7787 = vadd.f32 %v7594, %v7786
        %v7788 = vpop.f32.mrb[0].mxu0
        %v7789 = vadd.f32 %v7596, %v7788
        %v7790 = vpop.f32.mrb[0].mxu0
        %v7791 = vadd.f32 %v7598, %v7790
        %7792 = vmatprep.mubr.bf16.mxu0 %v3122
        %7793 = vmatmul.mubr.bf16.gmra.mrb[0].mxu0 %v3121
        %v7794 = vpop.f32.mrb[0].mxu0
        %v7795 = vadd.f32 %v7602, %v7794
        %v7796 = vpop.f32.mrb[0].mxu0
        %v7797 = vadd.f32 %v7604, %v7796
        %v7798 = vpop.f32.mrb[0].mxu0
        %v7799 = vadd.f32 %v7606, %v7798
        %v7800 = vpop.f32.mrb[0].mxu0
        %v7801 = vadd.f32 %v7608, %v7800
        %7802 = vmatprep.mubr.bf16.mxu0 %v3150
        %7803 = vmatmul.mubr.bf16.gmra.mrb[0].mxu0 %v3149
        %v7804 = vpop.f32.mrb[0].mxu0
        %v7805 = vadd.f32 %v7612, %v7804
        %v7806 = vpop.f32.mrb[0].mxu0
        %v7807 = vadd.f32 %v7614, %v7806
        %v7808 = vpop.f32.mrb[0].mxu0
        %v7809 = vadd.f32 %v7616, %v7808
        %v7810 = vpop.f32.mrb[0].mxu0
        %v7811 = vadd.f32 %v7618, %v7810
        %7812 = vmatprep.mubr.bf16.mxu0 %v3178
        %7813 = vmatmul.mubr.bf16.gmra.mrb[0].mxu0 %v3177
        %v7814 = vpop.f32.mrb[0].mxu0
        %v7815 = vadd.f32 %v7622, %v7814
        %v7816 = vpop.f32.mrb[0].mxu0
        %v7817 = vadd.f32 %v7624, %v7816
        %v7818 = vpop.f32.mrb[0].mxu0
        %v7819 = vadd.f32 %v7626, %v7818
        %v7820 = vpop.f32.mrb[0].mxu0
        %v7821 = vadd.f32 %v7628, %v7820
        %7822 = vmatprep.mubr.bf16.mxu0 %v3206
        %7823 = vmatmul.mubr.bf16.gmra.mrb[0].mxu0 %v3205
        %v7824 = vpop.f32.mrb[0].mxu0
        %v7825 = vadd.f32 %v7632, %v7824
        %v7826 = vpop.f32.mrb[0].mxu0
        %v7827 = vadd.f32 %v7634, %v7826
        %v7828 = vpop.f32.mrb[0].mxu0
        %v7829 = vadd.f32 %v7636, %v7828
        %v7830 = vpop.f32.mrb[0].mxu0
        %v7831 = vadd.f32 %v7638, %v7830
        %7832 = vdwg.mxu0
        %7833 = vmatprep.subr.bf16.mxu0 %v5328
        %7834 = vmatpush1.bf16.msra.mxu0 %v5327
        %7835 = vmatprep.subr.bf16.mxu0 %v5330
        %7836 = vmatpush1.bf16.msra.mxu0 %v5329
        %7837 = vmatprep.subr.bf16.mxu0 %v5332
        %7838 = vmatpush1.bf16.msra.mxu0 %v5331
        %7839 = vmatprep.subr.bf16.mxu0 %v5334
        %7840 = vmatpush1.bf16.msra.mxu0 %v5333
        %7841 = vmatprep.subr.bf16.mxu0 %v5336
        %7842 = vmatpush1.bf16.msra.mxu0 %v5335
        %7843 = vmatprep.subr.bf16.mxu0 %v5338
        %7844 = vmatpush1.bf16.msra.mxu0 %v5337
        %7845 = vmatprep.subr.bf16.mxu0 %v5340
        %7846 = vmatpush1.bf16.msra.mxu0 %v5339
        %7847 = vmatprep.subr.bf16.mxu0 %v5342
        %7848 = vmatpush1.bf16.msra.mxu0 %v5341
        %7849 = vmatprep.subr.bf16.mxu0 %v5344
        %7850 = vmatpush1.bf16.msra.mxu0 %v5343
        %7851 = vmatprep.subr.bf16.mxu0 %v5346
        %7852 = vmatpush1.bf16.msra.mxu0 %v5345
        %7853 = vmatprep.subr.bf16.mxu0 %v5348
        %7854 = vmatpush1.bf16.msra.mxu0 %v5347
        %7855 = vmatprep.subr.bf16.mxu0 %v5350
        %7856 = vmatpush1.bf16.msra.mxu0 %v5349
        %7857 = vmatprep.subr.bf16.mxu0 %v5352
        %7858 = vmatpush1.bf16.msra.mxu0 %v5351
        %7859 = vmatprep.subr.bf16.mxu0 %v5354
        %7860 = vmatpush1.bf16.msra.mxu0 %v5353
        %7861 = vmatprep.subr.bf16.mxu0 %v5356
        %7862 = vmatpush1.bf16.msra.mxu0 %v5355
        %7863 = vmatprep.subr.bf16.mxu0 %v5358
        %7864 = vmatpush1.bf16.msra.mxu0 %v5357
        %7865 = vmatprep.mubr.bf16.mxu0 %v2788
        %7866 = vmatmul.mubr.bf16.gmra.mrb[0].mxu0 %v2787
        %v7867 = vpop.f32.mrb[0].mxu0
        %v7868 = vadd.f32 %v7675, %v7867
        %v7869 = vpop.f32.mrb[0].mxu0
        %v7870 = vadd.f32 %v7677, %v7869
        %v7871 = vpop.f32.mrb[0].mxu0
        %v7872 = vadd.f32 %v7679, %v7871
        %v7873 = vpop.f32.mrb[0].mxu0
        %v7874 = vadd.f32 %v7681, %v7873
        %7875 = vmatprep.mubr.bf16.mxu0 %v2816
        %7876 = vmatmul.mubr.bf16.gmra.mrb[0].mxu0 %v2815
        %v7877 = vpop.f32.mrb[0].mxu0
        %v7878 = vadd.f32 %v7685, %v7877
        %v7879 = vpop.f32.mrb[0].mxu0
        %v7880 = vadd.f32 %v7687, %v7879
        %v7881 = vpop.f32.mrb[0].mxu0
        %v7882 = vadd.f32 %v7689, %v7881
        %v7883 = vpop.f32.mrb[0].mxu0
        %v7884 = vadd.f32 %v7691, %v7883
        %7885 = vmatprep.mubr.bf16.mxu0 %v2844
        %7886 = vmatmul.mubr.bf16.gmra.mrb[0].mxu0 %v2843
        %v7887 = vpop.f32.mrb[0].mxu0
        %v7888 = vadd.f32 %v7695, %v7887
        %v7889 = vpop.f32.mrb[0].mxu0
        %v7890 = vadd.f32 %v7697, %v7889
        %v7891 = vpop.f32.mrb[0].mxu0
        %v7892 = vadd.f32 %v7699, %v7891
        %v7893 = vpop.f32.mrb[0].mxu0
        %v7894 = vadd.f32 %v7701, %v7893
        %7895 = vmatprep.mubr.bf16.mxu0 %v2872
        %7896 = vmatmul.mubr.bf16.gmra.mrb[0].mxu0 %v2871
        %v7897 = vpop.f32.mrb[0].mxu0
        %v7898 = vadd.f32 %v7705, %v7897
        %v7899 = vpop.f32.mrb[0].mxu0
        %v7900 = vadd.f32 %v7707, %v7899
        %v7901 = vpop.f32.mrb[0].mxu0
        %v7902 = vadd.f32 %v7709, %v7901
        %v7903 = vpop.f32.mrb[0].mxu0
        %v7904 = vadd.f32 %v7711, %v7903
        %7905 = vmatprep.mubr.bf16.mxu0 %v2900
        %7906 = vmatmul.mubr.bf16.gmra.mrb[0].mxu0 %v2899
        %v7907 = vpop.f32.mrb[0].mxu0
        %v7908 = vadd.f32 %v7715, %v7907
        %v7909 = vpop.f32.mrb[0].mxu0
        %v7910 = vadd.f32 %v7717, %v7909
        %v7911 = vpop.f32.mrb[0].mxu0
        %v7912 = vadd.f32 %v7719, %v7911
        %v7913 = vpop.f32.mrb[0].mxu0
        %v7914 = vadd.f32 %v7721, %v7913
        %7915 = vmatprep.mubr.bf16.mxu0 %v2928
        %7916 = vmatmul.mubr.bf16.gmra.mrb[0].mxu0 %v2927
        %v7917 = vpop.f32.mrb[0].mxu0
        %v7918 = vadd.f32 %v7725, %v7917
        %v7919 = vpop.f32.mrb[0].mxu0
        %v7920 = vadd.f32 %v7727, %v7919
        %v7921 = vpop.f32.mrb[0].mxu0
        %v7922 = vadd.f32 %v7729, %v7921
        %v7923 = vpop.f32.mrb[0].mxu0
        %v7924 = vadd.f32 %v7731, %v7923
        %7925 = vmatprep.mubr.bf16.mxu0 %v2956
        %7926 = vmatmul.mubr.bf16.gmra.mrb[0].mxu0 %v2955
        %v7927 = vpop.f32.mrb[0].mxu0
        %v7928 = vadd.f32 %v7735, %v7927
        %v7929 = vpop.f32.mrb[0].mxu0
        %v7930 = vadd.f32 %v7737, %v7929
        %v7931 = vpop.f32.mrb[0].mxu0
        %v7932 = vadd.f32 %v7739, %v7931
        %v7933 = vpop.f32.mrb[0].mxu0
        %v7934 = vadd.f32 %v7741, %v7933
        %7935 = vmatprep.mubr.bf16.mxu0 %v2984
        %7936 = vmatmul.mubr.bf16.gmra.mrb[0].mxu0 %v2983
        %v7937 = vpop.f32.mrb[0].mxu0
        %v7938 = vadd.f32 %v7745, %v7937
        %v7939 = vpop.f32.mrb[0].mxu0
        %v7940 = vadd.f32 %v7747, %v7939
        %v7941 = vpop.f32.mrb[0].mxu0
        %v7942 = vadd.f32 %v7749, %v7941
        %v7943 = vpop.f32.mrb[0].mxu0
        %v7944 = vadd.f32 %v7751, %v7943
        %7945 = vmatprep.mubr.bf16.mxu0 %v3012
        %7946 = vmatmul.mubr.bf16.gmra.mrb[0].mxu0 %v3011
        %v7947 = vpop.f32.mrb[0].mxu0
        %v7948 = vadd.f32 %v7755, %v7947
        %v7949 = vpop.f32.mrb[0].mxu0
        %v7950 = vadd.f32 %v7757, %v7949
        %v7951 = vpop.f32.mrb[0].mxu0
        %v7952 = vadd.f32 %v7759, %v7951
        %v7953 = vpop.f32.mrb[0].mxu0
        %v7954 = vadd.f32 %v7761, %v7953
        %7955 = vmatprep.mubr.bf16.mxu0 %v3040
        %7956 = vmatmul.mubr.bf16.gmra.mrb[0].mxu0 %v3039
        %v7957 = vpop.f32.mrb[0].mxu0
        %v7958 = vadd.f32 %v7765, %v7957
        %v7959 = vpop.f32.mrb[0].mxu0
        %v7960 = vadd.f32 %v7767, %v7959
        %v7961 = vpop.f32.mrb[0].mxu0
        %v7962 = vadd.f32 %v7769, %v7961
        %v7963 = vpop.f32.mrb[0].mxu0
        %v7964 = vadd.f32 %v7771, %v7963
        %7965 = vmatprep.mubr.bf16.mxu0 %v3068
        %7966 = vmatmul.mubr.bf16.gmra.mrb[0].mxu0 %v3067
        %v7967 = vpop.f32.mrb[0].mxu0
        %v7968 = vadd.f32 %v7775, %v7967
        %v7969 = vpop.f32.mrb[0].mxu0
        %v7970 = vadd.f32 %v7777, %v7969
        %v7971 = vpop.f32.mrb[0].mxu0
        %v7972 = vadd.f32 %v7779, %v7971
        %v7973 = vpop.f32.mrb[0].mxu0
        %v7974 = vadd.f32 %v7781, %v7973
        %7975 = vmatprep.mubr.bf16.mxu0 %v3096
        %7976 = vmatmul.mubr.bf16.gmra.mrb[0].mxu0 %v3095
        %v7977 = vpop.f32.mrb[0].mxu0
        %v7978 = vadd.f32 %v7785, %v7977
        %v7979 = vpop.f32.mrb[0].mxu0
        %v7980 = vadd.f32 %v7787, %v7979
        %v7981 = vpop.f32.mrb[0].mxu0
        %v7982 = vadd.f32 %v7789, %v7981
        %v7983 = vpop.f32.mrb[0].mxu0
        %v7984 = vadd.f32 %v7791, %v7983
        %7985 = vmatprep.mubr.bf16.mxu0 %v3124
        %7986 = vmatmul.mubr.bf16.gmra.mrb[0].mxu0 %v3123
        %v7987 = vpop.f32.mrb[0].mxu0
        %v7988 = vadd.f32 %v7795, %v7987
        %v7989 = vpop.f32.mrb[0].mxu0
        %v7990 = vadd.f32 %v7797, %v7989
        %v7991 = vpop.f32.mrb[0].mxu0
        %v7992 = vadd.f32 %v7799, %v7991
        %v7993 = vpop.f32.mrb[0].mxu0
        %v7994 = vadd.f32 %v7801, %v7993
        %7995 = vmatprep.mubr.bf16.mxu0 %v3152
        %7996 = vmatmul.mubr.bf16.gmra.mrb[0].mxu0 %v3151
        %v7997 = vpop.f32.mrb[0].mxu0
        %v7998 = vadd.f32 %v7805, %v7997
        %v7999 = vpop.f32.mrb[0].mxu0
        %v8000 = vadd.f32 %v7807, %v7999
        %v8001 = vpop.f32.mrb[0].mxu0
        %v8002 = vadd.f32 %v7809, %v8001
        %v8003 = vpop.f32.mrb[0].mxu0
        %v8004 = vadd.f32 %v7811, %v8003
        %8005 = vmatprep.mubr.bf16.mxu0 %v3180
        %8006 = vmatmul.mubr.bf16.gmra.mrb[0].mxu0 %v3179
        %v8007 = vpop.f32.mrb[0].mxu0
        %v8008 = vadd.f32 %v7815, %v8007
        %v8009 = vpop.f32.mrb[0].mxu0
        %v8010 = vadd.f32 %v7817, %v8009
        %v8011 = vpop.f32.mrb[0].mxu0
        %v8012 = vadd.f32 %v7819, %v8011
        %v8013 = vpop.f32.mrb[0].mxu0
        %v8014 = vadd.f32 %v7821, %v8013
        %8015 = vmatprep.mubr.bf16.mxu0 %v3208
        %8016 = vmatmul.mubr.bf16.gmra.mrb[0].mxu0 %v3207
        %v8017 = vpop.f32.mrb[0].mxu0
        %v8018 = vadd.f32 %v7825, %v8017
        %v8019 = vpop.f32.mrb[0].mxu0
        %v8020 = vadd.f32 %v7827, %v8019
        %v8021 = vpop.f32.mrb[0].mxu0
        %v8022 = vadd.f32 %v7829, %v8021
        %v8023 = vpop.f32.mrb[0].mxu0
        %v8024 = vadd.f32 %v7831, %v8023
        %8025 = vdwg.mxu0
        %8026 = vmatprep.subr.bf16.mxu0 %v5360
        %8027 = vmatpush1.bf16.msra.mxu0 %v5359
        %8028 = vmatprep.subr.bf16.mxu0 %v5362
        %8029 = vmatpush1.bf16.msra.mxu0 %v5361
        %8030 = vmatprep.subr.bf16.mxu0 %v5364
        %8031 = vmatpush1.bf16.msra.mxu0 %v5363
        %8032 = vmatprep.subr.bf16.mxu0 %v5366
        %8033 = vmatpush1.bf16.msra.mxu0 %v5365
        %8034 = vmatprep.subr.bf16.mxu0 %v5368
        %8035 = vmatpush1.bf16.msra.mxu0 %v5367
        %8036 = vmatprep.subr.bf16.mxu0 %v5370
        %8037 = vmatpush1.bf16.msra.mxu0 %v5369
        %8038 = vmatprep.subr.bf16.mxu0 %v5372
        %8039 = vmatpush1.bf16.msra.mxu0 %v5371
        %8040 = vmatprep.subr.bf16.mxu0 %v5374
        %8041 = vmatpush1.bf16.msra.mxu0 %v5373
        %8042 = vmatprep.subr.bf16.mxu0 %v5376
        %8043 = vmatpush1.bf16.msra.mxu0 %v5375
        %8044 = vmatprep.subr.bf16.mxu0 %v5378
        %8045 = vmatpush1.bf16.msra.mxu0 %v5377
        %8046 = vmatprep.subr.bf16.mxu0 %v5380
        %8047 = vmatpush1.bf16.msra.mxu0 %v5379
        %8048 = vmatprep.subr.bf16.mxu0 %v5382
        %8049 = vmatpush1.bf16.msra.mxu0 %v5381
        %8050 = vmatprep.subr.bf16.mxu0 %v5384
        %8051 = vmatpush1.bf16.msra.mxu0 %v5383
        %8052 = vmatprep.subr.bf16.mxu0 %v5386
        %8053 = vmatpush1.bf16.msra.mxu0 %v5385
        %8054 = vmatprep.subr.bf16.mxu0 %v5388
        %8055 = vmatpush1.bf16.msra.mxu0 %v5387
        %8056 = vmatprep.subr.bf16.mxu0 %v5390
        %8057 = vmatpush1.bf16.msra.mxu0 %v5389
        %8058 = vmatprep.mubr.bf16.mxu0 %v2790
        %8059 = vmatmul.mubr.bf16.gmra.mrb[0].mxu0 %v2789
        %v8060 = vpop.f32.mrb[0].mxu0
        %v8061 = vadd.f32 %v7868, %v8060
        %v8062 = vpop.f32.mrb[0].mxu0
        %v8063 = vadd.f32 %v7870, %v8062
        %v8064 = vpop.f32.mrb[0].mxu0
        %v8065 = vadd.f32 %v7872, %v8064
        %v8066 = vpop.f32.mrb[0].mxu0
        %v8067 = vadd.f32 %v7874, %v8066
        %8068 = vmatprep.mubr.bf16.mxu0 %v2818
        %8069 = vmatmul.mubr.bf16.gmra.mrb[0].mxu0 %v2817
        %v8070 = vpop.f32.mrb[0].mxu0
        %v8071 = vadd.f32 %v7878, %v8070
        %v8072 = vpop.f32.mrb[0].mxu0
        %v8073 = vadd.f32 %v7880, %v8072
        %v8074 = vpop.f32.mrb[0].mxu0
        %v8075 = vadd.f32 %v7882, %v8074
        %v8076 = vpop.f32.mrb[0].mxu0
        %v8077 = vadd.f32 %v7884, %v8076
        %8078 = vmatprep.mubr.bf16.mxu0 %v2846
        %8079 = vmatmul.mubr.bf16.gmra.mrb[0].mxu0 %v2845
        %v8080 = vpop.f32.mrb[0].mxu0
        %v8081 = vadd.f32 %v7888, %v8080
        %v8082 = vpop.f32.mrb[0].mxu0
        %v8083 = vadd.f32 %v7890, %v8082
        %v8084 = vpop.f32.mrb[0].mxu0
        %v8085 = vadd.f32 %v7892, %v8084
        %v8086 = vpop.f32.mrb[0].mxu0
        %v8087 = vadd.f32 %v7894, %v8086
        %8088 = vmatprep.mubr.bf16.mxu0 %v2874
        %8089 = vmatmul.mubr.bf16.gmra.mrb[0].mxu0 %v2873
        %v8090 = vpop.f32.mrb[0].mxu0
        %v8091 = vadd.f32 %v7898, %v8090
        %v8092 = vpop.f32.mrb[0].mxu0
        %v8093 = vadd.f32 %v7900, %v8092
        %v8094 = vpop.f32.mrb[0].mxu0
        %v8095 = vadd.f32 %v7902, %v8094
        %v8096 = vpop.f32.mrb[0].mxu0
        %v8097 = vadd.f32 %v7904, %v8096
        %8098 = vmatprep.mubr.bf16.mxu0 %v2902
        %8099 = vmatmul.mubr.bf16.gmra.mrb[0].mxu0 %v2901
        %v8100 = vpop.f32.mrb[0].mxu0
        %v8101 = vadd.f32 %v7908, %v8100
        %v8102 = vpop.f32.mrb[0].mxu0
        %v8103 = vadd.f32 %v7910, %v8102
        %v8104 = vpop.f32.mrb[0].mxu0
        %v8105 = vadd.f32 %v7912, %v8104
        %v8106 = vpop.f32.mrb[0].mxu0
        %v8107 = vadd.f32 %v7914, %v8106
        %8108 = vmatprep.mubr.bf16.mxu0 %v2930
        %8109 = vmatmul.mubr.bf16.gmra.mrb[0].mxu0 %v2929
        %v8110 = vpop.f32.mrb[0].mxu0
        %v8111 = vadd.f32 %v7918, %v8110
        %v8112 = vpop.f32.mrb[0].mxu0
        %v8113 = vadd.f32 %v7920, %v8112
        %v8114 = vpop.f32.mrb[0].mxu0
        %v8115 = vadd.f32 %v7922, %v8114
        %v8116 = vpop.f32.mrb[0].mxu0
        %v8117 = vadd.f32 %v7924, %v8116
        %8118 = vmatprep.mubr.bf16.mxu0 %v2958
        %8119 = vmatmul.mubr.bf16.gmra.mrb[0].mxu0 %v2957
        %v8120 = vpop.f32.mrb[0].mxu0
        %v8121 = vadd.f32 %v7928, %v8120
        %v8122 = vpop.f32.mrb[0].mxu0
        %v8123 = vadd.f32 %v7930, %v8122
        %v8124 = vpop.f32.mrb[0].mxu0
        %v8125 = vadd.f32 %v7932, %v8124
        %v8126 = vpop.f32.mrb[0].mxu0
        %v8127 = vadd.f32 %v7934, %v8126
        %8128 = vmatprep.mubr.bf16.mxu0 %v2986
        %8129 = vmatmul.mubr.bf16.gmra.mrb[0].mxu0 %v2985
        %v8130 = vpop.f32.mrb[0].mxu0
        %v8131 = vadd.f32 %v7938, %v8130
        %v8132 = vpop.f32.mrb[0].mxu0
        %v8133 = vadd.f32 %v7940, %v8132
        %v8134 = vpop.f32.mrb[0].mxu0
        %v8135 = vadd.f32 %v7942, %v8134
        %v8136 = vpop.f32.mrb[0].mxu0
        %v8137 = vadd.f32 %v7944, %v8136
        %8138 = vmatprep.mubr.bf16.mxu0 %v3014
        %8139 = vmatmul.mubr.bf16.gmra.mrb[0].mxu0 %v3013
        %v8140 = vpop.f32.mrb[0].mxu0
        %v8141 = vadd.f32 %v7948, %v8140
        %v8142 = vpop.f32.mrb[0].mxu0
        %v8143 = vadd.f32 %v7950, %v8142
        %v8144 = vpop.f32.mrb[0].mxu0
        %v8145 = vadd.f32 %v7952, %v8144
        %v8146 = vpop.f32.mrb[0].mxu0
        %v8147 = vadd.f32 %v7954, %v8146
        %8148 = vmatprep.mubr.bf16.mxu0 %v3042
        %8149 = vmatmul.mubr.bf16.gmra.mrb[0].mxu0 %v3041
        %v8150 = vpop.f32.mrb[0].mxu0
        %v8151 = vadd.f32 %v7958, %v8150
        %v8152 = vpop.f32.mrb[0].mxu0
        %v8153 = vadd.f32 %v7960, %v8152
        %v8154 = vpop.f32.mrb[0].mxu0
        %v8155 = vadd.f32 %v7962, %v8154
        %v8156 = vpop.f32.mrb[0].mxu0
        %v8157 = vadd.f32 %v7964, %v8156
        %8158 = vmatprep.mubr.bf16.mxu0 %v3070
        %8159 = vmatmul.mubr.bf16.gmra.mrb[0].mxu0 %v3069
        %v8160 = vpop.f32.mrb[0].mxu0
        %v8161 = vadd.f32 %v7968, %v8160
        %v8162 = vpop.f32.mrb[0].mxu0
        %v8163 = vadd.f32 %v7970, %v8162
        %v8164 = vpop.f32.mrb[0].mxu0
        %v8165 = vadd.f32 %v7972, %v8164
        %v8166 = vpop.f32.mrb[0].mxu0
        %v8167 = vadd.f32 %v7974, %v8166
        %8168 = vmatprep.mubr.bf16.mxu0 %v3098
        %8169 = vmatmul.mubr.bf16.gmra.mrb[0].mxu0 %v3097
        %v8170 = vpop.f32.mrb[0].mxu0
        %v8171 = vadd.f32 %v7978, %v8170
        %v8172 = vpop.f32.mrb[0].mxu0
        %v8173 = vadd.f32 %v7980, %v8172
        %v8174 = vpop.f32.mrb[0].mxu0
        %v8175 = vadd.f32 %v7982, %v8174
        %v8176 = vpop.f32.mrb[0].mxu0
        %v8177 = vadd.f32 %v7984, %v8176
        %8178 = vmatprep.mubr.bf16.mxu0 %v3126
        %8179 = vmatmul.mubr.bf16.gmra.mrb[0].mxu0 %v3125
        %v8180 = vpop.f32.mrb[0].mxu0
        %v8181 = vadd.f32 %v7988, %v8180
        %v8182 = vpop.f32.mrb[0].mxu0
        %v8183 = vadd.f32 %v7990, %v8182
        %v8184 = vpop.f32.mrb[0].mxu0
        %v8185 = vadd.f32 %v7992, %v8184
        %v8186 = vpop.f32.mrb[0].mxu0
        %v8187 = vadd.f32 %v7994, %v8186
        %8188 = vmatprep.mubr.bf16.mxu0 %v3154
        %8189 = vmatmul.mubr.bf16.gmra.mrb[0].mxu0 %v3153
        %v8190 = vpop.f32.mrb[0].mxu0
        %v8191 = vadd.f32 %v7998, %v8190
        %v8192 = vpop.f32.mrb[0].mxu0
        %v8193 = vadd.f32 %v8000, %v8192
        %v8194 = vpop.f32.mrb[0].mxu0
        %v8195 = vadd.f32 %v8002, %v8194
        %v8196 = vpop.f32.mrb[0].mxu0
        %v8197 = vadd.f32 %v8004, %v8196
        %8198 = vmatprep.mubr.bf16.mxu0 %v3182
        %8199 = vmatmul.mubr.bf16.gmra.mrb[0].mxu0 %v3181
        %v8200 = vpop.f32.mrb[0].mxu0
        %v8201 = vadd.f32 %v8008, %v8200
        %v8202 = vpop.f32.mrb[0].mxu0
        %v8203 = vadd.f32 %v8010, %v8202
        %v8204 = vpop.f32.mrb[0].mxu0
        %v8205 = vadd.f32 %v8012, %v8204
        %v8206 = vpop.f32.mrb[0].mxu0
        %v8207 = vadd.f32 %v8014, %v8206
        %8208 = vmatprep.mubr.bf16.mxu0 %v3210
        %8209 = vmatmul.mubr.bf16.gmra.mrb[0].mxu0 %v3209
        %v8210 = vpop.f32.mrb[0].mxu0
        %v8211 = vadd.f32 %v8018, %v8210
        %v8212 = vpop.f32.mrb[0].mxu0
        %v8213 = vadd.f32 %v8020, %v8212
        %v8214 = vpop.f32.mrb[0].mxu0
        %v8215 = vadd.f32 %v8022, %v8214
        %v8216 = vpop.f32.mrb[0].mxu0
        %v8217 = vadd.f32 %v8024, %v8216
        %8218 = vdwg.mxu0
        %8219 = vmatprep.subr.bf16.mxu0 %v5392
        %8220 = vmatpush1.bf16.msra.mxu0 %v5391
        %8221 = vmatprep.subr.bf16.mxu0 %v5394
        %8222 = vmatpush1.bf16.msra.mxu0 %v5393
        %8223 = vmatprep.subr.bf16.mxu0 %v5396
        %8224 = vmatpush1.bf16.msra.mxu0 %v5395
        %8225 = vmatprep.subr.bf16.mxu0 %v5398
        %8226 = vmatpush1.bf16.msra.mxu0 %v5397
        %8227 = vmatprep.subr.bf16.mxu0 %v5400
        %8228 = vmatpush1.bf16.msra.mxu0 %v5399
        %8229 = vmatprep.subr.bf16.mxu0 %v5402
        %8230 = vmatpush1.bf16.msra.mxu0 %v5401
        %8231 = vmatprep.subr.bf16.mxu0 %v5404
        %8232 = vmatpush1.bf16.msra.mxu0 %v5403
        %8233 = vmatprep.subr.bf16.mxu0 %v5406
        %8234 = vmatpush1.bf16.msra.mxu0 %v5405
        %8235 = vmatprep.subr.bf16.mxu0 %v5408
        %8236 = vmatpush1.bf16.msra.mxu0 %v5407
        %8237 = vmatprep.subr.bf16.mxu0 %v5410
        %8238 = vmatpush1.bf16.msra.mxu0 %v5409
        %8239 = vmatprep.subr.bf16.mxu0 %v5412
        %8240 = vmatpush1.bf16.msra.mxu0 %v5411
        %8241 = vmatprep.subr.bf16.mxu0 %v5414
        %8242 = vmatpush1.bf16.msra.mxu0 %v5413
        %8243 = vmatprep.subr.bf16.mxu0 %v5416
        %8244 = vmatpush1.bf16.msra.mxu0 %v5415
        %8245 = vmatprep.subr.bf16.mxu0 %v5418
        %8246 = vmatpush1.bf16.msra.mxu0 %v5417
        %8247 = vmatprep.subr.bf16.mxu0 %v5420
        %8248 = vmatpush1.bf16.msra.mxu0 %v5419
        %8249 = vmatprep.subr.bf16.mxu0 %v5422
        %8250 = vmatpush1.bf16.msra.mxu0 %v5421
        %8251 = vmatprep.mubr.bf16.mxu0 %v2792
        %8252 = vmatmul.mubr.bf16.gmra.mrb[0].mxu0 %v2791
        %v8253 = vpop.f32.mrb[0].mxu0
        %v8254 = vadd.f32 %v8061, %v8253
        %v8255 = vpop.f32.mrb[0].mxu0
        %v8256 = vadd.f32 %v8063, %v8255
        %v8257 = vpop.f32.mrb[0].mxu0
        %v8258 = vadd.f32 %v8065, %v8257
        %v8259 = vpop.f32.mrb[0].mxu0
        %v8260 = vadd.f32 %v8067, %v8259
        %8261 = vmatprep.mubr.bf16.mxu0 %v2820
        %8262 = vmatmul.mubr.bf16.gmra.mrb[0].mxu0 %v2819
        %v8263 = vpop.f32.mrb[0].mxu0
        %v8264 = vadd.f32 %v8071, %v8263
        %v8265 = vpop.f32.mrb[0].mxu0
        %v8266 = vadd.f32 %v8073, %v8265
        %v8267 = vpop.f32.mrb[0].mxu0
        %v8268 = vadd.f32 %v8075, %v8267
        %v8269 = vpop.f32.mrb[0].mxu0
        %v8270 = vadd.f32 %v8077, %v8269
        %8271 = vmatprep.mubr.bf16.mxu0 %v2848
        %8272 = vmatmul.mubr.bf16.gmra.mrb[0].mxu0 %v2847
        %v8273 = vpop.f32.mrb[0].mxu0
        %v8274 = vadd.f32 %v8081, %v8273
        %v8275 = vpop.f32.mrb[0].mxu0
        %v8276 = vadd.f32 %v8083, %v8275
        %v8277 = vpop.f32.mrb[0].mxu0
        %v8278 = vadd.f32 %v8085, %v8277
        %v8279 = vpop.f32.mrb[0].mxu0
        %v8280 = vadd.f32 %v8087, %v8279
        %8281 = vmatprep.mubr.bf16.mxu0 %v2876
        %8282 = vmatmul.mubr.bf16.gmra.mrb[0].mxu0 %v2875
        %v8283 = vpop.f32.mrb[0].mxu0
        %v8284 = vadd.f32 %v8091, %v8283
        %v8285 = vpop.f32.mrb[0].mxu0
        %v8286 = vadd.f32 %v8093, %v8285
        %v8287 = vpop.f32.mrb[0].mxu0
        %v8288 = vadd.f32 %v8095, %v8287
        %v8289 = vpop.f32.mrb[0].mxu0
        %v8290 = vadd.f32 %v8097, %v8289
        %8291 = vmatprep.mubr.bf16.mxu0 %v2904
        %8292 = vmatmul.mubr.bf16.gmra.mrb[0].mxu0 %v2903
        %v8293 = vpop.f32.mrb[0].mxu0
        %v8294 = vadd.f32 %v8101, %v8293
        %v8295 = vpop.f32.mrb[0].mxu0
        %v8296 = vadd.f32 %v8103, %v8295
        %v8297 = vpop.f32.mrb[0].mxu0
        %v8298 = vadd.f32 %v8105, %v8297
        %v8299 = vpop.f32.mrb[0].mxu0
        %v8300 = vadd.f32 %v8107, %v8299
        %8301 = vmatprep.mubr.bf16.mxu0 %v2932
        %8302 = vmatmul.mubr.bf16.gmra.mrb[0].mxu0 %v2931
        %v8303 = vpop.f32.mrb[0].mxu0
        %v8304 = vadd.f32 %v8111, %v8303
        %v8305 = vpop.f32.mrb[0].mxu0
        %v8306 = vadd.f32 %v8113, %v8305
        %v8307 = vpop.f32.mrb[0].mxu0
        %v8308 = vadd.f32 %v8115, %v8307
        %v8309 = vpop.f32.mrb[0].mxu0
        %v8310 = vadd.f32 %v8117, %v8309
        %8311 = vmatprep.mubr.bf16.mxu0 %v2960
        %8312 = vmatmul.mubr.bf16.gmra.mrb[0].mxu0 %v2959
        %v8313 = vpop.f32.mrb[0].mxu0
        %v8314 = vadd.f32 %v8121, %v8313
        %v8315 = vpop.f32.mrb[0].mxu0
        %v8316 = vadd.f32 %v8123, %v8315
        %v8317 = vpop.f32.mrb[0].mxu0
        %v8318 = vadd.f32 %v8125, %v8317
        %v8319 = vpop.f32.mrb[0].mxu0
        %v8320 = vadd.f32 %v8127, %v8319
        %8321 = vmatprep.mubr.bf16.mxu0 %v2988
        %8322 = vmatmul.mubr.bf16.gmra.mrb[0].mxu0 %v2987
        %v8323 = vpop.f32.mrb[0].mxu0
        %v8324 = vadd.f32 %v8131, %v8323
        %v8325 = vpop.f32.mrb[0].mxu0
        %v8326 = vadd.f32 %v8133, %v8325
        %v8327 = vpop.f32.mrb[0].mxu0
        %v8328 = vadd.f32 %v8135, %v8327
        %v8329 = vpop.f32.mrb[0].mxu0
        %v8330 = vadd.f32 %v8137, %v8329
        %8331 = vmatprep.mubr.bf16.mxu0 %v3016
        %8332 = vmatmul.mubr.bf16.gmra.mrb[0].mxu0 %v3015
        %v8333 = vpop.f32.mrb[0].mxu0
        %v8334 = vadd.f32 %v8141, %v8333
        %v8335 = vpop.f32.mrb[0].mxu0
        %v8336 = vadd.f32 %v8143, %v8335
        %v8337 = vpop.f32.mrb[0].mxu0
        %v8338 = vadd.f32 %v8145, %v8337
        %v8339 = vpop.f32.mrb[0].mxu0
        %v8340 = vadd.f32 %v8147, %v8339
        %8341 = vmatprep.mubr.bf16.mxu0 %v3044
        %8342 = vmatmul.mubr.bf16.gmra.mrb[0].mxu0 %v3043
        %v8343 = vpop.f32.mrb[0].mxu0
        %v8344 = vadd.f32 %v8151, %v8343
        %v8345 = vpop.f32.mrb[0].mxu0
        %v8346 = vadd.f32 %v8153, %v8345
        %v8347 = vpop.f32.mrb[0].mxu0
        %v8348 = vadd.f32 %v8155, %v8347
        %v8349 = vpop.f32.mrb[0].mxu0
        %v8350 = vadd.f32 %v8157, %v8349
        %8351 = vmatprep.mubr.bf16.mxu0 %v3072
        %8352 = vmatmul.mubr.bf16.gmra.mrb[0].mxu0 %v3071
        %v8353 = vpop.f32.mrb[0].mxu0
        %v8354 = vadd.f32 %v8161, %v8353
        %v8355 = vpop.f32.mrb[0].mxu0
        %v8356 = vadd.f32 %v8163, %v8355
        %v8357 = vpop.f32.mrb[0].mxu0
        %v8358 = vadd.f32 %v8165, %v8357
        %v8359 = vpop.f32.mrb[0].mxu0
        %v8360 = vadd.f32 %v8167, %v8359
        %8361 = vmatprep.mubr.bf16.mxu0 %v3100
        %8362 = vmatmul.mubr.bf16.gmra.mrb[0].mxu0 %v3099
        %v8363 = vpop.f32.mrb[0].mxu0
        %v8364 = vadd.f32 %v8171, %v8363
        %v8365 = vpop.f32.mrb[0].mxu0
        %v8366 = vadd.f32 %v8173, %v8365
        %v8367 = vpop.f32.mrb[0].mxu0
        %v8368 = vadd.f32 %v8175, %v8367
        %v8369 = vpop.f32.mrb[0].mxu0
        %v8370 = vadd.f32 %v8177, %v8369
        %8371 = vmatprep.mubr.bf16.mxu0 %v3128
        %8372 = vmatmul.mubr.bf16.gmra.mrb[0].mxu0 %v3127
        %v8373 = vpop.f32.mrb[0].mxu0
        %v8374 = vadd.f32 %v8181, %v8373
        %v8375 = vpop.f32.mrb[0].mxu0
        %v8376 = vadd.f32 %v8183, %v8375
        %v8377 = vpop.f32.mrb[0].mxu0
        %v8378 = vadd.f32 %v8185, %v8377
        %v8379 = vpop.f32.mrb[0].mxu0
        %v8380 = vadd.f32 %v8187, %v8379
        %8381 = vmatprep.mubr.bf16.mxu0 %v3156
        %8382 = vmatmul.mubr.bf16.gmra.mrb[0].mxu0 %v3155
        %v8383 = vpop.f32.mrb[0].mxu0
        %v8384 = vadd.f32 %v8191, %v8383
        %v8385 = vpop.f32.mrb[0].mxu0
        %v8386 = vadd.f32 %v8193, %v8385
        %v8387 = vpop.f32.mrb[0].mxu0
        %v8388 = vadd.f32 %v8195, %v8387
        %v8389 = vpop.f32.mrb[0].mxu0
        %v8390 = vadd.f32 %v8197, %v8389
        %8391 = vmatprep.mubr.bf16.mxu0 %v3184
        %8392 = vmatmul.mubr.bf16.gmra.mrb[0].mxu0 %v3183
        %v8393 = vpop.f32.mrb[0].mxu0
        %v8394 = vadd.f32 %v8201, %v8393
        %v8395 = vpop.f32.mrb[0].mxu0
        %v8396 = vadd.f32 %v8203, %v8395
        %v8397 = vpop.f32.mrb[0].mxu0
        %v8398 = vadd.f32 %v8205, %v8397
        %v8399 = vpop.f32.mrb[0].mxu0
        %v8400 = vadd.f32 %v8207, %v8399
        %8401 = vmatprep.mubr.bf16.mxu0 %v3212
        %8402 = vmatmul.mubr.bf16.gmra.mrb[0].mxu0 %v3211
        %v8403 = vpop.f32.mrb[0].mxu0
        %v8404 = vadd.f32 %v8211, %v8403
        %v8405 = vpop.f32.mrb[0].mxu0
        %v8406 = vadd.f32 %v8213, %v8405
        %v8407 = vpop.f32.mrb[0].mxu0
        %v8408 = vadd.f32 %v8215, %v8407
        %v8409 = vpop.f32.mrb[0].mxu0
        %v8410 = vadd.f32 %v8217, %v8409
        %8411 = vdwg.mxu0
        %8412 = vmatprep.subr.bf16.mxu0 %v5424
        %8413 = vmatpush1.bf16.msra.mxu0 %v5423
        %8414 = vmatprep.subr.bf16.mxu0 %v5426
        %8415 = vmatpush1.bf16.msra.mxu0 %v5425
        %8416 = vmatprep.subr.bf16.mxu0 %v5428
        %8417 = vmatpush1.bf16.msra.mxu0 %v5427
        %8418 = vmatprep.subr.bf16.mxu0 %v5430
        %8419 = vmatpush1.bf16.msra.mxu0 %v5429
        %8420 = vmatprep.subr.bf16.mxu0 %v5432
        %8421 = vmatpush1.bf16.msra.mxu0 %v5431
        %8422 = vmatprep.subr.bf16.mxu0 %v5434
        %8423 = vmatpush1.bf16.msra.mxu0 %v5433
        %8424 = vmatprep.subr.bf16.mxu0 %v5436
        %8425 = vmatpush1.bf16.msra.mxu0 %v5435
        %8426 = vmatprep.subr.bf16.mxu0 %v5438
        %8427 = vmatpush1.bf16.msra.mxu0 %v5437
        %8428 = vmatprep.subr.bf16.mxu0 %v5440
        %8429 = vmatpush1.bf16.msra.mxu0 %v5439
        %8430 = vmatprep.subr.bf16.mxu0 %v5442
        %8431 = vmatpush1.bf16.msra.mxu0 %v5441
        %8432 = vmatprep.subr.bf16.mxu0 %v5444
        %8433 = vmatpush1.bf16.msra.mxu0 %v5443
        %8434 = vmatprep.subr.bf16.mxu0 %v5446
        %8435 = vmatpush1.bf16.msra.mxu0 %v5445
        %8436 = vmatprep.subr.bf16.mxu0 %v5448
        %8437 = vmatpush1.bf16.msra.mxu0 %v5447
        %8438 = vmatprep.subr.bf16.mxu0 %v5450
        %8439 = vmatpush1.bf16.msra.mxu0 %v5449
        %8440 = vmatprep.subr.bf16.mxu0 %v5452
        %8441 = vmatpush1.bf16.msra.mxu0 %v5451
        %8442 = vmatprep.subr.bf16.mxu0 %v5454
        %8443 = vmatpush1.bf16.msra.mxu0 %v5453
        %8444 = vmatprep.mubr.bf16.mxu0 %v2794
        %8445 = vmatmul.mubr.bf16.gmra.mrb[0].mxu0 %v2793
        %v8446 = vpop.f32.mrb[0].mxu0
        %v8447 = vadd.f32 %v8254, %v8446
        %v8448 = vpop.f32.mrb[0].mxu0
        %v8449 = vadd.f32 %v8256, %v8448
        %v8450 = vpop.f32.mrb[0].mxu0
        %v8451 = vadd.f32 %v8258, %v8450
        %v8452 = vpop.f32.mrb[0].mxu0
        %v8453 = vadd.f32 %v8260, %v8452
        %8454 = vmatprep.mubr.bf16.mxu0 %v2822
        %8455 = vmatmul.mubr.bf16.gmra.mrb[0].mxu0 %v2821
        %v8456 = vpop.f32.mrb[0].mxu0
        %v8457 = vadd.f32 %v8264, %v8456
        %v8458 = vpop.f32.mrb[0].mxu0
        %v8459 = vadd.f32 %v8266, %v8458
        %v8460 = vpop.f32.mrb[0].mxu0
        %v8461 = vadd.f32 %v8268, %v8460
        %v8462 = vpop.f32.mrb[0].mxu0
        %v8463 = vadd.f32 %v8270, %v8462
        %8464 = vmatprep.mubr.bf16.mxu0 %v2850
        %8465 = vmatmul.mubr.bf16.gmra.mrb[0].mxu0 %v2849
        %v8466 = vpop.f32.mrb[0].mxu0
        %v8467 = vadd.f32 %v8274, %v8466
        %v8468 = vpop.f32.mrb[0].mxu0
        %v8469 = vadd.f32 %v8276, %v8468
        %v8470 = vpop.f32.mrb[0].mxu0
        %v8471 = vadd.f32 %v8278, %v8470
        %v8472 = vpop.f32.mrb[0].mxu0
        %v8473 = vadd.f32 %v8280, %v8472
        %8474 = vmatprep.mubr.bf16.mxu0 %v2878
        %8475 = vmatmul.mubr.bf16.gmra.mrb[0].mxu0 %v2877
        %v8476 = vpop.f32.mrb[0].mxu0
        %v8477 = vadd.f32 %v8284, %v8476
        %v8478 = vpop.f32.mrb[0].mxu0
        %v8479 = vadd.f32 %v8286, %v8478
        %v8480 = vpop.f32.mrb[0].mxu0
        %v8481 = vadd.f32 %v8288, %v8480
        %v8482 = vpop.f32.mrb[0].mxu0
        %v8483 = vadd.f32 %v8290, %v8482
        %8484 = vmatprep.mubr.bf16.mxu0 %v2906
        %8485 = vmatmul.mubr.bf16.gmra.mrb[0].mxu0 %v2905
        %v8486 = vpop.f32.mrb[0].mxu0
        %v8487 = vadd.f32 %v8294, %v8486
        %v8488 = vpop.f32.mrb[0].mxu0
        %v8489 = vadd.f32 %v8296, %v8488
        %v8490 = vpop.f32.mrb[0].mxu0
        %v8491 = vadd.f32 %v8298, %v8490
        %v8492 = vpop.f32.mrb[0].mxu0
        %v8493 = vadd.f32 %v8300, %v8492
        %8494 = vmatprep.mubr.bf16.mxu0 %v2934
        %8495 = vmatmul.mubr.bf16.gmra.mrb[0].mxu0 %v2933
        %v8496 = vpop.f32.mrb[0].mxu0
        %v8497 = vadd.f32 %v8304, %v8496
        %v8498 = vpop.f32.mrb[0].mxu0
        %v8499 = vadd.f32 %v8306, %v8498
        %v8500 = vpop.f32.mrb[0].mxu0
        %v8501 = vadd.f32 %v8308, %v8500
        %v8502 = vpop.f32.mrb[0].mxu0
        %v8503 = vadd.f32 %v8310, %v8502
        %8504 = vmatprep.mubr.bf16.mxu0 %v2962
        %8505 = vmatmul.mubr.bf16.gmra.mrb[0].mxu0 %v2961
        %v8506 = vpop.f32.mrb[0].mxu0
        %v8507 = vadd.f32 %v8314, %v8506
        %v8508 = vpop.f32.mrb[0].mxu0
        %v8509 = vadd.f32 %v8316, %v8508
        %v8510 = vpop.f32.mrb[0].mxu0
        %v8511 = vadd.f32 %v8318, %v8510
        %v8512 = vpop.f32.mrb[0].mxu0
        %v8513 = vadd.f32 %v8320, %v8512
        %8514 = vmatprep.mubr.bf16.mxu0 %v2990
        %8515 = vmatmul.mubr.bf16.gmra.mrb[0].mxu0 %v2989
        %v8516 = vpop.f32.mrb[0].mxu0
        %v8517 = vadd.f32 %v8324, %v8516
        %v8518 = vpop.f32.mrb[0].mxu0
        %v8519 = vadd.f32 %v8326, %v8518
        %v8520 = vpop.f32.mrb[0].mxu0
        %v8521 = vadd.f32 %v8328, %v8520
        %v8522 = vpop.f32.mrb[0].mxu0
        %v8523 = vadd.f32 %v8330, %v8522
        %8524 = vmatprep.mubr.bf16.mxu0 %v3018
        %8525 = vmatmul.mubr.bf16.gmra.mrb[0].mxu0 %v3017
        %v8526 = vpop.f32.mrb[0].mxu0
        %v8527 = vadd.f32 %v8334, %v8526
        %v8528 = vpop.f32.mrb[0].mxu0
        %v8529 = vadd.f32 %v8336, %v8528
        %v8530 = vpop.f32.mrb[0].mxu0
        %v8531 = vadd.f32 %v8338, %v8530
        %v8532 = vpop.f32.mrb[0].mxu0
        %v8533 = vadd.f32 %v8340, %v8532
        %8534 = vmatprep.mubr.bf16.mxu0 %v3046
        %8535 = vmatmul.mubr.bf16.gmra.mrb[0].mxu0 %v3045
        %v8536 = vpop.f32.mrb[0].mxu0
        %v8537 = vadd.f32 %v8344, %v8536
        %v8538 = vpop.f32.mrb[0].mxu0
        %v8539 = vadd.f32 %v8346, %v8538
        %v8540 = vpop.f32.mrb[0].mxu0
        %v8541 = vadd.f32 %v8348, %v8540
        %v8542 = vpop.f32.mrb[0].mxu0
        %v8543 = vadd.f32 %v8350, %v8542
        %8544 = vmatprep.mubr.bf16.mxu0 %v3074
        %8545 = vmatmul.mubr.bf16.gmra.mrb[0].mxu0 %v3073
        %v8546 = vpop.f32.mrb[0].mxu0
        %v8547 = vadd.f32 %v8354, %v8546
        %v8548 = vpop.f32.mrb[0].mxu0
        %v8549 = vadd.f32 %v8356, %v8548
        %v8550 = vpop.f32.mrb[0].mxu0
        %v8551 = vadd.f32 %v8358, %v8550
        %v8552 = vpop.f32.mrb[0].mxu0
        %v8553 = vadd.f32 %v8360, %v8552
        %8554 = vmatprep.mubr.bf16.mxu0 %v3102
        %8555 = vmatmul.mubr.bf16.gmra.mrb[0].mxu0 %v3101
        %v8556 = vpop.f32.mrb[0].mxu0
        %v8557 = vadd.f32 %v8364, %v8556
        %v8558 = vpop.f32.mrb[0].mxu0
        %v8559 = vadd.f32 %v8366, %v8558
        %v8560 = vpop.f32.mrb[0].mxu0
        %v8561 = vadd.f32 %v8368, %v8560
        %v8562 = vpop.f32.mrb[0].mxu0
        %v8563 = vadd.f32 %v8370, %v8562
        %8564 = vmatprep.mubr.bf16.mxu0 %v3130
        %8565 = vmatmul.mubr.bf16.gmra.mrb[0].mxu0 %v3129
        %v8566 = vpop.f32.mrb[0].mxu0
        %v8567 = vadd.f32 %v8374, %v8566
        %v8568 = vpop.f32.mrb[0].mxu0
        %v8569 = vadd.f32 %v8376, %v8568
        %v8570 = vpop.f32.mrb[0].mxu0
        %v8571 = vadd.f32 %v8378, %v8570
        %v8572 = vpop.f32.mrb[0].mxu0
        %v8573 = vadd.f32 %v8380, %v8572
        %8574 = vmatprep.mubr.bf16.mxu0 %v3158
        %8575 = vmatmul.mubr.bf16.gmra.mrb[0].mxu0 %v3157
        %v8576 = vpop.f32.mrb[0].mxu0
        %v8577 = vadd.f32 %v8384, %v8576
        %v8578 = vpop.f32.mrb[0].mxu0
        %v8579 = vadd.f32 %v8386, %v8578
        %v8580 = vpop.f32.mrb[0].mxu0
        %v8581 = vadd.f32 %v8388, %v8580
        %v8582 = vpop.f32.mrb[0].mxu0
        %v8583 = vadd.f32 %v8390, %v8582
        %8584 = vmatprep.mubr.bf16.mxu0 %v3186
        %8585 = vmatmul.mubr.bf16.gmra.mrb[0].mxu0 %v3185
        %v8586 = vpop.f32.mrb[0].mxu0
        %v8587 = vadd.f32 %v8394, %v8586
        %v8588 = vpop.f32.mrb[0].mxu0
        %v8589 = vadd.f32 %v8396, %v8588
        %v8590 = vpop.f32.mrb[0].mxu0
        %v8591 = vadd.f32 %v8398, %v8590
        %v8592 = vpop.f32.mrb[0].mxu0
        %v8593 = vadd.f32 %v8400, %v8592
        %8594 = vmatprep.mubr.bf16.mxu0 %v3214
        %8595 = vmatmul.mubr.bf16.gmra.mrb[0].mxu0 %v3213
        %v8596 = vpop.f32.mrb[0].mxu0
        %v8597 = vadd.f32 %v8404, %v8596
        %v8598 = vpop.f32.mrb[0].mxu0
        %v8599 = vadd.f32 %v8406, %v8598
        %v8600 = vpop.f32.mrb[0].mxu0
        %v8601 = vadd.f32 %v8408, %v8600
        %v8602 = vpop.f32.mrb[0].mxu0
        %v8603 = vadd.f32 %v8410, %v8602
        %8604 = vdwg.mxu0
        %v8605 = vadd.f32 %v463, %v8447
        %v8606 = vadd.f32 %v464, %v8449
        %v8607 = vadd.f32 %v465, %v8451
        %v8608 = vadd.f32 %v466, %v8453
        %v8609 = vadd.f32 %v467, %v8457
        %v8610 = vadd.f32 %v468, %v8459
        %v8611 = vadd.f32 %v469, %v8461
        %v8612 = vadd.f32 %v470, %v8463
        %v8613 = vadd.f32 %v471, %v8467
        %v8614 = vadd.f32 %v472, %v8469
        %v8615 = vadd.f32 %v473, %v8471
        %v8616 = vadd.f32 %v474, %v8473
        %v8617 = vadd.f32 %v475, %v8477
        %v8618 = vadd.f32 %v476, %v8479
        %v8619 = vadd.f32 %v477, %v8481
        %v8620 = vadd.f32 %v478, %v8483
        %v8621 = vadd.f32 %v479, %v8487
        %v8622 = vadd.f32 %v480, %v8489
        %v8623 = vadd.f32 %v481, %v8491
        %v8624 = vadd.f32 %v482, %v8493
        %v8625 = vadd.f32 %v483, %v8497
        %v8626 = vadd.f32 %v484, %v8499
        %v8627 = vadd.f32 %v485, %v8501
        %v8628 = vadd.f32 %v486, %v8503
        %v8629 = vadd.f32 %v487, %v8507
        %v8630 = vadd.f32 %v488, %v8509
        %v8631 = vadd.f32 %v489, %v8511
        %v8632 = vadd.f32 %v490, %v8513
        %v8633 = vadd.f32 %v491, %v8517
        %v8634 = vadd.f32 %v492, %v8519
        %v8635 = vadd.f32 %v493, %v8521
        %v8636 = vadd.f32 %v494, %v8523
        %v8637 = vadd.f32 %v495, %v8527
        %v8638 = vadd.f32 %v496, %v8529
        %v8639 = vadd.f32 %v497, %v8531
        %v8640 = vadd.f32 %v498, %v8533
        %v8641 = vadd.f32 %v499, %v8537
        %v8642 = vadd.f32 %v500, %v8539
        %v8643 = vadd.f32 %v501, %v8541
        %v8644 = vadd.f32 %v502, %v8543
        %v8645 = vadd.f32 %v503, %v8547
        %v8646 = vadd.f32 %v504, %v8549
        %v8647 = vadd.f32 %v505, %v8551
        %v8648 = vadd.f32 %v506, %v8553
        %v8649 = vadd.f32 %v507, %v8557
        %v8650 = vadd.f32 %v508, %v8559
        %v8651 = vadd.f32 %v509, %v8561
        %v8652 = vadd.f32 %v510, %v8563
        %v8653 = vadd.f32 %v511, %v8567
        %v8654 = vadd.f32 %v512, %v8569
        %v8655 = vadd.f32 %v513, %v8571
        %v8656 = vadd.f32 %v514, %v8573
        %v8657 = vadd.f32 %v515, %v8577
        %v8658 = vadd.f32 %v516, %v8579
        %v8659 = vadd.f32 %v517, %v8581
        %v8660 = vadd.f32 %v518, %v8583
        %v8661 = vadd.f32 %v519, %v8587
        %v8662 = vadd.f32 %v520, %v8589
        %v8663 = vadd.f32 %v521, %v8591
        %v8664 = vadd.f32 %v522, %v8593
        %v8665 = vadd.f32 %v523, %v8597
        %v8666 = vadd.f32 %v524, %v8599
        %v8667 = vadd.f32 %v525, %v8601
        %v8668 = vadd.f32 %v526, %v8603
        %8669 = vst [vmem:[#allocation2] sm:$0xff] %v8605
        %8670 = vst [vmem:[#allocation2 + $0x8] sm:$0xff] %v8606
        %8671 = vst [vmem:[#allocation2 + $0x10] sm:$0xff] %v8607
        %8672 = vst [vmem:[#allocation2 + $0x18] sm:$0xff] %v8608
        %8673 = vst [vmem:[#allocation2 + $0x20] sm:$0xff] %v8609
        %8674 = vst [vmem:[#allocation2 + $0x28] sm:$0xff] %v8610
        %8675 = vst [vmem:[#allocation2 + $0x30] sm:$0xff] %v8611
        %8676 = vst [vmem:[#allocation2 + $0x38] sm:$0xff] %v8612
        %8677 = vst [vmem:[#allocation2 + $0x40] sm:$0xff] %v8613
        %8678 = vst [vmem:[#allocation2 + $0x48] sm:$0xff] %v8614
        %8679 = vst [vmem:[#allocation2 + $0x50] sm:$0xff] %v8615
        %8680 = vst [vmem:[#allocation2 + $0x58] sm:$0xff] %v8616
        %8681 = vst [vmem:[#allocation2 + $0x60] sm:$0xff] %v8617
        %8682 = vst [vmem:[#allocation2 + $0x68] sm:$0xff] %v8618
        %8683 = vst [vmem:[#allocation2 + $0x70] sm:$0xff] %v8619
        %8684 = vst [vmem:[#allocation2 + $0x78] sm:$0xff] %v8620
        %8685 = vst [vmem:[#allocation2 + $0x80] sm:$0xff] %v8621
        %8686 = vst [vmem:[#allocation2 + $0x88] sm:$0xff] %v8622
        %8687 = vst [vmem:[#allocation2 + $0x90] sm:$0xff] %v8623
        %8688 = vst [vmem:[#allocation2 + $0x98] sm:$0xff] %v8624
        %8689 = vst [vmem:[#allocation2 + $0xa0] sm:$0xff] %v8625
        %8690 = vst [vmem:[#allocation2 + $0xa8] sm:$0xff] %v8626
        %8691 = vst [vmem:[#allocation2 + $0xb0] sm:$0xff] %v8627
        %8692 = vst [vmem:[#allocation2 + $0xb8] sm:$0xff] %v8628
        %8693 = vst [vmem:[#allocation2 + $0xc0] sm:$0xff] %v8629
        %8694 = vst [vmem:[#allocation2 + $0xc8] sm:$0xff] %v8630
        %8695 = vst [vmem:[#allocation2 + $0xd0] sm:$0xff] %v8631
        %8696 = vst [vmem:[#allocation2 + $0xd8] sm:$0xff] %v8632
        %8697 = vst [vmem:[#allocation2 + $0xe0] sm:$0xff] %v8633
        %8698 = vst [vmem:[#allocation2 + $0xe8] sm:$0xff] %v8634
        %8699 = vst [vmem:[#allocation2 + $0xf0] sm:$0xff] %v8635
        %8700 = vst [vmem:[#allocation2 + $0xf8] sm:$0xff] %v8636
        %8701 = vst [vmem:[#allocation2 + $0x100] sm:$0xff] %v8637
        %8702 = vst [vmem:[#allocation2 + $0x108] sm:$0xff] %v8638
        %8703 = vst [vmem:[#allocation2 + $0x110] sm:$0xff] %v8639
        %8704 = vst [vmem:[#allocation2 + $0x118] sm:$0xff] %v8640
        %8705 = vst [vmem:[#allocation2 + $0x120] sm:$0xff] %v8641
        %8706 = vst [vmem:[#allocation2 + $0x128] sm:$0xff] %v8642
        %8707 = vst [vmem:[#allocation2 + $0x130] sm:$0xff] %v8643
        %8708 = vst [vmem:[#allocation2 + $0x138] sm:$0xff] %v8644
        %8709 = vst [vmem:[#allocation2 + $0x140] sm:$0xff] %v8645
        %8710 = vst [vmem:[#allocation2 + $0x148] sm:$0xff] %v8646
        %8711 = vst [vmem:[#allocation2 + $0x150] sm:$0xff] %v8647
        %8712 = vst [vmem:[#allocation2 + $0x158] sm:$0xff] %v8648
        %8713 = vst [vmem:[#allocation2 + $0x160] sm:$0xff] %v8649
        %8714 = vst [vmem:[#allocation2 + $0x168] sm:$0xff] %v8650
        %8715 = vst [vmem:[#allocation2 + $0x170] sm:$0xff] %v8651
        %8716 = vst [vmem:[#allocation2 + $0x178] sm:$0xff] %v8652
        %8717 = vst [vmem:[#allocation2 + $0x180] sm:$0xff] %v8653
        %8718 = vst [vmem:[#allocation2 + $0x188] sm:$0xff] %v8654
        %8719 = vst [vmem:[#allocation2 + $0x190] sm:$0xff] %v8655
        %8720 = vst [vmem:[#allocation2 + $0x198] sm:$0xff] %v8656
        %8721 = vst [vmem:[#allocation2 + $0x1a0] sm:$0xff] %v8657
        %8722 = vst [vmem:[#allocation2 + $0x1a8] sm:$0xff] %v8658
        %8723 = vst [vmem:[#allocation2 + $0x1b0] sm:$0xff] %v8659
        %8724 = vst [vmem:[#allocation2 + $0x1b8] sm:$0xff] %v8660
        %8725 = vst [vmem:[#allocation2 + $0x1c0] sm:$0xff] %v8661
        %8726 = vst [vmem:[#allocation2 + $0x1c8] sm:$0xff] %v8662
        %8727 = vst [vmem:[#allocation2 + $0x1d0] sm:$0xff] %v8663
        %8728 = vst [vmem:[#allocation2 + $0x1d8] sm:$0xff] %v8664
        %8729 = vst [vmem:[#allocation2 + $0x1e0] sm:$0xff] %v8665
        %8730 = vst [vmem:[#allocation2 + $0x1e8] sm:$0xff] %v8666
        %8731 = vst [vmem:[#allocation2 + $0x1f0] sm:$0xff] %v8667
        %8732 = vst [vmem:[#allocation2 + $0x1f8] sm:$0xff] %v8668
        %p8733 = scmp.eq.s32.totalorder %s27, 1
        // Predicated region
        $region81: #{tpu_custom_call.1} parent=47 // pred_check
          %p8734 = pneg %p8733
        $region82: #{tpu_custom_call.1} parent=47 // pred_check_branch
          %8736 = sbr.rel (%p8734) target = $region84
        $region83: #{tpu_custom_call.1} parent=47 // pred_region
          %v8737 = vld [vmem:[#allocation2] sm:$0xff]
          %v8738 = vld [vmem:[#allocation2 + $0x8] sm:$0xff]
          %v8739 = vld [vmem:[#allocation2 + $0x10] sm:$0xff]
          %v8740 = vld [vmem:[#allocation2 + $0x18] sm:$0xff]
          %v8741 = vld [vmem:[#allocation2 + $0x20] sm:$0xff]
          %v8742 = vld [vmem:[#allocation2 + $0x28] sm:$0xff]
          %v8743 = vld [vmem:[#allocation2 + $0x30] sm:$0xff]
          %v8744 = vld [vmem:[#allocation2 + $0x38] sm:$0xff]
          %v8745 = vld [vmem:[#allocation2 + $0x40] sm:$0xff]
          %v8746 = vld [vmem:[#allocation2 + $0x48] sm:$0xff]
          %v8747 = vld [vmem:[#allocation2 + $0x50] sm:$0xff]
          %v8748 = vld [vmem:[#allocation2 + $0x58] sm:$0xff]
          %v8749 = vld [vmem:[#allocation2 + $0x60] sm:$0xff]
          %v8750 = vld [vmem:[#allocation2 + $0x68] sm:$0xff]
          %v8751 = vld [vmem:[#allocation2 + $0x70] sm:$0xff]
          %v8752 = vld [vmem:[#allocation2 + $0x78] sm:$0xff]
          %v8753 = vld [vmem:[#allocation2 + $0x80] sm:$0xff]
          %v8754 = vld [vmem:[#allocation2 + $0x88] sm:$0xff]
          %v8755 = vld [vmem:[#allocation2 + $0x90] sm:$0xff]
          %v8756 = vld [vmem:[#allocation2 + $0x98] sm:$0xff]
          %v8757 = vld [vmem:[#allocation2 + $0xa0] sm:$0xff]
          %v8758 = vld [vmem:[#allocation2 + $0xa8] sm:$0xff]
          %v8759 = vld [vmem:[#allocation2 + $0xb0] sm:$0xff]
          %v8760 = vld [vmem:[#allocation2 + $0xb8] sm:$0xff]
          %v8761 = vld [vmem:[#allocation2 + $0xc0] sm:$0xff]
          %v8762 = vld [vmem:[#allocation2 + $0xc8] sm:$0xff]
          %v8763 = vld [vmem:[#allocation2 + $0xd0] sm:$0xff]
          %v8764 = vld [vmem:[#allocation2 + $0xd8] sm:$0xff]
          %v8765 = vld [vmem:[#allocation2 + $0xe0] sm:$0xff]
          %v8766 = vld [vmem:[#allocation2 + $0xe8] sm:$0xff]
          %v8767 = vld [vmem:[#allocation2 + $0xf0] sm:$0xff]
          %v8768 = vld [vmem:[#allocation2 + $0xf8] sm:$0xff]
          %v8769 = vld [vmem:[#allocation2 + $0x100] sm:$0xff]
          %v8770 = vld [vmem:[#allocation2 + $0x108] sm:$0xff]
          %v8771 = vld [vmem:[#allocation2 + $0x110] sm:$0xff]
          %v8772 = vld [vmem:[#allocation2 + $0x118] sm:$0xff]
          %v8773 = vld [vmem:[#allocation2 + $0x120] sm:$0xff]
          %v8774 = vld [vmem:[#allocation2 + $0x128] sm:$0xff]
          %v8775 = vld [vmem:[#allocation2 + $0x130] sm:$0xff]
          %v8776 = vld [vmem:[#allocation2 + $0x138] sm:$0xff]
          %v8777 = vld [vmem:[#allocation2 + $0x140] sm:$0xff]
          %v8778 = vld [vmem:[#allocation2 + $0x148] sm:$0xff]
          %v8779 = vld [vmem:[#allocation2 + $0x150] sm:$0xff]
          %v8780 = vld [vmem:[#allocation2 + $0x158] sm:$0xff]
          %v8781 = vld [vmem:[#allocation2 + $0x160] sm:$0xff]
          %v8782 = vld [vmem:[#allocation2 + $0x168] sm:$0xff]
          %v8783 = vld [vmem:[#allocation2 + $0x170] sm:$0xff]
          %v8784 = vld [vmem:[#allocation2 + $0x178] sm:$0xff]
          %v8785 = vld [vmem:[#allocation2 + $0x180] sm:$0xff]
          %v8786 = vld [vmem:[#allocation2 + $0x188] sm:$0xff]
          %v8787 = vld [vmem:[#allocation2 + $0x190] sm:$0xff]
          %v8788 = vld [vmem:[#allocation2 + $0x198] sm:$0xff]
          %v8789 = vld [vmem:[#allocation2 + $0x1a0] sm:$0xff]
          %v8790 = vld [vmem:[#allocation2 + $0x1a8] sm:$0xff]
          %v8791 = vld [vmem:[#allocation2 + $0x1b0] sm:$0xff]
          %v8792 = vld [vmem:[#allocation2 + $0x1b8] sm:$0xff]
          %v8793 = vld [vmem:[#allocation2 + $0x1c0] sm:$0xff]
          %v8794 = vld [vmem:[#allocation2 + $0x1c8] sm:$0xff]
          %v8795 = vld [vmem:[#allocation2 + $0x1d0] sm:$0xff]
          %v8796 = vld [vmem:[#allocation2 + $0x1d8] sm:$0xff]
          %v8797 = vld [vmem:[#allocation2 + $0x1e0] sm:$0xff]
          %v8798 = vld [vmem:[#allocation2 + $0x1e8] sm:$0xff]
          %v8799 = vld [vmem:[#allocation2 + $0x1f0] sm:$0xff]
          %v8800 = vld [vmem:[#allocation2 + $0x1f8] sm:$0xff]
          %v8801 = vld [vmem:[#allocation8] sm:$0x3]
          %v8803 = vlaneseq
          %v8804 = vshrl.u32 %v8803, 7
          %v8805 = vsub.s32 0, %v8804
          %v8806 = vrot.slane %v8801, %v8805
          %v8807 = vlaneseq
          %v8808 = vshrl.u32 %v8807, 7
          %v8809 = vsub.s32 1, %v8808
          %v8810 = vrot.slane %v8801, %v8809
          %v8813 = vadd.f32 %v8737, %v8806
          %v8814 = vadd.f32 %v8738, %v8810
          %v8815 = vadd.f32 %v8739, %v8806
          %v8816 = vadd.f32 %v8740, %v8810
          %v8817 = vadd.f32 %v8741, %v8806
          %v8818 = vadd.f32 %v8742, %v8810
          %v8819 = vadd.f32 %v8743, %v8806
          %v8820 = vadd.f32 %v8744, %v8810
          %v8821 = vadd.f32 %v8745, %v8806
          %v8822 = vadd.f32 %v8746, %v8810
          %v8823 = vadd.f32 %v8747, %v8806
          %v8824 = vadd.f32 %v8748, %v8810
          %v8825 = vadd.f32 %v8749, %v8806
          %v8826 = vadd.f32 %v8750, %v8810
          %v8827 = vadd.f32 %v8751, %v8806
          %v8828 = vadd.f32 %v8752, %v8810
          %v8829 = vadd.f32 %v8753, %v8806
          %v8830 = vadd.f32 %v8754, %v8810
          %v8831 = vadd.f32 %v8755, %v8806
          %v8832 = vadd.f32 %v8756, %v8810
          %v8833 = vadd.f32 %v8757, %v8806
          %v8834 = vadd.f32 %v8758, %v8810
          %v8835 = vadd.f32 %v8759, %v8806
          %v8836 = vadd.f32 %v8760, %v8810
          %v8837 = vadd.f32 %v8761, %v8806
          %v8838 = vadd.f32 %v8762, %v8810
          %v8839 = vadd.f32 %v8763, %v8806
          %v8840 = vadd.f32 %v8764, %v8810
          %v8841 = vadd.f32 %v8765, %v8806
          %v8842 = vadd.f32 %v8766, %v8810
          %v8843 = vadd.f32 %v8767, %v8806
          %v8844 = vadd.f32 %v8768, %v8810
          %v8845 = vadd.f32 %v8769, %v8806
          %v8846 = vadd.f32 %v8770, %v8810
          %v8847 = vadd.f32 %v8771, %v8806
          %v8848 = vadd.f32 %v8772, %v8810
          %v8849 = vadd.f32 %v8773, %v8806
          %v8850 = vadd.f32 %v8774, %v8810
          %v8851 = vadd.f32 %v8775, %v8806
          %v8852 = vadd.f32 %v8776, %v8810
          %v8853 = vadd.f32 %v8777, %v8806
          %v8854 = vadd.f32 %v8778, %v8810
          %v8855 = vadd.f32 %v8779, %v8806
          %v8856 = vadd.f32 %v8780, %v8810
          %v8857 = vadd.f32 %v8781, %v8806
          %v8858 = vadd.f32 %v8782, %v8810
          %v8859 = vadd.f32 %v8783, %v8806
          %v8860 = vadd.f32 %v8784, %v8810
          %v8861 = vadd.f32 %v8785, %v8806
          %v8862 = vadd.f32 %v8786, %v8810
          %v8863 = vadd.f32 %v8787, %v8806
          %v8864 = vadd.f32 %v8788, %v8810
          %v8865 = vadd.f32 %v8789, %v8806
          %v8866 = vadd.f32 %v8790, %v8810
          %v8867 = vadd.f32 %v8791, %v8806
          %v8868 = vadd.f32 %v8792, %v8810
          %v8869 = vadd.f32 %v8793, %v8806
          %v8870 = vadd.f32 %v8794, %v8810
          %v8871 = vadd.f32 %v8795, %v8806
          %v8872 = vadd.f32 %v8796, %v8810
          %v8873 = vadd.f32 %v8797, %v8806
          %v8874 = vadd.f32 %v8798, %v8810
          %v8875 = vadd.f32 %v8799, %v8806
          %v8876 = vadd.f32 %v8800, %v8810
          %v8877 = vmax.f32 %v8813, 0.0
          %v8878 = vmax.f32 %v8814, 0.0
          %v8879 = vmax.f32 %v8815, 0.0
          %v8880 = vmax.f32 %v8816, 0.0
          %v8881 = vmax.f32 %v8817, 0.0
          %v8882 = vmax.f32 %v8818, 0.0
          %v8883 = vmax.f32 %v8819, 0.0
          %v8884 = vmax.f32 %v8820, 0.0
          %v8885 = vmax.f32 %v8821, 0.0
          %v8886 = vmax.f32 %v8822, 0.0
          %v8887 = vmax.f32 %v8823, 0.0
          %v8888 = vmax.f32 %v8824, 0.0
          %v8889 = vmax.f32 %v8825, 0.0
          %v8890 = vmax.f32 %v8826, 0.0
          %v8891 = vmax.f32 %v8827, 0.0
          %v8892 = vmax.f32 %v8828, 0.0
          %v8893 = vmax.f32 %v8829, 0.0
          %v8894 = vmax.f32 %v8830, 0.0
          %v8895 = vmax.f32 %v8831, 0.0
          %v8896 = vmax.f32 %v8832, 0.0
          %v8897 = vmax.f32 %v8833, 0.0
          %v8898 = vmax.f32 %v8834, 0.0
          %v8899 = vmax.f32 %v8835, 0.0
          %v8900 = vmax.f32 %v8836, 0.0
          %v8901 = vmax.f32 %v8837, 0.0
          %v8902 = vmax.f32 %v8838, 0.0
          %v8903 = vmax.f32 %v8839, 0.0
          %v8904 = vmax.f32 %v8840, 0.0
          %v8905 = vmax.f32 %v8841, 0.0
          %v8906 = vmax.f32 %v8842, 0.0
          %v8907 = vmax.f32 %v8843, 0.0
          %v8908 = vmax.f32 %v8844, 0.0
          %v8909 = vmax.f32 %v8845, 0.0
          %v8910 = vmax.f32 %v8846, 0.0
          %v8911 = vmax.f32 %v8847, 0.0
          %v8912 = vmax.f32 %v8848, 0.0
          %v8913 = vmax.f32 %v8849, 0.0
          %v8914 = vmax.f32 %v8850, 0.0
          %v8915 = vmax.f32 %v8851, 0.0
          %v8916 = vmax.f32 %v8852, 0.0
          %v8917 = vmax.f32 %v8853, 0.0
          %v8918 = vmax.f32 %v8854, 0.0
          %v8919 = vmax.f32 %v8855, 0.0
          %v8920 = vmax.f32 %v8856, 0.0
          %v8921 = vmax.f32 %v8857, 0.0
          %v8922 = vmax.f32 %v8858, 0.0
          %v8923 = vmax.f32 %v8859, 0.0
          %v8924 = vmax.f32 %v8860, 0.0
          %v8925 = vmax.f32 %v8861, 0.0
          %v8926 = vmax.f32 %v8862, 0.0
          %v8927 = vmax.f32 %v8863, 0.0
          %v8928 = vmax.f32 %v8864, 0.0
          %v8929 = vmax.f32 %v8865, 0.0
          %v8930 = vmax.f32 %v8866, 0.0
          %v8931 = vmax.f32 %v8867, 0.0
          %v8932 = vmax.f32 %v8868, 0.0
          %v8933 = vmax.f32 %v8869, 0.0
          %v8934 = vmax.f32 %v8870, 0.0
          %v8935 = vmax.f32 %v8871, 0.0
          %v8936 = vmax.f32 %v8872, 0.0
          %v8937 = vmax.f32 %v8873, 0.0
          %v8938 = vmax.f32 %v8874, 0.0
          %v8939 = vmax.f32 %v8875, 0.0
          %v8940 = vmax.f32 %v8876, 0.0
          %v8941 = vpack.c.bf16 %v8879, %v8877
          %v8942 = vpack.c.bf16 %v8880, %v8878
          %v8943 = vpack.c.bf16 %v8883, %v8881
          %v8944 = vpack.c.bf16 %v8884, %v8882
          %v8945 = vpack.c.bf16 %v8887, %v8885
          %v8946 = vpack.c.bf16 %v8888, %v8886
          %v8947 = vpack.c.bf16 %v8891, %v8889
          %v8948 = vpack.c.bf16 %v8892, %v8890
          %v8949 = vpack.c.bf16 %v8895, %v8893
          %v8950 = vpack.c.bf16 %v8896, %v8894
          %v8951 = vpack.c.bf16 %v8899, %v8897
          %v8952 = vpack.c.bf16 %v8900, %v8898
          %v8953 = vpack.c.bf16 %v8903, %v8901
          %v8954 = vpack.c.bf16 %v8904, %v8902
          %v8955 = vpack.c.bf16 %v8907, %v8905
          %v8956 = vpack.c.bf16 %v8908, %v8906
          %v8957 = vpack.c.bf16 %v8911, %v8909
          %v8958 = vpack.c.bf16 %v8912, %v8910
          %v8959 = vpack.c.bf16 %v8915, %v8913
          %v8960 = vpack.c.bf16 %v8916, %v8914
          %v8961 = vpack.c.bf16 %v8919, %v8917
          %v8962 = vpack.c.bf16 %v8920, %v8918
          %v8963 = vpack.c.bf16 %v8923, %v8921
          %v8964 = vpack.c.bf16 %v8924, %v8922
          %v8965 = vpack.c.bf16 %v8927, %v8925
          %v8966 = vpack.c.bf16 %v8928, %v8926
          %v8967 = vpack.c.bf16 %v8931, %v8929
          %v8968 = vpack.c.bf16 %v8932, %v8930
          %v8969 = vpack.c.bf16 %v8935, %v8933
          %v8970 = vpack.c.bf16 %v8936, %v8934
          %v8971 = vpack.c.bf16 %v8939, %v8937
          %v8972 = vpack.c.bf16 %v8940, %v8938
          %v8973 = vld [vmem:[#allocation9] sm:$0xff]
          %v8974 = vld [vmem:[#allocation9 + $0x8] sm:$0xff]
          %v8975 = vld [vmem:[#allocation9 + $0x10] sm:$0xff]
          %v8976 = vld [vmem:[#allocation9 + $0x18] sm:$0xff]
          %v8977 = vld [vmem:[#allocation9 + $0x20] sm:$0xff]
          %v8978 = vld [vmem:[#allocation9 + $0x28] sm:$0xff]
          %v8979 = vld [vmem:[#allocation9 + $0x30] sm:$0xff]
          %v8980 = vld [vmem:[#allocation9 + $0x38] sm:$0xff]
          %v8981 = vld [vmem:[#allocation9 + $0x40] sm:$0xff]
          %v8982 = vld [vmem:[#allocation9 + $0x48] sm:$0xff]
          %v8983 = vld [vmem:[#allocation9 + $0x50] sm:$0xff]
          %v8984 = vld [vmem:[#allocation9 + $0x58] sm:$0xff]
          %v8985 = vld [vmem:[#allocation9 + $0x60] sm:$0xff]
          %v8986 = vld [vmem:[#allocation9 + $0x68] sm:$0xff]
          %v8987 = vld [vmem:[#allocation9 + $0x70] sm:$0xff]
          %v8988 = vld [vmem:[#allocation9 + $0x78] sm:$0xff]
          %v8989 = vld [vmem:[#allocation9 + $0x80] sm:$0xff]
          %v8990 = vld [vmem:[#allocation9 + $0x88] sm:$0xff]
          %v8991 = vld [vmem:[#allocation9 + $0x90] sm:$0xff]
          %v8992 = vld [vmem:[#allocation9 + $0x98] sm:$0xff]
          %v8993 = vld [vmem:[#allocation9 + $0xa0] sm:$0xff]
          %v8994 = vld [vmem:[#allocation9 + $0xa8] sm:$0xff]
          %v8995 = vld [vmem:[#allocation9 + $0xb0] sm:$0xff]
          %v8996 = vld [vmem:[#allocation9 + $0xb8] sm:$0xff]
          %v8997 = vld [vmem:[#allocation9 + $0xc0] sm:$0xff]
          %v8998 = vld [vmem:[#allocation9 + $0xc8] sm:$0xff]
          %v8999 = vld [vmem:[#allocation9 + $0xd0] sm:$0xff]
          %v9000 = vld [vmem:[#allocation9 + $0xd8] sm:$0xff]
          %v9001 = vld [vmem:[#allocation9 + $0xe0] sm:$0xff]
          %v9002 = vld [vmem:[#allocation9 + $0xe8] sm:$0xff]
          %v9003 = vld [vmem:[#allocation9 + $0xf0] sm:$0xff]
          %v9004 = vld [vmem:[#allocation9 + $0xf8] sm:$0xff]
          %v9005 = vld [vmem:[#allocation11] sm:$0x3]
          %v9007 = vlaneseq
          %v9008 = vshrl.u32 %v9007, 7
          %v9009 = vsub.s32 0, %v9008
          %v9010 = vrot.slane %v9005, %v9009
          %v9011 = vlaneseq
          %v9012 = vshrl.u32 %v9011, 7
          %v9013 = vsub.s32 1, %v9012
          %v9014 = vrot.slane %v9005, %v9013
          %v9049 = vunpack.c.l.b16 %v8973
          %v9050 = vunpack.c.h.b16 %v8973
          %v9051 = vunpack.c.l.b16 %v8974
          %v9052 = vunpack.c.h.b16 %v8974
          %v9053 = vunpack.c.l.b16 %v8975
          %v9054 = vunpack.c.h.b16 %v8975
          %v9055 = vunpack.c.l.b16 %v8976
          %v9056 = vunpack.c.h.b16 %v8976
          %v9057 = vunpack.c.l.b16 %v8977
          %v9058 = vunpack.c.h.b16 %v8977
          %v9059 = vunpack.c.l.b16 %v8978
          %v9060 = vunpack.c.h.b16 %v8978
          %v9061 = vunpack.c.l.b16 %v8979
          %v9062 = vunpack.c.h.b16 %v8979
          %v9063 = vunpack.c.l.b16 %v8980
          %v9064 = vunpack.c.h.b16 %v8980
          %v9065 = vunpack.c.l.b16 %v8981
          %v9066 = vunpack.c.h.b16 %v8981
          %v9067 = vunpack.c.l.b16 %v8982
          %v9068 = vunpack.c.h.b16 %v8982
          %v9069 = vunpack.c.l.b16 %v8983
          %v9070 = vunpack.c.h.b16 %v8983
          %v9071 = vunpack.c.l.b16 %v8984
          %v9072 = vunpack.c.h.b16 %v8984
          %v9073 = vunpack.c.l.b16 %v8985
          %v9074 = vunpack.c.h.b16 %v8985
          %v9075 = vunpack.c.l.b16 %v8986
          %v9076 = vunpack.c.h.b16 %v8986
          %v9077 = vunpack.c.l.b16 %v8987
          %v9078 = vunpack.c.h.b16 %v8987
          %v9079 = vunpack.c.l.b16 %v8988
          %v9080 = vunpack.c.h.b16 %v8988
          %v9081 = vunpack.c.l.b16 %v8989
          %v9082 = vunpack.c.h.b16 %v8989
          %v9083 = vunpack.c.l.b16 %v8990
          %v9084 = vunpack.c.h.b16 %v8990
          %v9085 = vunpack.c.l.b16 %v8991
          %v9086 = vunpack.c.h.b16 %v8991
          %v9087 = vunpack.c.l.b16 %v8992
          %v9088 = vunpack.c.h.b16 %v8992
          %v9089 = vunpack.c.l.b16 %v8993
          %v9090 = vunpack.c.h.b16 %v8993
          %v9091 = vunpack.c.l.b16 %v8994
          %v9092 = vunpack.c.h.b16 %v8994
          %v9093 = vunpack.c.l.b16 %v8995
          %v9094 = vunpack.c.h.b16 %v8995
          %v9095 = vunpack.c.l.b16 %v8996
          %v9096 = vunpack.c.h.b16 %v8996
          %v9097 = vunpack.c.l.b16 %v8997
          %v9098 = vunpack.c.h.b16 %v8997
          %v9099 = vunpack.c.l.b16 %v8998
          %v9100 = vunpack.c.h.b16 %v8998
          %v9101 = vunpack.c.l.b16 %v8999
          %v9102 = vunpack.c.h.b16 %v8999
          %v9103 = vunpack.c.l.b16 %v9000
          %v9104 = vunpack.c.h.b16 %v9000
          %v9105 = vunpack.c.l.b16 %v9001
          %v9106 = vunpack.c.h.b16 %v9001
          %v9107 = vunpack.c.l.b16 %v9002
          %v9108 = vunpack.c.h.b16 %v9002
          %v9109 = vunpack.c.l.b16 %v9003
          %v9110 = vunpack.c.h.b16 %v9003
          %v9111 = vunpack.c.l.b16 %v9004
          %v9112 = vunpack.c.h.b16 %v9004
          %v9113 = vpack.c.b16 %v9051, %v9049
          %v9114 = vpack.c.b16 %v9052, %v9050
          %v9115 = vpack.c.b16 %v9055, %v9053
          %v9116 = vpack.c.b16 %v9056, %v9054
          %v9117 = vpack.c.b16 %v9059, %v9057
          %v9118 = vpack.c.b16 %v9060, %v9058
          %v9119 = vpack.c.b16 %v9063, %v9061
          %v9120 = vpack.c.b16 %v9064, %v9062
          %v9121 = vpack.c.b16 %v9067, %v9065
          %v9122 = vpack.c.b16 %v9068, %v9066
          %v9123 = vpack.c.b16 %v9071, %v9069
          %v9124 = vpack.c.b16 %v9072, %v9070
          %v9125 = vpack.c.b16 %v9075, %v9073
          %v9126 = vpack.c.b16 %v9076, %v9074
          %v9127 = vpack.c.b16 %v9079, %v9077
          %v9128 = vpack.c.b16 %v9080, %v9078
          %v9129 = vpack.c.b16 %v9083, %v9081
          %v9130 = vpack.c.b16 %v9084, %v9082
          %v9131 = vpack.c.b16 %v9087, %v9085
          %v9132 = vpack.c.b16 %v9088, %v9086
          %v9133 = vpack.c.b16 %v9091, %v9089
          %v9134 = vpack.c.b16 %v9092, %v9090
          %v9135 = vpack.c.b16 %v9095, %v9093
          %v9136 = vpack.c.b16 %v9096, %v9094
          %v9137 = vpack.c.b16 %v9099, %v9097
          %v9138 = vpack.c.b16 %v9100, %v9098
          %v9139 = vpack.c.b16 %v9103, %v9101
          %v9140 = vpack.c.b16 %v9104, %v9102
          %v9141 = vpack.c.b16 %v9107, %v9105
          %v9142 = vpack.c.b16 %v9108, %v9106
          %v9143 = vpack.c.b16 %v9111, %v9109
          %v9144 = vpack.c.b16 %v9112, %v9110
          %9177 = vmatprep.subr.bf16.mxu0 %v9114
          %9178 = vmatpush1.bf16.msra.mxu0 %v9113
          %9179 = vmatprep.subr.bf16.mxu0 %v9116
          %9180 = vmatpush1.bf16.msra.mxu0 %v9115
          %9181 = vmatprep.subr.bf16.mxu0 %v9118
          %9182 = vmatpush1.bf16.msra.mxu0 %v9117
          %9183 = vmatprep.subr.bf16.mxu0 %v9120
          %9184 = vmatpush1.bf16.msra.mxu0 %v9119
          %9185 = vmatprep.subr.bf16.mxu0 %v9122
          %9186 = vmatpush1.bf16.msra.mxu0 %v9121
          %9187 = vmatprep.subr.bf16.mxu0 %v9124
          %9188 = vmatpush1.bf16.msra.mxu0 %v9123
          %9189 = vmatprep.subr.bf16.mxu0 %v9126
          %9190 = vmatpush1.bf16.msra.mxu0 %v9125
          %9191 = vmatprep.subr.bf16.mxu0 %v9128
          %9192 = vmatpush1.bf16.msra.mxu0 %v9127
          %9193 = vmatprep.subr.bf16.mxu0 %v9130
          %9194 = vmatpush1.bf16.msra.mxu0 %v9129
          %9195 = vmatprep.subr.bf16.mxu0 %v9132
          %9196 = vmatpush1.bf16.msra.mxu0 %v9131
          %9197 = vmatprep.subr.bf16.mxu0 %v9134
          %9198 = vmatpush1.bf16.msra.mxu0 %v9133
          %9199 = vmatprep.subr.bf16.mxu0 %v9136
          %9200 = vmatpush1.bf16.msra.mxu0 %v9135
          %9201 = vmatprep.subr.bf16.mxu0 %v9138
          %9202 = vmatpush1.bf16.msra.mxu0 %v9137
          %9203 = vmatprep.subr.bf16.mxu0 %v9140
          %9204 = vmatpush1.bf16.msra.mxu0 %v9139
          %9205 = vmatprep.subr.bf16.mxu0 %v9142
          %9206 = vmatpush1.bf16.msra.mxu0 %v9141
          %9207 = vmatprep.subr.bf16.mxu0 %v9144
          %9208 = vmatpush1.bf16.msra.mxu0 %v9143
          %9209 = vmatprep.mubr.bf16.mxu0 %v8942
          %9210 = vmatmul.mubr.bf16.gmra.mrb[0].mxu0 %v8941
          %v9211 = vpop.f32.mrb[0].mxu0
          %v9212 = vadd.f32 %v9010, %v9211
          %v9213 = vpop.f32.mrb[0].mxu0
          %v9214 = vadd.f32 %v9014, %v9213
          %v9215 = vpop.f32.mrb[0].mxu0
          %v9216 = vadd.f32 %v9010, %v9215
          %v9217 = vpop.f32.mrb[0].mxu0
          %v9218 = vadd.f32 %v9014, %v9217
          %9219 = vmatprep.mubr.bf16.mxu0 %v8944
          %9220 = vmatmul.mubr.bf16.gmra.mrb[0].mxu0 %v8943
          %v9221 = vpop.f32.mrb[0].mxu0
          %v9222 = vadd.f32 %v9010, %v9221
          %v9223 = vpop.f32.mrb[0].mxu0
          %v9224 = vadd.f32 %v9014, %v9223
          %v9225 = vpop.f32.mrb[0].mxu0
          %v9226 = vadd.f32 %v9010, %v9225
          %v9227 = vpop.f32.mrb[0].mxu0
          %v9228 = vadd.f32 %v9014, %v9227
          %9229 = vmatprep.mubr.bf16.mxu0 %v8946
          %9230 = vmatmul.mubr.bf16.gmra.mrb[0].mxu0 %v8945
          %v9231 = vpop.f32.mrb[0].mxu0
          %v9232 = vadd.f32 %v9010, %v9231
          %v9233 = vpop.f32.mrb[0].mxu0
          %v9234 = vadd.f32 %v9014, %v9233
          %v9235 = vpop.f32.mrb[0].mxu0
          %v9236 = vadd.f32 %v9010, %v9235
          %v9237 = vpop.f32.mrb[0].mxu0
          %v9238 = vadd.f32 %v9014, %v9237
          %9239 = vmatprep.mubr.bf16.mxu0 %v8948
          %9240 = vmatmul.mubr.bf16.gmra.mrb[0].mxu0 %v8947
          %v9241 = vpop.f32.mrb[0].mxu0
          %v9242 = vadd.f32 %v9010, %v9241
          %v9243 = vpop.f32.mrb[0].mxu0
          %v9244 = vadd.f32 %v9014, %v9243
          %v9245 = vpop.f32.mrb[0].mxu0
          %v9246 = vadd.f32 %v9010, %v9245
          %v9247 = vpop.f32.mrb[0].mxu0
          %v9248 = vadd.f32 %v9014, %v9247
          %9249 = vmatprep.mubr.bf16.mxu0 %v8950
          %9250 = vmatmul.mubr.bf16.gmra.mrb[0].mxu0 %v8949
          %v9251 = vpop.f32.mrb[0].mxu0
          %v9252 = vadd.f32 %v9010, %v9251
          %v9253 = vpop.f32.mrb[0].mxu0
          %v9254 = vadd.f32 %v9014, %v9253
          %v9255 = vpop.f32.mrb[0].mxu0
          %v9256 = vadd.f32 %v9010, %v9255
          %v9257 = vpop.f32.mrb[0].mxu0
          %v9258 = vadd.f32 %v9014, %v9257
          %9259 = vmatprep.mubr.bf16.mxu0 %v8952
          %9260 = vmatmul.mubr.bf16.gmra.mrb[0].mxu0 %v8951
          %v9261 = vpop.f32.mrb[0].mxu0
          %v9262 = vadd.f32 %v9010, %v9261
          %v9263 = vpop.f32.mrb[0].mxu0
          %v9264 = vadd.f32 %v9014, %v9263
          %v9265 = vpop.f32.mrb[0].mxu0
          %v9266 = vadd.f32 %v9010, %v9265
          %v9267 = vpop.f32.mrb[0].mxu0
          %v9268 = vadd.f32 %v9014, %v9267
          %9269 = vmatprep.mubr.bf16.mxu0 %v8954
          %9270 = vmatmul.mubr.bf16.gmra.mrb[0].mxu0 %v8953
          %v9271 = vpop.f32.mrb[0].mxu0
          %v9272 = vadd.f32 %v9010, %v9271
          %v9273 = vpop.f32.mrb[0].mxu0
          %v9274 = vadd.f32 %v9014, %v9273
          %v9275 = vpop.f32.mrb[0].mxu0
          %v9276 = vadd.f32 %v9010, %v9275
          %v9277 = vpop.f32.mrb[0].mxu0
          %v9278 = vadd.f32 %v9014, %v9277
          %9279 = vmatprep.mubr.bf16.mxu0 %v8956
          %9280 = vmatmul.mubr.bf16.gmra.mrb[0].mxu0 %v8955
          %v9281 = vpop.f32.mrb[0].mxu0
          %v9282 = vadd.f32 %v9010, %v9281
          %v9283 = vpop.f32.mrb[0].mxu0
          %v9284 = vadd.f32 %v9014, %v9283
          %v9285 = vpop.f32.mrb[0].mxu0
          %v9286 = vadd.f32 %v9010, %v9285
          %v9287 = vpop.f32.mrb[0].mxu0
          %v9288 = vadd.f32 %v9014, %v9287
          %9289 = vmatprep.mubr.bf16.mxu0 %v8958
          %9290 = vmatmul.mubr.bf16.gmra.mrb[0].mxu0 %v8957
          %v9291 = vpop.f32.mrb[0].mxu0
          %v9292 = vadd.f32 %v9010, %v9291
          %v9293 = vpop.f32.mrb[0].mxu0
          %v9294 = vadd.f32 %v9014, %v9293
          %v9295 = vpop.f32.mrb[0].mxu0
          %v9296 = vadd.f32 %v9010, %v9295
          %v9297 = vpop.f32.mrb[0].mxu0
          %v9298 = vadd.f32 %v9014, %v9297
          %9299 = vmatprep.mubr.bf16.mxu0 %v8960
          %9300 = vmatmul.mubr.bf16.gmra.mrb[0].mxu0 %v8959
          %v9301 = vpop.f32.mrb[0].mxu0
          %v9302 = vadd.f32 %v9010, %v9301
          %v9303 = vpop.f32.mrb[0].mxu0
          %v9304 = vadd.f32 %v9014, %v9303
          %v9305 = vpop.f32.mrb[0].mxu0
          %v9306 = vadd.f32 %v9010, %v9305
          %v9307 = vpop.f32.mrb[0].mxu0
          %v9308 = vadd.f32 %v9014, %v9307
          %9309 = vmatprep.mubr.bf16.mxu0 %v8962
          %9310 = vmatmul.mubr.bf16.gmra.mrb[0].mxu0 %v8961
          %v9311 = vpop.f32.mrb[0].mxu0
          %v9312 = vadd.f32 %v9010, %v9311
          %v9313 = vpop.f32.mrb[0].mxu0
          %v9314 = vadd.f32 %v9014, %v9313
          %v9315 = vpop.f32.mrb[0].mxu0
          %v9316 = vadd.f32 %v9010, %v9315
          %v9317 = vpop.f32.mrb[0].mxu0
          %v9318 = vadd.f32 %v9014, %v9317
          %9319 = vmatprep.mubr.bf16.mxu0 %v8964
          %9320 = vmatmul.mubr.bf16.gmra.mrb[0].mxu0 %v8963
          %v9321 = vpop.f32.mrb[0].mxu0
          %v9322 = vadd.f32 %v9010, %v9321
          %v9323 = vpop.f32.mrb[0].mxu0
          %v9324 = vadd.f32 %v9014, %v9323
          %v9325 = vpop.f32.mrb[0].mxu0
          %v9326 = vadd.f32 %v9010, %v9325
          %v9327 = vpop.f32.mrb[0].mxu0
          %v9328 = vadd.f32 %v9014, %v9327
          %9329 = vmatprep.mubr.bf16.mxu0 %v8966
          %9330 = vmatmul.mubr.bf16.gmra.mrb[0].mxu0 %v8965
          %v9331 = vpop.f32.mrb[0].mxu0
          %v9332 = vadd.f32 %v9010, %v9331
          %v9333 = vpop.f32.mrb[0].mxu0
          %v9334 = vadd.f32 %v9014, %v9333
          %v9335 = vpop.f32.mrb[0].mxu0
          %v9336 = vadd.f32 %v9010, %v9335
          %v9337 = vpop.f32.mrb[0].mxu0
          %v9338 = vadd.f32 %v9014, %v9337
          %9339 = vmatprep.mubr.bf16.mxu0 %v8968
          %9340 = vmatmul.mubr.bf16.gmra.mrb[0].mxu0 %v8967
          %v9341 = vpop.f32.mrb[0].mxu0
          %v9342 = vadd.f32 %v9010, %v9341
          %v9343 = vpop.f32.mrb[0].mxu0
          %v9344 = vadd.f32 %v9014, %v9343
          %v9345 = vpop.f32.mrb[0].mxu0
          %v9346 = vadd.f32 %v9010, %v9345
          %v9347 = vpop.f32.mrb[0].mxu0
          %v9348 = vadd.f32 %v9014, %v9347
          %9349 = vmatprep.mubr.bf16.mxu0 %v8970
          %9350 = vmatmul.mubr.bf16.gmra.mrb[0].mxu0 %v8969
          %v9351 = vpop.f32.mrb[0].mxu0
          %v9352 = vadd.f32 %v9010, %v9351
          %v9353 = vpop.f32.mrb[0].mxu0
          %v9354 = vadd.f32 %v9014, %v9353
          %v9355 = vpop.f32.mrb[0].mxu0
          %v9356 = vadd.f32 %v9010, %v9355
          %v9357 = vpop.f32.mrb[0].mxu0
          %v9358 = vadd.f32 %v9014, %v9357
          %9359 = vmatprep.mubr.bf16.mxu0 %v8972
          %9360 = vmatmul.mubr.bf16.gmra.mrb[0].mxu0 %v8971
          %v9361 = vpop.f32.mrb[0].mxu0
          %v9362 = vadd.f32 %v9010, %v9361
          %v9363 = vpop.f32.mrb[0].mxu0
          %v9364 = vadd.f32 %v9014, %v9363
          %v9365 = vpop.f32.mrb[0].mxu0
          %v9366 = vadd.f32 %v9010, %v9365
          %v9367 = vpop.f32.mrb[0].mxu0
          %v9368 = vadd.f32 %v9014, %v9367
          %9369 = vdwg.mxu0
          %v9370 = vmax.f32 %v9212, 0.0
          %v9371 = vmax.f32 %v9214, 0.0
          %v9372 = vmax.f32 %v9216, 0.0
          %v9373 = vmax.f32 %v9218, 0.0
          %v9374 = vmax.f32 %v9222, 0.0
          %v9375 = vmax.f32 %v9224, 0.0
          %v9376 = vmax.f32 %v9226, 0.0
          %v9377 = vmax.f32 %v9228, 0.0
          %v9378 = vmax.f32 %v9232, 0.0
          %v9379 = vmax.f32 %v9234, 0.0
          %v9380 = vmax.f32 %v9236, 0.0
          %v9381 = vmax.f32 %v9238, 0.0
          %v9382 = vmax.f32 %v9242, 0.0
          %v9383 = vmax.f32 %v9244, 0.0
          %v9384 = vmax.f32 %v9246, 0.0
          %v9385 = vmax.f32 %v9248, 0.0
          %v9386 = vmax.f32 %v9252, 0.0
          %v9387 = vmax.f32 %v9254, 0.0
          %v9388 = vmax.f32 %v9256, 0.0
          %v9389 = vmax.f32 %v9258, 0.0
          %v9390 = vmax.f32 %v9262, 0.0
          %v9391 = vmax.f32 %v9264, 0.0
          %v9392 = vmax.f32 %v9266, 0.0
          %v9393 = vmax.f32 %v9268, 0.0
          %v9394 = vmax.f32 %v9272, 0.0
          %v9395 = vmax.f32 %v9274, 0.0
          %v9396 = vmax.f32 %v9276, 0.0
          %v9397 = vmax.f32 %v9278, 0.0
          %v9398 = vmax.f32 %v9282, 0.0
          %v9399 = vmax.f32 %v9284, 0.0
          %v9400 = vmax.f32 %v9286, 0.0
          %v9401 = vmax.f32 %v9288, 0.0
          %v9402 = vmax.f32 %v9292, 0.0
          %v9403 = vmax.f32 %v9294, 0.0
          %v9404 = vmax.f32 %v9296, 0.0
          %v9405 = vmax.f32 %v9298, 0.0
          %v9406 = vmax.f32 %v9302, 0.0
          %v9407 = vmax.f32 %v9304, 0.0
          %v9408 = vmax.f32 %v9306, 0.0
          %v9409 = vmax.f32 %v9308, 0.0
          %v9410 = vmax.f32 %v9312, 0.0
          %v9411 = vmax.f32 %v9314, 0.0
          %v9412 = vmax.f32 %v9316, 0.0
          %v9413 = vmax.f32 %v9318, 0.0
          %v9414 = vmax.f32 %v9322, 0.0
          %v9415 = vmax.f32 %v9324, 0.0
          %v9416 = vmax.f32 %v9326, 0.0
          %v9417 = vmax.f32 %v9328, 0.0
          %v9418 = vmax.f32 %v9332, 0.0
          %v9419 = vmax.f32 %v9334, 0.0
          %v9420 = vmax.f32 %v9336, 0.0
          %v9421 = vmax.f32 %v9338, 0.0
          %v9422 = vmax.f32 %v9342, 0.0
          %v9423 = vmax.f32 %v9344, 0.0
          %v9424 = vmax.f32 %v9346, 0.0
          %v9425 = vmax.f32 %v9348, 0.0
          %v9426 = vmax.f32 %v9352, 0.0
          %v9427 = vmax.f32 %v9354, 0.0
          %v9428 = vmax.f32 %v9356, 0.0
          %v9429 = vmax.f32 %v9358, 0.0
          %v9430 = vmax.f32 %v9362, 0.0
          %v9431 = vmax.f32 %v9364, 0.0
          %v9432 = vmax.f32 %v9366, 0.0
          %v9433 = vmax.f32 %v9368, 0.0
          %v9434 = vpack.c.bf16 %v9372, %v9370
          %v9435 = vpack.c.bf16 %v9373, %v9371
          %v9436 = vpack.c.bf16 %v9376, %v9374
          %v9437 = vpack.c.bf16 %v9377, %v9375
          %v9438 = vpack.c.bf16 %v9380, %v9378
          %v9439 = vpack.c.bf16 %v9381, %v9379
          %v9440 = vpack.c.bf16 %v9384, %v9382
          %v9441 = vpack.c.bf16 %v9385, %v9383
          %v9442 = vpack.c.bf16 %v9388, %v9386
          %v9443 = vpack.c.bf16 %v9389, %v9387
          %v9444 = vpack.c.bf16 %v9392, %v9390
          %v9445 = vpack.c.bf16 %v9393, %v9391
          %v9446 = vpack.c.bf16 %v9396, %v9394
          %v9447 = vpack.c.bf16 %v9397, %v9395
          %v9448 = vpack.c.bf16 %v9400, %v9398
          %v9449 = vpack.c.bf16 %v9401, %v9399
          %v9450 = vpack.c.bf16 %v9404, %v9402
          %v9451 = vpack.c.bf16 %v9405, %v9403
          %v9452 = vpack.c.bf16 %v9408, %v9406
          %v9453 = vpack.c.bf16 %v9409, %v9407
          %v9454 = vpack.c.bf16 %v9412, %v9410
          %v9455 = vpack.c.bf16 %v9413, %v9411
          %v9456 = vpack.c.bf16 %v9416, %v9414
          %v9457 = vpack.c.bf16 %v9417, %v9415
          %v9458 = vpack.c.bf16 %v9420, %v9418
          %v9459 = vpack.c.bf16 %v9421, %v9419
          %v9460 = vpack.c.bf16 %v9424, %v9422
          %v9461 = vpack.c.bf16 %v9425, %v9423
          %v9462 = vpack.c.bf16 %v9428, %v9426
          %v9463 = vpack.c.bf16 %v9429, %v9427
          %v9464 = vpack.c.bf16 %v9432, %v9430
          %v9465 = vpack.c.bf16 %v9433, %v9431
          %v9466 = vld [vmem:[#allocation12] sm:$0xf]
          %v9467 = vld [vmem:[#allocation12 + $0x4] sm:$0xf]
          %v9468 = vld [vmem:[#allocation12 + $0x8] sm:$0xf]
          %v9469 = vld [vmem:[#allocation12 + $0xc] sm:$0xf]
          %v9470 = vld [vmem:[#allocation12 + $0x10] sm:$0xf]
          %v9471 = vld [vmem:[#allocation12 + $0x14] sm:$0xf]
          %v9472 = vld [vmem:[#allocation12 + $0x18] sm:$0xf]
          %v9473 = vld [vmem:[#allocation12 + $0x1c] sm:$0xf]
          %v9474 = vld [vmem:[#allocation12 + $0x20] sm:$0xf]
          %v9475 = vld [vmem:[#allocation12 + $0x24] sm:$0xf]
          %v9476 = vld [vmem:[#allocation12 + $0x28] sm:$0xf]
          %v9477 = vld [vmem:[#allocation12 + $0x2c] sm:$0xf]
          %v9478 = vld [vmem:[#allocation12 + $0x30] sm:$0xf]
          %v9479 = vld [vmem:[#allocation12 + $0x34] sm:$0xf]
          %v9480 = vld [vmem:[#allocation12 + $0x38] sm:$0xf]
          %v9481 = vld [vmem:[#allocation12 + $0x3c] sm:$0xf]
          %v9482 = vld [vmem:[#allocation12 + $0x40] sm:$0xf]
          %v9483 = vld [vmem:[#allocation12 + $0x44] sm:$0xf]
          %v9484 = vld [vmem:[#allocation12 + $0x48] sm:$0xf]
          %v9485 = vld [vmem:[#allocation12 + $0x4c] sm:$0xf]
          %v9486 = vld [vmem:[#allocation12 + $0x50] sm:$0xf]
          %v9487 = vld [vmem:[#allocation12 + $0x54] sm:$0xf]
          %v9488 = vld [vmem:[#allocation12 + $0x58] sm:$0xf]
          %v9489 = vld [vmem:[#allocation12 + $0x5c] sm:$0xf]
          %v9490 = vld [vmem:[#allocation12 + $0x60] sm:$0xf]
          %v9491 = vld [vmem:[#allocation12 + $0x64] sm:$0xf]
          %v9492 = vld [vmem:[#allocation12 + $0x68] sm:$0xf]
          %v9493 = vld [vmem:[#allocation12 + $0x6c] sm:$0xf]
          %v9494 = vld [vmem:[#allocation12 + $0x70] sm:$0xf]
          %v9495 = vld [vmem:[#allocation12 + $0x74] sm:$0xf]
          %v9496 = vld [vmem:[#allocation12 + $0x78] sm:$0xf]
          %v9497 = vld [vmem:[#allocation12 + $0x7c] sm:$0xf]
          %v9498 = vld [vmem:[#allocation14] sm:$0x1]
          %v9500 = vlaneseq
          %v9501 = vshrl.u32 %v9500, 7
          %v9502 = vsub.s32 0, %v9501
          %v9503 = vrot.slane %v9498, %v9502
          %v9537 = vunpack.c.l.b16 %v9466
          %v9538 = vunpack.c.l.b16 %v9467
          %v9539 = vunpack.c.l.b16 %v9468
          %v9540 = vunpack.c.l.b16 %v9469
          %v9541 = vunpack.c.l.b16 %v9470
          %v9542 = vunpack.c.l.b16 %v9471
          %v9543 = vunpack.c.l.b16 %v9472
          %v9544 = vunpack.c.l.b16 %v9473
          %v9545 = vunpack.c.l.b16 %v9474
          %v9546 = vunpack.c.l.b16 %v9475
          %v9547 = vunpack.c.l.b16 %v9476
          %v9548 = vunpack.c.l.b16 %v9477
          %v9549 = vunpack.c.l.b16 %v9478
          %v9550 = vunpack.c.l.b16 %v9479
          %v9551 = vunpack.c.l.b16 %v9480
          %v9552 = vunpack.c.l.b16 %v9481
          %v9553 = vunpack.c.l.b16 %v9482
          %v9554 = vunpack.c.l.b16 %v9483
          %v9555 = vunpack.c.l.b16 %v9484
          %v9556 = vunpack.c.l.b16 %v9485
          %v9557 = vunpack.c.l.b16 %v9486
          %v9558 = vunpack.c.l.b16 %v9487
          %v9559 = vunpack.c.l.b16 %v9488
          %v9560 = vunpack.c.l.b16 %v9489
          %v9561 = vunpack.c.l.b16 %v9490
          %v9562 = vunpack.c.l.b16 %v9491
          %v9563 = vunpack.c.l.b16 %v9492
          %v9564 = vunpack.c.l.b16 %v9493
          %v9565 = vunpack.c.l.b16 %v9494
          %v9566 = vunpack.c.l.b16 %v9495
          %v9567 = vunpack.c.l.b16 %v9496
          %v9568 = vunpack.c.l.b16 %v9497
          %v9569 = vpack.c.b16 %v9538, %v9537
          %v9570 = vpack.c.b16 %v9540, %v9539
          %v9571 = vpack.c.b16 %v9542, %v9541
          %v9572 = vpack.c.b16 %v9544, %v9543
          %v9573 = vpack.c.b16 %v9546, %v9545
          %v9574 = vpack.c.b16 %v9548, %v9547
          %v9575 = vpack.c.b16 %v9550, %v9549
          %v9576 = vpack.c.b16 %v9552, %v9551
          %v9577 = vpack.c.b16 %v9554, %v9553
          %v9578 = vpack.c.b16 %v9556, %v9555
          %v9579 = vpack.c.b16 %v9558, %v9557
          %v9580 = vpack.c.b16 %v9560, %v9559
          %v9581 = vpack.c.b16 %v9562, %v9561
          %v9582 = vpack.c.b16 %v9564, %v9563
          %v9583 = vpack.c.b16 %v9566, %v9565
          %v9584 = vpack.c.b16 %v9568, %v9567
          %9601 = vmatprep.subr.bf16.mxu0 0
          %9602 = vmatpush1.bf16.msra.mxu0 %v9569
          %9603 = vmatprep.subr.bf16.mxu0 0
          %9604 = vmatpush1.bf16.msra.mxu0 %v9570
          %9605 = vmatprep.subr.bf16.mxu0 0
          %9606 = vmatpush1.bf16.msra.mxu0 %v9571
          %9607 = vmatprep.subr.bf16.mxu0 0
          %9608 = vmatpush1.bf16.msra.mxu0 %v9572
          %9609 = vmatprep.subr.bf16.mxu0 0
          %9610 = vmatpush1.bf16.msra.mxu0 %v9573
          %9611 = vmatprep.subr.bf16.mxu0 0
          %9612 = vmatpush1.bf16.msra.mxu0 %v9574
          %9613 = vmatprep.subr.bf16.mxu0 0
          %9614 = vmatpush1.bf16.msra.mxu0 %v9575
          %9615 = vmatprep.subr.bf16.mxu0 0
          %9616 = vmatpush1.bf16.msra.mxu0 %v9576
          %9617 = vmatprep.subr.bf16.mxu0 0
          %9618 = vmatpush1.bf16.msra.mxu0 %v9577
          %9619 = vmatprep.subr.bf16.mxu0 0
          %9620 = vmatpush1.bf16.msra.mxu0 %v9578
          %9621 = vmatprep.subr.bf16.mxu0 0
          %9622 = vmatpush1.bf16.msra.mxu0 %v9579
          %9623 = vmatprep.subr.bf16.mxu0 0
          %9624 = vmatpush1.bf16.msra.mxu0 %v9580
          %9625 = vmatprep.subr.bf16.mxu0 0
          %9626 = vmatpush1.bf16.msra.mxu0 %v9581
          %9627 = vmatprep.subr.bf16.mxu0 0
          %9628 = vmatpush1.bf16.msra.mxu0 %v9582
          %9629 = vmatprep.subr.bf16.mxu0 0
          %9630 = vmatpush1.bf16.msra.mxu0 %v9583
          %9631 = vmatprep.subr.bf16.mxu0 0
          %9632 = vmatpush1.bf16.msra.mxu0 %v9584
          %9633 = vmatprep.mubr.bf16.mxu0 %v9435
          %9634 = vmatmul.mubr.bf16.gmra.mrb[0].mxu0 %v9434
          %v9635 = vpop.f32.mrb[0].mxu0
          %v9636 = vadd.f32 %v9503, %v9635
          %v9637 = vpop.f32.mrb[0].mxu0
          %v9638 = vpop.f32.mrb[0].mxu0
          %v9639 = vadd.f32 %v9503, %v9638
          %v9640 = vpop.f32.mrb[0].mxu0
          %9641 = vmatprep.mubr.bf16.mxu0 %v9437
          %9642 = vmatmul.mubr.bf16.gmra.mrb[0].mxu0 %v9436
          %v9643 = vpop.f32.mrb[0].mxu0
          %v9644 = vadd.f32 %v9503, %v9643
          %v9645 = vpop.f32.mrb[0].mxu0
          %v9646 = vpop.f32.mrb[0].mxu0
          %v9647 = vadd.f32 %v9503, %v9646
          %v9648 = vpop.f32.mrb[0].mxu0
          %9649 = vmatprep.mubr.bf16.mxu0 %v9439
          %9650 = vmatmul.mubr.bf16.gmra.mrb[0].mxu0 %v9438
          %v9651 = vpop.f32.mrb[0].mxu0
          %v9652 = vadd.f32 %v9503, %v9651
          %v9653 = vpop.f32.mrb[0].mxu0
          %v9654 = vpop.f32.mrb[0].mxu0
          %v9655 = vadd.f32 %v9503, %v9654
          %v9656 = vpop.f32.mrb[0].mxu0
          %9657 = vmatprep.mubr.bf16.mxu0 %v9441
          %9658 = vmatmul.mubr.bf16.gmra.mrb[0].mxu0 %v9440
          %v9659 = vpop.f32.mrb[0].mxu0
          %v9660 = vadd.f32 %v9503, %v9659
          %v9661 = vpop.f32.mrb[0].mxu0
          %v9662 = vpop.f32.mrb[0].mxu0
          %v9663 = vadd.f32 %v9503, %v9662
          %v9664 = vpop.f32.mrb[0].mxu0
          %9665 = vmatprep.mubr.bf16.mxu0 %v9443
          %9666 = vmatmul.mubr.bf16.gmra.mrb[0].mxu0 %v9442
          %v9667 = vpop.f32.mrb[0].mxu0
          %v9668 = vadd.f32 %v9503, %v9667
          %v9669 = vpop.f32.mrb[0].mxu0
          %v9670 = vpop.f32.mrb[0].mxu0
          %v9671 = vadd.f32 %v9503, %v9670
          %v9672 = vpop.f32.mrb[0].mxu0
          %9673 = vmatprep.mubr.bf16.mxu0 %v9445
          %9674 = vmatmul.mubr.bf16.gmra.mrb[0].mxu0 %v9444
          %v9675 = vpop.f32.mrb[0].mxu0
          %v9676 = vadd.f32 %v9503, %v9675
          %v9677 = vpop.f32.mrb[0].mxu0
          %v9678 = vpop.f32.mrb[0].mxu0
          %v9679 = vadd.f32 %v9503, %v9678
          %v9680 = vpop.f32.mrb[0].mxu0
          %9681 = vmatprep.mubr.bf16.mxu0 %v9447
          %9682 = vmatmul.mubr.bf16.gmra.mrb[0].mxu0 %v9446
          %v9683 = vpop.f32.mrb[0].mxu0
          %v9684 = vadd.f32 %v9503, %v9683
          %v9685 = vpop.f32.mrb[0].mxu0
          %v9686 = vpop.f32.mrb[0].mxu0
          %v9687 = vadd.f32 %v9503, %v9686
          %v9688 = vpop.f32.mrb[0].mxu0
          %9689 = vmatprep.mubr.bf16.mxu0 %v9449
          %9690 = vmatmul.mubr.bf16.gmra.mrb[0].mxu0 %v9448
          %v9691 = vpop.f32.mrb[0].mxu0
          %v9692 = vadd.f32 %v9503, %v9691
          %v9693 = vpop.f32.mrb[0].mxu0
          %v9694 = vpop.f32.mrb[0].mxu0
          %v9695 = vadd.f32 %v9503, %v9694
          %v9696 = vpop.f32.mrb[0].mxu0
          %9697 = vmatprep.mubr.bf16.mxu0 %v9451
          %9698 = vmatmul.mubr.bf16.gmra.mrb[0].mxu0 %v9450
          %v9699 = vpop.f32.mrb[0].mxu0
          %v9700 = vadd.f32 %v9503, %v9699
          %v9701 = vpop.f32.mrb[0].mxu0
          %v9702 = vpop.f32.mrb[0].mxu0
          %v9703 = vadd.f32 %v9503, %v9702
          %v9704 = vpop.f32.mrb[0].mxu0
          %9705 = vmatprep.mubr.bf16.mxu0 %v9453
          %9706 = vmatmul.mubr.bf16.gmra.mrb[0].mxu0 %v9452
          %v9707 = vpop.f32.mrb[0].mxu0
          %v9708 = vadd.f32 %v9503, %v9707
          %v9709 = vpop.f32.mrb[0].mxu0
          %v9710 = vpop.f32.mrb[0].mxu0
          %v9711 = vadd.f32 %v9503, %v9710
          %v9712 = vpop.f32.mrb[0].mxu0
          %9713 = vmatprep.mubr.bf16.mxu0 %v9455
          %9714 = vmatmul.mubr.bf16.gmra.mrb[0].mxu0 %v9454
          %v9715 = vpop.f32.mrb[0].mxu0
          %v9716 = vadd.f32 %v9503, %v9715
          %v9717 = vpop.f32.mrb[0].mxu0
          %v9718 = vpop.f32.mrb[0].mxu0
          %v9719 = vadd.f32 %v9503, %v9718
          %v9720 = vpop.f32.mrb[0].mxu0
          %9721 = vmatprep.mubr.bf16.mxu0 %v9457
          %9722 = vmatmul.mubr.bf16.gmra.mrb[0].mxu0 %v9456
          %v9723 = vpop.f32.mrb[0].mxu0
          %v9724 = vadd.f32 %v9503, %v9723
          %v9725 = vpop.f32.mrb[0].mxu0
          %v9726 = vpop.f32.mrb[0].mxu0
          %v9727 = vadd.f32 %v9503, %v9726
          %v9728 = vpop.f32.mrb[0].mxu0
          %9729 = vmatprep.mubr.bf16.mxu0 %v9459
          %9730 = vmatmul.mubr.bf16.gmra.mrb[0].mxu0 %v9458
          %v9731 = vpop.f32.mrb[0].mxu0
          %v9732 = vadd.f32 %v9503, %v9731
          %v9733 = vpop.f32.mrb[0].mxu0
          %v9734 = vpop.f32.mrb[0].mxu0
          %v9735 = vadd.f32 %v9503, %v9734
          %v9736 = vpop.f32.mrb[0].mxu0
          %9737 = vmatprep.mubr.bf16.mxu0 %v9461
          %9738 = vmatmul.mubr.bf16.gmra.mrb[0].mxu0 %v9460
          %v9739 = vpop.f32.mrb[0].mxu0
          %v9740 = vadd.f32 %v9503, %v9739
          %v9741 = vpop.f32.mrb[0].mxu0
          %v9742 = vpop.f32.mrb[0].mxu0
          %v9743 = vadd.f32 %v9503, %v9742
          %v9744 = vpop.f32.mrb[0].mxu0
          %9745 = vmatprep.mubr.bf16.mxu0 %v9463
          %9746 = vmatmul.mubr.bf16.gmra.mrb[0].mxu0 %v9462
          %v9747 = vpop.f32.mrb[0].mxu0
          %v9748 = vadd.f32 %v9503, %v9747
          %v9749 = vpop.f32.mrb[0].mxu0
          %v9750 = vpop.f32.mrb[0].mxu0
          %v9751 = vadd.f32 %v9503, %v9750
          %v9752 = vpop.f32.mrb[0].mxu0
          %9753 = vmatprep.mubr.bf16.mxu0 %v9465
          %9754 = vmatmul.mubr.bf16.gmra.mrb[0].mxu0 %v9464
          %v9755 = vpop.f32.mrb[0].mxu0
          %v9756 = vadd.f32 %v9503, %v9755
          %v9757 = vpop.f32.mrb[0].mxu0
          %v9758 = vpop.f32.mrb[0].mxu0
          %v9759 = vadd.f32 %v9503, %v9758
          %v9760 = vpop.f32.mrb[0].mxu0
          %9761 = vdwg.mxu0
          %9762 = vst [vmem:[#allocation15] sm:$0xff] %v9636
          %9763 = vst [vmem:[#allocation15 + $0x8] sm:$0xff] %v9639
          %9764 = vst [vmem:[#allocation15 + $0x10] sm:$0xff] %v9644
          %9765 = vst [vmem:[#allocation15 + $0x18] sm:$0xff] %v9647
          %9766 = vst [vmem:[#allocation15 + $0x20] sm:$0xff] %v9652
          %9767 = vst [vmem:[#allocation15 + $0x28] sm:$0xff] %v9655
          %9768 = vst [vmem:[#allocation15 + $0x30] sm:$0xff] %v9660
          %9769 = vst [vmem:[#allocation15 + $0x38] sm:$0xff] %v9663
          %9770 = vst [vmem:[#allocation15 + $0x40] sm:$0xff] %v9668
          %9771 = vst [vmem:[#allocation15 + $0x48] sm:$0xff] %v9671
          %9772 = vst [vmem:[#allocation15 + $0x50] sm:$0xff] %v9676
          %9773 = vst [vmem:[#allocation15 + $0x58] sm:$0xff] %v9679
          %9774 = vst [vmem:[#allocation15 + $0x60] sm:$0xff] %v9684
          %9775 = vst [vmem:[#allocation15 + $0x68] sm:$0xff] %v9687
          %9776 = vst [vmem:[#allocation15 + $0x70] sm:$0xff] %v9692
          %9777 = vst [vmem:[#allocation15 + $0x78] sm:$0xff] %v9695
          %9778 = vst [vmem:[#allocation15 + $0x80] sm:$0xff] %v9700
          %9779 = vst [vmem:[#allocation15 + $0x88] sm:$0xff] %v9703
          %9780 = vst [vmem:[#allocation15 + $0x90] sm:$0xff] %v9708
          %9781 = vst [vmem:[#allocation15 + $0x98] sm:$0xff] %v9711
          %9782 = vst [vmem:[#allocation15 + $0xa0] sm:$0xff] %v9716
          %9783 = vst [vmem:[#allocation15 + $0xa8] sm:$0xff] %v9719
          %9784 = vst [vmem:[#allocation15 + $0xb0] sm:$0xff] %v9724
          %9785 = vst [vmem:[#allocation15 + $0xb8] sm:$0xff] %v9727
          %9786 = vst [vmem:[#allocation15 + $0xc0] sm:$0xff] %v9732
          %9787 = vst [vmem:[#allocation15 + $0xc8] sm:$0xff] %v9735
          %9788 = vst [vmem:[#allocation15 + $0xd0] sm:$0xff] %v9740
          %9789 = vst [vmem:[#allocation15 + $0xd8] sm:$0xff] %v9743
          %9790 = vst [vmem:[#allocation15 + $0xe0] sm:$0xff] %v9748
          %9791 = vst [vmem:[#allocation15 + $0xe8] sm:$0xff] %v9751
          %9792 = vst [vmem:[#allocation15 + $0xf0] sm:$0xff] %v9756
          %9793 = vst [vmem:[#allocation15 + $0xf8] sm:$0xff] %v9759
        $region84: #{tpu_custom_call.1} parent=47 // pred_fallthru
          _
        // Predicated region
        $region85: #{tpu_custom_call.1} parent=47 // pred_check
          %p9794 = pneg %p197
        $region86: #{tpu_custom_call.1} parent=47 // pred_check_branch
          %9796 = sbr.rel (%p9794) target = $region88
        $region87: #{tpu_custom_call.1} parent=47 // pred_region
          %s9798 = ssub.s32 4096, 4096
          %9799 = vsyncadd [#allocation5], %s9798
          %s9800 = sshll.u32 [#allocation15], 4
          %s9801 = int_to_ptr.vmem [resolvable:$true] %s9800
          %9806 = dma.vmem_to_hbm [thread:$0]  %s9801, 4096, %s7, [#allocation5], 128, 128, 8
        $region88: #{tpu_custom_call.1} parent=47 // pred_fallthru
          _
        // Predicated region
        $region89: #{tpu_custom_call.1} parent=47 // pred_check
          %p9807 = pneg %p197
        $region90: #{tpu_custom_call.1} parent=47 // pred_check_branch
          %9809 = sbr.rel (%p9807) target = $region92
        $region91: #{tpu_custom_call.1} parent=47 // pred_region
          %9810 = dma.done [#allocation5], 4096
        $region92: #{tpu_custom_call.1} parent=47 // pred_fallthru
          _
      $region48: #{tpu_custom_call.1} parent=5 // pred_fallthru
        _
      %p9811 = scmp.le.s32.totalorder 2, %s22
      // Predicated region
      $region93: #{tpu_custom_call.1} parent=5 // pred_check
        %p9812 = pneg %p9811
      $region94: #{tpu_custom_call.1} parent=5 // pred_check_branch
        %9814 = sbr.rel (%p9812) target = $region96
      $region95: #{tpu_custom_call.1} parent=5 // pred_region
        %s9815 = ssub.s32 %s22, 2
      $region96: #{tpu_custom_call.1} parent=5 // pred_fallthru
        _
    $region6: #{tpu_custom_call.1} parent=1 // loop_footer
      %s26 = sadd.s32 1, %s22
    $region7: #{tpu_custom_call.1} parent=1 // loop_footer_branch
      %21 = sbr.rel target = $region3
    $region8: #{tpu_custom_call.1} parent=1 // loop_exit
      _
    %9816 = vsyncpa [#allocation4], 1
    %s9817 = scalar_lea.sflag [#allocation4], 1
    %9818 = vsyncpa %s9817, 1
    %9819 = vsyncpa [#allocation7], 1
    %s9820 = scalar_lea.sflag [#allocation7], 1
    %9821 = vsyncpa %s9820, 1
    %9822 = vsyncpa [#allocation10], 1
    %9823 = vsyncpa [#allocation13], 1
    %9824 = vsyncpa [#allocation5], 1
    %s9825 = scalar_lea.sflag [#allocation5], 1
    %9826 = vsyncpa %s9825, 1

</llo_original>
